<compile_context>
chip_gen: v7x
topology: tpu7x:2x2x1
jax: 0.10.0
libtpu: 0.0.40
codegen_flags: <defaults>
</compile_context>

<pallas_src>
import functools

import jax
import jax.numpy as jnp
from jax import lax
from jax.experimental import pallas as pl
from jax.experimental.pallas import tpu as pltpu

NUM_CLASS = 5
K = 8            # k nearest neighbors (module default 20, shrunk for small shapes)
BIG = 1e30


# ---------------------------------------------------------------------------
# In-kernel DynamicEdgeConv: kNN (running top-K) + edge MLP + max aggregation.
# Everything stays in VMEM / vregs; neighbour gather is a one-hot matmul.
# ---------------------------------------------------------------------------
def _edge_conv(x, bcol, brow, w_a, w_b, b_first, rest):
    """x: (N, F) f32; bcol: (N,1) int32; brow: (1,N) int32.
    w_a/w_b: bf16 split first-layer weights (act on x_i and x_j - x_i).
    rest: list of (w_bf16, b_f32_row) for the remaining Lin+ReLU layers."""
    n = x.shape[0]
    xf = x.astype(jnp.float32)

    # Gram matrix x @ x.T without an explicit transpose.
    g = lax.dot_general(xf, xf, (((1,), (1,)), ((), ())),
                        preferred_element_type=jnp.float32)             # (N, N)
    row_i = lax.broadcasted_iota(jnp.int32, (n, n), 0)
    col_i = lax.broadcasted_iota(jnp.int32, (n, n), 1)
    # |x_j|^2 as a (1, N) row = diagonal of the Gram matrix (sublane reduce).
    sq_row = jnp.sum(jnp.where(row_i == col_i, g, 0.0), axis=0, keepdims=True)
    # Per-row ranking-equivalent squared distance (drops the constant |x_i|^2 term).
    d = sq_row - 2.0 * g
    d = jnp.where(bcol == brow, d, jnp.float32(BIG))     # mask cross-graph pairs

    colf = col_i.astype(jnp.float32)
    nf = jnp.float32(n)

    # x_i half of the split first layer: computed once, reused for all K neighbours.
    hi = jnp.dot(xf.astype(jnp.bfloat16), w_a,
                 preferred_element_type=jnp.float32) + b_first          # (N, C1)

    # Hoist remaining-layer bias broadcasts out of the K loop (no CSE in tracing).
    rest_b = [jnp.broadcast_to(b, (n, b.shape[-1])) for _, b in rest]

    c_out = rest[-1][0].shape[-1] if rest else w_a.shape[-1]
    acc = jnp.full((n, c_out), -jnp.float32(BIG), jnp.float32)

    d_work = d
    for _ in range(K):                                   # running top-K (k smallest)
        m = jnp.min(d_work, axis=-1, keepdims=True)
        eq = d_work <= m
        first = jnp.min(jnp.where(eq, colf, nf), axis=-1, keepdims=True)
        onehot = colf == first                           # exactly one hit per row
        d_work = jnp.where(onehot, jnp.float32(BIG), d_work)

        sel = onehot.astype(jnp.float32)
        xj = jnp.dot(sel, xf, preferred_element_type=jnp.float32)       # gather
        diff = (xj - xf).astype(jnp.bfloat16)
        h = hi + jnp.dot(diff, w_b, preferred_element_type=jnp.float32)
        h = jnp.maximum(h, 0.0)                          # Lin -> ReLU (BN identity)
        for li, (w, _) in enumerate(rest):
            h = jnp.dot(h.astype(jnp.bfloat16), w,
                        preferred_element_type=jnp.float32) + rest_b[li]
            h = jnp.maximum(h, 0.0)
        acc = jnp.maximum(acc, h)                        # aggr='max'
    return acc


# ---------------------------------------------------------------------------
# Kernel 1: one Siamese branch = conv1 -> conv2 -> global_max_pool.
# Grid axis 0 = branch index (parallel over TensorCores on v7x).
# ---------------------------------------------------------------------------
def _branch_kernel(x_ref, bcol_ref, brow_ref,
                   w1a_ref, w1b_ref, b1_ref, w2_ref, b2_ref, w3_ref, b3_ref,
                   w4a_ref, w4b_ref, b4_ref,
                   out_ref):
    x = x_ref[0]                                # (N, F) f32
    bcol = bcol_ref[0]                          # (N, 1) int32
    brow = brow_ref[0]                          # (1, N) int32
    num_graphs = out_ref.shape[1]

    # conv1: DynamicEdgeConv(MLP([2*6, 64, 64, 64]), K, 'max')
    h1 = _edge_conv(x, bcol, brow,
                    w1a_ref[...], w1b_ref[...], b1_ref[...],
                    [(w2_ref[...], b2_ref[...]), (w3_ref[...], b3_ref[...])])
    # conv2: DynamicEdgeConv(MLP([2*64, 256]), K, 'max')
    h2 = _edge_conv(h1, bcol, brow,
                    w4a_ref[...], w4b_ref[...], b4_ref[...], [])

    # global_max_pool per graph (B static, tiny) -> single lane-dense store.
    pooled = []
    for gid in range(num_graphs):
        msk = bcol == gid                                            # (N, 1)
        pooled.append(jnp.max(jnp.where(msk, h2, -jnp.float32(BIG)),
                              axis=0, keepdims=True))                # (1, C)
    out_ref[0] = jnp.concatenate(pooled, axis=0)                     # (B, C)


# ---------------------------------------------------------------------------
# Kernel 2: tail = (b2_out - b1_out) -> MLP([256, 64]) -> Lin(64, 5) -> log_softmax
# ---------------------------------------------------------------------------
def _tail_kernel(pooled_ref, w1_ref, b1_ref, w2_ref, b2_ref, out_ref):
    diff = pooled_ref[1] - pooled_ref[0]                 # b2_out - b1_out, (B, 256)
    h = jnp.dot(diff.astype(jnp.bfloat16), w1_ref[...],
                preferred_element_type=jnp.float32) + b1_ref[...]
    h = jnp.maximum(h, 0.0)                              # Dropout(0.5) identity (eval)
    logits = jnp.dot(h.astype(jnp.bfloat16), w2_ref[...],
                     preferred_element_type=jnp.float32) + b2_ref[...]
    m = jnp.max(logits, axis=-1, keepdims=True)
    s = logits - m
    lse = jnp.log(jnp.sum(jnp.exp(s), axis=-1, keepdims=True))
    out_ref[...] = s - lse


# ---------------------------------------------------------------------------
# Forward wrapper: stack both branches, two pallas_calls total.
# ---------------------------------------------------------------------------
def net2_forward(params, x, batch, x2, batch2, num_graphs):
    n, f = x.shape
    x_both = jnp.stack([x, x2], axis=0).astype(jnp.float32)                 # (2,N,F)
    b_both = jnp.stack([batch, batch2], axis=0).astype(jnp.int32)           # (2,N)
    bcol = b_both[:, :, None]                                               # (2,N,1)
    brow = b_both[:, None, :]                                               # (2,1,N)

    (w1, b1), (w2, b2), (w3, b3) = params["conv1"]
    (w4, b4), = params["conv2"]
    f_in = w1.shape[0] // 2
    c1 = w4.shape[0] // 2
    c_out = w4.shape[-1]

    bf16 = jnp.bfloat16
    wb = [
        w1[:f_in].astype(bf16), w1[f_in:].astype(bf16),
        b1.reshape(1, -1).astype(jnp.float32),
        w2.astype(bf16), b2.reshape(1, -1).astype(jnp.float32),
        w3.astype(bf16), b3.reshape(1, -1).astype(jnp.float32),
        w4[:c1].astype(bf16), w4[c1:].astype(bf16),
        b4.reshape(1, -1).astype(jnp.float32),
    ]

    branch_in_specs = [
        pl.BlockSpec((1, n, f), lambda br: (br, 0, 0)),
        pl.BlockSpec((1, n, 1), lambda br: (br, 0, 0)),
        pl.BlockSpec((1, 1, n), lambda br: (br, 0, 0)),
    ] + [pl.BlockSpec(a.shape, lambda br: (0, 0)) for a in wb]   # weights: same block

    pooled = pl.pallas_call(
        _branch_kernel,
        grid=(2,),
        in_specs=branch_in_specs,
        out_specs=pl.BlockSpec((1, num_graphs, c_out), lambda br: (br, 0, 0)),
        out_shape=jax.ShapeDtypeStruct((2, num_graphs, c_out), jnp.float32),
        compiler_params=pltpu.CompilerParams(
            dimension_semantics=("parallel",)),
    )(x_both, bcol, brow, *wb)

    (wh1, bh1), (wh2, bh2) = params["mlp2"]
    tail_in = [
        pooled,
        wh1.astype(bf16), bh1.reshape(1, -1).astype(jnp.float32),
        wh2.astype(bf16), bh2.reshape(1, -1).astype(jnp.float32),
    ]
    tail_in_specs = [
        pl.BlockSpec((2, num_graphs, c_out), lambda i: (0, 0, 0)),
        pl.BlockSpec(wh1.shape, lambda i: (0, 0)),
        pl.BlockSpec((1, wh1.shape[-1]), lambda i: (0, 0)),
        pl.BlockSpec(wh2.shape, lambda i: (0, 0)),
        pl.BlockSpec((1, wh2.shape[-1]), lambda i: (0, 0)),
    ]
    out = pl.pallas_call(
        _tail_kernel,
        grid=(1,),
        in_specs=tail_in_specs,
        out_specs=pl.BlockSpec((num_graphs, NUM_CLASS), lambda i: (0, 0)),
        out_shape=jax.ShapeDtypeStruct((num_graphs, NUM_CLASS), jnp.float32),
    )(*tail_in)
    return out


def init_params(key):
    def lin(k, fin, fout):
        kw, kb = jax.random.split(k)
        w = jax.random.normal(kw, (fin, fout), jnp.float32) * (1.0 / jnp.sqrt(fin))
        b = jax.random.normal(kb, (fout,), jnp.float32) * 0.01
        return w, b
    ks = jax.random.split(key, 6)
    conv1 = [lin(ks[0], 2 * 6, 64), lin(ks[1], 64, 64), lin(ks[2], 64, 64)]
    conv2 = [lin(ks[3], 2 * 64, 256)]
    mlp2 = [lin(ks[4], 256, 64), lin(ks[5], 64, NUM_CLASS)]
    return {"conv1": conv1, "conv2": conv2, "mlp2": mlp2}


if __name__ == "__main__":
    key = jax.random.PRNGKey(0)
    kp, kx1, kx2 = jax.random.split(key, 3)
    params = init_params(kp)

    B, N_PER_GRAPH, F_IN = 2, 32, 6
    N = B * N_PER_GRAPH
    x = jax.random.normal(kx1, (N, F_IN), jnp.float32)     # 2016 point cloud features
    x2 = jax.random.normal(kx2, (N, F_IN), jnp.float32)    # 2020 point cloud features
    batch = jnp.repeat(jnp.arange(B, dtype=jnp.int32), N_PER_GRAPH)
    batch2 = batch

    fwd = jax.jit(functools.partial(net2_forward, num_graphs=B))
    out = fwd(params, x, batch, x2, batch2)
    out = jax.block_until_ready(out)
    assert out.shape == (B, NUM_CLASS)
    assert bool(jnp.all(jnp.isfinite(out)))
    print("KERNEL_OK")
</pallas_src>

<mosaic_0001>
module attributes {stable_mosaic.version = 11 : i64} {
  func.func @_tail_kernel(%arg0: i32, %arg1: memref<2x2x256xf32, #tpu.memory_space<vmem>>, %arg2: memref<256x64xbf16, #tpu.memory_space<vmem>>, %arg3: memref<1x64xf32, #tpu.memory_space<vmem>>, %arg4: memref<64x5xbf16, #tpu.memory_space<vmem>>, %arg5: memref<1x5xf32, #tpu.memory_space<vmem>>, %arg6: memref<2x5xf32, #tpu.memory_space<vmem>>) attributes {dimension_semantics = [#tpu.dimension_semantics<arbitrary>], iteration_bounds = array<i64: 1>, scalar_prefetch = 0 : i64, scratch_operands = 0 : i64, tpu.core_type = #tpu.core_type<tc>, window_params = [{pipeline_mode = #tpu.pipeline_mode<synchronous>, transform_indices = @transform_0, window_bounds = array<i64: 2, 2, 256>}, {pipeline_mode = #tpu.pipeline_mode<synchronous>, transform_indices = @transform_1, window_bounds = array<i64: 256, 64>}, {pipeline_mode = #tpu.pipeline_mode<synchronous>, transform_indices = @transform_2, window_bounds = array<i64: 1, 64>}, {pipeline_mode = #tpu.pipeline_mode<synchronous>, transform_indices = @transform_3, window_bounds = array<i64: 64, 5>}, {pipeline_mode = #tpu.pipeline_mode<synchronous>, transform_indices = @transform_4, window_bounds = array<i64: 1, 5>}, {pipeline_mode = #tpu.pipeline_mode<synchronous>, transform_indices = @transform_5, window_bounds = array<i64: 2, 5>}]} {
    %c1 = arith.constant 1 : index
    %c0 = arith.constant 0 : index
    %c0_0 = arith.constant 0 : index
    %0 = vector.load %arg1[%c1, %c0, %c0_0] : memref<2x2x256xf32, #tpu.memory_space<vmem>>, vector<1x2x256xf32>
    %1 = vector.shape_cast %0 : vector<1x2x256xf32> to vector<2x256xf32>
    %c0_1 = arith.constant 0 : index
    %c0_2 = arith.constant 0 : index
    %c0_3 = arith.constant 0 : index
    %2 = vector.load %arg1[%c0_1, %c0_2, %c0_3] : memref<2x2x256xf32, #tpu.memory_space<vmem>>, vector<1x2x256xf32>
    %3 = vector.shape_cast %2 : vector<1x2x256xf32> to vector<2x256xf32>
    %4 = arith.subf %1, %3 : vector<2x256xf32>
    %5 = arith.truncf %4 : vector<2x256xf32> to vector<2x256xbf16>
    %c0_4 = arith.constant 0 : index
    %c0_5 = arith.constant 0 : index
    %6 = vector.load %arg2[%c0_4, %c0_5] : memref<256x64xbf16, #tpu.memory_space<vmem>>, vector<256x64xbf16>
    %cst = arith.constant dense<0.000000e+00> : vector<2x64xf32>
    %7 = tpu.matmul %5, %6, %cst {dimension_numbers = #tpu.dot_dimension_numbers<[1], [0], [0], [1], [0, 0, 1, 1], [], []>} : vector<2x256xbf16>, vector<256x64xbf16>, vector<2x64xf32> -> vector<2x64xf32>
    %c0_6 = arith.constant 0 : index
    %c0_7 = arith.constant 0 : index
    %8 = vector.load %arg3[%c0_6, %c0_7] : memref<1x64xf32, #tpu.memory_space<vmem>>, vector<1x64xf32>
    %9 = vector.broadcast %8 : vector<1x64xf32> to vector<2x64xf32>
    %10 = arith.addf %7, %9 : vector<2x64xf32>
    %cst_8 = arith.constant 0.000000e+00 : f32
    %11 = vector.broadcast %cst_8 : f32 to vector<2x64xf32>
    %12 = arith.maximumf %10, %11 : vector<2x64xf32>
    %13 = arith.truncf %12 : vector<2x64xf32> to vector<2x64xbf16>
    %c0_9 = arith.constant 0 : index
    %c0_10 = arith.constant 0 : index
    %14 = vector.load %arg4[%c0_9, %c0_10] : memref<64x5xbf16, #tpu.memory_space<vmem>>, vector<64x5xbf16>
    %cst_11 = arith.constant dense<0.000000e+00> : vector<2x5xf32>
    %15 = tpu.matmul %13, %14, %cst_11 {dimension_numbers = #tpu.dot_dimension_numbers<[1], [0], [0], [1], [0, 0, 1, 1], [], []>} : vector<2x64xbf16>, vector<64x5xbf16>, vector<2x5xf32> -> vector<2x5xf32>
    %c0_12 = arith.constant 0 : index
    %c0_13 = arith.constant 0 : index
    %16 = vector.load %arg5[%c0_12, %c0_13] : memref<1x5xf32, #tpu.memory_space<vmem>>, vector<1x5xf32>
    %17 = vector.broadcast %16 : vector<1x5xf32> to vector<2x5xf32>
    %18 = arith.addf %15, %17 : vector<2x5xf32>
    %cst_14 = arith.constant dense<0xFF800000> : vector<2xf32>
    %19 = vector.multi_reduction <maximumf>, %18, %cst_14 [1] : vector<2x5xf32> to vector<2xf32>
    %20 = vector.shape_cast %19 : vector<2xf32> to vector<2x1xf32>
    %21 = vector.broadcast %20 : vector<2x1xf32> to vector<2x5xf32>
    %22 = arith.subf %18, %21 : vector<2x5xf32>
    %23 = math.exp %22 : vector<2x5xf32>
    %cst_15 = arith.constant dense<0.000000e+00> : vector<2xf32>
    %24 = vector.multi_reduction <add>, %23, %cst_15 [1] : vector<2x5xf32> to vector<2xf32>
    %25 = vector.shape_cast %24 : vector<2xf32> to vector<2x1xf32>
    %26 = math.log %25 : vector<2x1xf32>
    %27 = vector.broadcast %26 : vector<2x1xf32> to vector<2x5xf32>
    %28 = arith.subf %22, %27 : vector<2x5xf32>
    %c0_16 = arith.constant 0 : index
    %c0_17 = arith.constant 0 : index
    %29 = vector.load %arg6[%c0_16, %c0_17] : memref<2x5xf32, #tpu.memory_space<vmem>>, vector<2x5xf32>
    tpu.vector_store %arg6[%c0_16, %c0_17], %28 {strides = array<i32>} : memref<2x5xf32, #tpu.memory_space<vmem>>, vector<2x5xf32>,
    return
  }
  func.func @transform_0(%arg0: i32) -> (i32, i32, i32) {
    %c0_i32 = arith.constant 0 : i32
    %c0_i32_0 = arith.constant 0 : i32
    %c0_i32_1 = arith.constant 0 : i32
    %c0_i32_2 = arith.constant 0 : i32
    return %c0_i32, %c0_i32_0, %c0_i32_1 : i32, i32, i32
  }
  func.func @transform_1(%arg0: i32) -> (i32, i32) {
    %c0_i32 = arith.constant 0 : i32
    %c0_i32_0 = arith.constant 0 : i32
    %c0_i32_1 = arith.constant 0 : i32
    return %c0_i32, %c0_i32_0 : i32, i32
  }
  func.func @transform_2(%arg0: i32) -> (i32, i32) {
    %c0_i32 = arith.constant 0 : i32
    %c0_i32_0 = arith.constant 0 : i32
    %c0_i32_1 = arith.constant 0 : i32
    return %c0_i32, %c0_i32_0 : i32, i32
  }
  func.func @transform_3(%arg0: i32) -> (i32, i32) {
    %c0_i32 = arith.constant 0 : i32
    %c0_i32_0 = arith.constant 0 : i32
    %c0_i32_1 = arith.constant 0 : i32
    return %c0_i32, %c0_i32_0 : i32, i32
  }
  func.func @transform_4(%arg0: i32) -> (i32, i32) {
    %c0_i32 = arith.constant 0 : i32
    %c0_i32_0 = arith.constant 0 : i32
    %c0_i32_1 = arith.constant 0 : i32
    return %c0_i32, %c0_i32_0 : i32, i32
  }
  func.func @transform_5(%arg0: i32) -> (i32, i32) {
    %c0_i32 = arith.constant 0 : i32
    %c0_i32_0 = arith.constant 0 : i32
    %c0_i32_1 = arith.constant 0 : i32
    return %c0_i32, %c0_i32_0 : i32, i32
  }
}

module attributes {stable_mosaic.version = 11 : i64} {
  func.func @_branch_kernel(%arg0: i32, %arg1: memref<1x64x6xf32, #tpu.memory_space<vmem>>, %arg2: memref<1x64x1xi32, #tpu.memory_space<vmem>>, %arg3: memref<1x1x64xi32, #tpu.memory_space<vmem>>, %arg4: memref<6x64xbf16, #tpu.memory_space<vmem>>, %arg5: memref<6x64xbf16, #tpu.memory_space<vmem>>, %arg6: memref<1x64xf32, #tpu.memory_space<vmem>>, %arg7: memref<64x64xbf16, #tpu.memory_space<vmem>>, %arg8: memref<1x64xf32, #tpu.memory_space<vmem>>, %arg9: memref<64x64xbf16, #tpu.memory_space<vmem>>, %arg10: memref<1x64xf32, #tpu.memory_space<vmem>>, %arg11: memref<64x256xbf16, #tpu.memory_space<vmem>>, %arg12: memref<64x256xbf16, #tpu.memory_space<vmem>>, %arg13: memref<1x256xf32, #tpu.memory_space<vmem>>, %arg14: memref<1x2x256xf32, #tpu.memory_space<vmem>>) attributes {dimension_semantics = [#tpu.dimension_semantics<parallel>], iteration_bounds = array<i64: 2>, scalar_prefetch = 0 : i64, scratch_operands = 0 : i64, tpu.core_type = #tpu.core_type<tc>, window_params = [{transform_indices = @transform_0, window_bounds = array<i64: 1, 64, 6>}, {transform_indices = @transform_1, window_bounds = array<i64: 1, 64, 1>}, {transform_indices = @transform_2, window_bounds = array<i64: 1, 1, 64>}, {pipeline_mode = #tpu.pipeline_mode<synchronous>, transform_indices = @transform_3, window_bounds = array<i64: 6, 64>}, {pipeline_mode = #tpu.pipeline_mode<synchronous>, transform_indices = @transform_4, window_bounds = array<i64: 6, 64>}, {pipeline_mode = #tpu.pipeline_mode<synchronous>, transform_indices = @transform_5, window_bounds = array<i64: 1, 64>}, {pipeline_mode = #tpu.pipeline_mode<synchronous>, transform_indices = @transform_6, window_bounds = array<i64: 64, 64>}, {pipeline_mode = #tpu.pipeline_mode<synchronous>, transform_indices = @transform_7, window_bounds = array<i64: 1, 64>}, {pipeline_mode = #tpu.pipeline_mode<synchronous>, transform_indices = @transform_8, window_bounds = array<i64: 64, 64>}, {pipeline_mode = #tpu.pipeline_mode<synchronous>, transform_indices = @transform_9, window_bounds = array<i64: 1, 64>}, {pipeline_mode = #tpu.pipeline_mode<synchronous>, transform_indices = @transform_10, window_bounds = array<i64: 64, 256>}, {pipeline_mode = #tpu.pipeline_mode<synchronous>, transform_indices = @transform_11, window_bounds = array<i64: 64, 256>}, {pipeline_mode = #tpu.pipeline_mode<synchronous>, transform_indices = @transform_12, window_bounds = array<i64: 1, 256>}, {transform_indices = @transform_13, window_bounds = array<i64: 1, 2, 256>}]} {
    %c0 = arith.constant 0 : index
    %c0_0 = arith.constant 0 : index
    %c0_1 = arith.constant 0 : index
    %0 = vector.load %arg1[%c0, %c0_0, %c0_1] : memref<1x64x6xf32, #tpu.memory_space<vmem>>, vector<1x64x6xf32>
    %1 = vector.shape_cast %0 : vector<1x64x6xf32> to vector<64x6xf32>
    %c0_2 = arith.constant 0 : index
    %c0_3 = arith.constant 0 : index
    %c0_4 = arith.constant 0 : index
    %2 = vector.load %arg2[%c0_2, %c0_3, %c0_4] : memref<1x64x1xi32, #tpu.memory_space<vmem>>, vector<1x64x1xi32>
    %3 = vector.shape_cast %2 : vector<1x64x1xi32> to vector<64x1xi32>
    %c0_5 = arith.constant 0 : index
    %c0_6 = arith.constant 0 : index
    %c0_7 = arith.constant 0 : index
    %4 = vector.load %arg3[%c0_5, %c0_6, %c0_7] : memref<1x1x64xi32, #tpu.memory_space<vmem>>, vector<1x1x64xi32>
    %5 = vector.shape_cast %4 : vector<1x1x64xi32> to vector<1x64xi32>
    %c0_8 = arith.constant 0 : index
    %c0_9 = arith.constant 0 : index
    %6 = vector.load %arg4[%c0_8, %c0_9] : memref<6x64xbf16, #tpu.memory_space<vmem>>, vector<6x64xbf16>
    %c0_10 = arith.constant 0 : index
    %c0_11 = arith.constant 0 : index
    %7 = vector.load %arg5[%c0_10, %c0_11] : memref<6x64xbf16, #tpu.memory_space<vmem>>, vector<6x64xbf16>
    %c0_12 = arith.constant 0 : index
    %c0_13 = arith.constant 0 : index
    %8 = vector.load %arg6[%c0_12, %c0_13] : memref<1x64xf32, #tpu.memory_space<vmem>>, vector<1x64xf32>
    %c0_14 = arith.constant 0 : index
    %c0_15 = arith.constant 0 : index
    %9 = vector.load %arg7[%c0_14, %c0_15] : memref<64x64xbf16, #tpu.memory_space<vmem>>, vector<64x64xbf16>
    %c0_16 = arith.constant 0 : index
    %c0_17 = arith.constant 0 : index
    %10 = vector.load %arg8[%c0_16, %c0_17] : memref<1x64xf32, #tpu.memory_space<vmem>>, vector<1x64xf32>
    %c0_18 = arith.constant 0 : index
    %c0_19 = arith.constant 0 : index
    %11 = vector.load %arg9[%c0_18, %c0_19] : memref<64x64xbf16, #tpu.memory_space<vmem>>, vector<64x64xbf16>
    %c0_20 = arith.constant 0 : index
    %c0_21 = arith.constant 0 : index
    %12 = vector.load %arg10[%c0_20, %c0_21] : memref<1x64xf32, #tpu.memory_space<vmem>>, vector<1x64xf32>
    %cst = arith.constant dense<0.000000e+00> : vector<64x64xf32>
    %13 = tpu.matmul %1, %1, %cst {dimension_numbers = #tpu.dot_dimension_numbers<[1], [1], [0], [0], [0, 0, 1, 0], [], []>} : vector<64x6xf32>, vector<64x6xf32>, vector<64x64xf32> -> vector<64x64xf32>
    %14 = tpu.iota {dimensions = array<i32: 0>} : vector<64x64xi32>
    %15 = tpu.iota {dimensions = array<i32: 1>} : vector<64x64xi32>
    %16 = arith.cmpi eq, %14, %15 : vector<64x64xi32>
    %cst_22 = arith.constant 0.000000e+00 : f32
    %17 = vector.broadcast %cst_22 : f32 to vector<64x64xf32>
    %18 = arith.select %16, %13, %17 : vector<64x64xi1>, vector<64x64xf32>
    %cst_23 = arith.constant dense<0.000000e+00> : vector<64xf32>
    %19 = vector.multi_reduction <add>, %18, %cst_23 [0] : vector<64x64xf32> to vector<64xf32>
    %20 = vector.shape_cast %19 : vector<64xf32> to vector<1x64xf32>
    %cst_24 = arith.constant 2.000000e+00 : f32
    %21 = vector.broadcast %cst_24 : f32 to vector<64x64xf32>
    %22 = arith.mulf %21, %13 : vector<64x64xf32>
    %23 = vector.broadcast %20 : vector<1x64xf32> to vector<64x64xf32>
    %24 = arith.subf %23, %22 : vector<64x64xf32>
    %25 = vector.broadcast %3 : vector<64x1xi32> to vector<64x64xi32>
    %26 = vector.broadcast %5 : vector<1x64xi32> to vector<64x64xi32>
    %27 = arith.cmpi eq, %25, %26 : vector<64x64xi32>
    %cst_25 = arith.constant 1.000000e+30 : f32
    %28 = vector.broadcast %cst_25 : f32 to vector<64x64xf32>
    %29 = arith.select %27, %24, %28 : vector<64x64xi1>, vector<64x64xf32>
    %30 = arith.sitofp %15 : vector<64x64xi32> to vector<64x64xf32>
    %31 = arith.truncf %1 : vector<64x6xf32> to vector<64x6xbf16>
    %cst_26 = arith.constant dense<0.000000e+00> : vector<64x64xf32>
    %32 = tpu.matmul %31, %6, %cst_26 {dimension_numbers = #tpu.dot_dimension_numbers<[1], [0], [0], [1], [0, 0, 1, 1], [], []>} : vector<64x6xbf16>, vector<6x64xbf16>, vector<64x64xf32> -> vector<64x64xf32>
    %33 = vector.broadcast %8 : vector<1x64xf32> to vector<64x64xf32>
    %34 = arith.addf %32, %33 : vector<64x64xf32>
    %35 = vector.shape_cast %10 : vector<1x64xf32> to vector<1x64xf32>
    %36 = vector.broadcast %35 : vector<1x64xf32> to vector<64x64xf32>
    %37 = vector.shape_cast %12 : vector<1x64xf32> to vector<1x64xf32>
    %38 = vector.broadcast %37 : vector<1x64xf32> to vector<64x64xf32>
    %cst_27 = arith.constant 0.000000e+00 : f32
    %cst_28 = arith.constant 1.000000e+30 : f32
    %39 = arith.subf %cst_27, %cst_28 : f32
    %40 = vector.broadcast %39 : f32 to vector<64x64xf32>
    %cst_29 = arith.constant dense<0x7F800000> : vector<64xf32>
    %41 = vector.multi_reduction <minimumf>, %29, %cst_29 [1] : vector<64x64xf32> to vector<64xf32>
    %42 = vector.shape_cast %41 : vector<64xf32> to vector<64x1xf32>
    %43 = vector.broadcast %42 : vector<64x1xf32> to vector<64x64xf32>
    %44 = arith.cmpf ole, %29, %43 : vector<64x64xf32>
    %cst_30 = arith.constant 6.400000e+01 : f32
    %45 = vector.broadcast %cst_30 : f32 to vector<64x64xf32>
    %46 = arith.select %44, %30, %45 : vector<64x64xi1>, vector<64x64xf32>
    %cst_31 = arith.constant dense<0x7F800000> : vector<64xf32>
    %47 = vector.multi_reduction <minimumf>, %46, %cst_31 [1] : vector<64x64xf32> to vector<64xf32>
    %48 = vector.shape_cast %47 : vector<64xf32> to vector<64x1xf32>
    %49 = vector.broadcast %48 : vector<64x1xf32> to vector<64x64xf32>
    %50 = arith.cmpf oeq, %30, %49 : vector<64x64xf32>
    %cst_32 = arith.constant 1.000000e+30 : f32
    %51 = vector.broadcast %cst_32 : f32 to vector<64x64xf32>
    %52 = arith.select %50, %51, %29 : vector<64x64xi1>, vector<64x64xf32>
    %53 = arith.extui %50 : vector<64x64xi1> to vector<64x64xi32>
    %54 = arith.sitofp %53 : vector<64x64xi32> to vector<64x64xf32>
    %cst_33 = arith.constant dense<0.000000e+00> : vector<64x6xf32>
    %55 = tpu.matmul %54, %1, %cst_33 {dimension_numbers = #tpu.dot_dimension_numbers<[1], [0], [0], [1], [0, 0, 1, 1], [], []>} : vector<64x64xf32>, vector<64x6xf32>, vector<64x6xf32> -> vector<64x6xf32>
    %56 = arith.subf %55, %1 : vector<64x6xf32>
    %57 = arith.truncf %56 : vector<64x6xf32> to vector<64x6xbf16>
    %cst_34 = arith.constant dense<0.000000e+00> : vector<64x64xf32>
    %58 = tpu.matmul %57, %7, %cst_34 {dimension_numbers = #tpu.dot_dimension_numbers<[1], [0], [0], [1], [0, 0, 1, 1], [], []>} : vector<64x6xbf16>, vector<6x64xbf16>, vector<64x64xf32> -> vector<64x64xf32>
    %59 = arith.addf %34, %58 : vector<64x64xf32>
    %cst_35 = arith.constant 0.000000e+00 : f32
    %60 = vector.broadcast %cst_35 : f32 to vector<64x64xf32>
    %61 = arith.maximumf %59, %60 : vector<64x64xf32>
    %62 = arith.truncf %61 : vector<64x64xf32> to vector<64x64xbf16>
    %cst_36 = arith.constant dense<0.000000e+00> : vector<64x64xf32>
    %63 = tpu.matmul %62, %9, %cst_36 {dimension_numbers = #tpu.dot_dimension_numbers<[1], [0], [0], [1], [0, 0, 1, 1], [], []>} : vector<64x64xbf16>, vector<64x64xbf16>, vector<64x64xf32> -> vector<64x64xf32>
    %64 = arith.addf %63, %36 : vector<64x64xf32>
    %cst_37 = arith.constant 0.000000e+00 : f32
    %65 = vector.broadcast %cst_37 : f32 to vector<64x64xf32>
    %66 = arith.maximumf %64, %65 : vector<64x64xf32>
    %67 = arith.truncf %66 : vector<64x64xf32> to vector<64x64xbf16>
    %cst_38 = arith.constant dense<0.000000e+00> : vector<64x64xf32>
    %68 = tpu.matmul %67, %11, %cst_38 {dimension_numbers = #tpu.dot_dimension_numbers<[1], [0], [0], [1], [0, 0, 1, 1], [], []>} : vector<64x64xbf16>, vector<64x64xbf16>, vector<64x64xf32> -> vector<64x64xf32>
    %69 = arith.addf %68, %38 : vector<64x64xf32>
    %cst_39 = arith.constant 0.000000e+00 : f32
    %70 = vector.broadcast %cst_39 : f32 to vector<64x64xf32>
    %71 = arith.maximumf %69, %70 : vector<64x64xf32>
    %72 = arith.maximumf %40, %71 : vector<64x64xf32>
    %cst_40 = arith.constant dense<0x7F800000> : vector<64xf32>
    %73 = vector.multi_reduction <minimumf>, %52, %cst_40 [1] : vector<64x64xf32> to vector<64xf32>
    %74 = vector.shape_cast %73 : vector<64xf32> to vector<64x1xf32>
    %75 = vector.broadcast %74 : vector<64x1xf32> to vector<64x64xf32>
    %76 = arith.cmpf ole, %52, %75 : vector<64x64xf32>
    %cst_41 = arith.constant 6.400000e+01 : f32
    %77 = vector.broadcast %cst_41 : f32 to vector<64x64xf32>
    %78 = arith.select %76, %30, %77 : vector<64x64xi1>, vector<64x64xf32>
    %cst_42 = arith.constant dense<0x7F800000> : vector<64xf32>
    %79 = vector.multi_reduction <minimumf>, %78, %cst_42 [1] : vector<64x64xf32> to vector<64xf32>
    %80 = vector.shape_cast %79 : vector<64xf32> to vector<64x1xf32>
    %81 = vector.broadcast %80 : vector<64x1xf32> to vector<64x64xf32>
    %82 = arith.cmpf oeq, %30, %81 : vector<64x64xf32>
    %cst_43 = arith.constant 1.000000e+30 : f32
    %83 = vector.broadcast %cst_43 : f32 to vector<64x64xf32>
    %84 = arith.select %82, %83, %52 : vector<64x64xi1>, vector<64x64xf32>
    %85 = arith.extui %82 : vector<64x64xi1> to vector<64x64xi32>
    %86 = arith.sitofp %85 : vector<64x64xi32> to vector<64x64xf32>
    %cst_44 = arith.constant dense<0.000000e+00> : vector<64x6xf32>
    %87 = tpu.matmul %86, %1, %cst_44 {dimension_numbers = #tpu.dot_dimension_numbers<[1], [0], [0], [1], [0, 0, 1, 1], [], []>} : vector<64x64xf32>, vector<64x6xf32>, vector<64x6xf32> -> vector<64x6xf32>
    %88 = arith.subf %87, %1 : vector<64x6xf32>
    %89 = arith.truncf %88 : vector<64x6xf32> to vector<64x6xbf16>
    %cst_45 = arith.constant dense<0.000000e+00> : vector<64x64xf32>
    %90 = tpu.matmul %89, %7, %cst_45 {dimension_numbers = #tpu.dot_dimension_numbers<[1], [0], [0], [1], [0, 0, 1, 1], [], []>} : vector<64x6xbf16>, vector<6x64xbf16>, vector<64x64xf32> -> vector<64x64xf32>
    %91 = arith.addf %34, %90 : vector<64x64xf32>
    %cst_46 = arith.constant 0.000000e+00 : f32
    %92 = vector.broadcast %cst_46 : f32 to vector<64x64xf32>
    %93 = arith.maximumf %91, %92 : vector<64x64xf32>
    %94 = arith.truncf %93 : vector<64x64xf32> to vector<64x64xbf16>
    %cst_47 = arith.constant dense<0.000000e+00> : vector<64x64xf32>
    %95 = tpu.matmul %94, %9, %cst_47 {dimension_numbers = #tpu.dot_dimension_numbers<[1], [0], [0], [1], [0, 0, 1, 1], [], []>} : vector<64x64xbf16>, vector<64x64xbf16>, vector<64x64xf32> -> vector<64x64xf32>
    %96 = arith.addf %95, %36 : vector<64x64xf32>
    %cst_48 = arith.constant 0.000000e+00 : f32
    %97 = vector.broadcast %cst_48 : f32 to vector<64x64xf32>
    %98 = arith.maximumf %96, %97 : vector<64x64xf32>
    %99 = arith.truncf %98 : vector<64x64xf32> to vector<64x64xbf16>
    %cst_49 = arith.constant dense<0.000000e+00> : vector<64x64xf32>
    %100 = tpu.matmul %99, %11, %cst_49 {dimension_numbers = #tpu.dot_dimension_numbers<[1], [0], [0], [1], [0, 0, 1, 1], [], []>} : vector<64x64xbf16>, vector<64x64xbf16>, vector<64x64xf32> -> vector<64x64xf32>
    %101 = arith.addf %100, %38 : vector<64x64xf32>
    %cst_50 = arith.constant 0.000000e+00 : f32
    %102 = vector.broadcast %cst_50 : f32 to vector<64x64xf32>
    %103 = arith.maximumf %101, %102 : vector<64x64xf32>
    %104 = arith.maximumf %72, %103 : vector<64x64xf32>
    %cst_51 = arith.constant dense<0x7F800000> : vector<64xf32>
    %105 = vector.multi_reduction <minimumf>, %84, %cst_51 [1] : vector<64x64xf32> to vector<64xf32>
    %106 = vector.shape_cast %105 : vector<64xf32> to vector<64x1xf32>
    %107 = vector.broadcast %106 : vector<64x1xf32> to vector<64x64xf32>
    %108 = arith.cmpf ole, %84, %107 : vector<64x64xf32>
    %cst_52 = arith.constant 6.400000e+01 : f32
    %109 = vector.broadcast %cst_52 : f32 to vector<64x64xf32>
    %110 = arith.select %108, %30, %109 : vector<64x64xi1>, vector<64x64xf32>
    %cst_53 = arith.constant dense<0x7F800000> : vector<64xf32>
    %111 = vector.multi_reduction <minimumf>, %110, %cst_53 [1] : vector<64x64xf32> to vector<64xf32>
    %112 = vector.shape_cast %111 : vector<64xf32> to vector<64x1xf32>
    %113 = vector.broadcast %112 : vector<64x1xf32> to vector<64x64xf32>
    %114 = arith.cmpf oeq, %30, %113 : vector<64x64xf32>
    %cst_54 = arith.constant 1.000000e+30 : f32
    %115 = vector.broadcast %cst_54 : f32 to vector<64x64xf32>
    %116 = arith.select %114, %115, %84 : vector<64x64xi1>, vector<64x64xf32>
    %117 = arith.extui %114 : vector<64x64xi1> to vector<64x64xi32>
    %118 = arith.sitofp %117 : vector<64x64xi32> to vector<64x64xf32>
    %cst_55 = arith.constant dense<0.000000e+00> : vector<64x6xf32>
    %119 = tpu.matmul %118, %1, %cst_55 {dimension_numbers = #tpu.dot_dimension_numbers<[1], [0], [0], [1], [0, 0, 1, 1], [], []>} : vector<64x64xf32>, vector<64x6xf32>, vector<64x6xf32> -> vector<64x6xf32>
    %120 = arith.subf %119, %1 : vector<64x6xf32>
    %121 = arith.truncf %120 : vector<64x6xf32> to vector<64x6xbf16>
    %cst_56 = arith.constant dense<0.000000e+00> : vector<64x64xf32>
    %122 = tpu.matmul %121, %7, %cst_56 {dimension_numbers = #tpu.dot_dimension_numbers<[1], [0], [0], [1], [0, 0, 1, 1], [], []>} : vector<64x6xbf16>, vector<6x64xbf16>, vector<64x64xf32> -> vector<64x64xf32>
    %123 = arith.addf %34, %122 : vector<64x64xf32>
    %cst_57 = arith.constant 0.000000e+00 : f32
    %124 = vector.broadcast %cst_57 : f32 to vector<64x64xf32>
    %125 = arith.maximumf %123, %124 : vector<64x64xf32>
    %126 = arith.truncf %125 : vector<64x64xf32> to vector<64x64xbf16>
    %cst_58 = arith.constant dense<0.000000e+00> : vector<64x64xf32>
    %127 = tpu.matmul %126, %9, %cst_58 {dimension_numbers = #tpu.dot_dimension_numbers<[1], [0], [0], [1], [0, 0, 1, 1], [], []>} : vector<64x64xbf16>, vector<64x64xbf16>, vector<64x64xf32> -> vector<64x64xf32>
    %128 = arith.addf %127, %36 : vector<64x64xf32>
    %cst_59 = arith.constant 0.000000e+00 : f32
    %129 = vector.broadcast %cst_59 : f32 to vector<64x64xf32>
    %130 = arith.maximumf %128, %129 : vector<64x64xf32>
    %131 = arith.truncf %130 : vector<64x64xf32> to vector<64x64xbf16>
    %cst_60 = arith.constant dense<0.000000e+00> : vector<64x64xf32>
    %132 = tpu.matmul %131, %11, %cst_60 {dimension_numbers = #tpu.dot_dimension_numbers<[1], [0], [0], [1], [0, 0, 1, 1], [], []>} : vector<64x64xbf16>, vector<64x64xbf16>, vector<64x64xf32> -> vector<64x64xf32>
    %133 = arith.addf %132, %38 : vector<64x64xf32>
    %cst_61 = arith.constant 0.000000e+00 : f32
    %134 = vector.broadcast %cst_61 : f32 to vector<64x64xf32>
    %135 = arith.maximumf %133, %134 : vector<64x64xf32>
    %136 = arith.maximumf %104, %135 : vector<64x64xf32>
    %cst_62 = arith.constant dense<0x7F800000> : vector<64xf32>
    %137 = vector.multi_reduction <minimumf>, %116, %cst_62 [1] : vector<64x64xf32> to vector<64xf32>
    %138 = vector.shape_cast %137 : vector<64xf32> to vector<64x1xf32>
    %139 = vector.broadcast %138 : vector<64x1xf32> to vector<64x64xf32>
    %140 = arith.cmpf ole, %116, %139 : vector<64x64xf32>
    %cst_63 = arith.constant 6.400000e+01 : f32
    %141 = vector.broadcast %cst_63 : f32 to vector<64x64xf32>
    %142 = arith.select %140, %30, %141 : vector<64x64xi1>, vector<64x64xf32>
    %cst_64 = arith.constant dense<0x7F800000> : vector<64xf32>
    %143 = vector.multi_reduction <minimumf>, %142, %cst_64 [1] : vector<64x64xf32> to vector<64xf32>
    %144 = vector.shape_cast %143 : vector<64xf32> to vector<64x1xf32>
    %145 = vector.broadcast %144 : vector<64x1xf32> to vector<64x64xf32>
    %146 = arith.cmpf oeq, %30, %145 : vector<64x64xf32>
    %cst_65 = arith.constant 1.000000e+30 : f32
    %147 = vector.broadcast %cst_65 : f32 to vector<64x64xf32>
    %148 = arith.select %146, %147, %116 : vector<64x64xi1>, vector<64x64xf32>
    %149 = arith.extui %146 : vector<64x64xi1> to vector<64x64xi32>
    %150 = arith.sitofp %149 : vector<64x64xi32> to vector<64x64xf32>
    %cst_66 = arith.constant dense<0.000000e+00> : vector<64x6xf32>
    %151 = tpu.matmul %150, %1, %cst_66 {dimension_numbers = #tpu.dot_dimension_numbers<[1], [0], [0], [1], [0, 0, 1, 1], [], []>} : vector<64x64xf32>, vector<64x6xf32>, vector<64x6xf32> -> vector<64x6xf32>
    %152 = arith.subf %151, %1 : vector<64x6xf32>
    %153 = arith.truncf %152 : vector<64x6xf32> to vector<64x6xbf16>
    %cst_67 = arith.constant dense<0.000000e+00> : vector<64x64xf32>
    %154 = tpu.matmul %153, %7, %cst_67 {dimension_numbers = #tpu.dot_dimension_numbers<[1], [0], [0], [1], [0, 0, 1, 1], [], []>} : vector<64x6xbf16>, vector<6x64xbf16>, vector<64x64xf32> -> vector<64x64xf32>
    %155 = arith.addf %34, %154 : vector<64x64xf32>
    %cst_68 = arith.constant 0.000000e+00 : f32
    %156 = vector.broadcast %cst_68 : f32 to vector<64x64xf32>
    %157 = arith.maximumf %155, %156 : vector<64x64xf32>
    %158 = arith.truncf %157 : vector<64x64xf32> to vector<64x64xbf16>
    %cst_69 = arith.constant dense<0.000000e+00> : vector<64x64xf32>
    %159 = tpu.matmul %158, %9, %cst_69 {dimension_numbers = #tpu.dot_dimension_numbers<[1], [0], [0], [1], [0, 0, 1, 1], [], []>} : vector<64x64xbf16>, vector<64x64xbf16>, vector<64x64xf32> -> vector<64x64xf32>
    %160 = arith.addf %159, %36 : vector<64x64xf32>
    %cst_70 = arith.constant 0.000000e+00 : f32
    %161 = vector.broadcast %cst_70 : f32 to vector<64x64xf32>
    %162 = arith.maximumf %160, %161 : vector<64x64xf32>
    %163 = arith.truncf %162 : vector<64x64xf32> to vector<64x64xbf16>
    %cst_71 = arith.constant dense<0.000000e+00> : vector<64x64xf32>
    %164 = tpu.matmul %163, %11, %cst_71 {dimension_numbers = #tpu.dot_dimension_numbers<[1], [0], [0], [1], [0, 0, 1, 1], [], []>} : vector<64x64xbf16>, vector<64x64xbf16>, vector<64x64xf32> -> vector<64x64xf32>
    %165 = arith.addf %164, %38 : vector<64x64xf32>
    %cst_72 = arith.constant 0.000000e+00 : f32
    %166 = vector.broadcast %cst_72 : f32 to vector<64x64xf32>
    %167 = arith.maximumf %165, %166 : vector<64x64xf32>
    %168 = arith.maximumf %136, %167 : vector<64x64xf32>
    %cst_73 = arith.constant dense<0x7F800000> : vector<64xf32>
    %169 = vector.multi_reduction <minimumf>, %148, %cst_73 [1] : vector<64x64xf32> to vector<64xf32>
    %170 = vector.shape_cast %169 : vector<64xf32> to vector<64x1xf32>
    %171 = vector.broadcast %170 : vector<64x1xf32> to vector<64x64xf32>
    %172 = arith.cmpf ole, %148, %171 : vector<64x64xf32>
    %cst_74 = arith.constant 6.400000e+01 : f32
    %173 = vector.broadcast %cst_74 : f32 to vector<64x64xf32>
    %174 = arith.select %172, %30, %173 : vector<64x64xi1>, vector<64x64xf32>
    %cst_75 = arith.constant dense<0x7F800000> : vector<64xf32>
    %175 = vector.multi_reduction <minimumf>, %174, %cst_75 [1] : vector<64x64xf32> to vector<64xf32>
    %176 = vector.shape_cast %175 : vector<64xf32> to vector<64x1xf32>
    %177 = vector.broadcast %176 : vector<64x1xf32> to vector<64x64xf32>
    %178 = arith.cmpf oeq, %30, %177 : vector<64x64xf32>
    %cst_76 = arith.constant 1.000000e+30 : f32
    %179 = vector.broadcast %cst_76 : f32 to vector<64x64xf32>
    %180 = arith.select %178, %179, %148 : vector<64x64xi1>, vector<64x64xf32>
    %181 = arith.extui %178 : vector<64x64xi1> to vector<64x64xi32>
    %182 = arith.sitofp %181 : vector<64x64xi32> to vector<64x64xf32>
    %cst_77 = arith.constant dense<0.000000e+00> : vector<64x6xf32>
    %183 = tpu.matmul %182, %1, %cst_77 {dimension_numbers = #tpu.dot_dimension_numbers<[1], [0], [0], [1], [0, 0, 1, 1], [], []>} : vector<64x64xf32>, vector<64x6xf32>, vector<64x6xf32> -> vector<64x6xf32>
    %184 = arith.subf %183, %1 : vector<64x6xf32>
    %185 = arith.truncf %184 : vector<64x6xf32> to vector<64x6xbf16>
    %cst_78 = arith.constant dense<0.000000e+00> : vector<64x64xf32>
    %186 = tpu.matmul %185, %7, %cst_78 {dimension_numbers = #tpu.dot_dimension_numbers<[1], [0], [0], [1], [0, 0, 1, 1], [], []>} : vector<64x6xbf16>, vector<6x64xbf16>, vector<64x64xf32> -> vector<64x64xf32>
    %187 = arith.addf %34, %186 : vector<64x64xf32>
    %cst_79 = arith.constant 0.000000e+00 : f32
    %188 = vector.broadcast %cst_79 : f32 to vector<64x64xf32>
    %189 = arith.maximumf %187, %188 : vector<64x64xf32>
    %190 = arith.truncf %189 : vector<64x64xf32> to vector<64x64xbf16>
    %cst_80 = arith.constant dense<0.000000e+00> : vector<64x64xf32>
    %191 = tpu.matmul %190, %9, %cst_80 {dimension_numbers = #tpu.dot_dimension_numbers<[1], [0], [0], [1], [0, 0, 1, 1], [], []>} : vector<64x64xbf16>, vector<64x64xbf16>, vector<64x64xf32> -> vector<64x64xf32>
    %192 = arith.addf %191, %36 : vector<64x64xf32>
    %cst_81 = arith.constant 0.000000e+00 : f32
    %193 = vector.broadcast %cst_81 : f32 to vector<64x64xf32>
    %194 = arith.maximumf %192, %193 : vector<64x64xf32>
    %195 = arith.truncf %194 : vector<64x64xf32> to vector<64x64xbf16>
    %cst_82 = arith.constant dense<0.000000e+00> : vector<64x64xf32>
    %196 = tpu.matmul %195, %11, %cst_82 {dimension_numbers = #tpu.dot_dimension_numbers<[1], [0], [0], [1], [0, 0, 1, 1], [], []>} : vector<64x64xbf16>, vector<64x64xbf16>, vector<64x64xf32> -> vector<64x64xf32>
    %197 = arith.addf %196, %38 : vector<64x64xf32>
    %cst_83 = arith.constant 0.000000e+00 : f32
    %198 = vector.broadcast %cst_83 : f32 to vector<64x64xf32>
    %199 = arith.maximumf %197, %198 : vector<64x64xf32>
    %200 = arith.maximumf %168, %199 : vector<64x64xf32>
    %cst_84 = arith.constant dense<0x7F800000> : vector<64xf32>
    %201 = vector.multi_reduction <minimumf>, %180, %cst_84 [1] : vector<64x64xf32> to vector<64xf32>
    %202 = vector.shape_cast %201 : vector<64xf32> to vector<64x1xf32>
    %203 = vector.broadcast %202 : vector<64x1xf32> to vector<64x64xf32>
    %204 = arith.cmpf ole, %180, %203 : vector<64x64xf32>
    %cst_85 = arith.constant 6.400000e+01 : f32
    %205 = vector.broadcast %cst_85 : f32 to vector<64x64xf32>
    %206 = arith.select %204, %30, %205 : vector<64x64xi1>, vector<64x64xf32>
    %cst_86 = arith.constant dense<0x7F800000> : vector<64xf32>
    %207 = vector.multi_reduction <minimumf>, %206, %cst_86 [1] : vector<64x64xf32> to vector<64xf32>
    %208 = vector.shape_cast %207 : vector<64xf32> to vector<64x1xf32>
    %209 = vector.broadcast %208 : vector<64x1xf32> to vector<64x64xf32>
    %210 = arith.cmpf oeq, %30, %209 : vector<64x64xf32>
    %cst_87 = arith.constant 1.000000e+30 : f32
    %211 = vector.broadcast %cst_87 : f32 to vector<64x64xf32>
    %212 = arith.select %210, %211, %180 : vector<64x64xi1>, vector<64x64xf32>
    %213 = arith.extui %210 : vector<64x64xi1> to vector<64x64xi32>
    %214 = arith.sitofp %213 : vector<64x64xi32> to vector<64x64xf32>
    %cst_88 = arith.constant dense<0.000000e+00> : vector<64x6xf32>
    %215 = tpu.matmul %214, %1, %cst_88 {dimension_numbers = #tpu.dot_dimension_numbers<[1], [0], [0], [1], [0, 0, 1, 1], [], []>} : vector<64x64xf32>, vector<64x6xf32>, vector<64x6xf32> -> vector<64x6xf32>
    %216 = arith.subf %215, %1 : vector<64x6xf32>
    %217 = arith.truncf %216 : vector<64x6xf32> to vector<64x6xbf16>
    %cst_89 = arith.constant dense<0.000000e+00> : vector<64x64xf32>
    %218 = tpu.matmul %217, %7, %cst_89 {dimension_numbers = #tpu.dot_dimension_numbers<[1], [0], [0], [1], [0, 0, 1, 1], [], []>} : vector<64x6xbf16>, vector<6x64xbf16>, vector<64x64xf32> -> vector<64x64xf32>
    %219 = arith.addf %34, %218 : vector<64x64xf32>
    %cst_90 = arith.constant 0.000000e+00 : f32
    %220 = vector.broadcast %cst_90 : f32 to vector<64x64xf32>
    %221 = arith.maximumf %219, %220 : vector<64x64xf32>
    %222 = arith.truncf %221 : vector<64x64xf32> to vector<64x64xbf16>
    %cst_91 = arith.constant dense<0.000000e+00> : vector<64x64xf32>
    %223 = tpu.matmul %222, %9, %cst_91 {dimension_numbers = #tpu.dot_dimension_numbers<[1], [0], [0], [1], [0, 0, 1, 1], [], []>} : vector<64x64xbf16>, vector<64x64xbf16>, vector<64x64xf32> -> vector<64x64xf32>
    %224 = arith.addf %223, %36 : vector<64x64xf32>
    %cst_92 = arith.constant 0.000000e+00 : f32
    %225 = vector.broadcast %cst_92 : f32 to vector<64x64xf32>
    %226 = arith.maximumf %224, %225 : vector<64x64xf32>
    %227 = arith.truncf %226 : vector<64x64xf32> to vector<64x64xbf16>
    %cst_93 = arith.constant dense<0.000000e+00> : vector<64x64xf32>
    %228 = tpu.matmul %227, %11, %cst_93 {dimension_numbers = #tpu.dot_dimension_numbers<[1], [0], [0], [1], [0, 0, 1, 1], [], []>} : vector<64x64xbf16>, vector<64x64xbf16>, vector<64x64xf32> -> vector<64x64xf32>
    %229 = arith.addf %228, %38 : vector<64x64xf32>
    %cst_94 = arith.constant 0.000000e+00 : f32
    %230 = vector.broadcast %cst_94 : f32 to vector<64x64xf32>
    %231 = arith.maximumf %229, %230 : vector<64x64xf32>
    %232 = arith.maximumf %200, %231 : vector<64x64xf32>
    %cst_95 = arith.constant dense<0x7F800000> : vector<64xf32>
    %233 = vector.multi_reduction <minimumf>, %212, %cst_95 [1] : vector<64x64xf32> to vector<64xf32>
    %234 = vector.shape_cast %233 : vector<64xf32> to vector<64x1xf32>
    %235 = vector.broadcast %234 : vector<64x1xf32> to vector<64x64xf32>
    %236 = arith.cmpf ole, %212, %235 : vector<64x64xf32>
    %cst_96 = arith.constant 6.400000e+01 : f32
    %237 = vector.broadcast %cst_96 : f32 to vector<64x64xf32>
    %238 = arith.select %236, %30, %237 : vector<64x64xi1>, vector<64x64xf32>
    %cst_97 = arith.constant dense<0x7F800000> : vector<64xf32>
    %239 = vector.multi_reduction <minimumf>, %238, %cst_97 [1] : vector<64x64xf32> to vector<64xf32>
    %240 = vector.shape_cast %239 : vector<64xf32> to vector<64x1xf32>
    %241 = vector.broadcast %240 : vector<64x1xf32> to vector<64x64xf32>
    %242 = arith.cmpf oeq, %30, %241 : vector<64x64xf32>
    %cst_98 = arith.constant 1.000000e+30 : f32
    %243 = vector.broadcast %cst_98 : f32 to vector<64x64xf32>
    %244 = arith.select %242, %243, %212 : vector<64x64xi1>, vector<64x64xf32>
    %245 = arith.extui %242 : vector<64x64xi1> to vector<64x64xi32>
    %246 = arith.sitofp %245 : vector<64x64xi32> to vector<64x64xf32>
    %cst_99 = arith.constant dense<0.000000e+00> : vector<64x6xf32>
    %247 = tpu.matmul %246, %1, %cst_99 {dimension_numbers = #tpu.dot_dimension_numbers<[1], [0], [0], [1], [0, 0, 1, 1], [], []>} : vector<64x64xf32>, vector<64x6xf32>, vector<64x6xf32> -> vector<64x6xf32>
    %248 = arith.subf %247, %1 : vector<64x6xf32>
    %249 = arith.truncf %248 : vector<64x6xf32> to vector<64x6xbf16>
    %cst_100 = arith.constant dense<0.000000e+00> : vector<64x64xf32>
    %250 = tpu.matmul %249, %7, %cst_100 {dimension_numbers = #tpu.dot_dimension_numbers<[1], [0], [0], [1], [0, 0, 1, 1], [], []>} : vector<64x6xbf16>, vector<6x64xbf16>, vector<64x64xf32> -> vector<64x64xf32>
    %251 = arith.addf %34, %250 : vector<64x64xf32>
    %cst_101 = arith.constant 0.000000e+00 : f32
    %252 = vector.broadcast %cst_101 : f32 to vector<64x64xf32>
    %253 = arith.maximumf %251, %252 : vector<64x64xf32>
    %254 = arith.truncf %253 : vector<64x64xf32> to vector<64x64xbf16>
    %cst_102 = arith.constant dense<0.000000e+00> : vector<64x64xf32>
    %255 = tpu.matmul %254, %9, %cst_102 {dimension_numbers = #tpu.dot_dimension_numbers<[1], [0], [0], [1], [0, 0, 1, 1], [], []>} : vector<64x64xbf16>, vector<64x64xbf16>, vector<64x64xf32> -> vector<64x64xf32>
    %256 = arith.addf %255, %36 : vector<64x64xf32>
    %cst_103 = arith.constant 0.000000e+00 : f32
    %257 = vector.broadcast %cst_103 : f32 to vector<64x64xf32>
    %258 = arith.maximumf %256, %257 : vector<64x64xf32>
    %259 = arith.truncf %258 : vector<64x64xf32> to vector<64x64xbf16>
    %cst_104 = arith.constant dense<0.000000e+00> : vector<64x64xf32>
    %260 = tpu.matmul %259, %11, %cst_104 {dimension_numbers = #tpu.dot_dimension_numbers<[1], [0], [0], [1], [0, 0, 1, 1], [], []>} : vector<64x64xbf16>, vector<64x64xbf16>, vector<64x64xf32> -> vector<64x64xf32>
    %261 = arith.addf %260, %38 : vector<64x64xf32>
    %cst_105 = arith.constant 0.000000e+00 : f32
    %262 = vector.broadcast %cst_105 : f32 to vector<64x64xf32>
    %263 = arith.maximumf %261, %262 : vector<64x64xf32>
    %264 = arith.maximumf %232, %263 : vector<64x64xf32>
    %cst_106 = arith.constant dense<0x7F800000> : vector<64xf32>
    %265 = vector.multi_reduction <minimumf>, %244, %cst_106 [1] : vector<64x64xf32> to vector<64xf32>
    %266 = vector.shape_cast %265 : vector<64xf32> to vector<64x1xf32>
    %267 = vector.broadcast %266 : vector<64x1xf32> to vector<64x64xf32>
    %268 = arith.cmpf ole, %244, %267 : vector<64x64xf32>
    %cst_107 = arith.constant 6.400000e+01 : f32
    %269 = vector.broadcast %cst_107 : f32 to vector<64x64xf32>
    %270 = arith.select %268, %30, %269 : vector<64x64xi1>, vector<64x64xf32>
    %cst_108 = arith.constant dense<0x7F800000> : vector<64xf32>
    %271 = vector.multi_reduction <minimumf>, %270, %cst_108 [1] : vector<64x64xf32> to vector<64xf32>
    %272 = vector.shape_cast %271 : vector<64xf32> to vector<64x1xf32>
    %273 = vector.broadcast %272 : vector<64x1xf32> to vector<64x64xf32>
    %274 = arith.cmpf oeq, %30, %273 : vector<64x64xf32>
    %275 = arith.extui %274 : vector<64x64xi1> to vector<64x64xi32>
    %276 = arith.sitofp %275 : vector<64x64xi32> to vector<64x64xf32>
    %cst_109 = arith.constant dense<0.000000e+00> : vector<64x6xf32>
    %277 = tpu.matmul %276, %1, %cst_109 {dimension_numbers = #tpu.dot_dimension_numbers<[1], [0], [0], [1], [0, 0, 1, 1], [], []>} : vector<64x64xf32>, vector<64x6xf32>, vector<64x6xf32> -> vector<64x6xf32>
    %278 = arith.subf %277, %1 : vector<64x6xf32>
    %279 = arith.truncf %278 : vector<64x6xf32> to vector<64x6xbf16>
    %cst_110 = arith.constant dense<0.000000e+00> : vector<64x64xf32>
    %280 = tpu.matmul %279, %7, %cst_110 {dimension_numbers = #tpu.dot_dimension_numbers<[1], [0], [0], [1], [0, 0, 1, 1], [], []>} : vector<64x6xbf16>, vector<6x64xbf16>, vector<64x64xf32> -> vector<64x64xf32>
    %281 = arith.addf %34, %280 : vector<64x64xf32>
    %cst_111 = arith.constant 0.000000e+00 : f32
    %282 = vector.broadcast %cst_111 : f32 to vector<64x64xf32>
    %283 = arith.maximumf %281, %282 : vector<64x64xf32>
    %284 = arith.truncf %283 : vector<64x64xf32> to vector<64x64xbf16>
    %cst_112 = arith.constant dense<0.000000e+00> : vector<64x64xf32>
    %285 = tpu.matmul %284, %9, %cst_112 {dimension_numbers = #tpu.dot_dimension_numbers<[1], [0], [0], [1], [0, 0, 1, 1], [], []>} : vector<64x64xbf16>, vector<64x64xbf16>, vector<64x64xf32> -> vector<64x64xf32>
    %286 = arith.addf %285, %36 : vector<64x64xf32>
    %cst_113 = arith.constant 0.000000e+00 : f32
    %287 = vector.broadcast %cst_113 : f32 to vector<64x64xf32>
    %288 = arith.maximumf %286, %287 : vector<64x64xf32>
    %289 = arith.truncf %288 : vector<64x64xf32> to vector<64x64xbf16>
    %cst_114 = arith.constant dense<0.000000e+00> : vector<64x64xf32>
    %290 = tpu.matmul %289, %11, %cst_114 {dimension_numbers = #tpu.dot_dimension_numbers<[1], [0], [0], [1], [0, 0, 1, 1], [], []>} : vector<64x64xbf16>, vector<64x64xbf16>, vector<64x64xf32> -> vector<64x64xf32>
    %291 = arith.addf %290, %38 : vector<64x64xf32>
    %cst_115 = arith.constant 0.000000e+00 : f32
    %292 = vector.broadcast %cst_115 : f32 to vector<64x64xf32>
    %293 = arith.maximumf %291, %292 : vector<64x64xf32>
    %294 = arith.maximumf %264, %293 : vector<64x64xf32>
    %c0_116 = arith.constant 0 : index
    %c0_117 = arith.constant 0 : index
    %295 = vector.load %arg11[%c0_116, %c0_117] : memref<64x256xbf16, #tpu.memory_space<vmem>>, vector<64x256xbf16>
    %c0_118 = arith.constant 0 : index
    %c0_119 = arith.constant 0 : index
    %296 = vector.load %arg12[%c0_118, %c0_119] : memref<64x256xbf16, #tpu.memory_space<vmem>>, vector<64x256xbf16>
    %c0_120 = arith.constant 0 : index
    %c0_121 = arith.constant 0 : index
    %297 = vector.load %arg13[%c0_120, %c0_121] : memref<1x256xf32, #tpu.memory_space<vmem>>, vector<1x256xf32>
    %cst_122 = arith.constant dense<0.000000e+00> : vector<64x64xf32>
    %298 = tpu.matmul %294, %294, %cst_122 {dimension_numbers = #tpu.dot_dimension_numbers<[1], [1], [0], [0], [0, 0, 1, 0], [], []>} : vector<64x64xf32>, vector<64x64xf32>, vector<64x64xf32> -> vector<64x64xf32>
    %299 = tpu.iota {dimensions = array<i32: 0>} : vector<64x64xi32>
    %300 = tpu.iota {dimensions = array<i32: 1>} : vector<64x64xi32>
    %301 = arith.cmpi eq, %299, %300 : vector<64x64xi32>
    %cst_123 = arith.constant 0.000000e+00 : f32
    %302 = vector.broadcast %cst_123 : f32 to vector<64x64xf32>
    %303 = arith.select %301, %298, %302 : vector<64x64xi1>, vector<64x64xf32>
    %cst_124 = arith.constant dense<0.000000e+00> : vector<64xf32>
    %304 = vector.multi_reduction <add>, %303, %cst_124 [0] : vector<64x64xf32> to vector<64xf32>
    %305 = vector.shape_cast %304 : vector<64xf32> to vector<1x64xf32>
    %cst_125 = arith.constant 2.000000e+00 : f32
    %306 = vector.broadcast %cst_125 : f32 to vector<64x64xf32>
    %307 = arith.mulf %306, %298 : vector<64x64xf32>
    %308 = vector.broadcast %305 : vector<1x64xf32> to vector<64x64xf32>
    %309 = arith.subf %308, %307 : vector<64x64xf32>
    %310 = vector.broadcast %3 : vector<64x1xi32> to vector<64x64xi32>
    %311 = vector.broadcast %5 : vector<1x64xi32> to vector<64x64xi32>
    %312 = arith.cmpi eq, %310, %311 : vector<64x64xi32>
    %cst_126 = arith.constant 1.000000e+30 : f32
    %313 = vector.broadcast %cst_126 : f32 to vector<64x64xf32>
    %314 = arith.select %312, %309, %313 : vector<64x64xi1>, vector<64x64xf32>
    %315 = arith.sitofp %300 : vector<64x64xi32> to vector<64x64xf32>
    %316 = arith.truncf %294 : vector<64x64xf32> to vector<64x64xbf16>
    %cst_127 = arith.constant dense<0.000000e+00> : vector<64x256xf32>
    %317 = tpu.matmul %316, %295, %cst_127 {dimension_numbers = #tpu.dot_dimension_numbers<[1], [0], [0], [1], [0, 0, 1, 1], [], []>} : vector<64x64xbf16>, vector<64x256xbf16>, vector<64x256xf32> -> vector<64x256xf32>
    %318 = vector.broadcast %297 : vector<1x256xf32> to vector<64x256xf32>
    %319 = arith.addf %317, %318 : vector<64x256xf32>
    %cst_128 = arith.constant 0.000000e+00 : f32
    %cst_129 = arith.constant 1.000000e+30 : f32
    %320 = arith.subf %cst_128, %cst_129 : f32
    %321 = vector.broadcast %320 : f32 to vector<64x256xf32>
    %cst_130 = arith.constant dense<0x7F800000> : vector<64xf32>
    %322 = vector.multi_reduction <minimumf>, %314, %cst_130 [1] : vector<64x64xf32> to vector<64xf32>
    %323 = vector.shape_cast %322 : vector<64xf32> to vector<64x1xf32>
    %324 = vector.broadcast %323 : vector<64x1xf32> to vector<64x64xf32>
    %325 = arith.cmpf ole, %314, %324 : vector<64x64xf32>
    %cst_131 = arith.constant 6.400000e+01 : f32
    %326 = vector.broadcast %cst_131 : f32 to vector<64x64xf32>
    %327 = arith.select %325, %315, %326 : vector<64x64xi1>, vector<64x64xf32>
    %cst_132 = arith.constant dense<0x7F800000> : vector<64xf32>
    %328 = vector.multi_reduction <minimumf>, %327, %cst_132 [1] : vector<64x64xf32> to vector<64xf32>
    %329 = vector.shape_cast %328 : vector<64xf32> to vector<64x1xf32>
    %330 = vector.broadcast %329 : vector<64x1xf32> to vector<64x64xf32>
    %331 = arith.cmpf oeq, %315, %330 : vector<64x64xf32>
    %cst_133 = arith.constant 1.000000e+30 : f32
    %332 = vector.broadcast %cst_133 : f32 to vector<64x64xf32>
    %333 = arith.select %331, %332, %314 : vector<64x64xi1>, vector<64x64xf32>
    %334 = arith.extui %331 : vector<64x64xi1> to vector<64x64xi32>
    %335 = arith.sitofp %334 : vector<64x64xi32> to vector<64x64xf32>
    %cst_134 = arith.constant dense<0.000000e+00> : vector<64x64xf32>
    %336 = tpu.matmul %335, %294, %cst_134 {dimension_numbers = #tpu.dot_dimension_numbers<[1], [0], [0], [1], [0, 0, 1, 1], [], []>} : vector<64x64xf32>, vector<64x64xf32>, vector<64x64xf32> -> vector<64x64xf32>
    %337 = arith.subf %336, %294 : vector<64x64xf32>
    %338 = arith.truncf %337 : vector<64x64xf32> to vector<64x64xbf16>
    %cst_135 = arith.constant dense<0.000000e+00> : vector<64x256xf32>
    %339 = tpu.matmul %338, %296, %cst_135 {dimension_numbers = #tpu.dot_dimension_numbers<[1], [0], [0], [1], [0, 0, 1, 1], [], []>} : vector<64x64xbf16>, vector<64x256xbf16>, vector<64x256xf32> -> vector<64x256xf32>
    %340 = arith.addf %319, %339 : vector<64x256xf32>
    %cst_136 = arith.constant 0.000000e+00 : f32
    %341 = vector.broadcast %cst_136 : f32 to vector<64x256xf32>
    %342 = arith.maximumf %340, %341 : vector<64x256xf32>
    %343 = arith.maximumf %321, %342 : vector<64x256xf32>
    %cst_137 = arith.constant dense<0x7F800000> : vector<64xf32>
    %344 = vector.multi_reduction <minimumf>, %333, %cst_137 [1] : vector<64x64xf32> to vector<64xf32>
    %345 = vector.shape_cast %344 : vector<64xf32> to vector<64x1xf32>
    %346 = vector.broadcast %345 : vector<64x1xf32> to vector<64x64xf32>
    %347 = arith.cmpf ole, %333, %346 : vector<64x64xf32>
    %cst_138 = arith.constant 6.400000e+01 : f32
    %348 = vector.broadcast %cst_138 : f32 to vector<64x64xf32>
    %349 = arith.select %347, %315, %348 : vector<64x64xi1>, vector<64x64xf32>
    %cst_139 = arith.constant dense<0x7F800000> : vector<64xf32>
    %350 = vector.multi_reduction <minimumf>, %349, %cst_139 [1] : vector<64x64xf32> to vector<64xf32>
    %351 = vector.shape_cast %350 : vector<64xf32> to vector<64x1xf32>
    %352 = vector.broadcast %351 : vector<64x1xf32> to vector<64x64xf32>
    %353 = arith.cmpf oeq, %315, %352 : vector<64x64xf32>
    %cst_140 = arith.constant 1.000000e+30 : f32
    %354 = vector.broadcast %cst_140 : f32 to vector<64x64xf32>
    %355 = arith.select %353, %354, %333 : vector<64x64xi1>, vector<64x64xf32>
    %356 = arith.extui %353 : vector<64x64xi1> to vector<64x64xi32>
    %357 = arith.sitofp %356 : vector<64x64xi32> to vector<64x64xf32>
    %cst_141 = arith.constant dense<0.000000e+00> : vector<64x64xf32>
    %358 = tpu.matmul %357, %294, %cst_141 {dimension_numbers = #tpu.dot_dimension_numbers<[1], [0], [0], [1], [0, 0, 1, 1], [], []>} : vector<64x64xf32>, vector<64x64xf32>, vector<64x64xf32> -> vector<64x64xf32>
    %359 = arith.subf %358, %294 : vector<64x64xf32>
    %360 = arith.truncf %359 : vector<64x64xf32> to vector<64x64xbf16>
    %cst_142 = arith.constant dense<0.000000e+00> : vector<64x256xf32>
    %361 = tpu.matmul %360, %296, %cst_142 {dimension_numbers = #tpu.dot_dimension_numbers<[1], [0], [0], [1], [0, 0, 1, 1], [], []>} : vector<64x64xbf16>, vector<64x256xbf16>, vector<64x256xf32> -> vector<64x256xf32>
    %362 = arith.addf %319, %361 : vector<64x256xf32>
    %cst_143 = arith.constant 0.000000e+00 : f32
    %363 = vector.broadcast %cst_143 : f32 to vector<64x256xf32>
    %364 = arith.maximumf %362, %363 : vector<64x256xf32>
    %365 = arith.maximumf %343, %364 : vector<64x256xf32>
    %cst_144 = arith.constant dense<0x7F800000> : vector<64xf32>
    %366 = vector.multi_reduction <minimumf>, %355, %cst_144 [1] : vector<64x64xf32> to vector<64xf32>
    %367 = vector.shape_cast %366 : vector<64xf32> to vector<64x1xf32>
    %368 = vector.broadcast %367 : vector<64x1xf32> to vector<64x64xf32>
    %369 = arith.cmpf ole, %355, %368 : vector<64x64xf32>
    %cst_145 = arith.constant 6.400000e+01 : f32
    %370 = vector.broadcast %cst_145 : f32 to vector<64x64xf32>
    %371 = arith.select %369, %315, %370 : vector<64x64xi1>, vector<64x64xf32>
    %cst_146 = arith.constant dense<0x7F800000> : vector<64xf32>
    %372 = vector.multi_reduction <minimumf>, %371, %cst_146 [1] : vector<64x64xf32> to vector<64xf32>
    %373 = vector.shape_cast %372 : vector<64xf32> to vector<64x1xf32>
    %374 = vector.broadcast %373 : vector<64x1xf32> to vector<64x64xf32>
    %375 = arith.cmpf oeq, %315, %374 : vector<64x64xf32>
    %cst_147 = arith.constant 1.000000e+30 : f32
    %376 = vector.broadcast %cst_147 : f32 to vector<64x64xf32>
    %377 = arith.select %375, %376, %355 : vector<64x64xi1>, vector<64x64xf32>
    %378 = arith.extui %375 : vector<64x64xi1> to vector<64x64xi32>
    %379 = arith.sitofp %378 : vector<64x64xi32> to vector<64x64xf32>
    %cst_148 = arith.constant dense<0.000000e+00> : vector<64x64xf32>
    %380 = tpu.matmul %379, %294, %cst_148 {dimension_numbers = #tpu.dot_dimension_numbers<[1], [0], [0], [1], [0, 0, 1, 1], [], []>} : vector<64x64xf32>, vector<64x64xf32>, vector<64x64xf32> -> vector<64x64xf32>
    %381 = arith.subf %380, %294 : vector<64x64xf32>
    %382 = arith.truncf %381 : vector<64x64xf32> to vector<64x64xbf16>
    %cst_149 = arith.constant dense<0.000000e+00> : vector<64x256xf32>
    %383 = tpu.matmul %382, %296, %cst_149 {dimension_numbers = #tpu.dot_dimension_numbers<[1], [0], [0], [1], [0, 0, 1, 1], [], []>} : vector<64x64xbf16>, vector<64x256xbf16>, vector<64x256xf32> -> vector<64x256xf32>
    %384 = arith.addf %319, %383 : vector<64x256xf32>
    %cst_150 = arith.constant 0.000000e+00 : f32
    %385 = vector.broadcast %cst_150 : f32 to vector<64x256xf32>
    %386 = arith.maximumf %384, %385 : vector<64x256xf32>
    %387 = arith.maximumf %365, %386 : vector<64x256xf32>
    %cst_151 = arith.constant dense<0x7F800000> : vector<64xf32>
    %388 = vector.multi_reduction <minimumf>, %377, %cst_151 [1] : vector<64x64xf32> to vector<64xf32>
    %389 = vector.shape_cast %388 : vector<64xf32> to vector<64x1xf32>
    %390 = vector.broadcast %389 : vector<64x1xf32> to vector<64x64xf32>
    %391 = arith.cmpf ole, %377, %390 : vector<64x64xf32>
    %cst_152 = arith.constant 6.400000e+01 : f32
    %392 = vector.broadcast %cst_152 : f32 to vector<64x64xf32>
    %393 = arith.select %391, %315, %392 : vector<64x64xi1>, vector<64x64xf32>
    %cst_153 = arith.constant dense<0x7F800000> : vector<64xf32>
    %394 = vector.multi_reduction <minimumf>, %393, %cst_153 [1] : vector<64x64xf32> to vector<64xf32>
    %395 = vector.shape_cast %394 : vector<64xf32> to vector<64x1xf32>
    %396 = vector.broadcast %395 : vector<64x1xf32> to vector<64x64xf32>
    %397 = arith.cmpf oeq, %315, %396 : vector<64x64xf32>
    %cst_154 = arith.constant 1.000000e+30 : f32
    %398 = vector.broadcast %cst_154 : f32 to vector<64x64xf32>
    %399 = arith.select %397, %398, %377 : vector<64x64xi1>, vector<64x64xf32>
    %400 = arith.extui %397 : vector<64x64xi1> to vector<64x64xi32>
    %401 = arith.sitofp %400 : vector<64x64xi32> to vector<64x64xf32>
    %cst_155 = arith.constant dense<0.000000e+00> : vector<64x64xf32>
    %402 = tpu.matmul %401, %294, %cst_155 {dimension_numbers = #tpu.dot_dimension_numbers<[1], [0], [0], [1], [0, 0, 1, 1], [], []>} : vector<64x64xf32>, vector<64x64xf32>, vector<64x64xf32> -> vector<64x64xf32>
    %403 = arith.subf %402, %294 : vector<64x64xf32>
    %404 = arith.truncf %403 : vector<64x64xf32> to vector<64x64xbf16>
    %cst_156 = arith.constant dense<0.000000e+00> : vector<64x256xf32>
    %405 = tpu.matmul %404, %296, %cst_156 {dimension_numbers = #tpu.dot_dimension_numbers<[1], [0], [0], [1], [0, 0, 1, 1], [], []>} : vector<64x64xbf16>, vector<64x256xbf16>, vector<64x256xf32> -> vector<64x256xf32>
    %406 = arith.addf %319, %405 : vector<64x256xf32>
    %cst_157 = arith.constant 0.000000e+00 : f32
    %407 = vector.broadcast %cst_157 : f32 to vector<64x256xf32>
    %408 = arith.maximumf %406, %407 : vector<64x256xf32>
    %409 = arith.maximumf %387, %408 : vector<64x256xf32>
    %cst_158 = arith.constant dense<0x7F800000> : vector<64xf32>
    %410 = vector.multi_reduction <minimumf>, %399, %cst_158 [1] : vector<64x64xf32> to vector<64xf32>
    %411 = vector.shape_cast %410 : vector<64xf32> to vector<64x1xf32>
    %412 = vector.broadcast %411 : vector<64x1xf32> to vector<64x64xf32>
    %413 = arith.cmpf ole, %399, %412 : vector<64x64xf32>
    %cst_159 = arith.constant 6.400000e+01 : f32
    %414 = vector.broadcast %cst_159 : f32 to vector<64x64xf32>
    %415 = arith.select %413, %315, %414 : vector<64x64xi1>, vector<64x64xf32>
    %cst_160 = arith.constant dense<0x7F800000> : vector<64xf32>
    %416 = vector.multi_reduction <minimumf>, %415, %cst_160 [1] : vector<64x64xf32> to vector<64xf32>
    %417 = vector.shape_cast %416 : vector<64xf32> to vector<64x1xf32>
    %418 = vector.broadcast %417 : vector<64x1xf32> to vector<64x64xf32>
    %419 = arith.cmpf oeq, %315, %418 : vector<64x64xf32>
    %cst_161 = arith.constant 1.000000e+30 : f32
    %420 = vector.broadcast %cst_161 : f32 to vector<64x64xf32>
    %421 = arith.select %419, %420, %399 : vector<64x64xi1>, vector<64x64xf32>
    %422 = arith.extui %419 : vector<64x64xi1> to vector<64x64xi32>
    %423 = arith.sitofp %422 : vector<64x64xi32> to vector<64x64xf32>
    %cst_162 = arith.constant dense<0.000000e+00> : vector<64x64xf32>
    %424 = tpu.matmul %423, %294, %cst_162 {dimension_numbers = #tpu.dot_dimension_numbers<[1], [0], [0], [1], [0, 0, 1, 1], [], []>} : vector<64x64xf32>, vector<64x64xf32>, vector<64x64xf32> -> vector<64x64xf32>
    %425 = arith.subf %424, %294 : vector<64x64xf32>
    %426 = arith.truncf %425 : vector<64x64xf32> to vector<64x64xbf16>
    %cst_163 = arith.constant dense<0.000000e+00> : vector<64x256xf32>
    %427 = tpu.matmul %426, %296, %cst_163 {dimension_numbers = #tpu.dot_dimension_numbers<[1], [0], [0], [1], [0, 0, 1, 1], [], []>} : vector<64x64xbf16>, vector<64x256xbf16>, vector<64x256xf32> -> vector<64x256xf32>
    %428 = arith.addf %319, %427 : vector<64x256xf32>
    %cst_164 = arith.constant 0.000000e+00 : f32
    %429 = vector.broadcast %cst_164 : f32 to vector<64x256xf32>
    %430 = arith.maximumf %428, %429 : vector<64x256xf32>
    %431 = arith.maximumf %409, %430 : vector<64x256xf32>
    %cst_165 = arith.constant dense<0x7F800000> : vector<64xf32>
    %432 = vector.multi_reduction <minimumf>, %421, %cst_165 [1] : vector<64x64xf32> to vector<64xf32>
    %433 = vector.shape_cast %432 : vector<64xf32> to vector<64x1xf32>
    %434 = vector.broadcast %433 : vector<64x1xf32> to vector<64x64xf32>
    %435 = arith.cmpf ole, %421, %434 : vector<64x64xf32>
    %cst_166 = arith.constant 6.400000e+01 : f32
    %436 = vector.broadcast %cst_166 : f32 to vector<64x64xf32>
    %437 = arith.select %435, %315, %436 : vector<64x64xi1>, vector<64x64xf32>
    %cst_167 = arith.constant dense<0x7F800000> : vector<64xf32>
    %438 = vector.multi_reduction <minimumf>, %437, %cst_167 [1] : vector<64x64xf32> to vector<64xf32>
    %439 = vector.shape_cast %438 : vector<64xf32> to vector<64x1xf32>
    %440 = vector.broadcast %439 : vector<64x1xf32> to vector<64x64xf32>
    %441 = arith.cmpf oeq, %315, %440 : vector<64x64xf32>
    %cst_168 = arith.constant 1.000000e+30 : f32
    %442 = vector.broadcast %cst_168 : f32 to vector<64x64xf32>
    %443 = arith.select %441, %442, %421 : vector<64x64xi1>, vector<64x64xf32>
    %444 = arith.extui %441 : vector<64x64xi1> to vector<64x64xi32>
    %445 = arith.sitofp %444 : vector<64x64xi32> to vector<64x64xf32>
    %cst_169 = arith.constant dense<0.000000e+00> : vector<64x64xf32>
    %446 = tpu.matmul %445, %294, %cst_169 {dimension_numbers = #tpu.dot_dimension_numbers<[1], [0], [0], [1], [0, 0, 1, 1], [], []>} : vector<64x64xf32>, vector<64x64xf32>, vector<64x64xf32> -> vector<64x64xf32>
    %447 = arith.subf %446, %294 : vector<64x64xf32>
    %448 = arith.truncf %447 : vector<64x64xf32> to vector<64x64xbf16>
    %cst_170 = arith.constant dense<0.000000e+00> : vector<64x256xf32>
    %449 = tpu.matmul %448, %296, %cst_170 {dimension_numbers = #tpu.dot_dimension_numbers<[1], [0], [0], [1], [0, 0, 1, 1], [], []>} : vector<64x64xbf16>, vector<64x256xbf16>, vector<64x256xf32> -> vector<64x256xf32>
    %450 = arith.addf %319, %449 : vector<64x256xf32>
    %cst_171 = arith.constant 0.000000e+00 : f32
    %451 = vector.broadcast %cst_171 : f32 to vector<64x256xf32>
    %452 = arith.maximumf %450, %451 : vector<64x256xf32>
    %453 = arith.maximumf %431, %452 : vector<64x256xf32>
    %cst_172 = arith.constant dense<0x7F800000> : vector<64xf32>
    %454 = vector.multi_reduction <minimumf>, %443, %cst_172 [1] : vector<64x64xf32> to vector<64xf32>
    %455 = vector.shape_cast %454 : vector<64xf32> to vector<64x1xf32>
    %456 = vector.broadcast %455 : vector<64x1xf32> to vector<64x64xf32>
    %457 = arith.cmpf ole, %443, %456 : vector<64x64xf32>
    %cst_173 = arith.constant 6.400000e+01 : f32
    %458 = vector.broadcast %cst_173 : f32 to vector<64x64xf32>
    %459 = arith.select %457, %315, %458 : vector<64x64xi1>, vector<64x64xf32>
    %cst_174 = arith.constant dense<0x7F800000> : vector<64xf32>
    %460 = vector.multi_reduction <minimumf>, %459, %cst_174 [1] : vector<64x64xf32> to vector<64xf32>
    %461 = vector.shape_cast %460 : vector<64xf32> to vector<64x1xf32>
    %462 = vector.broadcast %461 : vector<64x1xf32> to vector<64x64xf32>
    %463 = arith.cmpf oeq, %315, %462 : vector<64x64xf32>
    %cst_175 = arith.constant 1.000000e+30 : f32
    %464 = vector.broadcast %cst_175 : f32 to vector<64x64xf32>
    %465 = arith.select %463, %464, %443 : vector<64x64xi1>, vector<64x64xf32>
    %466 = arith.extui %463 : vector<64x64xi1> to vector<64x64xi32>
    %467 = arith.sitofp %466 : vector<64x64xi32> to vector<64x64xf32>
    %cst_176 = arith.constant dense<0.000000e+00> : vector<64x64xf32>
    %468 = tpu.matmul %467, %294, %cst_176 {dimension_numbers = #tpu.dot_dimension_numbers<[1], [0], [0], [1], [0, 0, 1, 1], [], []>} : vector<64x64xf32>, vector<64x64xf32>, vector<64x64xf32> -> vector<64x64xf32>
    %469 = arith.subf %468, %294 : vector<64x64xf32>
    %470 = arith.truncf %469 : vector<64x64xf32> to vector<64x64xbf16>
    %cst_177 = arith.constant dense<0.000000e+00> : vector<64x256xf32>
    %471 = tpu.matmul %470, %296, %cst_177 {dimension_numbers = #tpu.dot_dimension_numbers<[1], [0], [0], [1], [0, 0, 1, 1], [], []>} : vector<64x64xbf16>, vector<64x256xbf16>, vector<64x256xf32> -> vector<64x256xf32>
    %472 = arith.addf %319, %471 : vector<64x256xf32>
    %cst_178 = arith.constant 0.000000e+00 : f32
    %473 = vector.broadcast %cst_178 : f32 to vector<64x256xf32>
    %474 = arith.maximumf %472, %473 : vector<64x256xf32>
    %475 = arith.maximumf %453, %474 : vector<64x256xf32>
    %cst_179 = arith.constant dense<0x7F800000> : vector<64xf32>
    %476 = vector.multi_reduction <minimumf>, %465, %cst_179 [1] : vector<64x64xf32> to vector<64xf32>
    %477 = vector.shape_cast %476 : vector<64xf32> to vector<64x1xf32>
    %478 = vector.broadcast %477 : vector<64x1xf32> to vector<64x64xf32>
    %479 = arith.cmpf ole, %465, %478 : vector<64x64xf32>
    %cst_180 = arith.constant 6.400000e+01 : f32
    %480 = vector.broadcast %cst_180 : f32 to vector<64x64xf32>
    %481 = arith.select %479, %315, %480 : vector<64x64xi1>, vector<64x64xf32>
    %cst_181 = arith.constant dense<0x7F800000> : vector<64xf32>
    %482 = vector.multi_reduction <minimumf>, %481, %cst_181 [1] : vector<64x64xf32> to vector<64xf32>
    %483 = vector.shape_cast %482 : vector<64xf32> to vector<64x1xf32>
    %484 = vector.broadcast %483 : vector<64x1xf32> to vector<64x64xf32>
    %485 = arith.cmpf oeq, %315, %484 : vector<64x64xf32>
    %486 = arith.extui %485 : vector<64x64xi1> to vector<64x64xi32>
    %487 = arith.sitofp %486 : vector<64x64xi32> to vector<64x64xf32>
    %cst_182 = arith.constant dense<0.000000e+00> : vector<64x64xf32>
    %488 = tpu.matmul %487, %294, %cst_182 {dimension_numbers = #tpu.dot_dimension_numbers<[1], [0], [0], [1], [0, 0, 1, 1], [], []>} : vector<64x64xf32>, vector<64x64xf32>, vector<64x64xf32> -> vector<64x64xf32>
    %489 = arith.subf %488, %294 : vector<64x64xf32>
    %490 = arith.truncf %489 : vector<64x64xf32> to vector<64x64xbf16>
    %cst_183 = arith.constant dense<0.000000e+00> : vector<64x256xf32>
    %491 = tpu.matmul %490, %296, %cst_183 {dimension_numbers = #tpu.dot_dimension_numbers<[1], [0], [0], [1], [0, 0, 1, 1], [], []>} : vector<64x64xbf16>, vector<64x256xbf16>, vector<64x256xf32> -> vector<64x256xf32>
    %492 = arith.addf %319, %491 : vector<64x256xf32>
    %cst_184 = arith.constant 0.000000e+00 : f32
    %493 = vector.broadcast %cst_184 : f32 to vector<64x256xf32>
    %494 = arith.maximumf %492, %493 : vector<64x256xf32>
    %495 = arith.maximumf %475, %494 : vector<64x256xf32>
    %c0_i32 = arith.constant 0 : i32
    %496 = vector.broadcast %c0_i32 : i32 to vector<64x1xi32>
    %497 = arith.cmpi eq, %3, %496 : vector<64x1xi32>
    %cst_185 = arith.constant 0.000000e+00 : f32
    %cst_186 = arith.constant 1.000000e+30 : f32
    %498 = arith.subf %cst_185, %cst_186 : f32
    %499 = vector.shape_cast %497 : vector<64x1xi1> to vector<64x1xi1>
    %500 = vector.broadcast %499 : vector<64x1xi1> to vector<64x256xi1>
    %501 = vector.broadcast %498 : f32 to vector<64x256xf32>
    %502 = arith.select %500, %495, %501 : vector<64x256xi1>, vector<64x256xf32>
    %cst_187 = arith.constant dense<0xFF800000> : vector<256xf32>
    %503 = vector.multi_reduction <maximumf>, %502, %cst_187 [0] : vector<64x256xf32> to vector<256xf32>
    %504 = vector.shape_cast %503 : vector<256xf32> to vector<1x256xf32>
    %c1_i32 = arith.constant 1 : i32
    %505 = vector.broadcast %c1_i32 : i32 to vector<64x1xi32>
    %506 = arith.cmpi eq, %3, %505 : vector<64x1xi32>
    %cst_188 = arith.constant 0.000000e+00 : f32
    %cst_189 = arith.constant 1.000000e+30 : f32
    %507 = arith.subf %cst_188, %cst_189 : f32
    %508 = vector.shape_cast %506 : vector<64x1xi1> to vector<64x1xi1>
    %509 = vector.broadcast %508 : vector<64x1xi1> to vector<64x256xi1>
    %510 = vector.broadcast %507 : f32 to vector<64x256xf32>
    %511 = arith.select %509, %495, %510 : vector<64x256xi1>, vector<64x256xf32>
    %cst_190 = arith.constant dense<0xFF800000> : vector<256xf32>
    %512 = vector.multi_reduction <maximumf>, %511, %cst_190 [0] : vector<64x256xf32> to vector<256xf32>
    %513 = vector.shape_cast %512 : vector<256xf32> to vector<1x256xf32>
    %514 = tpu.concatenate %504, %513 in 0 : vector<1x256xf32>, vector<1x256xf32> -> vector<2x256xf32>
    %c0_191 = arith.constant 0 : index
    %c0_192 = arith.constant 0 : index
    %c0_193 = arith.constant 0 : index
    %515 = vector.load %arg14[%c0_191, %c0_192, %c0_193] : memref<1x2x256xf32, #tpu.memory_space<vmem>>, vector<1x2x256xf32>
    %516 = vector.shape_cast %515 : vector<1x2x256xf32> to vector<2x256xf32>
    %517 = vector.shape_cast %514 : vector<2x256xf32> to vector<1x2x256xf32>
    tpu.vector_store %arg14[%c0_191, %c0_192, %c0_193], %517 {strides = array<i32>} : memref<1x2x256xf32, #tpu.memory_space<vmem>>, vector<1x2x256xf32>,
    return
  }
  func.func @transform_0(%arg0: i32) -> (i32, i32, i32) {
    %c0_i32 = arith.constant 0 : i32
    %c0_i32_0 = arith.constant 0 : i32
    %c0_i32_1 = arith.constant 0 : i32
    return %arg0, %c0_i32, %c0_i32_0 : i32, i32, i32
  }
  func.func @transform_1(%arg0: i32) -> (i32, i32, i32) {
    %c0_i32 = arith.constant 0 : i32
    %c0_i32_0 = arith.constant 0 : i32
    %c0_i32_1 = arith.constant 0 : i32
    return %arg0, %c0_i32, %c0_i32_0 : i32, i32, i32
  }
  func.func @transform_2(%arg0: i32) -> (i32, i32, i32) {
    %c0_i32 = arith.constant 0 : i32
    %c0_i32_0 = arith.constant 0 : i32
    %c0_i32_1 = arith.constant 0 : i32
    return %arg0, %c0_i32, %c0_i32_0 : i32, i32, i32
  }
  func.func @transform_3(%arg0: i32) -> (i32, i32) {
    %c0_i32 = arith.constant 0 : i32
    %c0_i32_0 = arith.constant 0 : i32
    %c0_i32_1 = arith.constant 0 : i32
    return %c0_i32, %c0_i32_0 : i32, i32
  }
  func.func @transform_4(%arg0: i32) -> (i32, i32) {
    %c0_i32 = arith.constant 0 : i32
    %c0_i32_0 = arith.constant 0 : i32
    %c0_i32_1 = arith.constant 0 : i32
    return %c0_i32, %c0_i32_0 : i32, i32
  }
  func.func @transform_5(%arg0: i32) -> (i32, i32) {
    %c0_i32 = arith.constant 0 : i32
    %c0_i32_0 = arith.constant 0 : i32
    %c0_i32_1 = arith.constant 0 : i32
    return %c0_i32, %c0_i32_0 : i32, i32
  }
  func.func @transform_6(%arg0: i32) -> (i32, i32) {
    %c0_i32 = arith.constant 0 : i32
    %c0_i32_0 = arith.constant 0 : i32
    %c0_i32_1 = arith.constant 0 : i32
    return %c0_i32, %c0_i32_0 : i32, i32
  }
  func.func @transform_7(%arg0: i32) -> (i32, i32) {
    %c0_i32 = arith.constant 0 : i32
    %c0_i32_0 = arith.constant 0 : i32
    %c0_i32_1 = arith.constant 0 : i32
    return %c0_i32, %c0_i32_0 : i32, i32
  }
  func.func @transform_8(%arg0: i32) -> (i32, i32) {
    %c0_i32 = arith.constant 0 : i32
    %c0_i32_0 = arith.constant 0 : i32
    %c0_i32_1 = arith.constant 0 : i32
    return %c0_i32, %c0_i32_0 : i32, i32
  }
  func.func @transform_9(%arg0: i32) -> (i32, i32) {
    %c0_i32 = arith.constant 0 : i32
    %c0_i32_0 = arith.constant 0 : i32
    %c0_i32_1 = arith.constant 0 : i32
    return %c0_i32, %c0_i32_0 : i32, i32
  }
  func.func @transform_10(%arg0: i32) -> (i32, i32) {
    %c0_i32 = arith.constant 0 : i32
    %c0_i32_0 = arith.constant 0 : i32
    %c0_i32_1 = arith.constant 0 : i32
    return %c0_i32, %c0_i32_0 : i32, i32
  }
  func.func @transform_11(%arg0: i32) -> (i32, i32) {
    %c0_i32 = arith.constant 0 : i32
    %c0_i32_0 = arith.constant 0 : i32
    %c0_i32_1 = arith.constant 0 : i32
    return %c0_i32, %c0_i32_0 : i32, i32
  }
  func.func @transform_12(%arg0: i32) -> (i32, i32) {
    %c0_i32 = arith.constant 0 : i32
    %c0_i32_0 = arith.constant 0 : i32
    %c0_i32_1 = arith.constant 0 : i32
    return %c0_i32, %c0_i32_0 : i32, i32
  }
  func.func @transform_13(%arg0: i32) -> (i32, i32, i32) {
    %c0_i32 = arith.constant 0 : i32
    %c0_i32_0 = arith.constant 0 : i32
    %c0_i32_1 = arith.constant 0 : i32
    return %arg0, %c0_i32, %c0_i32_0 : i32, i32, i32
  }
}

</mosaic_0001>

<llo_original>
// kernel: net2_forward.3
$region0: #{net2_forward.3}
  #allocation0 [shape = 'u32[]', space=smem, size = 0x4, offset = 0x4, fixed_abs, tag = 'smem constant byte address 0x4 - core index']
  #allocation1 [shape = 'u32[144,128]{1,0:T(1,128)}', space=vmem, size = 0x12000, scoped, tag = 'internal scratch']
  %s0 = inlined_call_operand.vmem [shape: f32[2,2,256], index: 0, kind: input, shape index: {}]
  %s1 = inlined_call_operand.vmem [shape: bf16[256,64], index: 1, kind: input, shape index: {}]
  %s2 = inlined_call_operand.vmem [shape: f32[1,64], index: 2, kind: input, shape index: {}]
  %s3 = inlined_call_operand.vmem [shape: bf16[64,5], index: 3, kind: input, shape index: {}]
  %s4 = inlined_call_operand.vmem [shape: f32[1,5], index: 4, kind: input, shape index: {}]
  %s5 = inlined_call_operand.hbm [shape: f32[2,5], index: 5, kind: output, shape index: {}]
  %s6 = sld [smem:[#allocation0]]
  $region30: #{net2_forward.3} parent=0
    _
  %s8 = ssub.s32 1, %s6
  %s9 = scalar_select 0, %s8, %s6
  $region1: #{net2_forward.3} parent=0
    #allocation2 [shape = 'u8[1024]{0}', space=vmem, size = 0x400, scoped, tag = 'output window, operand 0, single buffered']
    #allocation3 [shape = 's32[1]{0}', space=sflag, size = 0x4, scoped, tag = 'scoped memory for net2_forward.3']
    %10 = vsyncpa [#allocation3], 0
    // Predicated region
    $region2: #{net2_forward.3} parent=1 // pred_check
      _
    $region3: #{net2_forward.3} parent=1 // pred_check_branch
      %12 = sbr.rel (0) target = $region5
    $region4: #{net2_forward.3} parent=1 // pred_region
      _
    $region5: #{net2_forward.3} parent=1 // pred_fallthru
      _
    // Predicated region
    $region6: #{net2_forward.3} parent=1 // pred_check
      _
    $region7: #{net2_forward.3} parent=1 // pred_check_branch
      %14 = sbr.rel (0) target = $region9
    $region8: #{net2_forward.3} parent=1 // pred_region
      _
    $region9: #{net2_forward.3} parent=1 // pred_fallthru
      _
    // Predicated region
    $region10: #{net2_forward.3} parent=1 // pred_check
      _
    $region11: #{net2_forward.3} parent=1 // pred_check_branch
      %16 = sbr.rel (0) target = $region13
    $region12: #{net2_forward.3} parent=1 // pred_region
      _
    $region13: #{net2_forward.3} parent=1 // pred_fallthru
      _
    // Predicated region
    $region14: #{net2_forward.3} parent=1 // pred_check
      _
    $region15: #{net2_forward.3} parent=1 // pred_check_branch
      %18 = sbr.rel (0) target = $region17
    $region16: #{net2_forward.3} parent=1 // pred_region
      _
    $region17: #{net2_forward.3} parent=1 // pred_fallthru
      _
    // Predicated region
    $region18: #{net2_forward.3} parent=1 // pred_check
      _
    $region19: #{net2_forward.3} parent=1 // pred_check_branch
      %20 = sbr.rel (0) target = $region21
    $region20: #{net2_forward.3} parent=1 // pred_region
      _
    $region21: #{net2_forward.3} parent=1 // pred_fallthru
      _
    %s22 = scalar_lea.vmem %s0, 4
    %v23 = vld [vmem:[%s22] sm:$0xf]
    %v24 = vld [vmem:[%s0] sm:$0xf]
    %v25 = vsub.f32 %v23, %v24
    %v28 = vunpack.c.l.s4 1983009808
    %v29 = vunpack.c.0.s8 %v28
    %v30 = vlaneseq
    %v31 = vshrl.u32 %v30, 7
    %v32 = vsub.s32 %v29, %v31
    %v33 = vrot.slane %v25, %v32
    %v34 = vcombine.high %v33, %v33
    %v37 = vpack.c.bf16 %v33, %v33
    %v38 = vpack.c.bf16 %v34, %v34
    %v39 = vld [vmem:[%s1] sm:$0xf]
    %v40 = vld [vmem:[%s1 + $0x4] sm:$0xf]
    %v41 = vld [vmem:[%s1 + $0x8] sm:$0xf]
    %v42 = vld [vmem:[%s1 + $0xc] sm:$0xf]
    %v43 = vld [vmem:[%s1 + $0x10] sm:$0xf]
    %v44 = vld [vmem:[%s1 + $0x14] sm:$0xf]
    %v45 = vld [vmem:[%s1 + $0x18] sm:$0xf]
    %v46 = vld [vmem:[%s1 + $0x1c] sm:$0xf]
    %v47 = vld [vmem:[%s1 + $0x20] sm:$0xf]
    %v48 = vld [vmem:[%s1 + $0x24] sm:$0xf]
    %v49 = vld [vmem:[%s1 + $0x28] sm:$0xf]
    %v50 = vld [vmem:[%s1 + $0x2c] sm:$0xf]
    %v51 = vld [vmem:[%s1 + $0x30] sm:$0xf]
    %v52 = vld [vmem:[%s1 + $0x34] sm:$0xf]
    %v53 = vld [vmem:[%s1 + $0x38] sm:$0xf]
    %v54 = vld [vmem:[%s1 + $0x3c] sm:$0xf]
    %v55 = vld [vmem:[%s1 + $0x40] sm:$0xf]
    %v56 = vld [vmem:[%s1 + $0x44] sm:$0xf]
    %v57 = vld [vmem:[%s1 + $0x48] sm:$0xf]
    %v58 = vld [vmem:[%s1 + $0x4c] sm:$0xf]
    %v59 = vld [vmem:[%s1 + $0x50] sm:$0xf]
    %v60 = vld [vmem:[%s1 + $0x54] sm:$0xf]
    %v61 = vld [vmem:[%s1 + $0x58] sm:$0xf]
    %v62 = vld [vmem:[%s1 + $0x5c] sm:$0xf]
    %v63 = vld [vmem:[%s1 + $0x60] sm:$0xf]
    %v64 = vld [vmem:[%s1 + $0x64] sm:$0xf]
    %v65 = vld [vmem:[%s1 + $0x68] sm:$0xf]
    %v66 = vld [vmem:[%s1 + $0x6c] sm:$0xf]
    %v67 = vld [vmem:[%s1 + $0x70] sm:$0xf]
    %v68 = vld [vmem:[%s1 + $0x74] sm:$0xf]
    %v69 = vld [vmem:[%s1 + $0x78] sm:$0xf]
    %v70 = vld [vmem:[%s1 + $0x7c] sm:$0xf]
    %v71 = vld [vmem:[%s2] sm:$0x1]
    %v73 = vlaneseq
    %v74 = vshrl.u32 %v73, 7
    %v75 = vsub.s32 0, %v74
    %v76 = vrot.slane %v71, %v75
    %v110 = vunpack.c.l.b16 %v39
    %v111 = vunpack.c.l.b16 %v40
    %v112 = vunpack.c.l.b16 %v41
    %v113 = vunpack.c.l.b16 %v42
    %v114 = vunpack.c.l.b16 %v43
    %v115 = vunpack.c.l.b16 %v44
    %v116 = vunpack.c.l.b16 %v45
    %v117 = vunpack.c.l.b16 %v46
    %v118 = vunpack.c.l.b16 %v47
    %v119 = vunpack.c.l.b16 %v48
    %v120 = vunpack.c.l.b16 %v49
    %v121 = vunpack.c.l.b16 %v50
    %v122 = vunpack.c.l.b16 %v51
    %v123 = vunpack.c.l.b16 %v52
    %v124 = vunpack.c.l.b16 %v53
    %v125 = vunpack.c.l.b16 %v54
    %v126 = vunpack.c.l.b16 %v55
    %v127 = vunpack.c.l.b16 %v56
    %v128 = vunpack.c.l.b16 %v57
    %v129 = vunpack.c.l.b16 %v58
    %v130 = vunpack.c.l.b16 %v59
    %v131 = vunpack.c.l.b16 %v60
    %v132 = vunpack.c.l.b16 %v61
    %v133 = vunpack.c.l.b16 %v62
    %v134 = vunpack.c.l.b16 %v63
    %v135 = vunpack.c.l.b16 %v64
    %v136 = vunpack.c.l.b16 %v65
    %v137 = vunpack.c.l.b16 %v66
    %v138 = vunpack.c.l.b16 %v67
    %v139 = vunpack.c.l.b16 %v68
    %v140 = vunpack.c.l.b16 %v69
    %v141 = vunpack.c.l.b16 %v70
    %v142 = vpack.c.b16 %v111, %v110
    %v143 = vpack.c.b16 %v113, %v112
    %v144 = vpack.c.b16 %v115, %v114
    %v145 = vpack.c.b16 %v117, %v116
    %v146 = vpack.c.b16 %v119, %v118
    %v147 = vpack.c.b16 %v121, %v120
    %v148 = vpack.c.b16 %v123, %v122
    %v149 = vpack.c.b16 %v125, %v124
    %v150 = vpack.c.b16 %v127, %v126
    %v151 = vpack.c.b16 %v129, %v128
    %v152 = vpack.c.b16 %v131, %v130
    %v153 = vpack.c.b16 %v133, %v132
    %v154 = vpack.c.b16 %v135, %v134
    %v155 = vpack.c.b16 %v137, %v136
    %v156 = vpack.c.b16 %v139, %v138
    %v157 = vpack.c.b16 %v141, %v140
    %174 = vmatprep.subr.bf16.mxu0 0
    %175 = vmatpush1.bf16.msra.mxu0 %v142
    %176 = vmatprep.subr.bf16.mxu0 0
    %177 = vmatpush1.bf16.msra.mxu0 %v143
    %178 = vmatprep.subr.bf16.mxu0 0
    %179 = vmatpush1.bf16.msra.mxu0 %v144
    %180 = vmatprep.subr.bf16.mxu0 0
    %181 = vmatpush1.bf16.msra.mxu0 %v145
    %182 = vmatprep.subr.bf16.mxu0 0
    %183 = vmatpush1.bf16.msra.mxu0 %v146
    %184 = vmatprep.subr.bf16.mxu0 0
    %185 = vmatpush1.bf16.msra.mxu0 %v147
    %186 = vmatprep.subr.bf16.mxu0 0
    %187 = vmatpush1.bf16.msra.mxu0 %v148
    %188 = vmatprep.subr.bf16.mxu0 0
    %189 = vmatpush1.bf16.msra.mxu0 %v149
    %190 = vmatprep.subr.bf16.mxu0 0
    %191 = vmatpush1.bf16.msra.mxu0 %v150
    %192 = vmatprep.subr.bf16.mxu0 0
    %193 = vmatpush1.bf16.msra.mxu0 %v151
    %194 = vmatprep.subr.bf16.mxu0 0
    %195 = vmatpush1.bf16.msra.mxu0 %v152
    %196 = vmatprep.subr.bf16.mxu0 0
    %197 = vmatpush1.bf16.msra.mxu0 %v153
    %198 = vmatprep.subr.bf16.mxu0 0
    %199 = vmatpush1.bf16.msra.mxu0 %v154
    %200 = vmatprep.subr.bf16.mxu0 0
    %201 = vmatpush1.bf16.msra.mxu0 %v155
    %202 = vmatprep.subr.bf16.mxu0 0
    %203 = vmatpush1.bf16.msra.mxu0 %v156
    %204 = vmatprep.subr.bf16.mxu0 0
    %205 = vmatpush1.bf16.msra.mxu0 %v157
    %206 = vmatprep.mubr.bf16.mxu0 %v38
    %207 = vmatmul.mubr.bf16.gmra.mrb[0].mxu0 %v37
    %v208 = vpop.f32.mrb[0].mxu0
    %v209 = vadd.f32 %v76, %v208
    %v210 = vpop.f32.mrb[0].mxu0
    %v211 = vpop.f32.mrb[0].mxu0
    %v212 = vpop.f32.mrb[0].mxu0
    %213 = vdwg.mxu0
    %v214 = vmax.f32 %v209, 0.0
    %v215 = vpack.c.bf16 %v214, %v214
    %v216 = vld [vmem:[%s3] sm:$0xf]
    %v217 = vld [vmem:[%s3 + $0x4] sm:$0xf]
    %v218 = vld [vmem:[%s3 + $0x8] sm:$0xf]
    %v219 = vld [vmem:[%s3 + $0xc] sm:$0xf]
    %v220 = vld [vmem:[%s3 + $0x10] sm:$0xf]
    %v221 = vld [vmem:[%s3 + $0x14] sm:$0xf]
    %v222 = vld [vmem:[%s3 + $0x18] sm:$0xf]
    %v223 = vld [vmem:[%s3 + $0x1c] sm:$0xf]
    %v224 = vld [vmem:[%s4] sm:$0x1]
    %v226 = vlaneseq
    %v227 = vshrl.u32 %v226, 7
    %v228 = vsub.s32 0, %v227
    %v229 = vrot.slane %v224, %v228
    %v239 = vunpack.c.l.b16 %v216
    %v240 = vunpack.c.l.b16 %v217
    %v241 = vunpack.c.l.b16 %v218
    %v242 = vunpack.c.l.b16 %v219
    %v243 = vunpack.c.l.b16 %v220
    %v244 = vunpack.c.l.b16 %v221
    %v245 = vunpack.c.l.b16 %v222
    %v246 = vunpack.c.l.b16 %v223
    %v247 = vpack.c.b16 %v240, %v239
    %v248 = vpack.c.b16 %v242, %v241
    %v249 = vpack.c.b16 %v244, %v243
    %v250 = vpack.c.b16 %v246, %v245
    %vm255 = vcmask 523264
    %v257 = vsel %vm255, %v215, 0
    %259 = vmatprep.subr.bf16.mxu0 0
    %260 = vmatpush1.bf16.msra.mxu0 %v247
    %261 = vmatprep.subr.bf16.mxu0 0
    %262 = vmatpush1.bf16.msra.mxu0 %v248
    %263 = vmatprep.subr.bf16.mxu0 0
    %264 = vmatpush1.bf16.msra.mxu0 %v249
    %265 = vmatprep.subr.bf16.mxu0 0
    %266 = vmatpush1.bf16.msra.mxu0 %v250
    %267 = vmatprep.subr.bf16.mxu0 0
    %268 = vmatpush1.bf16.msra.mxu0 0
    %269 = vmatprep.subr.bf16.mxu0 0
    %270 = vmatpush1.bf16.msra.mxu0 0
    %271 = vmatprep.subr.bf16.mxu0 0
    %272 = vmatpush1.bf16.msra.mxu0 0
    %273 = vmatprep.subr.bf16.mxu0 0
    %274 = vmatpush1.bf16.msra.mxu0 0
    %275 = vmatprep.subr.bf16.mxu0 0
    %276 = vmatpush1.bf16.msra.mxu0 0
    %277 = vmatprep.subr.bf16.mxu0 0
    %278 = vmatpush1.bf16.msra.mxu0 0
    %279 = vmatprep.subr.bf16.mxu0 0
    %280 = vmatpush1.bf16.msra.mxu0 0
    %281 = vmatprep.subr.bf16.mxu0 0
    %282 = vmatpush1.bf16.msra.mxu0 0
    %283 = vmatprep.subr.bf16.mxu0 0
    %284 = vmatpush1.bf16.msra.mxu0 0
    %285 = vmatprep.subr.bf16.mxu0 0
    %286 = vmatpush1.bf16.msra.mxu0 0
    %287 = vmatprep.subr.bf16.mxu0 0
    %288 = vmatpush1.bf16.msra.mxu0 0
    %289 = vmatprep.subr.bf16.mxu0 0
    %290 = vmatpush1.bf16.msra.mxu0 0
    %291 = vmatprep.mubr.bf16.mxu0 0
    %292 = vmatmul.mubr.bf16.gmra.mrb[0].mxu0 %v257
    %v293 = vpop.f32.mrb[0].mxu0
    %v294 = vadd.f32 %v229, %v293
    %v295 = vpop.f32.mrb[0].mxu0
    %v296 = vpop.f32.mrb[0].mxu0
    %v297 = vpop.f32.mrb[0].mxu0
    %298 = vdwg.mxu0
    %vm299 = vcmask 33792
    %v300 = vsel %vm299, %v294, -inf
    %301 = vmax.xlane.f32.xlu0 %v300
    %v302 = vpop.xlane.xlu0 %301
    %v303 = vsub.f32 %v294, %v302
    %v304 = vmul.f32 %v303, 1.442695
    %v305 = vpow.pop %v304
    %v306 = vsel %vm299, %v305, 0.0
    %307 = vadd.xlane.f32.xlu0 %v306
    %v308 = vpop.xlane.xlu0 %307
    %v309 = vlog2.pop %v308
    %v310 = vmul.f32 %v309, 0.6931472
    %v311 = vsub.f32 %v303, %v310
    %312 = vst.msk [vmem:[#allocation2] sm:$0x3] %vm299, %v311
    // Predicated region
    $region22: #{net2_forward.3} parent=1 // pred_check
      _
    $region23: #{net2_forward.3} parent=1 // pred_check_branch
      %314 = sbr.rel (0) target = $region25
    $region24: #{net2_forward.3} parent=1 // pred_region
      %s316 = ssub.s32 32, 32
      %317 = vsyncadd [#allocation3], %s316
      %s319 = sshll.u32 [#allocation2], 4
      %s320 = int_to_ptr.vmem [resolvable:$true] %s319
      %322 = dma.vmem_to_hbm [thread:$0]  %s320, 32, %s5, [#allocation3]
    $region25: #{net2_forward.3} parent=1 // pred_fallthru
      _
    // Predicated region
    $region26: #{net2_forward.3} parent=1 // pred_check
      _
    $region27: #{net2_forward.3} parent=1 // pred_check_branch
      %324 = sbr.rel (0) target = $region29
    $region28: #{net2_forward.3} parent=1 // pred_region
      %325 = dma.done [#allocation3], 32
    $region29: #{net2_forward.3} parent=1 // pred_fallthru
      _
    %326 = vsyncpa [#allocation3], 1

// kernel: net2_forward.2
$region0: #{net2_forward.2}
  #allocation0 [shape = 'u32[]', space=smem, size = 0x4, offset = 0x4, fixed_abs, tag = 'smem constant byte address 0x4 - core index']
  #allocation1 [shape = 'u32[144,128]{1,0:T(1,128)}', space=vmem, size = 0x12000, scoped, tag = 'internal scratch']
  %s0 = inlined_call_operand.vmem [shape: f32[2,64,6], index: 0, kind: input, shape index: {}]
  %s1 = inlined_call_operand.vmem [shape: s32[2,64,1], index: 1, kind: input, shape index: {}]
  %s2 = inlined_call_operand.vmem [shape: s32[2,1,64], index: 2, kind: input, shape index: {}]
  %s3 = inlined_call_operand.vmem [shape: bf16[6,64], index: 3, kind: input, shape index: {}]
  %s4 = inlined_call_operand.vmem [shape: bf16[6,64], index: 4, kind: input, shape index: {}]
  %s5 = inlined_call_operand.vmem [shape: f32[1,64], index: 5, kind: input, shape index: {}]
  %s6 = inlined_call_operand.vmem [shape: bf16[64,64], index: 6, kind: input, shape index: {}]
  %s7 = inlined_call_operand.vmem [shape: f32[1,64], index: 7, kind: input, shape index: {}]
  %s8 = inlined_call_operand.vmem [shape: bf16[64,64], index: 8, kind: input, shape index: {}]
  %s9 = inlined_call_operand.vmem [shape: f32[1,64], index: 9, kind: input, shape index: {}]
  %s10 = inlined_call_operand.vmem [shape: bf16[64,256], index: 10, kind: input, shape index: {}]
  %s11 = inlined_call_operand.vmem [shape: bf16[64,256], index: 11, kind: input, shape index: {}]
  %s12 = inlined_call_operand.vmem [shape: f32[1,256], index: 12, kind: input, shape index: {}]
  %s13 = inlined_call_operand.vmem [shape: f32[2,2,256], index: 13, kind: output, shape index: {}]
  %s14 = sld [smem:[#allocation0]]
  $region85: #{net2_forward.2} parent=0
    _
  %s16 = ssub.s32 1, %s14
  %s17 = scalar_select 0, %s16, %s14
  loop: start=0, step=1, limit=4
  $region2: #{net2_forward.2} parent=0 // loop_pre_header
    _
  $region3: #{net2_forward.2} parent=0 // loop_header
    %s19 = sphi 0, %s23
    %p20 = scmp.ge.s32.totalorder %s19, 4
    %s29 = sphi 0, %s31
    %s32 = sphi 0, %s29
    %s33 = sphi 0, %s32
    %s49 = sphi 0, %s33
    %s55 = sphi 0, %s57
    %s58 = sphi 0, %s55
    %s59 = sphi 0, %s58
    %s75 = sphi 0, %s59
    %s81 = sphi 0, %s83
    %s84 = sphi 0, %s81
    %s85 = sphi 0, %s84
    %s101 = sphi 0, %s85
    %s105 = sphi 0, %s105
    %s107 = sphi 0, %s105
    %s108 = sphi 0, %s107
    %s122 = sphi 0, %s108
    %s126 = sphi 0, %s126
    %s128 = sphi 0, %s126
    %s129 = sphi 0, %s128
    %s143 = sphi 0, %s129
    %s147 = sphi 0, %s147
    %s149 = sphi 0, %s147
    %s150 = sphi 0, %s149
    %s164 = sphi 0, %s150
    %s168 = sphi 0, %s168
    %s170 = sphi 0, %s168
    %s171 = sphi 0, %s170
    %s185 = sphi 0, %s171
    %s189 = sphi 0, %s189
    %s191 = sphi 0, %s189
    %s192 = sphi 0, %s191
    %s206 = sphi 0, %s192
    %s210 = sphi 0, %s210
    %s212 = sphi 0, %s210
    %s213 = sphi 0, %s212
    %s227 = sphi 0, %s213
    %s231 = sphi 0, %s231
    %s233 = sphi 0, %s231
    %s234 = sphi 0, %s233
    %s248 = sphi 0, %s234
    %s252 = sphi 0, %s252
    %s254 = sphi 0, %s252
    %s255 = sphi 0, %s254
    %s269 = sphi 0, %s255
    %s273 = sphi 0, %s273
    %s275 = sphi 0, %s273
    %s276 = sphi 0, %s275
    %s290 = sphi 0, %s276
    %s294 = sphi 0, %s294
    %s296 = sphi 0, %s294
    %s297 = sphi 0, %s296
    %s311 = sphi 0, %s297
    %s317 = sphi 0, %s319
    %s320 = sphi 0, %s317
    %s321 = sphi 0, %s320
    %s337 = sphi 0, %s321
  $region4: #{net2_forward.2} parent=0 // loop_header_branch
    %22 = sbr.rel (%p20) target = $region8
  $region5: #{net2_forward.2} parent=0 // loop_body
    %s24 = ssub.s32 %s19, 1
    %s25 = ssub.s32 %s19, 2
    %s26 = sadd.s32 %s19, 1
    %s27 = ssub.s32 %s19, %s26
    %p28 = scmp.eq.s32.totalorder %s27, 0
    %s30 = sadd.s32 %s29, 1
    %s31 = scalar_select %p28, %s29, %s30
    %p34 = pneg %p28
    %p35 = scmp.eq.s32.totalorder %s19, 1
    %p36 = por %p34, %p35
    %p37 = scmp.ne.s32.totalorder %s29, %s32
    %p38 = scmp.eq.s32.totalorder %s19, 0
    %p39 = por %p37, %p38
    %p40 = scmp.ne.s32.totalorder %s29, %s32
    %p41 = scmp.eq.s32.totalorder %s24, 1
    %p42 = por %p40, %p41
    %p43 = scmp.ne.s32.totalorder %s32, %s33
    %p44 = scmp.eq.s32.totalorder %s24, 0
    %p45 = por %p43, %p44
    %p46 = scmp.ne.s32.totalorder %s32, %s33
    %p47 = scmp.eq.s32.totalorder %s25, 1
    %p48 = por %p46, %p47
    %p50 = scmp.ne.s32.totalorder %s33, %s49
    %p51 = scmp.eq.s32.totalorder %s25, 0
    %p52 = por %p50, %p51
    %s53 = ssub.s32 %s19, %s26
    %p54 = scmp.eq.s32.totalorder %s53, 0
    %s56 = sadd.s32 %s55, 1
    %s57 = scalar_select %p54, %s55, %s56
    %p60 = pneg %p54
    %p61 = scmp.eq.s32.totalorder %s19, 1
    %p62 = por %p60, %p61
    %p63 = scmp.ne.s32.totalorder %s55, %s58
    %p64 = scmp.eq.s32.totalorder %s19, 0
    %p65 = por %p63, %p64
    %p66 = scmp.ne.s32.totalorder %s55, %s58
    %p67 = scmp.eq.s32.totalorder %s24, 1
    %p68 = por %p66, %p67
    %p69 = scmp.ne.s32.totalorder %s58, %s59
    %p70 = scmp.eq.s32.totalorder %s24, 0
    %p71 = por %p69, %p70
    %p72 = scmp.ne.s32.totalorder %s58, %s59
    %p73 = scmp.eq.s32.totalorder %s25, 1
    %p74 = por %p72, %p73
    %p76 = scmp.ne.s32.totalorder %s59, %s75
    %p77 = scmp.eq.s32.totalorder %s25, 0
    %p78 = por %p76, %p77
    %s79 = ssub.s32 %s19, %s26
    %p80 = scmp.eq.s32.totalorder %s79, 0
    %s82 = sadd.s32 %s81, 1
    %s83 = scalar_select %p80, %s81, %s82
    %p86 = pneg %p80
    %p87 = scmp.eq.s32.totalorder %s19, 1
    %p88 = por %p86, %p87
    %p89 = scmp.ne.s32.totalorder %s81, %s84
    %p90 = scmp.eq.s32.totalorder %s19, 0
    %p91 = por %p89, %p90
    %p92 = scmp.ne.s32.totalorder %s81, %s84
    %p93 = scmp.eq.s32.totalorder %s24, 1
    %p94 = por %p92, %p93
    %p95 = scmp.ne.s32.totalorder %s84, %s85
    %p96 = scmp.eq.s32.totalorder %s24, 0
    %p97 = por %p95, %p96
    %p98 = scmp.ne.s32.totalorder %s84, %s85
    %p99 = scmp.eq.s32.totalorder %s25, 1
    %p100 = por %p98, %p99
    %p102 = scmp.ne.s32.totalorder %s85, %s101
    %p103 = scmp.eq.s32.totalorder %s25, 0
    %p104 = por %p102, %p103
    %s106 = sadd.s32 %s105, 1
    %p109 = scmp.eq.s32.totalorder %s19, 1
    %p110 = scmp.ne.s32.totalorder %s105, %s107
    %p111 = scmp.eq.s32.totalorder %s19, 0
    %p112 = por %p110, %p111
    %p113 = scmp.ne.s32.totalorder %s105, %s107
    %p114 = scmp.eq.s32.totalorder %s24, 1
    %p115 = por %p113, %p114
    %p116 = scmp.ne.s32.totalorder %s107, %s108
    %p117 = scmp.eq.s32.totalorder %s24, 0
    %p118 = por %p116, %p117
    %p119 = scmp.ne.s32.totalorder %s107, %s108
    %p120 = scmp.eq.s32.totalorder %s25, 1
    %p121 = por %p119, %p120
    %p123 = scmp.ne.s32.totalorder %s108, %s122
    %p124 = scmp.eq.s32.totalorder %s25, 0
    %p125 = por %p123, %p124
    %s127 = sadd.s32 %s126, 1
    %p130 = scmp.eq.s32.totalorder %s19, 1
    %p131 = scmp.ne.s32.totalorder %s126, %s128
    %p132 = scmp.eq.s32.totalorder %s19, 0
    %p133 = por %p131, %p132
    %p134 = scmp.ne.s32.totalorder %s126, %s128
    %p135 = scmp.eq.s32.totalorder %s24, 1
    %p136 = por %p134, %p135
    %p137 = scmp.ne.s32.totalorder %s128, %s129
    %p138 = scmp.eq.s32.totalorder %s24, 0
    %p139 = por %p137, %p138
    %p140 = scmp.ne.s32.totalorder %s128, %s129
    %p141 = scmp.eq.s32.totalorder %s25, 1
    %p142 = por %p140, %p141
    %p144 = scmp.ne.s32.totalorder %s129, %s143
    %p145 = scmp.eq.s32.totalorder %s25, 0
    %p146 = por %p144, %p145
    %s148 = sadd.s32 %s147, 1
    %p151 = scmp.eq.s32.totalorder %s19, 1
    %p152 = scmp.ne.s32.totalorder %s147, %s149
    %p153 = scmp.eq.s32.totalorder %s19, 0
    %p154 = por %p152, %p153
    %p155 = scmp.ne.s32.totalorder %s147, %s149
    %p156 = scmp.eq.s32.totalorder %s24, 1
    %p157 = por %p155, %p156
    %p158 = scmp.ne.s32.totalorder %s149, %s150
    %p159 = scmp.eq.s32.totalorder %s24, 0
    %p160 = por %p158, %p159
    %p161 = scmp.ne.s32.totalorder %s149, %s150
    %p162 = scmp.eq.s32.totalorder %s25, 1
    %p163 = por %p161, %p162
    %p165 = scmp.ne.s32.totalorder %s150, %s164
    %p166 = scmp.eq.s32.totalorder %s25, 0
    %p167 = por %p165, %p166
    %s169 = sadd.s32 %s168, 1
    %p172 = scmp.eq.s32.totalorder %s19, 1
    %p173 = scmp.ne.s32.totalorder %s168, %s170
    %p174 = scmp.eq.s32.totalorder %s19, 0
    %p175 = por %p173, %p174
    %p176 = scmp.ne.s32.totalorder %s168, %s170
    %p177 = scmp.eq.s32.totalorder %s24, 1
    %p178 = por %p176, %p177
    %p179 = scmp.ne.s32.totalorder %s170, %s171
    %p180 = scmp.eq.s32.totalorder %s24, 0
    %p181 = por %p179, %p180
    %p182 = scmp.ne.s32.totalorder %s170, %s171
    %p183 = scmp.eq.s32.totalorder %s25, 1
    %p184 = por %p182, %p183
    %p186 = scmp.ne.s32.totalorder %s171, %s185
    %p187 = scmp.eq.s32.totalorder %s25, 0
    %p188 = por %p186, %p187
    %s190 = sadd.s32 %s189, 1
    %p193 = scmp.eq.s32.totalorder %s19, 1
    %p194 = scmp.ne.s32.totalorder %s189, %s191
    %p195 = scmp.eq.s32.totalorder %s19, 0
    %p196 = por %p194, %p195
    %p197 = scmp.ne.s32.totalorder %s189, %s191
    %p198 = scmp.eq.s32.totalorder %s24, 1
    %p199 = por %p197, %p198
    %p200 = scmp.ne.s32.totalorder %s191, %s192
    %p201 = scmp.eq.s32.totalorder %s24, 0
    %p202 = por %p200, %p201
    %p203 = scmp.ne.s32.totalorder %s191, %s192
    %p204 = scmp.eq.s32.totalorder %s25, 1
    %p205 = por %p203, %p204
    %p207 = scmp.ne.s32.totalorder %s192, %s206
    %p208 = scmp.eq.s32.totalorder %s25, 0
    %p209 = por %p207, %p208
    %s211 = sadd.s32 %s210, 1
    %p214 = scmp.eq.s32.totalorder %s19, 1
    %p215 = scmp.ne.s32.totalorder %s210, %s212
    %p216 = scmp.eq.s32.totalorder %s19, 0
    %p217 = por %p215, %p216
    %p218 = scmp.ne.s32.totalorder %s210, %s212
    %p219 = scmp.eq.s32.totalorder %s24, 1
    %p220 = por %p218, %p219
    %p221 = scmp.ne.s32.totalorder %s212, %s213
    %p222 = scmp.eq.s32.totalorder %s24, 0
    %p223 = por %p221, %p222
    %p224 = scmp.ne.s32.totalorder %s212, %s213
    %p225 = scmp.eq.s32.totalorder %s25, 1
    %p226 = por %p224, %p225
    %p228 = scmp.ne.s32.totalorder %s213, %s227
    %p229 = scmp.eq.s32.totalorder %s25, 0
    %p230 = por %p228, %p229
    %s232 = sadd.s32 %s231, 1
    %p235 = scmp.eq.s32.totalorder %s19, 1
    %p236 = scmp.ne.s32.totalorder %s231, %s233
    %p237 = scmp.eq.s32.totalorder %s19, 0
    %p238 = por %p236, %p237
    %p239 = scmp.ne.s32.totalorder %s231, %s233
    %p240 = scmp.eq.s32.totalorder %s24, 1
    %p241 = por %p239, %p240
    %p242 = scmp.ne.s32.totalorder %s233, %s234
    %p243 = scmp.eq.s32.totalorder %s24, 0
    %p244 = por %p242, %p243
    %p245 = scmp.ne.s32.totalorder %s233, %s234
    %p246 = scmp.eq.s32.totalorder %s25, 1
    %p247 = por %p245, %p246
    %p249 = scmp.ne.s32.totalorder %s234, %s248
    %p250 = scmp.eq.s32.totalorder %s25, 0
    %p251 = por %p249, %p250
    %s253 = sadd.s32 %s252, 1
    %p256 = scmp.eq.s32.totalorder %s19, 1
    %p257 = scmp.ne.s32.totalorder %s252, %s254
    %p258 = scmp.eq.s32.totalorder %s19, 0
    %p259 = por %p257, %p258
    %p260 = scmp.ne.s32.totalorder %s252, %s254
    %p261 = scmp.eq.s32.totalorder %s24, 1
    %p262 = por %p260, %p261
    %p263 = scmp.ne.s32.totalorder %s254, %s255
    %p264 = scmp.eq.s32.totalorder %s24, 0
    %p265 = por %p263, %p264
    %p266 = scmp.ne.s32.totalorder %s254, %s255
    %p267 = scmp.eq.s32.totalorder %s25, 1
    %p268 = por %p266, %p267
    %p270 = scmp.ne.s32.totalorder %s255, %s269
    %p271 = scmp.eq.s32.totalorder %s25, 0
    %p272 = por %p270, %p271
    %s274 = sadd.s32 %s273, 1
    %p277 = scmp.eq.s32.totalorder %s19, 1
    %p278 = scmp.ne.s32.totalorder %s273, %s275
    %p279 = scmp.eq.s32.totalorder %s19, 0
    %p280 = por %p278, %p279
    %p281 = scmp.ne.s32.totalorder %s273, %s275
    %p282 = scmp.eq.s32.totalorder %s24, 1
    %p283 = por %p281, %p282
    %p284 = scmp.ne.s32.totalorder %s275, %s276
    %p285 = scmp.eq.s32.totalorder %s24, 0
    %p286 = por %p284, %p285
    %p287 = scmp.ne.s32.totalorder %s275, %s276
    %p288 = scmp.eq.s32.totalorder %s25, 1
    %p289 = por %p287, %p288
    %p291 = scmp.ne.s32.totalorder %s276, %s290
    %p292 = scmp.eq.s32.totalorder %s25, 0
    %p293 = por %p291, %p292
    %s295 = sadd.s32 %s294, 1
    %p298 = scmp.eq.s32.totalorder %s19, 1
    %p299 = scmp.ne.s32.totalorder %s294, %s296
    %p300 = scmp.eq.s32.totalorder %s19, 0
    %p301 = por %p299, %p300
    %p302 = scmp.ne.s32.totalorder %s294, %s296
    %p303 = scmp.eq.s32.totalorder %s24, 1
    %p304 = por %p302, %p303
    %p305 = scmp.ne.s32.totalorder %s296, %s297
    %p306 = scmp.eq.s32.totalorder %s24, 0
    %p307 = por %p305, %p306
    %p308 = scmp.ne.s32.totalorder %s296, %s297
    %p309 = scmp.eq.s32.totalorder %s25, 1
    %p310 = por %p308, %p309
    %p312 = scmp.ne.s32.totalorder %s297, %s311
    %p313 = scmp.eq.s32.totalorder %s25, 0
    %p314 = por %p312, %p313
    %s315 = ssub.s32 %s19, %s26
    %p316 = scmp.eq.s32.totalorder %s315, 0
    %s318 = sadd.s32 %s317, 1
    %s319 = scalar_select %p316, %s317, %s318
    %p322 = pneg %p316
    %p323 = scmp.eq.s32.totalorder %s19, 1
    %p324 = por %p322, %p323
    %p325 = scmp.ne.s32.totalorder %s317, %s320
    %p326 = scmp.eq.s32.totalorder %s19, 0
    %p327 = por %p325, %p326
    %p328 = scmp.ne.s32.totalorder %s317, %s320
    %p329 = scmp.eq.s32.totalorder %s24, 1
    %p330 = por %p328, %p329
    %p331 = scmp.ne.s32.totalorder %s320, %s321
    %p332 = scmp.eq.s32.totalorder %s24, 0
    %p333 = por %p331, %p332
    %p334 = scmp.ne.s32.totalorder %s320, %s321
    %p335 = scmp.eq.s32.totalorder %s25, 1
    %p336 = por %p334, %p335
    %p338 = scmp.ne.s32.totalorder %s321, %s337
    %p339 = scmp.eq.s32.totalorder %s25, 0
    %p340 = por %p338, %p339
    %p341 = scmp.le.s32.totalorder 1, %s19
    %p342 = scmp.lt.s32.totalorder %s19, 3
    %p343 = pnand %p341, %p342
    %p344 = pneg %p343
    // Predicated region
    $region9: #{net2_forward.2} parent=5 // pred_check
      _
    $region10: #{net2_forward.2} parent=5 // pred_check_branch
      %346 = sbr.rel (%p343) target = $region12
    $region11: #{net2_forward.2} parent=5 // pred_region
      %s347 = ssub.s32 %s19, 1
      // Predicated region
      $region13: #{net2_forward.2} parent=11 // pred_check
        %p348 = pneg %p118
      $region14: #{net2_forward.2} parent=11 // pred_check_branch
        %350 = sbr.rel (%p348) target = $region16
      $region15: #{net2_forward.2} parent=11 // pred_region
        _
      $region16: #{net2_forward.2} parent=11 // pred_fallthru
        _
      // Predicated region
      $region17: #{net2_forward.2} parent=11 // pred_check
        %p351 = pneg %p139
      $region18: #{net2_forward.2} parent=11 // pred_check_branch
        %353 = sbr.rel (%p351) target = $region20
      $region19: #{net2_forward.2} parent=11 // pred_region
        _
      $region20: #{net2_forward.2} parent=11 // pred_fallthru
        _
      // Predicated region
      $region21: #{net2_forward.2} parent=11 // pred_check
        %p354 = pneg %p160
      $region22: #{net2_forward.2} parent=11 // pred_check_branch
        %356 = sbr.rel (%p354) target = $region24
      $region23: #{net2_forward.2} parent=11 // pred_region
        _
      $region24: #{net2_forward.2} parent=11 // pred_fallthru
        _
      // Predicated region
      $region25: #{net2_forward.2} parent=11 // pred_check
        %p357 = pneg %p181
      $region26: #{net2_forward.2} parent=11 // pred_check_branch
        %359 = sbr.rel (%p357) target = $region28
      $region27: #{net2_forward.2} parent=11 // pred_region
        _
      $region28: #{net2_forward.2} parent=11 // pred_fallthru
        _
      // Predicated region
      $region29: #{net2_forward.2} parent=11 // pred_check
        %p360 = pneg %p202
      $region30: #{net2_forward.2} parent=11 // pred_check_branch
        %362 = sbr.rel (%p360) target = $region32
      $region31: #{net2_forward.2} parent=11 // pred_region
        _
      $region32: #{net2_forward.2} parent=11 // pred_fallthru
        _
      // Predicated region
      $region33: #{net2_forward.2} parent=11 // pred_check
        %p363 = pneg %p223
      $region34: #{net2_forward.2} parent=11 // pred_check_branch
        %365 = sbr.rel (%p363) target = $region36
      $region35: #{net2_forward.2} parent=11 // pred_region
        _
      $region36: #{net2_forward.2} parent=11 // pred_fallthru
        _
      // Predicated region
      $region37: #{net2_forward.2} parent=11 // pred_check
        %p366 = pneg %p244
      $region38: #{net2_forward.2} parent=11 // pred_check_branch
        %368 = sbr.rel (%p366) target = $region40
      $region39: #{net2_forward.2} parent=11 // pred_region
        _
      $region40: #{net2_forward.2} parent=11 // pred_fallthru
        _
      // Predicated region
      $region41: #{net2_forward.2} parent=11 // pred_check
        %p369 = pneg %p265
      $region42: #{net2_forward.2} parent=11 // pred_check_branch
        %371 = sbr.rel (%p369) target = $region44
      $region43: #{net2_forward.2} parent=11 // pred_region
        _
      $region44: #{net2_forward.2} parent=11 // pred_fallthru
        _
      // Predicated region
      $region45: #{net2_forward.2} parent=11 // pred_check
        %p372 = pneg %p286
      $region46: #{net2_forward.2} parent=11 // pred_check_branch
        %374 = sbr.rel (%p372) target = $region48
      $region47: #{net2_forward.2} parent=11 // pred_region
        _
      $region48: #{net2_forward.2} parent=11 // pred_fallthru
        _
      // Predicated region
      $region49: #{net2_forward.2} parent=11 // pred_check
        %p375 = pneg %p307
      $region50: #{net2_forward.2} parent=11 // pred_check_branch
        %377 = sbr.rel (%p375) target = $region52
      $region51: #{net2_forward.2} parent=11 // pred_region
        _
      $region52: #{net2_forward.2} parent=11 // pred_fallthru
        _
    $region12: #{net2_forward.2} parent=5 // pred_fallthru
      _
    %p378 = scmp.lt.s32.totalorder %s19, 2
    // Predicated region
    $region53: #{net2_forward.2} parent=5 // pred_check
      %p379 = pneg %p378
    $region54: #{net2_forward.2} parent=5 // pred_check_branch
      %381 = sbr.rel (%p379) target = $region56
    $region55: #{net2_forward.2} parent=5 // pred_region
      // Predicated region
      $region57: #{net2_forward.2} parent=55 // pred_check
        %p382 = pneg %p39
      $region58: #{net2_forward.2} parent=55 // pred_check_branch
        %384 = sbr.rel (%p382) target = $region60
      $region59: #{net2_forward.2} parent=55 // pred_region
        %p385 = scmp.lt.s32.totalorder %s19, 1
        %s386 = scalar_select %p385, %s19, 1
        %s387 = smul.addr %s386, 8
        %s388 = smul.addr %s387, 8
        %s389 = scalar_lea.vmem %s0, %s388
      $region60: #{net2_forward.2} parent=55 // pred_fallthru
        _
      // Predicated region
      $region61: #{net2_forward.2} parent=55 // pred_check
        %p390 = pneg %p65
      $region62: #{net2_forward.2} parent=55 // pred_check_branch
        %392 = sbr.rel (%p390) target = $region64
      $region63: #{net2_forward.2} parent=55 // pred_region
        %p393 = scmp.lt.s32.totalorder %s19, 1
        %s394 = scalar_select %p393, %s19, 1
        %s395 = smul.addr %s394, 8
        %s396 = smul.addr %s395, 8
        %s397 = scalar_lea.vmem %s1, %s396
      $region64: #{net2_forward.2} parent=55 // pred_fallthru
        _
      // Predicated region
      $region65: #{net2_forward.2} parent=55 // pred_check
        %p398 = pneg %p91
      $region66: #{net2_forward.2} parent=55 // pred_check_branch
        %400 = sbr.rel (%p398) target = $region68
      $region67: #{net2_forward.2} parent=55 // pred_region
        %p401 = scmp.lt.s32.totalorder %s19, 1
        %s402 = scalar_select %p401, %s19, 1
        %s403 = scalar_lea.vmem %s2, %s402
      $region68: #{net2_forward.2} parent=55 // pred_fallthru
        _
    $region56: #{net2_forward.2} parent=5 // pred_fallthru
      _
    %p404 = scmp.le.s32.totalorder 1, %s19
    %p405 = scmp.lt.s32.totalorder %s19, 3
    %p406 = pnand %p404, %p405
    %p407 = pneg %p406
    // Predicated region
    $region69: #{net2_forward.2} parent=5 // pred_check
      _
    $region70: #{net2_forward.2} parent=5 // pred_check_branch
      %409 = sbr.rel (%p406) target = $region72
    $region71: #{net2_forward.2} parent=5 // pred_region
      %s410 = ssub.s32 %s19, 1
      %p411 = scmp.lt.s32.totalorder %s24, 1
      %s412 = scalar_select %p411, %s24, 1
      %s413 = smul.addr %s412, 8
      %s414 = smul.addr %s413, 8
      %s415 = scalar_lea.vmem %s0, %s414
      %p416 = pneg %p45
      %p417 = pneg %p42
      %p418 = scmp.lt.s32.totalorder %s24, 1
      %s419 = scalar_select %p418, %s24, 1
      %s420 = smul.addr %s419, 8
      %s421 = smul.addr %s420, 8
      %s422 = scalar_lea.vmem %s1, %s421
      %p423 = pneg %p71
      %p424 = pneg %p68
      %p425 = scmp.lt.s32.totalorder %s24, 1
      %s426 = scalar_select %p425, %s24, 1
      %s427 = scalar_lea.vmem %s2, %s426
      %p428 = pneg %p97
      %p429 = pneg %p94
      %p430 = pneg %p118
      %p431 = pneg %p115
      %p432 = pneg %p139
      %p433 = pneg %p136
      %p434 = pneg %p160
      %p435 = pneg %p157
      %p436 = pneg %p181
      %p437 = pneg %p178
      %p438 = pneg %p202
      %p439 = pneg %p199
      %p440 = pneg %p223
      %p441 = pneg %p220
      %p442 = pneg %p244
      %p443 = pneg %p241
      %p444 = pneg %p265
      %p445 = pneg %p262
      %p446 = pneg %p286
      %p447 = pneg %p283
      %p448 = pneg %p307
      %p449 = pneg %p304
      %p450 = pneg %p333
      %p451 = pneg %p330
      %p452 = scmp.lt.s32.totalorder %s24, 1
      %s453 = scalar_select %p452, %s24, 1
      %s454 = smul.addr %s453, 2
      %s455 = smul.addr %s454, 2
      %s456 = scalar_lea.vmem %s13, %s455
      %p457 = scmp.lt.s32.totalorder %s24, 1
      %s458 = scalar_select %p457, %s24, 1
      %s459 = smul.addr %s458, 8
      %s460 = smul.addr %s459, 8
      %s461 = scalar_lea.vmem %s0, %s460
      %p462 = scmp.lt.s32.totalorder %s24, 1
      %s463 = scalar_select %p462, %s24, 1
      %s464 = smul.addr %s463, 8
      %s465 = smul.addr %s464, 8
      %s466 = scalar_lea.vmem %s1, %s465
      %p467 = scmp.lt.s32.totalorder %s24, 1
      %s468 = scalar_select %p467, %s24, 1
      %s469 = scalar_lea.vmem %s2, %s468
      %p470 = scmp.lt.s32.totalorder %s24, 1
      %s471 = scalar_select %p470, %s24, 1
      %s472 = smul.addr %s471, 2
      %s473 = smul.addr %s472, 2
      %s474 = scalar_lea.vmem %s13, %s473
      %v476 = vld [vmem:[%s461] sm:$0xff]
      %v477 = vld [vmem:[%s461 + $0x8] sm:$0xff]
      %v478 = vld [vmem:[%s461 + $0x10] sm:$0xff]
      %v479 = vld [vmem:[%s461 + $0x18] sm:$0xff]
      %v480 = vld [vmem:[%s461 + $0x20] sm:$0xff]
      %v481 = vld [vmem:[%s461 + $0x28] sm:$0xff]
      %v482 = vld [vmem:[%s461 + $0x30] sm:$0xff]
      %v483 = vld [vmem:[%s461 + $0x38] sm:$0xff]
      %v484 = vld [vmem:[%s466] sm:$0xff]
      %v485 = vld [vmem:[%s466 + $0x8] sm:$0xff]
      %v486 = vld [vmem:[%s466 + $0x10] sm:$0xff]
      %v487 = vld [vmem:[%s466 + $0x18] sm:$0xff]
      %v488 = vld [vmem:[%s466 + $0x20] sm:$0xff]
      %v489 = vld [vmem:[%s466 + $0x28] sm:$0xff]
      %v490 = vld [vmem:[%s466 + $0x30] sm:$0xff]
      %v491 = vld [vmem:[%s466 + $0x38] sm:$0xff]
      %v492 = vld [vmem:[%s469] sm:$0x1]
      %v493 = vld [vmem:[%s3] sm:$0x7]
      %v494 = vld [vmem:[%s4] sm:$0x7]
      %v495 = vld [vmem:[%s5] sm:$0x1]
      %v496 = vld [vmem:[%s6] sm:$0xf]
      %v497 = vld [vmem:[%s6 + $0x4] sm:$0xf]
      %v498 = vld [vmem:[%s6 + $0x8] sm:$0xf]
      %v499 = vld [vmem:[%s6 + $0xc] sm:$0xf]
      %v500 = vld [vmem:[%s6 + $0x10] sm:$0xf]
      %v501 = vld [vmem:[%s6 + $0x14] sm:$0xf]
      %v502 = vld [vmem:[%s6 + $0x18] sm:$0xf]
      %v503 = vld [vmem:[%s6 + $0x1c] sm:$0xf]
      %v504 = vld [vmem:[%s7] sm:$0x1]
      %v505 = vld [vmem:[%s8] sm:$0xf]
      %v506 = vld [vmem:[%s8 + $0x4] sm:$0xf]
      %v507 = vld [vmem:[%s8 + $0x8] sm:$0xf]
      %v508 = vld [vmem:[%s8 + $0xc] sm:$0xf]
      %v509 = vld [vmem:[%s8 + $0x10] sm:$0xf]
      %v510 = vld [vmem:[%s8 + $0x14] sm:$0xf]
      %v511 = vld [vmem:[%s8 + $0x18] sm:$0xf]
      %v512 = vld [vmem:[%s8 + $0x1c] sm:$0xf]
      %v513 = vld [vmem:[%s9] sm:$0x1]
      %vm514 = vcmask 48128
      %v516 = vsel %vm514, %v476, 0
      %v519 = vsel %vm514, %v477, 0
      %v522 = vsel %vm514, %v478, 0
      %v525 = vsel %vm514, %v479, 0
      %v528 = vsel %vm514, %v480, 0
      %v531 = vsel %vm514, %v481, 0
      %v534 = vsel %vm514, %v482, 0
      %v537 = vsel %vm514, %v483, 0
      %539 = vmatprep.subr.mxu0 0.0
      %540 = vmatpush1.xpose.msra.mxu0 %v516
      %541 = vmatprep.subr.mxu0 0.0
      %542 = vmatpush1.xpose.msra.mxu0 %v519
      %543 = vmatprep.subr.mxu0 0.0
      %544 = vmatpush1.xpose.msra.mxu0 %v522
      %545 = vmatprep.subr.mxu0 0.0
      %546 = vmatpush1.xpose.msra.mxu0 %v525
      %547 = vmatprep.subr.mxu0 0.0
      %548 = vmatpush1.xpose.msra.mxu0 %v528
      %549 = vmatprep.subr.mxu0 0.0
      %550 = vmatpush1.xpose.msra.mxu0 %v531
      %551 = vmatprep.subr.mxu0 0.0
      %552 = vmatpush1.xpose.msra.mxu0 %v534
      %553 = vmatprep.subr.mxu0 0.0
      %554 = vmatpush1.xpose.msra.mxu0 %v537
      %555 = vmatprep.subr.mxu0 0.0
      %556 = vmatpush1.xpose.msra.mxu0 0.0
      %557 = vmatprep.subr.mxu0 0.0
      %558 = vmatpush1.xpose.msra.mxu0 0.0
      %559 = vmatprep.subr.mxu0 0.0
      %560 = vmatpush1.xpose.msra.mxu0 0.0
      %561 = vmatprep.subr.mxu0 0.0
      %562 = vmatpush1.xpose.msra.mxu0 0.0
      %563 = vmatprep.subr.mxu0 0.0
      %564 = vmatpush1.xpose.msra.mxu0 0.0
      %565 = vmatprep.subr.mxu0 0.0
      %566 = vmatpush1.xpose.msra.mxu0 0.0
      %567 = vmatprep.subr.mxu0 0.0
      %568 = vmatpush1.xpose.msra.mxu0 0.0
      %569 = vmatprep.subr.mxu0 0.0
      %570 = vmatpush1.xpose.msra.mxu0 0.0
      %571 = vmatprep.subr.mxu0 0.0
      %572 = vmatpush1.xpose.msra.mxu0 0.0
      %573 = vmatprep.subr.mxu0 0.0
      %574 = vmatpush1.xpose.msra.mxu0 0.0
      %575 = vmatprep.subr.mxu0 0.0
      %576 = vmatpush1.xpose.msra.mxu0 0.0
      %577 = vmatprep.subr.mxu0 0.0
      %578 = vmatpush1.xpose.msra.mxu0 0.0
      %579 = vmatprep.subr.mxu0 0.0
      %580 = vmatpush1.xpose.msra.mxu0 0.0
      %581 = vmatprep.subr.mxu0 0.0
      %582 = vmatpush1.xpose.msra.mxu0 0.0
      %583 = vmatprep.subr.mxu0 0.0
      %584 = vmatpush1.xpose.msra.mxu0 0.0
      %585 = vmatprep.subr.mxu0 0.0
      %586 = vmatpush1.xpose.msra.mxu0 0.0
      %587 = vmatprep.subr.mxu0 0.0
      %588 = vmatpush1.xpose.msra.mxu0 0.0
      %589 = vmatprep.subr.mxu0 0.0
      %590 = vmatpush1.xpose.msra.mxu0 0.0
      %591 = vmatprep.subr.mxu0 0.0
      %592 = vmatpush1.xpose.msra.mxu0 0.0
      %593 = vmatprep.subr.mxu0 0.0
      %594 = vmatpush1.xpose.msra.mxu0 0.0
      %595 = vmatprep.subr.mxu0 0.0
      %596 = vmatpush1.xpose.msra.mxu0 0.0
      %597 = vmatprep.subr.mxu0 0.0
      %598 = vmatpush1.xpose.msra.mxu0 0.0
      %599 = vmatprep.subr.mxu0 0.0
      %600 = vmatpush1.xpose.msra.mxu0 0.0
      %601 = vmatprep.subr.mxu0 0.0
      %602 = vmatpush1.xpose.msra.mxu0 0.0
      %603 = vmatprep.mubr.f32.mxu0 0.0
      %604 = vmatmul.mubr.f32.gmra.mrb[0].mxu0 %v516
      %v605 = vpop.f32.mrb[0].mxu0
      %v606 = vadd.f32 0.0, %v605
      %v607 = vpop.f32.mrb[0].mxu0
      %608 = vmatprep.mubr.f32.mxu0 0.0
      %609 = vmatmul.mubr.f32.gmra.mrb[0].mxu0 %v519
      %v610 = vpop.f32.mrb[0].mxu0
      %v611 = vadd.f32 0.0, %v610
      %v612 = vpop.f32.mrb[0].mxu0
      %613 = vmatprep.mubr.f32.mxu0 0.0
      %614 = vmatmul.mubr.f32.gmra.mrb[0].mxu0 %v522
      %v615 = vpop.f32.mrb[0].mxu0
      %v616 = vadd.f32 0.0, %v615
      %v617 = vpop.f32.mrb[0].mxu0
      %618 = vmatprep.mubr.f32.mxu0 0.0
      %619 = vmatmul.mubr.f32.gmra.mrb[0].mxu0 %v525
      %v620 = vpop.f32.mrb[0].mxu0
      %v621 = vadd.f32 0.0, %v620
      %v622 = vpop.f32.mrb[0].mxu0
      %623 = vmatprep.mubr.f32.mxu0 0.0
      %624 = vmatmul.mubr.f32.gmra.mrb[0].mxu0 %v528
      %v625 = vpop.f32.mrb[0].mxu0
      %v626 = vadd.f32 0.0, %v625
      %v627 = vpop.f32.mrb[0].mxu0
      %628 = vmatprep.mubr.f32.mxu0 0.0
      %629 = vmatmul.mubr.f32.gmra.mrb[0].mxu0 %v531
      %v630 = vpop.f32.mrb[0].mxu0
      %v631 = vadd.f32 0.0, %v630
      %v632 = vpop.f32.mrb[0].mxu0
      %633 = vmatprep.mubr.f32.mxu0 0.0
      %634 = vmatmul.mubr.f32.gmra.mrb[0].mxu0 %v534
      %v635 = vpop.f32.mrb[0].mxu0
      %v636 = vadd.f32 0.0, %v635
      %v637 = vpop.f32.mrb[0].mxu0
      %638 = vmatprep.mubr.f32.mxu0 0.0
      %639 = vmatmul.mubr.f32.gmra.mrb[0].mxu0 %v537
      %v640 = vpop.f32.mrb[0].mxu0
      %v641 = vadd.f32 0.0, %v640
      %v642 = vpop.f32.mrb[0].mxu0
      %643 = vdwg.mxu0
      %v644 = vlaneseq
      %v645 = vshrl.u32 %v644, 7
      %v646 = vadd.s32 %v645, 8
      %v647 = vadd.s32 %v645, 16
      %v648 = vadd.s32 %v645, 24
      %v649 = vadd.s32 %v645, 32
      %v650 = vadd.s32 %v645, 40
      %v651 = vadd.s32 %v645, 48
      %v652 = vadd.s32 %v645, 56
      %v653 = vlaneseq
      %v654 = vand.u32 %v653, 127
      %vm655 = vcmp.eq.s32.totalorder %v645, %v654
      %vm656 = vcmp.eq.s32.totalorder %v646, %v654
      %vm657 = vcmp.eq.s32.totalorder %v647, %v654
      %vm658 = vcmp.eq.s32.totalorder %v648, %v654
      %vm659 = vcmp.eq.s32.totalorder %v649, %v654
      %vm660 = vcmp.eq.s32.totalorder %v650, %v654
      %vm661 = vcmp.eq.s32.totalorder %v651, %v654
      %vm662 = vcmp.eq.s32.totalorder %v652, %v654
      %v663 = vsel %vm655, %v606, 0.0
      %v664 = vsel %vm656, %v611, 0.0
      %v665 = vsel %vm657, %v616, 0.0
      %v666 = vsel %vm658, %v621, 0.0
      %v667 = vsel %vm659, %v626, 0.0
      %v668 = vsel %vm660, %v631, 0.0
      %v669 = vsel %vm661, %v636, 0.0
      %v670 = vsel %vm662, %v641, 0.0
      %vm671 = vcmask 523264
      %v672 = vsel %vm671, %v663, 0.0
      %v673 = vsel %vm671, %v664, 0.0
      %v674 = vadd.f32 %v672, %v673
      %v675 = vsel %vm671, %v665, 0.0
      %v676 = vadd.f32 %v674, %v675
      %v677 = vsel %vm671, %v666, 0.0
      %v678 = vadd.f32 %v676, %v677
      %v679 = vsel %vm671, %v667, 0.0
      %v680 = vadd.f32 %v678, %v679
      %v681 = vsel %vm671, %v668, 0.0
      %v682 = vadd.f32 %v680, %v681
      %v683 = vsel %vm671, %v669, 0.0
      %v684 = vadd.f32 %v682, %v683
      %v685 = vsel %vm671, %v670, 0.0
      %v686 = vadd.f32 %v684, %v685
      %v687 = vrot.slane %v686, 4
      %v688 = vadd.f32 %v686, %v687
      %v689 = vrot.slane %v688, 2
      %v690 = vadd.f32 %v688, %v689
      %v691 = vrot.slane %v690, 1
      %v692 = vadd.f32 %v690, %v691
      %v693 = vmul.f32 %v606, 2.0
      %v694 = vmul.f32 %v611, 2.0
      %v695 = vmul.f32 %v616, 2.0
      %v696 = vmul.f32 %v621, 2.0
      %v697 = vmul.f32 %v626, 2.0
      %v698 = vmul.f32 %v631, 2.0
      %v699 = vmul.f32 %v636, 2.0
      %v700 = vmul.f32 %v641, 2.0
      %v701 = vsub.f32 %v692, %v693
      %v702 = vsub.f32 %v692, %v694
      %v703 = vsub.f32 %v692, %v695
      %v704 = vsub.f32 %v692, %v696
      %v705 = vsub.f32 %v692, %v697
      %v706 = vsub.f32 %v692, %v698
      %v707 = vsub.f32 %v692, %v699
      %v708 = vsub.f32 %v692, %v700
      %709 = vset.pattern.permute.xlu0 0
      %710 = vperm.xlu0 %709, %v484
      %v711 = vpop.permute.xlu0 %710
      %712 = vset.pattern.permute.xlu0 0
      %713 = vperm.xlu0 %712, %v485
      %v714 = vpop.permute.xlu0 %713
      %715 = vset.pattern.permute.xlu0 0
      %716 = vperm.xlu0 %715, %v486
      %v717 = vpop.permute.xlu0 %716
      %718 = vset.pattern.permute.xlu0 0
      %719 = vperm.xlu0 %718, %v487
      %v720 = vpop.permute.xlu0 %719
      %721 = vset.pattern.permute.xlu0 0
      %722 = vperm.xlu0 %721, %v488
      %v723 = vpop.permute.xlu0 %722
      %724 = vset.pattern.permute.xlu0 0
      %725 = vperm.xlu0 %724, %v489
      %v726 = vpop.permute.xlu0 %725
      %727 = vset.pattern.permute.xlu0 0
      %728 = vperm.xlu0 %727, %v490
      %v729 = vpop.permute.xlu0 %728
      %730 = vset.pattern.permute.xlu0 0
      %731 = vperm.xlu0 %730, %v491
      %v732 = vpop.permute.xlu0 %731
      %v733 = vlaneseq
      %v734 = vshrl.u32 %v733, 7
      %v735 = vsub.s32 0, %v734
      %v736 = vrot.slane %v492, %v735
      %vm737 = vcmp.eq.s32.totalorder %v711, %v736
      %vm738 = vcmp.eq.s32.totalorder %v714, %v736
      %vm739 = vcmp.eq.s32.totalorder %v717, %v736
      %vm740 = vcmp.eq.s32.totalorder %v720, %v736
      %vm741 = vcmp.eq.s32.totalorder %v723, %v736
      %vm742 = vcmp.eq.s32.totalorder %v726, %v736
      %vm743 = vcmp.eq.s32.totalorder %v729, %v736
      %vm744 = vcmp.eq.s32.totalorder %v732, %v736
      %v745 = vsel %vm737, %v701, 1e+30
      %v746 = vsel %vm738, %v702, 1e+30
      %v747 = vsel %vm739, %v703, 1e+30
      %v748 = vsel %vm740, %v704, 1e+30
      %v749 = vsel %vm741, %v705, 1e+30
      %v750 = vsel %vm742, %v706, 1e+30
      %v751 = vsel %vm743, %v707, 1e+30
      %v752 = vsel %vm744, %v708, 1e+30
      %v753 = vcvt.s32.f32 %v654
      %v754 = vpack.c.bf16 %v477, %v476
      %v755 = vpack.c.bf16 %v479, %v478
      %v756 = vpack.c.bf16 %v481, %v480
      %v757 = vpack.c.bf16 %v483, %v482
      %v759 = vlaneseq
      %v760 = vshrl.u32 %v759, 7
      %v761 = vsub.s32 0, %v760
      %v762 = vrot.slane %v495, %v761
      %v765 = vsel %vm514, %v754, 0
      %v768 = vsel %vm514, %v755, 0
      %v771 = vsel %vm514, %v756, 0
      %v774 = vsel %vm514, %v757, 0
      %vm776 = vcmask 1042432
      %v778 = vsel %vm776, %v493, 0
      %780 = vmatprep.subr.bf16.mxu0 0
      %781 = vmatpush1.bf16.msra.mxu0 %v778
      %782 = vmatprep.subr.bf16.mxu0 0
      %783 = vmatpush1.bf16.msra.mxu0 0
      %784 = vmatprep.subr.bf16.mxu0 0
      %785 = vmatpush1.bf16.msra.mxu0 0
      %786 = vmatprep.subr.bf16.mxu0 0
      %787 = vmatpush1.bf16.msra.mxu0 0
      %788 = vmatprep.subr.bf16.mxu0 0
      %789 = vmatpush1.bf16.msra.mxu0 0
      %790 = vmatprep.subr.bf16.mxu0 0
      %791 = vmatpush1.bf16.msra.mxu0 0
      %792 = vmatprep.subr.bf16.mxu0 0
      %793 = vmatpush1.bf16.msra.mxu0 0
      %794 = vmatprep.subr.bf16.mxu0 0
      %795 = vmatpush1.bf16.msra.mxu0 0
      %796 = vmatprep.subr.bf16.mxu0 0
      %797 = vmatpush1.bf16.msra.mxu0 0
      %798 = vmatprep.subr.bf16.mxu0 0
      %799 = vmatpush1.bf16.msra.mxu0 0
      %800 = vmatprep.subr.bf16.mxu0 0
      %801 = vmatpush1.bf16.msra.mxu0 0
      %802 = vmatprep.subr.bf16.mxu0 0
      %803 = vmatpush1.bf16.msra.mxu0 0
      %804 = vmatprep.subr.bf16.mxu0 0
      %805 = vmatpush1.bf16.msra.mxu0 0
      %806 = vmatprep.subr.bf16.mxu0 0
      %807 = vmatpush1.bf16.msra.mxu0 0
      %808 = vmatprep.subr.bf16.mxu0 0
      %809 = vmatpush1.bf16.msra.mxu0 0
      %810 = vmatprep.subr.bf16.mxu0 0
      %811 = vmatpush1.bf16.msra.mxu0 0
      %812 = vmatprep.mubr.bf16.mxu0 0
      %813 = vmatmul.mubr.bf16.gmra.mrb[0].mxu0 %v765
      %v814 = vpop.f32.mrb[0].mxu0
      %v815 = vadd.f32 %v762, %v814
      %v816 = vpop.f32.mrb[0].mxu0
      %v817 = vpop.f32.mrb[0].mxu0
      %v818 = vadd.f32 %v762, %v817
      %v819 = vpop.f32.mrb[0].mxu0
      %820 = vmatprep.mubr.bf16.mxu0 0
      %821 = vmatmul.mubr.bf16.gmra.mrb[0].mxu0 %v768
      %v822 = vpop.f32.mrb[0].mxu0
      %v823 = vadd.f32 %v762, %v822
      %v824 = vpop.f32.mrb[0].mxu0
      %v825 = vpop.f32.mrb[0].mxu0
      %v826 = vadd.f32 %v762, %v825
      %v827 = vpop.f32.mrb[0].mxu0
      %828 = vmatprep.mubr.bf16.mxu0 0
      %829 = vmatmul.mubr.bf16.gmra.mrb[0].mxu0 %v771
      %v830 = vpop.f32.mrb[0].mxu0
      %v831 = vadd.f32 %v762, %v830
      %v832 = vpop.f32.mrb[0].mxu0
      %v833 = vpop.f32.mrb[0].mxu0
      %v834 = vadd.f32 %v762, %v833
      %v835 = vpop.f32.mrb[0].mxu0
      %836 = vmatprep.mubr.bf16.mxu0 0
      %837 = vmatmul.mubr.bf16.gmra.mrb[0].mxu0 %v774
      %v838 = vpop.f32.mrb[0].mxu0
      %v839 = vadd.f32 %v762, %v838
      %v840 = vpop.f32.mrb[0].mxu0
      %v841 = vpop.f32.mrb[0].mxu0
      %v842 = vadd.f32 %v762, %v841
      %v843 = vpop.f32.mrb[0].mxu0
      %844 = vdwg.mxu0
      %v846 = vlaneseq
      %v847 = vshrl.u32 %v846, 7
      %v848 = vsub.s32 0, %v847
      %v849 = vrot.slane %v504, %v848
      %v852 = vlaneseq
      %v853 = vshrl.u32 %v852, 7
      %v854 = vsub.s32 0, %v853
      %v855 = vrot.slane %v513, %v854
      %v857 = vsel %vm671, %v745, inf
      %858 = vmin.xlane.f32.xlu0 %v857
      %v859 = vpop.xlane.xlu0 %858
      %v860 = vsel %vm671, %v746, inf
      %861 = vmin.xlane.f32.xlu0 %v860
      %v862 = vpop.xlane.xlu0 %861
      %v863 = vsel %vm671, %v747, inf
      %864 = vmin.xlane.f32.xlu0 %v863
      %v865 = vpop.xlane.xlu0 %864
      %v866 = vsel %vm671, %v748, inf
      %867 = vmin.xlane.f32.xlu0 %v866
      %v868 = vpop.xlane.xlu0 %867
      %v869 = vsel %vm671, %v749, inf
      %870 = vmin.xlane.f32.xlu0 %v869
      %v871 = vpop.xlane.xlu0 %870
      %v872 = vsel %vm671, %v750, inf
      %873 = vmin.xlane.f32.xlu0 %v872
      %v874 = vpop.xlane.xlu0 %873
      %v875 = vsel %vm671, %v751, inf
      %876 = vmin.xlane.f32.xlu0 %v875
      %v877 = vpop.xlane.xlu0 %876
      %v878 = vsel %vm671, %v752, inf
      %879 = vmin.xlane.f32.xlu0 %v878
      %v880 = vpop.xlane.xlu0 %879
      %vm881 = vcmp.le.f32.partialorder %v745, %v859
      %vm882 = vcmp.le.f32.partialorder %v746, %v862
      %vm883 = vcmp.le.f32.partialorder %v747, %v865
      %vm884 = vcmp.le.f32.partialorder %v748, %v868
      %vm885 = vcmp.le.f32.partialorder %v749, %v871
      %vm886 = vcmp.le.f32.partialorder %v750, %v874
      %vm887 = vcmp.le.f32.partialorder %v751, %v877
      %vm888 = vcmp.le.f32.partialorder %v752, %v880
      %v889 = vsel %vm881, %v753, 64.0
      %v890 = vsel %vm882, %v753, 64.0
      %v891 = vsel %vm883, %v753, 64.0
      %v892 = vsel %vm884, %v753, 64.0
      %v893 = vsel %vm885, %v753, 64.0
      %v894 = vsel %vm886, %v753, 64.0
      %v895 = vsel %vm887, %v753, 64.0
      %v896 = vsel %vm888, %v753, 64.0
      %v897 = vsel %vm671, %v889, inf
      %898 = vmin.xlane.f32.xlu0 %v897
      %v899 = vpop.xlane.xlu0 %898
      %v900 = vsel %vm671, %v890, inf
      %901 = vmin.xlane.f32.xlu0 %v900
      %v902 = vpop.xlane.xlu0 %901
      %v903 = vsel %vm671, %v891, inf
      %904 = vmin.xlane.f32.xlu0 %v903
      %v905 = vpop.xlane.xlu0 %904
      %v906 = vsel %vm671, %v892, inf
      %907 = vmin.xlane.f32.xlu0 %v906
      %v908 = vpop.xlane.xlu0 %907
      %v909 = vsel %vm671, %v893, inf
      %910 = vmin.xlane.f32.xlu0 %v909
      %v911 = vpop.xlane.xlu0 %910
      %v912 = vsel %vm671, %v894, inf
      %913 = vmin.xlane.f32.xlu0 %v912
      %v914 = vpop.xlane.xlu0 %913
      %v915 = vsel %vm671, %v895, inf
      %916 = vmin.xlane.f32.xlu0 %v915
      %v917 = vpop.xlane.xlu0 %916
      %v918 = vsel %vm671, %v896, inf
      %919 = vmin.xlane.f32.xlu0 %v918
      %v920 = vpop.xlane.xlu0 %919
      %vm921 = vcmp.eq.f32.partialorder %v753, %v899
      %vm922 = vcmp.eq.f32.partialorder %v753, %v902
      %vm923 = vcmp.eq.f32.partialorder %v753, %v905
      %vm924 = vcmp.eq.f32.partialorder %v753, %v908
      %vm925 = vcmp.eq.f32.partialorder %v753, %v911
      %vm926 = vcmp.eq.f32.partialorder %v753, %v914
      %vm927 = vcmp.eq.f32.partialorder %v753, %v917
      %vm928 = vcmp.eq.f32.partialorder %v753, %v920
      %v929 = vsel %vm921, 1e+30, %v745
      %v930 = vsel %vm922, 1e+30, %v746
      %v931 = vsel %vm923, 1e+30, %v747
      %v932 = vsel %vm924, 1e+30, %v748
      %v933 = vsel %vm925, 1e+30, %v749
      %v934 = vsel %vm926, 1e+30, %v750
      %v935 = vsel %vm927, 1e+30, %v751
      %v936 = vsel %vm928, 1e+30, %v752
      %v937 = vsel %vm921, 1, 0
      %v938 = vsel %vm922, 1, 0
      %v939 = vsel %vm923, 1, 0
      %v940 = vsel %vm924, 1, 0
      %v941 = vsel %vm925, 1, 0
      %v942 = vsel %vm926, 1, 0
      %v943 = vsel %vm927, 1, 0
      %v944 = vsel %vm928, 1, 0
      %v945 = vcvt.s32.f32 %v937
      %v946 = vcvt.s32.f32 %v938
      %v947 = vcvt.s32.f32 %v939
      %v948 = vcvt.s32.f32 %v940
      %v949 = vcvt.s32.f32 %v941
      %v950 = vcvt.s32.f32 %v942
      %v951 = vcvt.s32.f32 %v943
      %v952 = vcvt.s32.f32 %v944
      %v954 = vsel %vm671, %v945, 0
      %v957 = vsel %vm671, %v946, 0
      %v960 = vsel %vm671, %v947, 0
      %v963 = vsel %vm671, %v948, 0
      %v966 = vsel %vm671, %v949, 0
      %v969 = vsel %vm671, %v950, 0
      %v972 = vsel %vm671, %v951, 0
      %v975 = vsel %vm671, %v952, 0
      %977 = vmatprep.subr.mxu0 0.0
      %978 = vmatpush1.msra.mxu0 %v476
      %979 = vmatprep.subr.mxu0 0.0
      %980 = vmatpush1.msra.mxu0 %v477
      %981 = vmatprep.subr.mxu0 0.0
      %982 = vmatpush1.msra.mxu0 %v478
      %983 = vmatprep.subr.mxu0 0.0
      %984 = vmatpush1.msra.mxu0 %v479
      %985 = vmatprep.subr.mxu0 0.0
      %986 = vmatpush1.msra.mxu0 %v480
      %987 = vmatprep.subr.mxu0 0.0
      %988 = vmatpush1.msra.mxu0 %v481
      %989 = vmatprep.subr.mxu0 0.0
      %990 = vmatpush1.msra.mxu0 %v482
      %991 = vmatprep.subr.mxu0 0.0
      %992 = vmatpush1.msra.mxu0 %v483
      %993 = vmatprep.subr.mxu0 0.0
      %994 = vmatpush1.msra.mxu0 0.0
      %995 = vmatprep.subr.mxu0 0.0
      %996 = vmatpush1.msra.mxu0 0.0
      %997 = vmatprep.subr.mxu0 0.0
      %998 = vmatpush1.msra.mxu0 0.0
      %999 = vmatprep.subr.mxu0 0.0
      %1000 = vmatpush1.msra.mxu0 0.0
      %1001 = vmatprep.subr.mxu0 0.0
      %1002 = vmatpush1.msra.mxu0 0.0
      %1003 = vmatprep.subr.mxu0 0.0
      %1004 = vmatpush1.msra.mxu0 0.0
      %1005 = vmatprep.subr.mxu0 0.0
      %1006 = vmatpush1.msra.mxu0 0.0
      %1007 = vmatprep.subr.mxu0 0.0
      %1008 = vmatpush1.msra.mxu0 0.0
      %1009 = vmatprep.subr.mxu0 0.0
      %1010 = vmatpush1.msra.mxu0 0.0
      %1011 = vmatprep.subr.mxu0 0.0
      %1012 = vmatpush1.msra.mxu0 0.0
      %1013 = vmatprep.subr.mxu0 0.0
      %1014 = vmatpush1.msra.mxu0 0.0
      %1015 = vmatprep.subr.mxu0 0.0
      %1016 = vmatpush1.msra.mxu0 0.0
      %1017 = vmatprep.subr.mxu0 0.0
      %1018 = vmatpush1.msra.mxu0 0.0
      %1019 = vmatprep.subr.mxu0 0.0
      %1020 = vmatpush1.msra.mxu0 0.0
      %1021 = vmatprep.subr.mxu0 0.0
      %1022 = vmatpush1.msra.mxu0 0.0
      %1023 = vmatprep.subr.mxu0 0.0
      %1024 = vmatpush1.msra.mxu0 0.0
      %1025 = vmatprep.subr.mxu0 0.0
      %1026 = vmatpush1.msra.mxu0 0.0
      %1027 = vmatprep.subr.mxu0 0.0
      %1028 = vmatpush1.msra.mxu0 0.0
      %1029 = vmatprep.subr.mxu0 0.0
      %1030 = vmatpush1.msra.mxu0 0.0
      %1031 = vmatprep.subr.mxu0 0.0
      %1032 = vmatpush1.msra.mxu0 0.0
      %1033 = vmatprep.subr.mxu0 0.0
      %1034 = vmatpush1.msra.mxu0 0.0
      %1035 = vmatprep.subr.mxu0 0.0
      %1036 = vmatpush1.msra.mxu0 0.0
      %1037 = vmatprep.subr.mxu0 0.0
      %1038 = vmatpush1.msra.mxu0 0.0
      %1039 = vmatprep.subr.mxu0 0.0
      %1040 = vmatpush1.msra.mxu0 0.0
      %1041 = vmatprep.mubr.f32.mxu0 0.0
      %1042 = vmatmul.mubr.f32.gmra.mrb[0].mxu0 %v954
      %v1043 = vpop.f32.mrb[0].mxu0
      %v1044 = vadd.f32 0.0, %v1043
      %v1045 = vpop.f32.mrb[0].mxu0
      %1046 = vmatprep.mubr.f32.mxu0 0.0
      %1047 = vmatmul.mubr.f32.gmra.mrb[0].mxu0 %v957
      %v1048 = vpop.f32.mrb[0].mxu0
      %v1049 = vadd.f32 0.0, %v1048
      %v1050 = vpop.f32.mrb[0].mxu0
      %1051 = vmatprep.mubr.f32.mxu0 0.0
      %1052 = vmatmul.mubr.f32.gmra.mrb[0].mxu0 %v960
      %v1053 = vpop.f32.mrb[0].mxu0
      %v1054 = vadd.f32 0.0, %v1053
      %v1055 = vpop.f32.mrb[0].mxu0
      %1056 = vmatprep.mubr.f32.mxu0 0.0
      %1057 = vmatmul.mubr.f32.gmra.mrb[0].mxu0 %v963
      %v1058 = vpop.f32.mrb[0].mxu0
      %v1059 = vadd.f32 0.0, %v1058
      %v1060 = vpop.f32.mrb[0].mxu0
      %1061 = vmatprep.mubr.f32.mxu0 0.0
      %1062 = vmatmul.mubr.f32.gmra.mrb[0].mxu0 %v966
      %v1063 = vpop.f32.mrb[0].mxu0
      %v1064 = vadd.f32 0.0, %v1063
      %v1065 = vpop.f32.mrb[0].mxu0
      %1066 = vmatprep.mubr.f32.mxu0 0.0
      %1067 = vmatmul.mubr.f32.gmra.mrb[0].mxu0 %v969
      %v1068 = vpop.f32.mrb[0].mxu0
      %v1069 = vadd.f32 0.0, %v1068
      %v1070 = vpop.f32.mrb[0].mxu0
      %1071 = vmatprep.mubr.f32.mxu0 0.0
      %1072 = vmatmul.mubr.f32.gmra.mrb[0].mxu0 %v972
      %v1073 = vpop.f32.mrb[0].mxu0
      %v1074 = vadd.f32 0.0, %v1073
      %v1075 = vpop.f32.mrb[0].mxu0
      %1076 = vmatprep.mubr.f32.mxu0 0.0
      %1077 = vmatmul.mubr.f32.gmra.mrb[0].mxu0 %v975
      %v1078 = vpop.f32.mrb[0].mxu0
      %v1079 = vadd.f32 0.0, %v1078
      %v1080 = vpop.f32.mrb[0].mxu0
      %1081 = vdwg.mxu0
      %v1082 = vsub.f32 %v1044, %v476
      %v1083 = vsub.f32 %v1049, %v477
      %v1084 = vsub.f32 %v1054, %v478
      %v1085 = vsub.f32 %v1059, %v479
      %v1086 = vsub.f32 %v1064, %v480
      %v1087 = vsub.f32 %v1069, %v481
      %v1088 = vsub.f32 %v1074, %v482
      %v1089 = vsub.f32 %v1079, %v483
      %v1090 = vpack.c.bf16 %v1083, %v1082
      %v1091 = vpack.c.bf16 %v1085, %v1084
      %v1092 = vpack.c.bf16 %v1087, %v1086
      %v1093 = vpack.c.bf16 %v1089, %v1088
      %v1095 = vsel %vm514, %v1090, 0
      %v1098 = vsel %vm514, %v1091, 0
      %v1101 = vsel %vm514, %v1092, 0
      %v1104 = vsel %vm514, %v1093, 0
      %v1107 = vsel %vm776, %v494, 0
      %1109 = vmatprep.subr.bf16.mxu0 0
      %1110 = vmatpush1.bf16.msra.mxu0 %v1107
      %1111 = vmatprep.subr.bf16.mxu0 0
      %1112 = vmatpush1.bf16.msra.mxu0 0
      %1113 = vmatprep.subr.bf16.mxu0 0
      %1114 = vmatpush1.bf16.msra.mxu0 0
      %1115 = vmatprep.subr.bf16.mxu0 0
      %1116 = vmatpush1.bf16.msra.mxu0 0
      %1117 = vmatprep.subr.bf16.mxu0 0
      %1118 = vmatpush1.bf16.msra.mxu0 0
      %1119 = vmatprep.subr.bf16.mxu0 0
      %1120 = vmatpush1.bf16.msra.mxu0 0
      %1121 = vmatprep.subr.bf16.mxu0 0
      %1122 = vmatpush1.bf16.msra.mxu0 0
      %1123 = vmatprep.subr.bf16.mxu0 0
      %1124 = vmatpush1.bf16.msra.mxu0 0
      %1125 = vmatprep.subr.bf16.mxu0 0
      %1126 = vmatpush1.bf16.msra.mxu0 0
      %1127 = vmatprep.subr.bf16.mxu0 0
      %1128 = vmatpush1.bf16.msra.mxu0 0
      %1129 = vmatprep.subr.bf16.mxu0 0
      %1130 = vmatpush1.bf16.msra.mxu0 0
      %1131 = vmatprep.subr.bf16.mxu0 0
      %1132 = vmatpush1.bf16.msra.mxu0 0
      %1133 = vmatprep.subr.bf16.mxu0 0
      %1134 = vmatpush1.bf16.msra.mxu0 0
      %1135 = vmatprep.subr.bf16.mxu0 0
      %1136 = vmatpush1.bf16.msra.mxu0 0
      %1137 = vmatprep.subr.bf16.mxu0 0
      %1138 = vmatpush1.bf16.msra.mxu0 0
      %1139 = vmatprep.subr.bf16.mxu0 0
      %1140 = vmatpush1.bf16.msra.mxu0 0
      %1141 = vmatprep.mubr.bf16.mxu0 0
      %1142 = vmatmul.mubr.bf16.gmra.mrb[0].mxu0 %v1095
      %v1143 = vpop.f32.mrb[0].mxu0
      %v1144 = vadd.f32 0.0, %v1143
      %v1145 = vpop.f32.mrb[0].mxu0
      %v1146 = vpop.f32.mrb[0].mxu0
      %v1147 = vadd.f32 0.0, %v1146
      %v1148 = vpop.f32.mrb[0].mxu0
      %1149 = vmatprep.mubr.bf16.mxu0 0
      %1150 = vmatmul.mubr.bf16.gmra.mrb[0].mxu0 %v1098
      %v1151 = vpop.f32.mrb[0].mxu0
      %v1152 = vadd.f32 0.0, %v1151
      %v1153 = vpop.f32.mrb[0].mxu0
      %v1154 = vpop.f32.mrb[0].mxu0
      %v1155 = vadd.f32 0.0, %v1154
      %v1156 = vpop.f32.mrb[0].mxu0
      %1157 = vmatprep.mubr.bf16.mxu0 0
      %1158 = vmatmul.mubr.bf16.gmra.mrb[0].mxu0 %v1101
      %v1159 = vpop.f32.mrb[0].mxu0
      %v1160 = vadd.f32 0.0, %v1159
      %v1161 = vpop.f32.mrb[0].mxu0
      %v1162 = vpop.f32.mrb[0].mxu0
      %v1163 = vadd.f32 0.0, %v1162
      %v1164 = vpop.f32.mrb[0].mxu0
      %1165 = vmatprep.mubr.bf16.mxu0 0
      %1166 = vmatmul.mubr.bf16.gmra.mrb[0].mxu0 %v1104
      %v1167 = vpop.f32.mrb[0].mxu0
      %v1168 = vadd.f32 0.0, %v1167
      %v1169 = vpop.f32.mrb[0].mxu0
      %v1170 = vpop.f32.mrb[0].mxu0
      %v1171 = vadd.f32 0.0, %v1170
      %v1172 = vpop.f32.mrb[0].mxu0
      %1173 = vdwg.mxu0
      %v1174 = vadd.f32 %v815, %v1144
      %v1175 = vadd.f32 %v818, %v1147
      %v1176 = vadd.f32 %v823, %v1152
      %v1177 = vadd.f32 %v826, %v1155
      %v1178 = vadd.f32 %v831, %v1160
      %v1179 = vadd.f32 %v834, %v1163
      %v1180 = vadd.f32 %v839, %v1168
      %v1181 = vadd.f32 %v842, %v1171
      %v1182 = vmax.f32 %v1174, 0.0
      %v1183 = vmax.f32 %v1175, 0.0
      %v1184 = vmax.f32 %v1176, 0.0
      %v1185 = vmax.f32 %v1177, 0.0
      %v1186 = vmax.f32 %v1178, 0.0
      %v1187 = vmax.f32 %v1179, 0.0
      %v1188 = vmax.f32 %v1180, 0.0
      %v1189 = vmax.f32 %v1181, 0.0
      %v1190 = vpack.c.bf16 %v1183, %v1182
      %v1191 = vpack.c.bf16 %v1185, %v1184
      %v1192 = vpack.c.bf16 %v1187, %v1186
      %v1193 = vpack.c.bf16 %v1189, %v1188
      %v1202 = vunpack.c.l.b16 %v496
      %v1203 = vunpack.c.l.b16 %v497
      %v1204 = vunpack.c.l.b16 %v498
      %v1205 = vunpack.c.l.b16 %v499
      %v1206 = vunpack.c.l.b16 %v500
      %v1207 = vunpack.c.l.b16 %v501
      %v1208 = vunpack.c.l.b16 %v502
      %v1209 = vunpack.c.l.b16 %v503
      %v1210 = vpack.c.b16 %v1203, %v1202
      %v1211 = vpack.c.b16 %v1205, %v1204
      %v1212 = vpack.c.b16 %v1207, %v1206
      %v1213 = vpack.c.b16 %v1209, %v1208
      %v1219 = vsel %vm671, %v1190, 0
      %v1222 = vsel %vm671, %v1191, 0
      %v1225 = vsel %vm671, %v1192, 0
      %v1228 = vsel %vm671, %v1193, 0
      %1230 = vmatprep.subr.bf16.mxu0 0
      %1231 = vmatpush1.bf16.msra.mxu0 %v1210
      %1232 = vmatprep.subr.bf16.mxu0 0
      %1233 = vmatpush1.bf16.msra.mxu0 %v1211
      %1234 = vmatprep.subr.bf16.mxu0 0
      %1235 = vmatpush1.bf16.msra.mxu0 %v1212
      %1236 = vmatprep.subr.bf16.mxu0 0
      %1237 = vmatpush1.bf16.msra.mxu0 %v1213
      %1238 = vmatprep.subr.bf16.mxu0 0
      %1239 = vmatpush1.bf16.msra.mxu0 0
      %1240 = vmatprep.subr.bf16.mxu0 0
      %1241 = vmatpush1.bf16.msra.mxu0 0
      %1242 = vmatprep.subr.bf16.mxu0 0
      %1243 = vmatpush1.bf16.msra.mxu0 0
      %1244 = vmatprep.subr.bf16.mxu0 0
      %1245 = vmatpush1.bf16.msra.mxu0 0
      %1246 = vmatprep.subr.bf16.mxu0 0
      %1247 = vmatpush1.bf16.msra.mxu0 0
      %1248 = vmatprep.subr.bf16.mxu0 0
      %1249 = vmatpush1.bf16.msra.mxu0 0
      %1250 = vmatprep.subr.bf16.mxu0 0
      %1251 = vmatpush1.bf16.msra.mxu0 0
      %1252 = vmatprep.subr.bf16.mxu0 0
      %1253 = vmatpush1.bf16.msra.mxu0 0
      %1254 = vmatprep.subr.bf16.mxu0 0
      %1255 = vmatpush1.bf16.msra.mxu0 0
      %1256 = vmatprep.subr.bf16.mxu0 0
      %1257 = vmatpush1.bf16.msra.mxu0 0
      %1258 = vmatprep.subr.bf16.mxu0 0
      %1259 = vmatpush1.bf16.msra.mxu0 0
      %1260 = vmatprep.subr.bf16.mxu0 0
      %1261 = vmatpush1.bf16.msra.mxu0 0
      %1262 = vmatprep.mubr.bf16.mxu0 0
      %1263 = vmatmul.mubr.bf16.gmra.mrb[0].mxu0 %v1219
      %v1264 = vpop.f32.mrb[0].mxu0
      %v1265 = vadd.f32 %v849, %v1264
      %v1266 = vpop.f32.mrb[0].mxu0
      %v1267 = vpop.f32.mrb[0].mxu0
      %v1268 = vadd.f32 %v849, %v1267
      %v1269 = vpop.f32.mrb[0].mxu0
      %1270 = vmatprep.mubr.bf16.mxu0 0
      %1271 = vmatmul.mubr.bf16.gmra.mrb[0].mxu0 %v1222
      %v1272 = vpop.f32.mrb[0].mxu0
      %v1273 = vadd.f32 %v849, %v1272
      %v1274 = vpop.f32.mrb[0].mxu0
      %v1275 = vpop.f32.mrb[0].mxu0
      %v1276 = vadd.f32 %v849, %v1275
      %v1277 = vpop.f32.mrb[0].mxu0
      %1278 = vmatprep.mubr.bf16.mxu0 0
      %1279 = vmatmul.mubr.bf16.gmra.mrb[0].mxu0 %v1225
      %v1280 = vpop.f32.mrb[0].mxu0
      %v1281 = vadd.f32 %v849, %v1280
      %v1282 = vpop.f32.mrb[0].mxu0
      %v1283 = vpop.f32.mrb[0].mxu0
      %v1284 = vadd.f32 %v849, %v1283
      %v1285 = vpop.f32.mrb[0].mxu0
      %1286 = vmatprep.mubr.bf16.mxu0 0
      %1287 = vmatmul.mubr.bf16.gmra.mrb[0].mxu0 %v1228
      %v1288 = vpop.f32.mrb[0].mxu0
      %v1289 = vadd.f32 %v849, %v1288
      %v1290 = vpop.f32.mrb[0].mxu0
      %v1291 = vpop.f32.mrb[0].mxu0
      %v1292 = vadd.f32 %v849, %v1291
      %v1293 = vpop.f32.mrb[0].mxu0
      %1294 = vdwg.mxu0
      %v1295 = vmax.f32 %v1265, 0.0
      %v1296 = vmax.f32 %v1268, 0.0
      %v1297 = vmax.f32 %v1273, 0.0
      %v1298 = vmax.f32 %v1276, 0.0
      %v1299 = vmax.f32 %v1281, 0.0
      %v1300 = vmax.f32 %v1284, 0.0
      %v1301 = vmax.f32 %v1289, 0.0
      %v1302 = vmax.f32 %v1292, 0.0
      %v1303 = vpack.c.bf16 %v1296, %v1295
      %v1304 = vpack.c.bf16 %v1298, %v1297
      %v1305 = vpack.c.bf16 %v1300, %v1299
      %v1306 = vpack.c.bf16 %v1302, %v1301
      %v1315 = vunpack.c.l.b16 %v505
      %v1316 = vunpack.c.l.b16 %v506
      %v1317 = vunpack.c.l.b16 %v507
      %v1318 = vunpack.c.l.b16 %v508
      %v1319 = vunpack.c.l.b16 %v509
      %v1320 = vunpack.c.l.b16 %v510
      %v1321 = vunpack.c.l.b16 %v511
      %v1322 = vunpack.c.l.b16 %v512
      %v1323 = vpack.c.b16 %v1316, %v1315
      %v1324 = vpack.c.b16 %v1318, %v1317
      %v1325 = vpack.c.b16 %v1320, %v1319
      %v1326 = vpack.c.b16 %v1322, %v1321
      %v1332 = vsel %vm671, %v1303, 0
      %v1335 = vsel %vm671, %v1304, 0
      %v1338 = vsel %vm671, %v1305, 0
      %v1341 = vsel %vm671, %v1306, 0
      %1343 = vmatprep.subr.bf16.mxu0 0
      %1344 = vmatpush1.bf16.msra.mxu0 %v1323
      %1345 = vmatprep.subr.bf16.mxu0 0
      %1346 = vmatpush1.bf16.msra.mxu0 %v1324
      %1347 = vmatprep.subr.bf16.mxu0 0
      %1348 = vmatpush1.bf16.msra.mxu0 %v1325
      %1349 = vmatprep.subr.bf16.mxu0 0
      %1350 = vmatpush1.bf16.msra.mxu0 %v1326
      %1351 = vmatprep.subr.bf16.mxu0 0
      %1352 = vmatpush1.bf16.msra.mxu0 0
      %1353 = vmatprep.subr.bf16.mxu0 0
      %1354 = vmatpush1.bf16.msra.mxu0 0
      %1355 = vmatprep.subr.bf16.mxu0 0
      %1356 = vmatpush1.bf16.msra.mxu0 0
      %1357 = vmatprep.subr.bf16.mxu0 0
      %1358 = vmatpush1.bf16.msra.mxu0 0
      %1359 = vmatprep.subr.bf16.mxu0 0
      %1360 = vmatpush1.bf16.msra.mxu0 0
      %1361 = vmatprep.subr.bf16.mxu0 0
      %1362 = vmatpush1.bf16.msra.mxu0 0
      %1363 = vmatprep.subr.bf16.mxu0 0
      %1364 = vmatpush1.bf16.msra.mxu0 0
      %1365 = vmatprep.subr.bf16.mxu0 0
      %1366 = vmatpush1.bf16.msra.mxu0 0
      %1367 = vmatprep.subr.bf16.mxu0 0
      %1368 = vmatpush1.bf16.msra.mxu0 0
      %1369 = vmatprep.subr.bf16.mxu0 0
      %1370 = vmatpush1.bf16.msra.mxu0 0
      %1371 = vmatprep.subr.bf16.mxu0 0
      %1372 = vmatpush1.bf16.msra.mxu0 0
      %1373 = vmatprep.subr.bf16.mxu0 0
      %1374 = vmatpush1.bf16.msra.mxu0 0
      %1375 = vmatprep.mubr.bf16.mxu0 0
      %1376 = vmatmul.mubr.bf16.gmra.mrb[0].mxu0 %v1332
      %v1377 = vpop.f32.mrb[0].mxu0
      %v1378 = vadd.f32 %v855, %v1377
      %v1379 = vpop.f32.mrb[0].mxu0
      %v1380 = vpop.f32.mrb[0].mxu0
      %v1381 = vadd.f32 %v855, %v1380
      %v1382 = vpop.f32.mrb[0].mxu0
      %1383 = vmatprep.mubr.bf16.mxu0 0
      %1384 = vmatmul.mubr.bf16.gmra.mrb[0].mxu0 %v1335
      %v1385 = vpop.f32.mrb[0].mxu0
      %v1386 = vadd.f32 %v855, %v1385
      %v1387 = vpop.f32.mrb[0].mxu0
      %v1388 = vpop.f32.mrb[0].mxu0
      %v1389 = vadd.f32 %v855, %v1388
      %v1390 = vpop.f32.mrb[0].mxu0
      %1391 = vmatprep.mubr.bf16.mxu0 0
      %1392 = vmatmul.mubr.bf16.gmra.mrb[0].mxu0 %v1338
      %v1393 = vpop.f32.mrb[0].mxu0
      %v1394 = vadd.f32 %v855, %v1393
      %v1395 = vpop.f32.mrb[0].mxu0
      %v1396 = vpop.f32.mrb[0].mxu0
      %v1397 = vadd.f32 %v855, %v1396
      %v1398 = vpop.f32.mrb[0].mxu0
      %1399 = vmatprep.mubr.bf16.mxu0 0
      %1400 = vmatmul.mubr.bf16.gmra.mrb[0].mxu0 %v1341
      %v1401 = vpop.f32.mrb[0].mxu0
      %v1402 = vadd.f32 %v855, %v1401
      %v1403 = vpop.f32.mrb[0].mxu0
      %v1404 = vpop.f32.mrb[0].mxu0
      %v1405 = vadd.f32 %v855, %v1404
      %v1406 = vpop.f32.mrb[0].mxu0
      %1407 = vdwg.mxu0
      %v1408 = vmax.f32 %v1378, 0.0
      %v1409 = vmax.f32 %v1381, 0.0
      %v1410 = vmax.f32 %v1386, 0.0
      %v1411 = vmax.f32 %v1389, 0.0
      %v1412 = vmax.f32 %v1394, 0.0
      %v1413 = vmax.f32 %v1397, 0.0
      %v1414 = vmax.f32 %v1402, 0.0
      %v1415 = vmax.f32 %v1405, 0.0
      %v1416 = vmax.f32 %v1408, -1e+30
      %v1417 = vmax.f32 %v1409, -1e+30
      %v1418 = vmax.f32 %v1410, -1e+30
      %v1419 = vmax.f32 %v1411, -1e+30
      %v1420 = vmax.f32 %v1412, -1e+30
      %v1421 = vmax.f32 %v1413, -1e+30
      %v1422 = vmax.f32 %v1414, -1e+30
      %v1423 = vmax.f32 %v1415, -1e+30
      %v1424 = vsel %vm671, %v929, inf
      %1425 = vmin.xlane.f32.xlu0 %v1424
      %v1426 = vpop.xlane.xlu0 %1425
      %v1427 = vsel %vm671, %v930, inf
      %1428 = vmin.xlane.f32.xlu0 %v1427
      %v1429 = vpop.xlane.xlu0 %1428
      %v1430 = vsel %vm671, %v931, inf
      %1431 = vmin.xlane.f32.xlu0 %v1430
      %v1432 = vpop.xlane.xlu0 %1431
      %v1433 = vsel %vm671, %v932, inf
      %1434 = vmin.xlane.f32.xlu0 %v1433
      %v1435 = vpop.xlane.xlu0 %1434
      %v1436 = vsel %vm671, %v933, inf
      %1437 = vmin.xlane.f32.xlu0 %v1436
      %v1438 = vpop.xlane.xlu0 %1437
      %v1439 = vsel %vm671, %v934, inf
      %1440 = vmin.xlane.f32.xlu0 %v1439
      %v1441 = vpop.xlane.xlu0 %1440
      %v1442 = vsel %vm671, %v935, inf
      %1443 = vmin.xlane.f32.xlu0 %v1442
      %v1444 = vpop.xlane.xlu0 %1443
      %v1445 = vsel %vm671, %v936, inf
      %1446 = vmin.xlane.f32.xlu0 %v1445
      %v1447 = vpop.xlane.xlu0 %1446
      %vm1448 = vcmp.le.f32.partialorder %v929, %v1426
      %vm1449 = vcmp.le.f32.partialorder %v930, %v1429
      %vm1450 = vcmp.le.f32.partialorder %v931, %v1432
      %vm1451 = vcmp.le.f32.partialorder %v932, %v1435
      %vm1452 = vcmp.le.f32.partialorder %v933, %v1438
      %vm1453 = vcmp.le.f32.partialorder %v934, %v1441
      %vm1454 = vcmp.le.f32.partialorder %v935, %v1444
      %vm1455 = vcmp.le.f32.partialorder %v936, %v1447
      %v1456 = vsel %vm1448, %v753, 64.0
      %v1457 = vsel %vm1449, %v753, 64.0
      %v1458 = vsel %vm1450, %v753, 64.0
      %v1459 = vsel %vm1451, %v753, 64.0
      %v1460 = vsel %vm1452, %v753, 64.0
      %v1461 = vsel %vm1453, %v753, 64.0
      %v1462 = vsel %vm1454, %v753, 64.0
      %v1463 = vsel %vm1455, %v753, 64.0
      %v1464 = vsel %vm671, %v1456, inf
      %1465 = vmin.xlane.f32.xlu0 %v1464
      %v1466 = vpop.xlane.xlu0 %1465
      %v1467 = vsel %vm671, %v1457, inf
      %1468 = vmin.xlane.f32.xlu0 %v1467
      %v1469 = vpop.xlane.xlu0 %1468
      %v1470 = vsel %vm671, %v1458, inf
      %1471 = vmin.xlane.f32.xlu0 %v1470
      %v1472 = vpop.xlane.xlu0 %1471
      %v1473 = vsel %vm671, %v1459, inf
      %1474 = vmin.xlane.f32.xlu0 %v1473
      %v1475 = vpop.xlane.xlu0 %1474
      %v1476 = vsel %vm671, %v1460, inf
      %1477 = vmin.xlane.f32.xlu0 %v1476
      %v1478 = vpop.xlane.xlu0 %1477
      %v1479 = vsel %vm671, %v1461, inf
      %1480 = vmin.xlane.f32.xlu0 %v1479
      %v1481 = vpop.xlane.xlu0 %1480
      %v1482 = vsel %vm671, %v1462, inf
      %1483 = vmin.xlane.f32.xlu0 %v1482
      %v1484 = vpop.xlane.xlu0 %1483
      %v1485 = vsel %vm671, %v1463, inf
      %1486 = vmin.xlane.f32.xlu0 %v1485
      %v1487 = vpop.xlane.xlu0 %1486
      %vm1488 = vcmp.eq.f32.partialorder %v753, %v1466
      %vm1489 = vcmp.eq.f32.partialorder %v753, %v1469
      %vm1490 = vcmp.eq.f32.partialorder %v753, %v1472
      %vm1491 = vcmp.eq.f32.partialorder %v753, %v1475
      %vm1492 = vcmp.eq.f32.partialorder %v753, %v1478
      %vm1493 = vcmp.eq.f32.partialorder %v753, %v1481
      %vm1494 = vcmp.eq.f32.partialorder %v753, %v1484
      %vm1495 = vcmp.eq.f32.partialorder %v753, %v1487
      %v1496 = vsel %vm1488, 1e+30, %v929
      %v1497 = vsel %vm1489, 1e+30, %v930
      %v1498 = vsel %vm1490, 1e+30, %v931
      %v1499 = vsel %vm1491, 1e+30, %v932
      %v1500 = vsel %vm1492, 1e+30, %v933
      %v1501 = vsel %vm1493, 1e+30, %v934
      %v1502 = vsel %vm1494, 1e+30, %v935
      %v1503 = vsel %vm1495, 1e+30, %v936
      %v1504 = vsel %vm1488, 1, 0
      %v1505 = vsel %vm1489, 1, 0
      %v1506 = vsel %vm1490, 1, 0
      %v1507 = vsel %vm1491, 1, 0
      %v1508 = vsel %vm1492, 1, 0
      %v1509 = vsel %vm1493, 1, 0
      %v1510 = vsel %vm1494, 1, 0
      %v1511 = vsel %vm1495, 1, 0
      %v1512 = vcvt.s32.f32 %v1504
      %v1513 = vcvt.s32.f32 %v1505
      %v1514 = vcvt.s32.f32 %v1506
      %v1515 = vcvt.s32.f32 %v1507
      %v1516 = vcvt.s32.f32 %v1508
      %v1517 = vcvt.s32.f32 %v1509
      %v1518 = vcvt.s32.f32 %v1510
      %v1519 = vcvt.s32.f32 %v1511
      %v1521 = vsel %vm671, %v1512, 0
      %v1524 = vsel %vm671, %v1513, 0
      %v1527 = vsel %vm671, %v1514, 0
      %v1530 = vsel %vm671, %v1515, 0
      %v1533 = vsel %vm671, %v1516, 0
      %v1536 = vsel %vm671, %v1517, 0
      %v1539 = vsel %vm671, %v1518, 0
      %v1542 = vsel %vm671, %v1519, 0
      %1544 = vmatprep.subr.mxu0 0.0
      %1545 = vmatpush1.msra.mxu0 %v476
      %1546 = vmatprep.subr.mxu0 0.0
      %1547 = vmatpush1.msra.mxu0 %v477
      %1548 = vmatprep.subr.mxu0 0.0
      %1549 = vmatpush1.msra.mxu0 %v478
      %1550 = vmatprep.subr.mxu0 0.0
      %1551 = vmatpush1.msra.mxu0 %v479
      %1552 = vmatprep.subr.mxu0 0.0
      %1553 = vmatpush1.msra.mxu0 %v480
      %1554 = vmatprep.subr.mxu0 0.0
      %1555 = vmatpush1.msra.mxu0 %v481
      %1556 = vmatprep.subr.mxu0 0.0
      %1557 = vmatpush1.msra.mxu0 %v482
      %1558 = vmatprep.subr.mxu0 0.0
      %1559 = vmatpush1.msra.mxu0 %v483
      %1560 = vmatprep.subr.mxu0 0.0
      %1561 = vmatpush1.msra.mxu0 0.0
      %1562 = vmatprep.subr.mxu0 0.0
      %1563 = vmatpush1.msra.mxu0 0.0
      %1564 = vmatprep.subr.mxu0 0.0
      %1565 = vmatpush1.msra.mxu0 0.0
      %1566 = vmatprep.subr.mxu0 0.0
      %1567 = vmatpush1.msra.mxu0 0.0
      %1568 = vmatprep.subr.mxu0 0.0
      %1569 = vmatpush1.msra.mxu0 0.0
      %1570 = vmatprep.subr.mxu0 0.0
      %1571 = vmatpush1.msra.mxu0 0.0
      %1572 = vmatprep.subr.mxu0 0.0
      %1573 = vmatpush1.msra.mxu0 0.0
      %1574 = vmatprep.subr.mxu0 0.0
      %1575 = vmatpush1.msra.mxu0 0.0
      %1576 = vmatprep.subr.mxu0 0.0
      %1577 = vmatpush1.msra.mxu0 0.0
      %1578 = vmatprep.subr.mxu0 0.0
      %1579 = vmatpush1.msra.mxu0 0.0
      %1580 = vmatprep.subr.mxu0 0.0
      %1581 = vmatpush1.msra.mxu0 0.0
      %1582 = vmatprep.subr.mxu0 0.0
      %1583 = vmatpush1.msra.mxu0 0.0
      %1584 = vmatprep.subr.mxu0 0.0
      %1585 = vmatpush1.msra.mxu0 0.0
      %1586 = vmatprep.subr.mxu0 0.0
      %1587 = vmatpush1.msra.mxu0 0.0
      %1588 = vmatprep.subr.mxu0 0.0
      %1589 = vmatpush1.msra.mxu0 0.0
      %1590 = vmatprep.subr.mxu0 0.0
      %1591 = vmatpush1.msra.mxu0 0.0
      %1592 = vmatprep.subr.mxu0 0.0
      %1593 = vmatpush1.msra.mxu0 0.0
      %1594 = vmatprep.subr.mxu0 0.0
      %1595 = vmatpush1.msra.mxu0 0.0
      %1596 = vmatprep.subr.mxu0 0.0
      %1597 = vmatpush1.msra.mxu0 0.0
      %1598 = vmatprep.subr.mxu0 0.0
      %1599 = vmatpush1.msra.mxu0 0.0
      %1600 = vmatprep.subr.mxu0 0.0
      %1601 = vmatpush1.msra.mxu0 0.0
      %1602 = vmatprep.subr.mxu0 0.0
      %1603 = vmatpush1.msra.mxu0 0.0
      %1604 = vmatprep.subr.mxu0 0.0
      %1605 = vmatpush1.msra.mxu0 0.0
      %1606 = vmatprep.subr.mxu0 0.0
      %1607 = vmatpush1.msra.mxu0 0.0
      %1608 = vmatprep.mubr.f32.mxu0 0.0
      %1609 = vmatmul.mubr.f32.gmra.mrb[0].mxu0 %v1521
      %v1610 = vpop.f32.mrb[0].mxu0
      %v1611 = vadd.f32 0.0, %v1610
      %v1612 = vpop.f32.mrb[0].mxu0
      %1613 = vmatprep.mubr.f32.mxu0 0.0
      %1614 = vmatmul.mubr.f32.gmra.mrb[0].mxu0 %v1524
      %v1615 = vpop.f32.mrb[0].mxu0
      %v1616 = vadd.f32 0.0, %v1615
      %v1617 = vpop.f32.mrb[0].mxu0
      %1618 = vmatprep.mubr.f32.mxu0 0.0
      %1619 = vmatmul.mubr.f32.gmra.mrb[0].mxu0 %v1527
      %v1620 = vpop.f32.mrb[0].mxu0
      %v1621 = vadd.f32 0.0, %v1620
      %v1622 = vpop.f32.mrb[0].mxu0
      %1623 = vmatprep.mubr.f32.mxu0 0.0
      %1624 = vmatmul.mubr.f32.gmra.mrb[0].mxu0 %v1530
      %v1625 = vpop.f32.mrb[0].mxu0
      %v1626 = vadd.f32 0.0, %v1625
      %v1627 = vpop.f32.mrb[0].mxu0
      %1628 = vmatprep.mubr.f32.mxu0 0.0
      %1629 = vmatmul.mubr.f32.gmra.mrb[0].mxu0 %v1533
      %v1630 = vpop.f32.mrb[0].mxu0
      %v1631 = vadd.f32 0.0, %v1630
      %v1632 = vpop.f32.mrb[0].mxu0
      %1633 = vmatprep.mubr.f32.mxu0 0.0
      %1634 = vmatmul.mubr.f32.gmra.mrb[0].mxu0 %v1536
      %v1635 = vpop.f32.mrb[0].mxu0
      %v1636 = vadd.f32 0.0, %v1635
      %v1637 = vpop.f32.mrb[0].mxu0
      %1638 = vmatprep.mubr.f32.mxu0 0.0
      %1639 = vmatmul.mubr.f32.gmra.mrb[0].mxu0 %v1539
      %v1640 = vpop.f32.mrb[0].mxu0
      %v1641 = vadd.f32 0.0, %v1640
      %v1642 = vpop.f32.mrb[0].mxu0
      %1643 = vmatprep.mubr.f32.mxu0 0.0
      %1644 = vmatmul.mubr.f32.gmra.mrb[0].mxu0 %v1542
      %v1645 = vpop.f32.mrb[0].mxu0
      %v1646 = vadd.f32 0.0, %v1645
      %v1647 = vpop.f32.mrb[0].mxu0
      %1648 = vdwg.mxu0
      %v1649 = vsub.f32 %v1611, %v476
      %v1650 = vsub.f32 %v1616, %v477
      %v1651 = vsub.f32 %v1621, %v478
      %v1652 = vsub.f32 %v1626, %v479
      %v1653 = vsub.f32 %v1631, %v480
      %v1654 = vsub.f32 %v1636, %v481
      %v1655 = vsub.f32 %v1641, %v482
      %v1656 = vsub.f32 %v1646, %v483
      %v1657 = vpack.c.bf16 %v1650, %v1649
      %v1658 = vpack.c.bf16 %v1652, %v1651
      %v1659 = vpack.c.bf16 %v1654, %v1653
      %v1660 = vpack.c.bf16 %v1656, %v1655
      %v1662 = vsel %vm514, %v1657, 0
      %v1665 = vsel %vm514, %v1658, 0
      %v1668 = vsel %vm514, %v1659, 0
      %v1671 = vsel %vm514, %v1660, 0
      %1673 = vmatprep.subr.bf16.mxu0 0
      %1674 = vmatpush1.bf16.msra.mxu0 %v1107
      %1675 = vmatprep.subr.bf16.mxu0 0
      %1676 = vmatpush1.bf16.msra.mxu0 0
      %1677 = vmatprep.subr.bf16.mxu0 0
      %1678 = vmatpush1.bf16.msra.mxu0 0
      %1679 = vmatprep.subr.bf16.mxu0 0
      %1680 = vmatpush1.bf16.msra.mxu0 0
      %1681 = vmatprep.subr.bf16.mxu0 0
      %1682 = vmatpush1.bf16.msra.mxu0 0
      %1683 = vmatprep.subr.bf16.mxu0 0
      %1684 = vmatpush1.bf16.msra.mxu0 0
      %1685 = vmatprep.subr.bf16.mxu0 0
      %1686 = vmatpush1.bf16.msra.mxu0 0
      %1687 = vmatprep.subr.bf16.mxu0 0
      %1688 = vmatpush1.bf16.msra.mxu0 0
      %1689 = vmatprep.subr.bf16.mxu0 0
      %1690 = vmatpush1.bf16.msra.mxu0 0
      %1691 = vmatprep.subr.bf16.mxu0 0
      %1692 = vmatpush1.bf16.msra.mxu0 0
      %1693 = vmatprep.subr.bf16.mxu0 0
      %1694 = vmatpush1.bf16.msra.mxu0 0
      %1695 = vmatprep.subr.bf16.mxu0 0
      %1696 = vmatpush1.bf16.msra.mxu0 0
      %1697 = vmatprep.subr.bf16.mxu0 0
      %1698 = vmatpush1.bf16.msra.mxu0 0
      %1699 = vmatprep.subr.bf16.mxu0 0
      %1700 = vmatpush1.bf16.msra.mxu0 0
      %1701 = vmatprep.subr.bf16.mxu0 0
      %1702 = vmatpush1.bf16.msra.mxu0 0
      %1703 = vmatprep.subr.bf16.mxu0 0
      %1704 = vmatpush1.bf16.msra.mxu0 0
      %1705 = vmatprep.mubr.bf16.mxu0 0
      %1706 = vmatmul.mubr.bf16.gmra.mrb[0].mxu0 %v1662
      %v1707 = vpop.f32.mrb[0].mxu0
      %v1708 = vadd.f32 0.0, %v1707
      %v1709 = vpop.f32.mrb[0].mxu0
      %v1710 = vpop.f32.mrb[0].mxu0
      %v1711 = vadd.f32 0.0, %v1710
      %v1712 = vpop.f32.mrb[0].mxu0
      %1713 = vmatprep.mubr.bf16.mxu0 0
      %1714 = vmatmul.mubr.bf16.gmra.mrb[0].mxu0 %v1665
      %v1715 = vpop.f32.mrb[0].mxu0
      %v1716 = vadd.f32 0.0, %v1715
      %v1717 = vpop.f32.mrb[0].mxu0
      %v1718 = vpop.f32.mrb[0].mxu0
      %v1719 = vadd.f32 0.0, %v1718
      %v1720 = vpop.f32.mrb[0].mxu0
      %1721 = vmatprep.mubr.bf16.mxu0 0
      %1722 = vmatmul.mubr.bf16.gmra.mrb[0].mxu0 %v1668
      %v1723 = vpop.f32.mrb[0].mxu0
      %v1724 = vadd.f32 0.0, %v1723
      %v1725 = vpop.f32.mrb[0].mxu0
      %v1726 = vpop.f32.mrb[0].mxu0
      %v1727 = vadd.f32 0.0, %v1726
      %v1728 = vpop.f32.mrb[0].mxu0
      %1729 = vmatprep.mubr.bf16.mxu0 0
      %1730 = vmatmul.mubr.bf16.gmra.mrb[0].mxu0 %v1671
      %v1731 = vpop.f32.mrb[0].mxu0
      %v1732 = vadd.f32 0.0, %v1731
      %v1733 = vpop.f32.mrb[0].mxu0
      %v1734 = vpop.f32.mrb[0].mxu0
      %v1735 = vadd.f32 0.0, %v1734
      %v1736 = vpop.f32.mrb[0].mxu0
      %1737 = vdwg.mxu0
      %v1738 = vadd.f32 %v815, %v1708
      %v1739 = vadd.f32 %v818, %v1711
      %v1740 = vadd.f32 %v823, %v1716
      %v1741 = vadd.f32 %v826, %v1719
      %v1742 = vadd.f32 %v831, %v1724
      %v1743 = vadd.f32 %v834, %v1727
      %v1744 = vadd.f32 %v839, %v1732
      %v1745 = vadd.f32 %v842, %v1735
      %v1746 = vmax.f32 %v1738, 0.0
      %v1747 = vmax.f32 %v1739, 0.0
      %v1748 = vmax.f32 %v1740, 0.0
      %v1749 = vmax.f32 %v1741, 0.0
      %v1750 = vmax.f32 %v1742, 0.0
      %v1751 = vmax.f32 %v1743, 0.0
      %v1752 = vmax.f32 %v1744, 0.0
      %v1753 = vmax.f32 %v1745, 0.0
      %v1754 = vpack.c.bf16 %v1747, %v1746
      %v1755 = vpack.c.bf16 %v1749, %v1748
      %v1756 = vpack.c.bf16 %v1751, %v1750
      %v1757 = vpack.c.bf16 %v1753, %v1752
      %v1759 = vsel %vm671, %v1754, 0
      %v1762 = vsel %vm671, %v1755, 0
      %v1765 = vsel %vm671, %v1756, 0
      %v1768 = vsel %vm671, %v1757, 0
      %1770 = vmatprep.subr.bf16.mxu0 0
      %1771 = vmatpush1.bf16.msra.mxu0 %v1210
      %1772 = vmatprep.subr.bf16.mxu0 0
      %1773 = vmatpush1.bf16.msra.mxu0 %v1211
      %1774 = vmatprep.subr.bf16.mxu0 0
      %1775 = vmatpush1.bf16.msra.mxu0 %v1212
      %1776 = vmatprep.subr.bf16.mxu0 0
      %1777 = vmatpush1.bf16.msra.mxu0 %v1213
      %1778 = vmatprep.subr.bf16.mxu0 0
      %1779 = vmatpush1.bf16.msra.mxu0 0
      %1780 = vmatprep.subr.bf16.mxu0 0
      %1781 = vmatpush1.bf16.msra.mxu0 0
      %1782 = vmatprep.subr.bf16.mxu0 0
      %1783 = vmatpush1.bf16.msra.mxu0 0
      %1784 = vmatprep.subr.bf16.mxu0 0
      %1785 = vmatpush1.bf16.msra.mxu0 0
      %1786 = vmatprep.subr.bf16.mxu0 0
      %1787 = vmatpush1.bf16.msra.mxu0 0
      %1788 = vmatprep.subr.bf16.mxu0 0
      %1789 = vmatpush1.bf16.msra.mxu0 0
      %1790 = vmatprep.subr.bf16.mxu0 0
      %1791 = vmatpush1.bf16.msra.mxu0 0
      %1792 = vmatprep.subr.bf16.mxu0 0
      %1793 = vmatpush1.bf16.msra.mxu0 0
      %1794 = vmatprep.subr.bf16.mxu0 0
      %1795 = vmatpush1.bf16.msra.mxu0 0
      %1796 = vmatprep.subr.bf16.mxu0 0
      %1797 = vmatpush1.bf16.msra.mxu0 0
      %1798 = vmatprep.subr.bf16.mxu0 0
      %1799 = vmatpush1.bf16.msra.mxu0 0
      %1800 = vmatprep.subr.bf16.mxu0 0
      %1801 = vmatpush1.bf16.msra.mxu0 0
      %1802 = vmatprep.mubr.bf16.mxu0 0
      %1803 = vmatmul.mubr.bf16.gmra.mrb[0].mxu0 %v1759
      %v1804 = vpop.f32.mrb[0].mxu0
      %v1805 = vadd.f32 %v849, %v1804
      %v1806 = vpop.f32.mrb[0].mxu0
      %v1807 = vpop.f32.mrb[0].mxu0
      %v1808 = vadd.f32 %v849, %v1807
      %v1809 = vpop.f32.mrb[0].mxu0
      %1810 = vmatprep.mubr.bf16.mxu0 0
      %1811 = vmatmul.mubr.bf16.gmra.mrb[0].mxu0 %v1762
      %v1812 = vpop.f32.mrb[0].mxu0
      %v1813 = vadd.f32 %v849, %v1812
      %v1814 = vpop.f32.mrb[0].mxu0
      %v1815 = vpop.f32.mrb[0].mxu0
      %v1816 = vadd.f32 %v849, %v1815
      %v1817 = vpop.f32.mrb[0].mxu0
      %1818 = vmatprep.mubr.bf16.mxu0 0
      %1819 = vmatmul.mubr.bf16.gmra.mrb[0].mxu0 %v1765
      %v1820 = vpop.f32.mrb[0].mxu0
      %v1821 = vadd.f32 %v849, %v1820
      %v1822 = vpop.f32.mrb[0].mxu0
      %v1823 = vpop.f32.mrb[0].mxu0
      %v1824 = vadd.f32 %v849, %v1823
      %v1825 = vpop.f32.mrb[0].mxu0
      %1826 = vmatprep.mubr.bf16.mxu0 0
      %1827 = vmatmul.mubr.bf16.gmra.mrb[0].mxu0 %v1768
      %v1828 = vpop.f32.mrb[0].mxu0
      %v1829 = vadd.f32 %v849, %v1828
      %v1830 = vpop.f32.mrb[0].mxu0
      %v1831 = vpop.f32.mrb[0].mxu0
      %v1832 = vadd.f32 %v849, %v1831
      %v1833 = vpop.f32.mrb[0].mxu0
      %1834 = vdwg.mxu0
      %v1835 = vmax.f32 %v1805, 0.0
      %v1836 = vmax.f32 %v1808, 0.0
      %v1837 = vmax.f32 %v1813, 0.0
      %v1838 = vmax.f32 %v1816, 0.0
      %v1839 = vmax.f32 %v1821, 0.0
      %v1840 = vmax.f32 %v1824, 0.0
      %v1841 = vmax.f32 %v1829, 0.0
      %v1842 = vmax.f32 %v1832, 0.0
      %v1843 = vpack.c.bf16 %v1836, %v1835
      %v1844 = vpack.c.bf16 %v1838, %v1837
      %v1845 = vpack.c.bf16 %v1840, %v1839
      %v1846 = vpack.c.bf16 %v1842, %v1841
      %v1848 = vsel %vm671, %v1843, 0
      %v1851 = vsel %vm671, %v1844, 0
      %v1854 = vsel %vm671, %v1845, 0
      %v1857 = vsel %vm671, %v1846, 0
      %1859 = vmatprep.subr.bf16.mxu0 0
      %1860 = vmatpush1.bf16.msra.mxu0 %v1323
      %1861 = vmatprep.subr.bf16.mxu0 0
      %1862 = vmatpush1.bf16.msra.mxu0 %v1324
      %1863 = vmatprep.subr.bf16.mxu0 0
      %1864 = vmatpush1.bf16.msra.mxu0 %v1325
      %1865 = vmatprep.subr.bf16.mxu0 0
      %1866 = vmatpush1.bf16.msra.mxu0 %v1326
      %1867 = vmatprep.subr.bf16.mxu0 0
      %1868 = vmatpush1.bf16.msra.mxu0 0
      %1869 = vmatprep.subr.bf16.mxu0 0
      %1870 = vmatpush1.bf16.msra.mxu0 0
      %1871 = vmatprep.subr.bf16.mxu0 0
      %1872 = vmatpush1.bf16.msra.mxu0 0
      %1873 = vmatprep.subr.bf16.mxu0 0
      %1874 = vmatpush1.bf16.msra.mxu0 0
      %1875 = vmatprep.subr.bf16.mxu0 0
      %1876 = vmatpush1.bf16.msra.mxu0 0
      %1877 = vmatprep.subr.bf16.mxu0 0
      %1878 = vmatpush1.bf16.msra.mxu0 0
      %1879 = vmatprep.subr.bf16.mxu0 0
      %1880 = vmatpush1.bf16.msra.mxu0 0
      %1881 = vmatprep.subr.bf16.mxu0 0
      %1882 = vmatpush1.bf16.msra.mxu0 0
      %1883 = vmatprep.subr.bf16.mxu0 0
      %1884 = vmatpush1.bf16.msra.mxu0 0
      %1885 = vmatprep.subr.bf16.mxu0 0
      %1886 = vmatpush1.bf16.msra.mxu0 0
      %1887 = vmatprep.subr.bf16.mxu0 0
      %1888 = vmatpush1.bf16.msra.mxu0 0
      %1889 = vmatprep.subr.bf16.mxu0 0
      %1890 = vmatpush1.bf16.msra.mxu0 0
      %1891 = vmatprep.mubr.bf16.mxu0 0
      %1892 = vmatmul.mubr.bf16.gmra.mrb[0].mxu0 %v1848
      %v1893 = vpop.f32.mrb[0].mxu0
      %v1894 = vadd.f32 %v855, %v1893
      %v1895 = vpop.f32.mrb[0].mxu0
      %v1896 = vpop.f32.mrb[0].mxu0
      %v1897 = vadd.f32 %v855, %v1896
      %v1898 = vpop.f32.mrb[0].mxu0
      %1899 = vmatprep.mubr.bf16.mxu0 0
      %1900 = vmatmul.mubr.bf16.gmra.mrb[0].mxu0 %v1851
      %v1901 = vpop.f32.mrb[0].mxu0
      %v1902 = vadd.f32 %v855, %v1901
      %v1903 = vpop.f32.mrb[0].mxu0
      %v1904 = vpop.f32.mrb[0].mxu0
      %v1905 = vadd.f32 %v855, %v1904
      %v1906 = vpop.f32.mrb[0].mxu0
      %1907 = vmatprep.mubr.bf16.mxu0 0
      %1908 = vmatmul.mubr.bf16.gmra.mrb[0].mxu0 %v1854
      %v1909 = vpop.f32.mrb[0].mxu0
      %v1910 = vadd.f32 %v855, %v1909
      %v1911 = vpop.f32.mrb[0].mxu0
      %v1912 = vpop.f32.mrb[0].mxu0
      %v1913 = vadd.f32 %v855, %v1912
      %v1914 = vpop.f32.mrb[0].mxu0
      %1915 = vmatprep.mubr.bf16.mxu0 0
      %1916 = vmatmul.mubr.bf16.gmra.mrb[0].mxu0 %v1857
      %v1917 = vpop.f32.mrb[0].mxu0
      %v1918 = vadd.f32 %v855, %v1917
      %v1919 = vpop.f32.mrb[0].mxu0
      %v1920 = vpop.f32.mrb[0].mxu0
      %v1921 = vadd.f32 %v855, %v1920
      %v1922 = vpop.f32.mrb[0].mxu0
      %1923 = vdwg.mxu0
      %v1924 = vmax.f32 %v1894, 0.0
      %v1925 = vmax.f32 %v1897, 0.0
      %v1926 = vmax.f32 %v1902, 0.0
      %v1927 = vmax.f32 %v1905, 0.0
      %v1928 = vmax.f32 %v1910, 0.0
      %v1929 = vmax.f32 %v1913, 0.0
      %v1930 = vmax.f32 %v1918, 0.0
      %v1931 = vmax.f32 %v1921, 0.0
      %v1932 = vmax.f32 %v1416, %v1924
      %v1933 = vmax.f32 %v1417, %v1925
      %v1934 = vmax.f32 %v1418, %v1926
      %v1935 = vmax.f32 %v1419, %v1927
      %v1936 = vmax.f32 %v1420, %v1928
      %v1937 = vmax.f32 %v1421, %v1929
      %v1938 = vmax.f32 %v1422, %v1930
      %v1939 = vmax.f32 %v1423, %v1931
      %v1940 = vsel %vm671, %v1496, inf
      %1941 = vmin.xlane.f32.xlu0 %v1940
      %v1942 = vpop.xlane.xlu0 %1941
      %v1943 = vsel %vm671, %v1497, inf
      %1944 = vmin.xlane.f32.xlu0 %v1943
      %v1945 = vpop.xlane.xlu0 %1944
      %v1946 = vsel %vm671, %v1498, inf
      %1947 = vmin.xlane.f32.xlu0 %v1946
      %v1948 = vpop.xlane.xlu0 %1947
      %v1949 = vsel %vm671, %v1499, inf
      %1950 = vmin.xlane.f32.xlu0 %v1949
      %v1951 = vpop.xlane.xlu0 %1950
      %v1952 = vsel %vm671, %v1500, inf
      %1953 = vmin.xlane.f32.xlu0 %v1952
      %v1954 = vpop.xlane.xlu0 %1953
      %v1955 = vsel %vm671, %v1501, inf
      %1956 = vmin.xlane.f32.xlu0 %v1955
      %v1957 = vpop.xlane.xlu0 %1956
      %v1958 = vsel %vm671, %v1502, inf
      %1959 = vmin.xlane.f32.xlu0 %v1958
      %v1960 = vpop.xlane.xlu0 %1959
      %v1961 = vsel %vm671, %v1503, inf
      %1962 = vmin.xlane.f32.xlu0 %v1961
      %v1963 = vpop.xlane.xlu0 %1962
      %vm1964 = vcmp.le.f32.partialorder %v1496, %v1942
      %vm1965 = vcmp.le.f32.partialorder %v1497, %v1945
      %vm1966 = vcmp.le.f32.partialorder %v1498, %v1948
      %vm1967 = vcmp.le.f32.partialorder %v1499, %v1951
      %vm1968 = vcmp.le.f32.partialorder %v1500, %v1954
      %vm1969 = vcmp.le.f32.partialorder %v1501, %v1957
      %vm1970 = vcmp.le.f32.partialorder %v1502, %v1960
      %vm1971 = vcmp.le.f32.partialorder %v1503, %v1963
      %v1972 = vsel %vm1964, %v753, 64.0
      %v1973 = vsel %vm1965, %v753, 64.0
      %v1974 = vsel %vm1966, %v753, 64.0
      %v1975 = vsel %vm1967, %v753, 64.0
      %v1976 = vsel %vm1968, %v753, 64.0
      %v1977 = vsel %vm1969, %v753, 64.0
      %v1978 = vsel %vm1970, %v753, 64.0
      %v1979 = vsel %vm1971, %v753, 64.0
      %v1980 = vsel %vm671, %v1972, inf
      %1981 = vmin.xlane.f32.xlu0 %v1980
      %v1982 = vpop.xlane.xlu0 %1981
      %v1983 = vsel %vm671, %v1973, inf
      %1984 = vmin.xlane.f32.xlu0 %v1983
      %v1985 = vpop.xlane.xlu0 %1984
      %v1986 = vsel %vm671, %v1974, inf
      %1987 = vmin.xlane.f32.xlu0 %v1986
      %v1988 = vpop.xlane.xlu0 %1987
      %v1989 = vsel %vm671, %v1975, inf
      %1990 = vmin.xlane.f32.xlu0 %v1989
      %v1991 = vpop.xlane.xlu0 %1990
      %v1992 = vsel %vm671, %v1976, inf
      %1993 = vmin.xlane.f32.xlu0 %v1992
      %v1994 = vpop.xlane.xlu0 %1993
      %v1995 = vsel %vm671, %v1977, inf
      %1996 = vmin.xlane.f32.xlu0 %v1995
      %v1997 = vpop.xlane.xlu0 %1996
      %v1998 = vsel %vm671, %v1978, inf
      %1999 = vmin.xlane.f32.xlu0 %v1998
      %v2000 = vpop.xlane.xlu0 %1999
      %v2001 = vsel %vm671, %v1979, inf
      %2002 = vmin.xlane.f32.xlu0 %v2001
      %v2003 = vpop.xlane.xlu0 %2002
      %vm2004 = vcmp.eq.f32.partialorder %v753, %v1982
      %vm2005 = vcmp.eq.f32.partialorder %v753, %v1985
      %vm2006 = vcmp.eq.f32.partialorder %v753, %v1988
      %vm2007 = vcmp.eq.f32.partialorder %v753, %v1991
      %vm2008 = vcmp.eq.f32.partialorder %v753, %v1994
      %vm2009 = vcmp.eq.f32.partialorder %v753, %v1997
      %vm2010 = vcmp.eq.f32.partialorder %v753, %v2000
      %vm2011 = vcmp.eq.f32.partialorder %v753, %v2003
      %v2012 = vsel %vm2004, 1e+30, %v1496
      %v2013 = vsel %vm2005, 1e+30, %v1497
      %v2014 = vsel %vm2006, 1e+30, %v1498
      %v2015 = vsel %vm2007, 1e+30, %v1499
      %v2016 = vsel %vm2008, 1e+30, %v1500
      %v2017 = vsel %vm2009, 1e+30, %v1501
      %v2018 = vsel %vm2010, 1e+30, %v1502
      %v2019 = vsel %vm2011, 1e+30, %v1503
      %v2020 = vsel %vm2004, 1, 0
      %v2021 = vsel %vm2005, 1, 0
      %v2022 = vsel %vm2006, 1, 0
      %v2023 = vsel %vm2007, 1, 0
      %v2024 = vsel %vm2008, 1, 0
      %v2025 = vsel %vm2009, 1, 0
      %v2026 = vsel %vm2010, 1, 0
      %v2027 = vsel %vm2011, 1, 0
      %v2028 = vcvt.s32.f32 %v2020
      %v2029 = vcvt.s32.f32 %v2021
      %v2030 = vcvt.s32.f32 %v2022
      %v2031 = vcvt.s32.f32 %v2023
      %v2032 = vcvt.s32.f32 %v2024
      %v2033 = vcvt.s32.f32 %v2025
      %v2034 = vcvt.s32.f32 %v2026
      %v2035 = vcvt.s32.f32 %v2027
      %v2037 = vsel %vm671, %v2028, 0
      %v2040 = vsel %vm671, %v2029, 0
      %v2043 = vsel %vm671, %v2030, 0
      %v2046 = vsel %vm671, %v2031, 0
      %v2049 = vsel %vm671, %v2032, 0
      %v2052 = vsel %vm671, %v2033, 0
      %v2055 = vsel %vm671, %v2034, 0
      %v2058 = vsel %vm671, %v2035, 0
      %2060 = vmatprep.subr.mxu0 0.0
      %2061 = vmatpush1.msra.mxu0 %v476
      %2062 = vmatprep.subr.mxu0 0.0
      %2063 = vmatpush1.msra.mxu0 %v477
      %2064 = vmatprep.subr.mxu0 0.0
      %2065 = vmatpush1.msra.mxu0 %v478
      %2066 = vmatprep.subr.mxu0 0.0
      %2067 = vmatpush1.msra.mxu0 %v479
      %2068 = vmatprep.subr.mxu0 0.0
      %2069 = vmatpush1.msra.mxu0 %v480
      %2070 = vmatprep.subr.mxu0 0.0
      %2071 = vmatpush1.msra.mxu0 %v481
      %2072 = vmatprep.subr.mxu0 0.0
      %2073 = vmatpush1.msra.mxu0 %v482
      %2074 = vmatprep.subr.mxu0 0.0
      %2075 = vmatpush1.msra.mxu0 %v483
      %2076 = vmatprep.subr.mxu0 0.0
      %2077 = vmatpush1.msra.mxu0 0.0
      %2078 = vmatprep.subr.mxu0 0.0
      %2079 = vmatpush1.msra.mxu0 0.0
      %2080 = vmatprep.subr.mxu0 0.0
      %2081 = vmatpush1.msra.mxu0 0.0
      %2082 = vmatprep.subr.mxu0 0.0
      %2083 = vmatpush1.msra.mxu0 0.0
      %2084 = vmatprep.subr.mxu0 0.0
      %2085 = vmatpush1.msra.mxu0 0.0
      %2086 = vmatprep.subr.mxu0 0.0
      %2087 = vmatpush1.msra.mxu0 0.0
      %2088 = vmatprep.subr.mxu0 0.0
      %2089 = vmatpush1.msra.mxu0 0.0
      %2090 = vmatprep.subr.mxu0 0.0
      %2091 = vmatpush1.msra.mxu0 0.0
      %2092 = vmatprep.subr.mxu0 0.0
      %2093 = vmatpush1.msra.mxu0 0.0
      %2094 = vmatprep.subr.mxu0 0.0
      %2095 = vmatpush1.msra.mxu0 0.0
      %2096 = vmatprep.subr.mxu0 0.0
      %2097 = vmatpush1.msra.mxu0 0.0
      %2098 = vmatprep.subr.mxu0 0.0
      %2099 = vmatpush1.msra.mxu0 0.0
      %2100 = vmatprep.subr.mxu0 0.0
      %2101 = vmatpush1.msra.mxu0 0.0
      %2102 = vmatprep.subr.mxu0 0.0
      %2103 = vmatpush1.msra.mxu0 0.0
      %2104 = vmatprep.subr.mxu0 0.0
      %2105 = vmatpush1.msra.mxu0 0.0
      %2106 = vmatprep.subr.mxu0 0.0
      %2107 = vmatpush1.msra.mxu0 0.0
      %2108 = vmatprep.subr.mxu0 0.0
      %2109 = vmatpush1.msra.mxu0 0.0
      %2110 = vmatprep.subr.mxu0 0.0
      %2111 = vmatpush1.msra.mxu0 0.0
      %2112 = vmatprep.subr.mxu0 0.0
      %2113 = vmatpush1.msra.mxu0 0.0
      %2114 = vmatprep.subr.mxu0 0.0
      %2115 = vmatpush1.msra.mxu0 0.0
      %2116 = vmatprep.subr.mxu0 0.0
      %2117 = vmatpush1.msra.mxu0 0.0
      %2118 = vmatprep.subr.mxu0 0.0
      %2119 = vmatpush1.msra.mxu0 0.0
      %2120 = vmatprep.subr.mxu0 0.0
      %2121 = vmatpush1.msra.mxu0 0.0
      %2122 = vmatprep.subr.mxu0 0.0
      %2123 = vmatpush1.msra.mxu0 0.0
      %2124 = vmatprep.mubr.f32.mxu0 0.0
      %2125 = vmatmul.mubr.f32.gmra.mrb[0].mxu0 %v2037
      %v2126 = vpop.f32.mrb[0].mxu0
      %v2127 = vadd.f32 0.0, %v2126
      %v2128 = vpop.f32.mrb[0].mxu0
      %2129 = vmatprep.mubr.f32.mxu0 0.0
      %2130 = vmatmul.mubr.f32.gmra.mrb[0].mxu0 %v2040
      %v2131 = vpop.f32.mrb[0].mxu0
      %v2132 = vadd.f32 0.0, %v2131
      %v2133 = vpop.f32.mrb[0].mxu0
      %2134 = vmatprep.mubr.f32.mxu0 0.0
      %2135 = vmatmul.mubr.f32.gmra.mrb[0].mxu0 %v2043
      %v2136 = vpop.f32.mrb[0].mxu0
      %v2137 = vadd.f32 0.0, %v2136
      %v2138 = vpop.f32.mrb[0].mxu0
      %2139 = vmatprep.mubr.f32.mxu0 0.0
      %2140 = vmatmul.mubr.f32.gmra.mrb[0].mxu0 %v2046
      %v2141 = vpop.f32.mrb[0].mxu0
      %v2142 = vadd.f32 0.0, %v2141
      %v2143 = vpop.f32.mrb[0].mxu0
      %2144 = vmatprep.mubr.f32.mxu0 0.0
      %2145 = vmatmul.mubr.f32.gmra.mrb[0].mxu0 %v2049
      %v2146 = vpop.f32.mrb[0].mxu0
      %v2147 = vadd.f32 0.0, %v2146
      %v2148 = vpop.f32.mrb[0].mxu0
      %2149 = vmatprep.mubr.f32.mxu0 0.0
      %2150 = vmatmul.mubr.f32.gmra.mrb[0].mxu0 %v2052
      %v2151 = vpop.f32.mrb[0].mxu0
      %v2152 = vadd.f32 0.0, %v2151
      %v2153 = vpop.f32.mrb[0].mxu0
      %2154 = vmatprep.mubr.f32.mxu0 0.0
      %2155 = vmatmul.mubr.f32.gmra.mrb[0].mxu0 %v2055
      %v2156 = vpop.f32.mrb[0].mxu0
      %v2157 = vadd.f32 0.0, %v2156
      %v2158 = vpop.f32.mrb[0].mxu0
      %2159 = vmatprep.mubr.f32.mxu0 0.0
      %2160 = vmatmul.mubr.f32.gmra.mrb[0].mxu0 %v2058
      %v2161 = vpop.f32.mrb[0].mxu0
      %v2162 = vadd.f32 0.0, %v2161
      %v2163 = vpop.f32.mrb[0].mxu0
      %2164 = vdwg.mxu0
      %v2165 = vsub.f32 %v2127, %v476
      %v2166 = vsub.f32 %v2132, %v477
      %v2167 = vsub.f32 %v2137, %v478
      %v2168 = vsub.f32 %v2142, %v479
      %v2169 = vsub.f32 %v2147, %v480
      %v2170 = vsub.f32 %v2152, %v481
      %v2171 = vsub.f32 %v2157, %v482
      %v2172 = vsub.f32 %v2162, %v483
      %v2173 = vpack.c.bf16 %v2166, %v2165
      %v2174 = vpack.c.bf16 %v2168, %v2167
      %v2175 = vpack.c.bf16 %v2170, %v2169
      %v2176 = vpack.c.bf16 %v2172, %v2171
      %v2178 = vsel %vm514, %v2173, 0
      %v2181 = vsel %vm514, %v2174, 0
      %v2184 = vsel %vm514, %v2175, 0
      %v2187 = vsel %vm514, %v2176, 0
      %2189 = vmatprep.subr.bf16.mxu0 0
      %2190 = vmatpush1.bf16.msra.mxu0 %v1107
      %2191 = vmatprep.subr.bf16.mxu0 0
      %2192 = vmatpush1.bf16.msra.mxu0 0
      %2193 = vmatprep.subr.bf16.mxu0 0
      %2194 = vmatpush1.bf16.msra.mxu0 0
      %2195 = vmatprep.subr.bf16.mxu0 0
      %2196 = vmatpush1.bf16.msra.mxu0 0
      %2197 = vmatprep.subr.bf16.mxu0 0
      %2198 = vmatpush1.bf16.msra.mxu0 0
      %2199 = vmatprep.subr.bf16.mxu0 0
      %2200 = vmatpush1.bf16.msra.mxu0 0
      %2201 = vmatprep.subr.bf16.mxu0 0
      %2202 = vmatpush1.bf16.msra.mxu0 0
      %2203 = vmatprep.subr.bf16.mxu0 0
      %2204 = vmatpush1.bf16.msra.mxu0 0
      %2205 = vmatprep.subr.bf16.mxu0 0
      %2206 = vmatpush1.bf16.msra.mxu0 0
      %2207 = vmatprep.subr.bf16.mxu0 0
      %2208 = vmatpush1.bf16.msra.mxu0 0
      %2209 = vmatprep.subr.bf16.mxu0 0
      %2210 = vmatpush1.bf16.msra.mxu0 0
      %2211 = vmatprep.subr.bf16.mxu0 0
      %2212 = vmatpush1.bf16.msra.mxu0 0
      %2213 = vmatprep.subr.bf16.mxu0 0
      %2214 = vmatpush1.bf16.msra.mxu0 0
      %2215 = vmatprep.subr.bf16.mxu0 0
      %2216 = vmatpush1.bf16.msra.mxu0 0
      %2217 = vmatprep.subr.bf16.mxu0 0
      %2218 = vmatpush1.bf16.msra.mxu0 0
      %2219 = vmatprep.subr.bf16.mxu0 0
      %2220 = vmatpush1.bf16.msra.mxu0 0
      %2221 = vmatprep.mubr.bf16.mxu0 0
      %2222 = vmatmul.mubr.bf16.gmra.mrb[0].mxu0 %v2178
      %v2223 = vpop.f32.mrb[0].mxu0
      %v2224 = vadd.f32 0.0, %v2223
      %v2225 = vpop.f32.mrb[0].mxu0
      %v2226 = vpop.f32.mrb[0].mxu0
      %v2227 = vadd.f32 0.0, %v2226
      %v2228 = vpop.f32.mrb[0].mxu0
      %2229 = vmatprep.mubr.bf16.mxu0 0
      %2230 = vmatmul.mubr.bf16.gmra.mrb[0].mxu0 %v2181
      %v2231 = vpop.f32.mrb[0].mxu0
      %v2232 = vadd.f32 0.0, %v2231
      %v2233 = vpop.f32.mrb[0].mxu0
      %v2234 = vpop.f32.mrb[0].mxu0
      %v2235 = vadd.f32 0.0, %v2234
      %v2236 = vpop.f32.mrb[0].mxu0
      %2237 = vmatprep.mubr.bf16.mxu0 0
      %2238 = vmatmul.mubr.bf16.gmra.mrb[0].mxu0 %v2184
      %v2239 = vpop.f32.mrb[0].mxu0
      %v2240 = vadd.f32 0.0, %v2239
      %v2241 = vpop.f32.mrb[0].mxu0
      %v2242 = vpop.f32.mrb[0].mxu0
      %v2243 = vadd.f32 0.0, %v2242
      %v2244 = vpop.f32.mrb[0].mxu0
      %2245 = vmatprep.mubr.bf16.mxu0 0
      %2246 = vmatmul.mubr.bf16.gmra.mrb[0].mxu0 %v2187
      %v2247 = vpop.f32.mrb[0].mxu0
      %v2248 = vadd.f32 0.0, %v2247
      %v2249 = vpop.f32.mrb[0].mxu0
      %v2250 = vpop.f32.mrb[0].mxu0
      %v2251 = vadd.f32 0.0, %v2250
      %v2252 = vpop.f32.mrb[0].mxu0
      %2253 = vdwg.mxu0
      %v2254 = vadd.f32 %v815, %v2224
      %v2255 = vadd.f32 %v818, %v2227
      %v2256 = vadd.f32 %v823, %v2232
      %v2257 = vadd.f32 %v826, %v2235
      %v2258 = vadd.f32 %v831, %v2240
      %v2259 = vadd.f32 %v834, %v2243
      %v2260 = vadd.f32 %v839, %v2248
      %v2261 = vadd.f32 %v842, %v2251
      %v2262 = vmax.f32 %v2254, 0.0
      %v2263 = vmax.f32 %v2255, 0.0
      %v2264 = vmax.f32 %v2256, 0.0
      %v2265 = vmax.f32 %v2257, 0.0
      %v2266 = vmax.f32 %v2258, 0.0
      %v2267 = vmax.f32 %v2259, 0.0
      %v2268 = vmax.f32 %v2260, 0.0
      %v2269 = vmax.f32 %v2261, 0.0
      %v2270 = vpack.c.bf16 %v2263, %v2262
      %v2271 = vpack.c.bf16 %v2265, %v2264
      %v2272 = vpack.c.bf16 %v2267, %v2266
      %v2273 = vpack.c.bf16 %v2269, %v2268
      %v2275 = vsel %vm671, %v2270, 0
      %v2278 = vsel %vm671, %v2271, 0
      %v2281 = vsel %vm671, %v2272, 0
      %v2284 = vsel %vm671, %v2273, 0
      %2286 = vmatprep.subr.bf16.mxu0 0
      %2287 = vmatpush1.bf16.msra.mxu0 %v1210
      %2288 = vmatprep.subr.bf16.mxu0 0
      %2289 = vmatpush1.bf16.msra.mxu0 %v1211
      %2290 = vmatprep.subr.bf16.mxu0 0
      %2291 = vmatpush1.bf16.msra.mxu0 %v1212
      %2292 = vmatprep.subr.bf16.mxu0 0
      %2293 = vmatpush1.bf16.msra.mxu0 %v1213
      %2294 = vmatprep.subr.bf16.mxu0 0
      %2295 = vmatpush1.bf16.msra.mxu0 0
      %2296 = vmatprep.subr.bf16.mxu0 0
      %2297 = vmatpush1.bf16.msra.mxu0 0
      %2298 = vmatprep.subr.bf16.mxu0 0
      %2299 = vmatpush1.bf16.msra.mxu0 0
      %2300 = vmatprep.subr.bf16.mxu0 0
      %2301 = vmatpush1.bf16.msra.mxu0 0
      %2302 = vmatprep.subr.bf16.mxu0 0
      %2303 = vmatpush1.bf16.msra.mxu0 0
      %2304 = vmatprep.subr.bf16.mxu0 0
      %2305 = vmatpush1.bf16.msra.mxu0 0
      %2306 = vmatprep.subr.bf16.mxu0 0
      %2307 = vmatpush1.bf16.msra.mxu0 0
      %2308 = vmatprep.subr.bf16.mxu0 0
      %2309 = vmatpush1.bf16.msra.mxu0 0
      %2310 = vmatprep.subr.bf16.mxu0 0
      %2311 = vmatpush1.bf16.msra.mxu0 0
      %2312 = vmatprep.subr.bf16.mxu0 0
      %2313 = vmatpush1.bf16.msra.mxu0 0
      %2314 = vmatprep.subr.bf16.mxu0 0
      %2315 = vmatpush1.bf16.msra.mxu0 0
      %2316 = vmatprep.subr.bf16.mxu0 0
      %2317 = vmatpush1.bf16.msra.mxu0 0
      %2318 = vmatprep.mubr.bf16.mxu0 0
      %2319 = vmatmul.mubr.bf16.gmra.mrb[0].mxu0 %v2275
      %v2320 = vpop.f32.mrb[0].mxu0
      %v2321 = vadd.f32 %v849, %v2320
      %v2322 = vpop.f32.mrb[0].mxu0
      %v2323 = vpop.f32.mrb[0].mxu0
      %v2324 = vadd.f32 %v849, %v2323
      %v2325 = vpop.f32.mrb[0].mxu0
      %2326 = vmatprep.mubr.bf16.mxu0 0
      %2327 = vmatmul.mubr.bf16.gmra.mrb[0].mxu0 %v2278
      %v2328 = vpop.f32.mrb[0].mxu0
      %v2329 = vadd.f32 %v849, %v2328
      %v2330 = vpop.f32.mrb[0].mxu0
      %v2331 = vpop.f32.mrb[0].mxu0
      %v2332 = vadd.f32 %v849, %v2331
      %v2333 = vpop.f32.mrb[0].mxu0
      %2334 = vmatprep.mubr.bf16.mxu0 0
      %2335 = vmatmul.mubr.bf16.gmra.mrb[0].mxu0 %v2281
      %v2336 = vpop.f32.mrb[0].mxu0
      %v2337 = vadd.f32 %v849, %v2336
      %v2338 = vpop.f32.mrb[0].mxu0
      %v2339 = vpop.f32.mrb[0].mxu0
      %v2340 = vadd.f32 %v849, %v2339
      %v2341 = vpop.f32.mrb[0].mxu0
      %2342 = vmatprep.mubr.bf16.mxu0 0
      %2343 = vmatmul.mubr.bf16.gmra.mrb[0].mxu0 %v2284
      %v2344 = vpop.f32.mrb[0].mxu0
      %v2345 = vadd.f32 %v849, %v2344
      %v2346 = vpop.f32.mrb[0].mxu0
      %v2347 = vpop.f32.mrb[0].mxu0
      %v2348 = vadd.f32 %v849, %v2347
      %v2349 = vpop.f32.mrb[0].mxu0
      %2350 = vdwg.mxu0
      %v2351 = vmax.f32 %v2321, 0.0
      %v2352 = vmax.f32 %v2324, 0.0
      %v2353 = vmax.f32 %v2329, 0.0
      %v2354 = vmax.f32 %v2332, 0.0
      %v2355 = vmax.f32 %v2337, 0.0
      %v2356 = vmax.f32 %v2340, 0.0
      %v2357 = vmax.f32 %v2345, 0.0
      %v2358 = vmax.f32 %v2348, 0.0
      %v2359 = vpack.c.bf16 %v2352, %v2351
      %v2360 = vpack.c.bf16 %v2354, %v2353
      %v2361 = vpack.c.bf16 %v2356, %v2355
      %v2362 = vpack.c.bf16 %v2358, %v2357
      %v2364 = vsel %vm671, %v2359, 0
      %v2367 = vsel %vm671, %v2360, 0
      %v2370 = vsel %vm671, %v2361, 0
      %v2373 = vsel %vm671, %v2362, 0
      %2375 = vmatprep.subr.bf16.mxu0 0
      %2376 = vmatpush1.bf16.msra.mxu0 %v1323
      %2377 = vmatprep.subr.bf16.mxu0 0
      %2378 = vmatpush1.bf16.msra.mxu0 %v1324
      %2379 = vmatprep.subr.bf16.mxu0 0
      %2380 = vmatpush1.bf16.msra.mxu0 %v1325
      %2381 = vmatprep.subr.bf16.mxu0 0
      %2382 = vmatpush1.bf16.msra.mxu0 %v1326
      %2383 = vmatprep.subr.bf16.mxu0 0
      %2384 = vmatpush1.bf16.msra.mxu0 0
      %2385 = vmatprep.subr.bf16.mxu0 0
      %2386 = vmatpush1.bf16.msra.mxu0 0
      %2387 = vmatprep.subr.bf16.mxu0 0
      %2388 = vmatpush1.bf16.msra.mxu0 0
      %2389 = vmatprep.subr.bf16.mxu0 0
      %2390 = vmatpush1.bf16.msra.mxu0 0
      %2391 = vmatprep.subr.bf16.mxu0 0
      %2392 = vmatpush1.bf16.msra.mxu0 0
      %2393 = vmatprep.subr.bf16.mxu0 0
      %2394 = vmatpush1.bf16.msra.mxu0 0
      %2395 = vmatprep.subr.bf16.mxu0 0
      %2396 = vmatpush1.bf16.msra.mxu0 0
      %2397 = vmatprep.subr.bf16.mxu0 0
      %2398 = vmatpush1.bf16.msra.mxu0 0
      %2399 = vmatprep.subr.bf16.mxu0 0
      %2400 = vmatpush1.bf16.msra.mxu0 0
      %2401 = vmatprep.subr.bf16.mxu0 0
      %2402 = vmatpush1.bf16.msra.mxu0 0
      %2403 = vmatprep.subr.bf16.mxu0 0
      %2404 = vmatpush1.bf16.msra.mxu0 0
      %2405 = vmatprep.subr.bf16.mxu0 0
      %2406 = vmatpush1.bf16.msra.mxu0 0
      %2407 = vmatprep.mubr.bf16.mxu0 0
      %2408 = vmatmul.mubr.bf16.gmra.mrb[0].mxu0 %v2364
      %v2409 = vpop.f32.mrb[0].mxu0
      %v2410 = vadd.f32 %v855, %v2409
      %v2411 = vpop.f32.mrb[0].mxu0
      %v2412 = vpop.f32.mrb[0].mxu0
      %v2413 = vadd.f32 %v855, %v2412
      %v2414 = vpop.f32.mrb[0].mxu0
      %2415 = vmatprep.mubr.bf16.mxu0 0
      %2416 = vmatmul.mubr.bf16.gmra.mrb[0].mxu0 %v2367
      %v2417 = vpop.f32.mrb[0].mxu0
      %v2418 = vadd.f32 %v855, %v2417
      %v2419 = vpop.f32.mrb[0].mxu0
      %v2420 = vpop.f32.mrb[0].mxu0
      %v2421 = vadd.f32 %v855, %v2420
      %v2422 = vpop.f32.mrb[0].mxu0
      %2423 = vmatprep.mubr.bf16.mxu0 0
      %2424 = vmatmul.mubr.bf16.gmra.mrb[0].mxu0 %v2370
      %v2425 = vpop.f32.mrb[0].mxu0
      %v2426 = vadd.f32 %v855, %v2425
      %v2427 = vpop.f32.mrb[0].mxu0
      %v2428 = vpop.f32.mrb[0].mxu0
      %v2429 = vadd.f32 %v855, %v2428
      %v2430 = vpop.f32.mrb[0].mxu0
      %2431 = vmatprep.mubr.bf16.mxu0 0
      %2432 = vmatmul.mubr.bf16.gmra.mrb[0].mxu0 %v2373
      %v2433 = vpop.f32.mrb[0].mxu0
      %v2434 = vadd.f32 %v855, %v2433
      %v2435 = vpop.f32.mrb[0].mxu0
      %v2436 = vpop.f32.mrb[0].mxu0
      %v2437 = vadd.f32 %v855, %v2436
      %v2438 = vpop.f32.mrb[0].mxu0
      %2439 = vdwg.mxu0
      %v2440 = vmax.f32 %v2410, 0.0
      %v2441 = vmax.f32 %v2413, 0.0
      %v2442 = vmax.f32 %v2418, 0.0
      %v2443 = vmax.f32 %v2421, 0.0
      %v2444 = vmax.f32 %v2426, 0.0
      %v2445 = vmax.f32 %v2429, 0.0
      %v2446 = vmax.f32 %v2434, 0.0
      %v2447 = vmax.f32 %v2437, 0.0
      %v2448 = vmax.f32 %v1932, %v2440
      %v2449 = vmax.f32 %v1933, %v2441
      %v2450 = vmax.f32 %v1934, %v2442
      %v2451 = vmax.f32 %v1935, %v2443
      %v2452 = vmax.f32 %v1936, %v2444
      %v2453 = vmax.f32 %v1937, %v2445
      %v2454 = vmax.f32 %v1938, %v2446
      %v2455 = vmax.f32 %v1939, %v2447
      %v2456 = vsel %vm671, %v2012, inf
      %2457 = vmin.xlane.f32.xlu0 %v2456
      %v2458 = vpop.xlane.xlu0 %2457
      %v2459 = vsel %vm671, %v2013, inf
      %2460 = vmin.xlane.f32.xlu0 %v2459
      %v2461 = vpop.xlane.xlu0 %2460
      %v2462 = vsel %vm671, %v2014, inf
      %2463 = vmin.xlane.f32.xlu0 %v2462
      %v2464 = vpop.xlane.xlu0 %2463
      %v2465 = vsel %vm671, %v2015, inf
      %2466 = vmin.xlane.f32.xlu0 %v2465
      %v2467 = vpop.xlane.xlu0 %2466
      %v2468 = vsel %vm671, %v2016, inf
      %2469 = vmin.xlane.f32.xlu0 %v2468
      %v2470 = vpop.xlane.xlu0 %2469
      %v2471 = vsel %vm671, %v2017, inf
      %2472 = vmin.xlane.f32.xlu0 %v2471
      %v2473 = vpop.xlane.xlu0 %2472
      %v2474 = vsel %vm671, %v2018, inf
      %2475 = vmin.xlane.f32.xlu0 %v2474
      %v2476 = vpop.xlane.xlu0 %2475
      %v2477 = vsel %vm671, %v2019, inf
      %2478 = vmin.xlane.f32.xlu0 %v2477
      %v2479 = vpop.xlane.xlu0 %2478
      %vm2480 = vcmp.le.f32.partialorder %v2012, %v2458
      %vm2481 = vcmp.le.f32.partialorder %v2013, %v2461
      %vm2482 = vcmp.le.f32.partialorder %v2014, %v2464
      %vm2483 = vcmp.le.f32.partialorder %v2015, %v2467
      %vm2484 = vcmp.le.f32.partialorder %v2016, %v2470
      %vm2485 = vcmp.le.f32.partialorder %v2017, %v2473
      %vm2486 = vcmp.le.f32.partialorder %v2018, %v2476
      %vm2487 = vcmp.le.f32.partialorder %v2019, %v2479
      %v2488 = vsel %vm2480, %v753, 64.0
      %v2489 = vsel %vm2481, %v753, 64.0
      %v2490 = vsel %vm2482, %v753, 64.0
      %v2491 = vsel %vm2483, %v753, 64.0
      %v2492 = vsel %vm2484, %v753, 64.0
      %v2493 = vsel %vm2485, %v753, 64.0
      %v2494 = vsel %vm2486, %v753, 64.0
      %v2495 = vsel %vm2487, %v753, 64.0
      %v2496 = vsel %vm671, %v2488, inf
      %2497 = vmin.xlane.f32.xlu0 %v2496
      %v2498 = vpop.xlane.xlu0 %2497
      %v2499 = vsel %vm671, %v2489, inf
      %2500 = vmin.xlane.f32.xlu0 %v2499
      %v2501 = vpop.xlane.xlu0 %2500
      %v2502 = vsel %vm671, %v2490, inf
      %2503 = vmin.xlane.f32.xlu0 %v2502
      %v2504 = vpop.xlane.xlu0 %2503
      %v2505 = vsel %vm671, %v2491, inf
      %2506 = vmin.xlane.f32.xlu0 %v2505
      %v2507 = vpop.xlane.xlu0 %2506
      %v2508 = vsel %vm671, %v2492, inf
      %2509 = vmin.xlane.f32.xlu0 %v2508
      %v2510 = vpop.xlane.xlu0 %2509
      %v2511 = vsel %vm671, %v2493, inf
      %2512 = vmin.xlane.f32.xlu0 %v2511
      %v2513 = vpop.xlane.xlu0 %2512
      %v2514 = vsel %vm671, %v2494, inf
      %2515 = vmin.xlane.f32.xlu0 %v2514
      %v2516 = vpop.xlane.xlu0 %2515
      %v2517 = vsel %vm671, %v2495, inf
      %2518 = vmin.xlane.f32.xlu0 %v2517
      %v2519 = vpop.xlane.xlu0 %2518
      %vm2520 = vcmp.eq.f32.partialorder %v753, %v2498
      %vm2521 = vcmp.eq.f32.partialorder %v753, %v2501
      %vm2522 = vcmp.eq.f32.partialorder %v753, %v2504
      %vm2523 = vcmp.eq.f32.partialorder %v753, %v2507
      %vm2524 = vcmp.eq.f32.partialorder %v753, %v2510
      %vm2525 = vcmp.eq.f32.partialorder %v753, %v2513
      %vm2526 = vcmp.eq.f32.partialorder %v753, %v2516
      %vm2527 = vcmp.eq.f32.partialorder %v753, %v2519
      %v2528 = vsel %vm2520, 1e+30, %v2012
      %v2529 = vsel %vm2521, 1e+30, %v2013
      %v2530 = vsel %vm2522, 1e+30, %v2014
      %v2531 = vsel %vm2523, 1e+30, %v2015
      %v2532 = vsel %vm2524, 1e+30, %v2016
      %v2533 = vsel %vm2525, 1e+30, %v2017
      %v2534 = vsel %vm2526, 1e+30, %v2018
      %v2535 = vsel %vm2527, 1e+30, %v2019
      %v2536 = vsel %vm2520, 1, 0
      %v2537 = vsel %vm2521, 1, 0
      %v2538 = vsel %vm2522, 1, 0
      %v2539 = vsel %vm2523, 1, 0
      %v2540 = vsel %vm2524, 1, 0
      %v2541 = vsel %vm2525, 1, 0
      %v2542 = vsel %vm2526, 1, 0
      %v2543 = vsel %vm2527, 1, 0
      %v2544 = vcvt.s32.f32 %v2536
      %v2545 = vcvt.s32.f32 %v2537
      %v2546 = vcvt.s32.f32 %v2538
      %v2547 = vcvt.s32.f32 %v2539
      %v2548 = vcvt.s32.f32 %v2540
      %v2549 = vcvt.s32.f32 %v2541
      %v2550 = vcvt.s32.f32 %v2542
      %v2551 = vcvt.s32.f32 %v2543
      %v2553 = vsel %vm671, %v2544, 0
      %v2556 = vsel %vm671, %v2545, 0
      %v2559 = vsel %vm671, %v2546, 0
      %v2562 = vsel %vm671, %v2547, 0
      %v2565 = vsel %vm671, %v2548, 0
      %v2568 = vsel %vm671, %v2549, 0
      %v2571 = vsel %vm671, %v2550, 0
      %v2574 = vsel %vm671, %v2551, 0
      %2576 = vmatprep.subr.mxu0 0.0
      %2577 = vmatpush1.msra.mxu0 %v476
      %2578 = vmatprep.subr.mxu0 0.0
      %2579 = vmatpush1.msra.mxu0 %v477
      %2580 = vmatprep.subr.mxu0 0.0
      %2581 = vmatpush1.msra.mxu0 %v478
      %2582 = vmatprep.subr.mxu0 0.0
      %2583 = vmatpush1.msra.mxu0 %v479
      %2584 = vmatprep.subr.mxu0 0.0
      %2585 = vmatpush1.msra.mxu0 %v480
      %2586 = vmatprep.subr.mxu0 0.0
      %2587 = vmatpush1.msra.mxu0 %v481
      %2588 = vmatprep.subr.mxu0 0.0
      %2589 = vmatpush1.msra.mxu0 %v482
      %2590 = vmatprep.subr.mxu0 0.0
      %2591 = vmatpush1.msra.mxu0 %v483
      %2592 = vmatprep.subr.mxu0 0.0
      %2593 = vmatpush1.msra.mxu0 0.0
      %2594 = vmatprep.subr.mxu0 0.0
      %2595 = vmatpush1.msra.mxu0 0.0
      %2596 = vmatprep.subr.mxu0 0.0
      %2597 = vmatpush1.msra.mxu0 0.0
      %2598 = vmatprep.subr.mxu0 0.0
      %2599 = vmatpush1.msra.mxu0 0.0
      %2600 = vmatprep.subr.mxu0 0.0
      %2601 = vmatpush1.msra.mxu0 0.0
      %2602 = vmatprep.subr.mxu0 0.0
      %2603 = vmatpush1.msra.mxu0 0.0
      %2604 = vmatprep.subr.mxu0 0.0
      %2605 = vmatpush1.msra.mxu0 0.0
      %2606 = vmatprep.subr.mxu0 0.0
      %2607 = vmatpush1.msra.mxu0 0.0
      %2608 = vmatprep.subr.mxu0 0.0
      %2609 = vmatpush1.msra.mxu0 0.0
      %2610 = vmatprep.subr.mxu0 0.0
      %2611 = vmatpush1.msra.mxu0 0.0
      %2612 = vmatprep.subr.mxu0 0.0
      %2613 = vmatpush1.msra.mxu0 0.0
      %2614 = vmatprep.subr.mxu0 0.0
      %2615 = vmatpush1.msra.mxu0 0.0
      %2616 = vmatprep.subr.mxu0 0.0
      %2617 = vmatpush1.msra.mxu0 0.0
      %2618 = vmatprep.subr.mxu0 0.0
      %2619 = vmatpush1.msra.mxu0 0.0
      %2620 = vmatprep.subr.mxu0 0.0
      %2621 = vmatpush1.msra.mxu0 0.0
      %2622 = vmatprep.subr.mxu0 0.0
      %2623 = vmatpush1.msra.mxu0 0.0
      %2624 = vmatprep.subr.mxu0 0.0
      %2625 = vmatpush1.msra.mxu0 0.0
      %2626 = vmatprep.subr.mxu0 0.0
      %2627 = vmatpush1.msra.mxu0 0.0
      %2628 = vmatprep.subr.mxu0 0.0
      %2629 = vmatpush1.msra.mxu0 0.0
      %2630 = vmatprep.subr.mxu0 0.0
      %2631 = vmatpush1.msra.mxu0 0.0
      %2632 = vmatprep.subr.mxu0 0.0
      %2633 = vmatpush1.msra.mxu0 0.0
      %2634 = vmatprep.subr.mxu0 0.0
      %2635 = vmatpush1.msra.mxu0 0.0
      %2636 = vmatprep.subr.mxu0 0.0
      %2637 = vmatpush1.msra.mxu0 0.0
      %2638 = vmatprep.subr.mxu0 0.0
      %2639 = vmatpush1.msra.mxu0 0.0
      %2640 = vmatprep.mubr.f32.mxu0 0.0
      %2641 = vmatmul.mubr.f32.gmra.mrb[0].mxu0 %v2553
      %v2642 = vpop.f32.mrb[0].mxu0
      %v2643 = vadd.f32 0.0, %v2642
      %v2644 = vpop.f32.mrb[0].mxu0
      %2645 = vmatprep.mubr.f32.mxu0 0.0
      %2646 = vmatmul.mubr.f32.gmra.mrb[0].mxu0 %v2556
      %v2647 = vpop.f32.mrb[0].mxu0
      %v2648 = vadd.f32 0.0, %v2647
      %v2649 = vpop.f32.mrb[0].mxu0
      %2650 = vmatprep.mubr.f32.mxu0 0.0
      %2651 = vmatmul.mubr.f32.gmra.mrb[0].mxu0 %v2559
      %v2652 = vpop.f32.mrb[0].mxu0
      %v2653 = vadd.f32 0.0, %v2652
      %v2654 = vpop.f32.mrb[0].mxu0
      %2655 = vmatprep.mubr.f32.mxu0 0.0
      %2656 = vmatmul.mubr.f32.gmra.mrb[0].mxu0 %v2562
      %v2657 = vpop.f32.mrb[0].mxu0
      %v2658 = vadd.f32 0.0, %v2657
      %v2659 = vpop.f32.mrb[0].mxu0
      %2660 = vmatprep.mubr.f32.mxu0 0.0
      %2661 = vmatmul.mubr.f32.gmra.mrb[0].mxu0 %v2565
      %v2662 = vpop.f32.mrb[0].mxu0
      %v2663 = vadd.f32 0.0, %v2662
      %v2664 = vpop.f32.mrb[0].mxu0
      %2665 = vmatprep.mubr.f32.mxu0 0.0
      %2666 = vmatmul.mubr.f32.gmra.mrb[0].mxu0 %v2568
      %v2667 = vpop.f32.mrb[0].mxu0
      %v2668 = vadd.f32 0.0, %v2667
      %v2669 = vpop.f32.mrb[0].mxu0
      %2670 = vmatprep.mubr.f32.mxu0 0.0
      %2671 = vmatmul.mubr.f32.gmra.mrb[0].mxu0 %v2571
      %v2672 = vpop.f32.mrb[0].mxu0
      %v2673 = vadd.f32 0.0, %v2672
      %v2674 = vpop.f32.mrb[0].mxu0
      %2675 = vmatprep.mubr.f32.mxu0 0.0
      %2676 = vmatmul.mubr.f32.gmra.mrb[0].mxu0 %v2574
      %v2677 = vpop.f32.mrb[0].mxu0
      %v2678 = vadd.f32 0.0, %v2677
      %v2679 = vpop.f32.mrb[0].mxu0
      %2680 = vdwg.mxu0
      %v2681 = vsub.f32 %v2643, %v476
      %v2682 = vsub.f32 %v2648, %v477
      %v2683 = vsub.f32 %v2653, %v478
      %v2684 = vsub.f32 %v2658, %v479
      %v2685 = vsub.f32 %v2663, %v480
      %v2686 = vsub.f32 %v2668, %v481
      %v2687 = vsub.f32 %v2673, %v482
      %v2688 = vsub.f32 %v2678, %v483
      %v2689 = vpack.c.bf16 %v2682, %v2681
      %v2690 = vpack.c.bf16 %v2684, %v2683
      %v2691 = vpack.c.bf16 %v2686, %v2685
      %v2692 = vpack.c.bf16 %v2688, %v2687
      %v2694 = vsel %vm514, %v2689, 0
      %v2697 = vsel %vm514, %v2690, 0
      %v2700 = vsel %vm514, %v2691, 0
      %v2703 = vsel %vm514, %v2692, 0
      %2705 = vmatprep.subr.bf16.mxu0 0
      %2706 = vmatpush1.bf16.msra.mxu0 %v1107
      %2707 = vmatprep.subr.bf16.mxu0 0
      %2708 = vmatpush1.bf16.msra.mxu0 0
      %2709 = vmatprep.subr.bf16.mxu0 0
      %2710 = vmatpush1.bf16.msra.mxu0 0
      %2711 = vmatprep.subr.bf16.mxu0 0
      %2712 = vmatpush1.bf16.msra.mxu0 0
      %2713 = vmatprep.subr.bf16.mxu0 0
      %2714 = vmatpush1.bf16.msra.mxu0 0
      %2715 = vmatprep.subr.bf16.mxu0 0
      %2716 = vmatpush1.bf16.msra.mxu0 0
      %2717 = vmatprep.subr.bf16.mxu0 0
      %2718 = vmatpush1.bf16.msra.mxu0 0
      %2719 = vmatprep.subr.bf16.mxu0 0
      %2720 = vmatpush1.bf16.msra.mxu0 0
      %2721 = vmatprep.subr.bf16.mxu0 0
      %2722 = vmatpush1.bf16.msra.mxu0 0
      %2723 = vmatprep.subr.bf16.mxu0 0
      %2724 = vmatpush1.bf16.msra.mxu0 0
      %2725 = vmatprep.subr.bf16.mxu0 0
      %2726 = vmatpush1.bf16.msra.mxu0 0
      %2727 = vmatprep.subr.bf16.mxu0 0
      %2728 = vmatpush1.bf16.msra.mxu0 0
      %2729 = vmatprep.subr.bf16.mxu0 0
      %2730 = vmatpush1.bf16.msra.mxu0 0
      %2731 = vmatprep.subr.bf16.mxu0 0
      %2732 = vmatpush1.bf16.msra.mxu0 0
      %2733 = vmatprep.subr.bf16.mxu0 0
      %2734 = vmatpush1.bf16.msra.mxu0 0
      %2735 = vmatprep.subr.bf16.mxu0 0
      %2736 = vmatpush1.bf16.msra.mxu0 0
      %2737 = vmatprep.mubr.bf16.mxu0 0
      %2738 = vmatmul.mubr.bf16.gmra.mrb[0].mxu0 %v2694
      %v2739 = vpop.f32.mrb[0].mxu0
      %v2740 = vadd.f32 0.0, %v2739
      %v2741 = vpop.f32.mrb[0].mxu0
      %v2742 = vpop.f32.mrb[0].mxu0
      %v2743 = vadd.f32 0.0, %v2742
      %v2744 = vpop.f32.mrb[0].mxu0
      %2745 = vmatprep.mubr.bf16.mxu0 0
      %2746 = vmatmul.mubr.bf16.gmra.mrb[0].mxu0 %v2697
      %v2747 = vpop.f32.mrb[0].mxu0
      %v2748 = vadd.f32 0.0, %v2747
      %v2749 = vpop.f32.mrb[0].mxu0
      %v2750 = vpop.f32.mrb[0].mxu0
      %v2751 = vadd.f32 0.0, %v2750
      %v2752 = vpop.f32.mrb[0].mxu0
      %2753 = vmatprep.mubr.bf16.mxu0 0
      %2754 = vmatmul.mubr.bf16.gmra.mrb[0].mxu0 %v2700
      %v2755 = vpop.f32.mrb[0].mxu0
      %v2756 = vadd.f32 0.0, %v2755
      %v2757 = vpop.f32.mrb[0].mxu0
      %v2758 = vpop.f32.mrb[0].mxu0
      %v2759 = vadd.f32 0.0, %v2758
      %v2760 = vpop.f32.mrb[0].mxu0
      %2761 = vmatprep.mubr.bf16.mxu0 0
      %2762 = vmatmul.mubr.bf16.gmra.mrb[0].mxu0 %v2703
      %v2763 = vpop.f32.mrb[0].mxu0
      %v2764 = vadd.f32 0.0, %v2763
      %v2765 = vpop.f32.mrb[0].mxu0
      %v2766 = vpop.f32.mrb[0].mxu0
      %v2767 = vadd.f32 0.0, %v2766
      %v2768 = vpop.f32.mrb[0].mxu0
      %2769 = vdwg.mxu0
      %v2770 = vadd.f32 %v815, %v2740
      %v2771 = vadd.f32 %v818, %v2743
      %v2772 = vadd.f32 %v823, %v2748
      %v2773 = vadd.f32 %v826, %v2751
      %v2774 = vadd.f32 %v831, %v2756
      %v2775 = vadd.f32 %v834, %v2759
      %v2776 = vadd.f32 %v839, %v2764
      %v2777 = vadd.f32 %v842, %v2767
      %v2778 = vmax.f32 %v2770, 0.0
      %v2779 = vmax.f32 %v2771, 0.0
      %v2780 = vmax.f32 %v2772, 0.0
      %v2781 = vmax.f32 %v2773, 0.0
      %v2782 = vmax.f32 %v2774, 0.0
      %v2783 = vmax.f32 %v2775, 0.0
      %v2784 = vmax.f32 %v2776, 0.0
      %v2785 = vmax.f32 %v2777, 0.0
      %v2786 = vpack.c.bf16 %v2779, %v2778
      %v2787 = vpack.c.bf16 %v2781, %v2780
      %v2788 = vpack.c.bf16 %v2783, %v2782
      %v2789 = vpack.c.bf16 %v2785, %v2784
      %v2791 = vsel %vm671, %v2786, 0
      %v2794 = vsel %vm671, %v2787, 0
      %v2797 = vsel %vm671, %v2788, 0
      %v2800 = vsel %vm671, %v2789, 0
      %2802 = vmatprep.subr.bf16.mxu0 0
      %2803 = vmatpush1.bf16.msra.mxu0 %v1210
      %2804 = vmatprep.subr.bf16.mxu0 0
      %2805 = vmatpush1.bf16.msra.mxu0 %v1211
      %2806 = vmatprep.subr.bf16.mxu0 0
      %2807 = vmatpush1.bf16.msra.mxu0 %v1212
      %2808 = vmatprep.subr.bf16.mxu0 0
      %2809 = vmatpush1.bf16.msra.mxu0 %v1213
      %2810 = vmatprep.subr.bf16.mxu0 0
      %2811 = vmatpush1.bf16.msra.mxu0 0
      %2812 = vmatprep.subr.bf16.mxu0 0
      %2813 = vmatpush1.bf16.msra.mxu0 0
      %2814 = vmatprep.subr.bf16.mxu0 0
      %2815 = vmatpush1.bf16.msra.mxu0 0
      %2816 = vmatprep.subr.bf16.mxu0 0
      %2817 = vmatpush1.bf16.msra.mxu0 0
      %2818 = vmatprep.subr.bf16.mxu0 0
      %2819 = vmatpush1.bf16.msra.mxu0 0
      %2820 = vmatprep.subr.bf16.mxu0 0
      %2821 = vmatpush1.bf16.msra.mxu0 0
      %2822 = vmatprep.subr.bf16.mxu0 0
      %2823 = vmatpush1.bf16.msra.mxu0 0
      %2824 = vmatprep.subr.bf16.mxu0 0
      %2825 = vmatpush1.bf16.msra.mxu0 0
      %2826 = vmatprep.subr.bf16.mxu0 0
      %2827 = vmatpush1.bf16.msra.mxu0 0
      %2828 = vmatprep.subr.bf16.mxu0 0
      %2829 = vmatpush1.bf16.msra.mxu0 0
      %2830 = vmatprep.subr.bf16.mxu0 0
      %2831 = vmatpush1.bf16.msra.mxu0 0
      %2832 = vmatprep.subr.bf16.mxu0 0
      %2833 = vmatpush1.bf16.msra.mxu0 0
      %2834 = vmatprep.mubr.bf16.mxu0 0
      %2835 = vmatmul.mubr.bf16.gmra.mrb[0].mxu0 %v2791
      %v2836 = vpop.f32.mrb[0].mxu0
      %v2837 = vadd.f32 %v849, %v2836
      %v2838 = vpop.f32.mrb[0].mxu0
      %v2839 = vpop.f32.mrb[0].mxu0
      %v2840 = vadd.f32 %v849, %v2839
      %v2841 = vpop.f32.mrb[0].mxu0
      %2842 = vmatprep.mubr.bf16.mxu0 0
      %2843 = vmatmul.mubr.bf16.gmra.mrb[0].mxu0 %v2794
      %v2844 = vpop.f32.mrb[0].mxu0
      %v2845 = vadd.f32 %v849, %v2844
      %v2846 = vpop.f32.mrb[0].mxu0
      %v2847 = vpop.f32.mrb[0].mxu0
      %v2848 = vadd.f32 %v849, %v2847
      %v2849 = vpop.f32.mrb[0].mxu0
      %2850 = vmatprep.mubr.bf16.mxu0 0
      %2851 = vmatmul.mubr.bf16.gmra.mrb[0].mxu0 %v2797
      %v2852 = vpop.f32.mrb[0].mxu0
      %v2853 = vadd.f32 %v849, %v2852
      %v2854 = vpop.f32.mrb[0].mxu0
      %v2855 = vpop.f32.mrb[0].mxu0
      %v2856 = vadd.f32 %v849, %v2855
      %v2857 = vpop.f32.mrb[0].mxu0
      %2858 = vmatprep.mubr.bf16.mxu0 0
      %2859 = vmatmul.mubr.bf16.gmra.mrb[0].mxu0 %v2800
      %v2860 = vpop.f32.mrb[0].mxu0
      %v2861 = vadd.f32 %v849, %v2860
      %v2862 = vpop.f32.mrb[0].mxu0
      %v2863 = vpop.f32.mrb[0].mxu0
      %v2864 = vadd.f32 %v849, %v2863
      %v2865 = vpop.f32.mrb[0].mxu0
      %2866 = vdwg.mxu0
      %v2867 = vmax.f32 %v2837, 0.0
      %v2868 = vmax.f32 %v2840, 0.0
      %v2869 = vmax.f32 %v2845, 0.0
      %v2870 = vmax.f32 %v2848, 0.0
      %v2871 = vmax.f32 %v2853, 0.0
      %v2872 = vmax.f32 %v2856, 0.0
      %v2873 = vmax.f32 %v2861, 0.0
      %v2874 = vmax.f32 %v2864, 0.0
      %v2875 = vpack.c.bf16 %v2868, %v2867
      %v2876 = vpack.c.bf16 %v2870, %v2869
      %v2877 = vpack.c.bf16 %v2872, %v2871
      %v2878 = vpack.c.bf16 %v2874, %v2873
      %v2880 = vsel %vm671, %v2875, 0
      %v2883 = vsel %vm671, %v2876, 0
      %v2886 = vsel %vm671, %v2877, 0
      %v2889 = vsel %vm671, %v2878, 0
      %2891 = vmatprep.subr.bf16.mxu0 0
      %2892 = vmatpush1.bf16.msra.mxu0 %v1323
      %2893 = vmatprep.subr.bf16.mxu0 0
      %2894 = vmatpush1.bf16.msra.mxu0 %v1324
      %2895 = vmatprep.subr.bf16.mxu0 0
      %2896 = vmatpush1.bf16.msra.mxu0 %v1325
      %2897 = vmatprep.subr.bf16.mxu0 0
      %2898 = vmatpush1.bf16.msra.mxu0 %v1326
      %2899 = vmatprep.subr.bf16.mxu0 0
      %2900 = vmatpush1.bf16.msra.mxu0 0
      %2901 = vmatprep.subr.bf16.mxu0 0
      %2902 = vmatpush1.bf16.msra.mxu0 0
      %2903 = vmatprep.subr.bf16.mxu0 0
      %2904 = vmatpush1.bf16.msra.mxu0 0
      %2905 = vmatprep.subr.bf16.mxu0 0
      %2906 = vmatpush1.bf16.msra.mxu0 0
      %2907 = vmatprep.subr.bf16.mxu0 0
      %2908 = vmatpush1.bf16.msra.mxu0 0
      %2909 = vmatprep.subr.bf16.mxu0 0
      %2910 = vmatpush1.bf16.msra.mxu0 0
      %2911 = vmatprep.subr.bf16.mxu0 0
      %2912 = vmatpush1.bf16.msra.mxu0 0
      %2913 = vmatprep.subr.bf16.mxu0 0
      %2914 = vmatpush1.bf16.msra.mxu0 0
      %2915 = vmatprep.subr.bf16.mxu0 0
      %2916 = vmatpush1.bf16.msra.mxu0 0
      %2917 = vmatprep.subr.bf16.mxu0 0
      %2918 = vmatpush1.bf16.msra.mxu0 0
      %2919 = vmatprep.subr.bf16.mxu0 0
      %2920 = vmatpush1.bf16.msra.mxu0 0
      %2921 = vmatprep.subr.bf16.mxu0 0
      %2922 = vmatpush1.bf16.msra.mxu0 0
      %2923 = vmatprep.mubr.bf16.mxu0 0
      %2924 = vmatmul.mubr.bf16.gmra.mrb[0].mxu0 %v2880
      %v2925 = vpop.f32.mrb[0].mxu0
      %v2926 = vadd.f32 %v855, %v2925
      %v2927 = vpop.f32.mrb[0].mxu0
      %v2928 = vpop.f32.mrb[0].mxu0
      %v2929 = vadd.f32 %v855, %v2928
      %v2930 = vpop.f32.mrb[0].mxu0
      %2931 = vmatprep.mubr.bf16.mxu0 0
      %2932 = vmatmul.mubr.bf16.gmra.mrb[0].mxu0 %v2883
      %v2933 = vpop.f32.mrb[0].mxu0
      %v2934 = vadd.f32 %v855, %v2933
      %v2935 = vpop.f32.mrb[0].mxu0
      %v2936 = vpop.f32.mrb[0].mxu0
      %v2937 = vadd.f32 %v855, %v2936
      %v2938 = vpop.f32.mrb[0].mxu0
      %2939 = vmatprep.mubr.bf16.mxu0 0
      %2940 = vmatmul.mubr.bf16.gmra.mrb[0].mxu0 %v2886
      %v2941 = vpop.f32.mrb[0].mxu0
      %v2942 = vadd.f32 %v855, %v2941
      %v2943 = vpop.f32.mrb[0].mxu0
      %v2944 = vpop.f32.mrb[0].mxu0
      %v2945 = vadd.f32 %v855, %v2944
      %v2946 = vpop.f32.mrb[0].mxu0
      %2947 = vmatprep.mubr.bf16.mxu0 0
      %2948 = vmatmul.mubr.bf16.gmra.mrb[0].mxu0 %v2889
      %v2949 = vpop.f32.mrb[0].mxu0
      %v2950 = vadd.f32 %v855, %v2949
      %v2951 = vpop.f32.mrb[0].mxu0
      %v2952 = vpop.f32.mrb[0].mxu0
      %v2953 = vadd.f32 %v855, %v2952
      %v2954 = vpop.f32.mrb[0].mxu0
      %2955 = vdwg.mxu0
      %v2956 = vmax.f32 %v2926, 0.0
      %v2957 = vmax.f32 %v2929, 0.0
      %v2958 = vmax.f32 %v2934, 0.0
      %v2959 = vmax.f32 %v2937, 0.0
      %v2960 = vmax.f32 %v2942, 0.0
      %v2961 = vmax.f32 %v2945, 0.0
      %v2962 = vmax.f32 %v2950, 0.0
      %v2963 = vmax.f32 %v2953, 0.0
      %v2964 = vmax.f32 %v2448, %v2956
      %v2965 = vmax.f32 %v2449, %v2957
      %v2966 = vmax.f32 %v2450, %v2958
      %v2967 = vmax.f32 %v2451, %v2959
      %v2968 = vmax.f32 %v2452, %v2960
      %v2969 = vmax.f32 %v2453, %v2961
      %v2970 = vmax.f32 %v2454, %v2962
      %v2971 = vmax.f32 %v2455, %v2963
      %v2972 = vsel %vm671, %v2528, inf
      %2973 = vmin.xlane.f32.xlu0 %v2972
      %v2974 = vpop.xlane.xlu0 %2973
      %v2975 = vsel %vm671, %v2529, inf
      %2976 = vmin.xlane.f32.xlu0 %v2975
      %v2977 = vpop.xlane.xlu0 %2976
      %v2978 = vsel %vm671, %v2530, inf
      %2979 = vmin.xlane.f32.xlu0 %v2978
      %v2980 = vpop.xlane.xlu0 %2979
      %v2981 = vsel %vm671, %v2531, inf
      %2982 = vmin.xlane.f32.xlu0 %v2981
      %v2983 = vpop.xlane.xlu0 %2982
      %v2984 = vsel %vm671, %v2532, inf
      %2985 = vmin.xlane.f32.xlu0 %v2984
      %v2986 = vpop.xlane.xlu0 %2985
      %v2987 = vsel %vm671, %v2533, inf
      %2988 = vmin.xlane.f32.xlu0 %v2987
      %v2989 = vpop.xlane.xlu0 %2988
      %v2990 = vsel %vm671, %v2534, inf
      %2991 = vmin.xlane.f32.xlu0 %v2990
      %v2992 = vpop.xlane.xlu0 %2991
      %v2993 = vsel %vm671, %v2535, inf
      %2994 = vmin.xlane.f32.xlu0 %v2993
      %v2995 = vpop.xlane.xlu0 %2994
      %vm2996 = vcmp.le.f32.partialorder %v2528, %v2974
      %vm2997 = vcmp.le.f32.partialorder %v2529, %v2977
      %vm2998 = vcmp.le.f32.partialorder %v2530, %v2980
      %vm2999 = vcmp.le.f32.partialorder %v2531, %v2983
      %vm3000 = vcmp.le.f32.partialorder %v2532, %v2986
      %vm3001 = vcmp.le.f32.partialorder %v2533, %v2989
      %vm3002 = vcmp.le.f32.partialorder %v2534, %v2992
      %vm3003 = vcmp.le.f32.partialorder %v2535, %v2995
      %v3004 = vsel %vm2996, %v753, 64.0
      %v3005 = vsel %vm2997, %v753, 64.0
      %v3006 = vsel %vm2998, %v753, 64.0
      %v3007 = vsel %vm2999, %v753, 64.0
      %v3008 = vsel %vm3000, %v753, 64.0
      %v3009 = vsel %vm3001, %v753, 64.0
      %v3010 = vsel %vm3002, %v753, 64.0
      %v3011 = vsel %vm3003, %v753, 64.0
      %v3012 = vsel %vm671, %v3004, inf
      %3013 = vmin.xlane.f32.xlu0 %v3012
      %v3014 = vpop.xlane.xlu0 %3013
      %v3015 = vsel %vm671, %v3005, inf
      %3016 = vmin.xlane.f32.xlu0 %v3015
      %v3017 = vpop.xlane.xlu0 %3016
      %v3018 = vsel %vm671, %v3006, inf
      %3019 = vmin.xlane.f32.xlu0 %v3018
      %v3020 = vpop.xlane.xlu0 %3019
      %v3021 = vsel %vm671, %v3007, inf
      %3022 = vmin.xlane.f32.xlu0 %v3021
      %v3023 = vpop.xlane.xlu0 %3022
      %v3024 = vsel %vm671, %v3008, inf
      %3025 = vmin.xlane.f32.xlu0 %v3024
      %v3026 = vpop.xlane.xlu0 %3025
      %v3027 = vsel %vm671, %v3009, inf
      %3028 = vmin.xlane.f32.xlu0 %v3027
      %v3029 = vpop.xlane.xlu0 %3028
      %v3030 = vsel %vm671, %v3010, inf
      %3031 = vmin.xlane.f32.xlu0 %v3030
      %v3032 = vpop.xlane.xlu0 %3031
      %v3033 = vsel %vm671, %v3011, inf
      %3034 = vmin.xlane.f32.xlu0 %v3033
      %v3035 = vpop.xlane.xlu0 %3034
      %vm3036 = vcmp.eq.f32.partialorder %v753, %v3014
      %vm3037 = vcmp.eq.f32.partialorder %v753, %v3017
      %vm3038 = vcmp.eq.f32.partialorder %v753, %v3020
      %vm3039 = vcmp.eq.f32.partialorder %v753, %v3023
      %vm3040 = vcmp.eq.f32.partialorder %v753, %v3026
      %vm3041 = vcmp.eq.f32.partialorder %v753, %v3029
      %vm3042 = vcmp.eq.f32.partialorder %v753, %v3032
      %vm3043 = vcmp.eq.f32.partialorder %v753, %v3035
      %v3044 = vsel %vm3036, 1e+30, %v2528
      %v3045 = vsel %vm3037, 1e+30, %v2529
      %v3046 = vsel %vm3038, 1e+30, %v2530
      %v3047 = vsel %vm3039, 1e+30, %v2531
      %v3048 = vsel %vm3040, 1e+30, %v2532
      %v3049 = vsel %vm3041, 1e+30, %v2533
      %v3050 = vsel %vm3042, 1e+30, %v2534
      %v3051 = vsel %vm3043, 1e+30, %v2535
      %v3052 = vsel %vm3036, 1, 0
      %v3053 = vsel %vm3037, 1, 0
      %v3054 = vsel %vm3038, 1, 0
      %v3055 = vsel %vm3039, 1, 0
      %v3056 = vsel %vm3040, 1, 0
      %v3057 = vsel %vm3041, 1, 0
      %v3058 = vsel %vm3042, 1, 0
      %v3059 = vsel %vm3043, 1, 0
      %v3060 = vcvt.s32.f32 %v3052
      %v3061 = vcvt.s32.f32 %v3053
      %v3062 = vcvt.s32.f32 %v3054
      %v3063 = vcvt.s32.f32 %v3055
      %v3064 = vcvt.s32.f32 %v3056
      %v3065 = vcvt.s32.f32 %v3057
      %v3066 = vcvt.s32.f32 %v3058
      %v3067 = vcvt.s32.f32 %v3059
      %v3069 = vsel %vm671, %v3060, 0
      %v3072 = vsel %vm671, %v3061, 0
      %v3075 = vsel %vm671, %v3062, 0
      %v3078 = vsel %vm671, %v3063, 0
      %v3081 = vsel %vm671, %v3064, 0
      %v3084 = vsel %vm671, %v3065, 0
      %v3087 = vsel %vm671, %v3066, 0
      %v3090 = vsel %vm671, %v3067, 0
      %3092 = vmatprep.subr.mxu0 0.0
      %3093 = vmatpush1.msra.mxu0 %v476
      %3094 = vmatprep.subr.mxu0 0.0
      %3095 = vmatpush1.msra.mxu0 %v477
      %3096 = vmatprep.subr.mxu0 0.0
      %3097 = vmatpush1.msra.mxu0 %v478
      %3098 = vmatprep.subr.mxu0 0.0
      %3099 = vmatpush1.msra.mxu0 %v479
      %3100 = vmatprep.subr.mxu0 0.0
      %3101 = vmatpush1.msra.mxu0 %v480
      %3102 = vmatprep.subr.mxu0 0.0
      %3103 = vmatpush1.msra.mxu0 %v481
      %3104 = vmatprep.subr.mxu0 0.0
      %3105 = vmatpush1.msra.mxu0 %v482
      %3106 = vmatprep.subr.mxu0 0.0
      %3107 = vmatpush1.msra.mxu0 %v483
      %3108 = vmatprep.subr.mxu0 0.0
      %3109 = vmatpush1.msra.mxu0 0.0
      %3110 = vmatprep.subr.mxu0 0.0
      %3111 = vmatpush1.msra.mxu0 0.0
      %3112 = vmatprep.subr.mxu0 0.0
      %3113 = vmatpush1.msra.mxu0 0.0
      %3114 = vmatprep.subr.mxu0 0.0
      %3115 = vmatpush1.msra.mxu0 0.0
      %3116 = vmatprep.subr.mxu0 0.0
      %3117 = vmatpush1.msra.mxu0 0.0
      %3118 = vmatprep.subr.mxu0 0.0
      %3119 = vmatpush1.msra.mxu0 0.0
      %3120 = vmatprep.subr.mxu0 0.0
      %3121 = vmatpush1.msra.mxu0 0.0
      %3122 = vmatprep.subr.mxu0 0.0
      %3123 = vmatpush1.msra.mxu0 0.0
      %3124 = vmatprep.subr.mxu0 0.0
      %3125 = vmatpush1.msra.mxu0 0.0
      %3126 = vmatprep.subr.mxu0 0.0
      %3127 = vmatpush1.msra.mxu0 0.0
      %3128 = vmatprep.subr.mxu0 0.0
      %3129 = vmatpush1.msra.mxu0 0.0
      %3130 = vmatprep.subr.mxu0 0.0
      %3131 = vmatpush1.msra.mxu0 0.0
      %3132 = vmatprep.subr.mxu0 0.0
      %3133 = vmatpush1.msra.mxu0 0.0
      %3134 = vmatprep.subr.mxu0 0.0
      %3135 = vmatpush1.msra.mxu0 0.0
      %3136 = vmatprep.subr.mxu0 0.0
      %3137 = vmatpush1.msra.mxu0 0.0
      %3138 = vmatprep.subr.mxu0 0.0
      %3139 = vmatpush1.msra.mxu0 0.0
      %3140 = vmatprep.subr.mxu0 0.0
      %3141 = vmatpush1.msra.mxu0 0.0
      %3142 = vmatprep.subr.mxu0 0.0
      %3143 = vmatpush1.msra.mxu0 0.0
      %3144 = vmatprep.subr.mxu0 0.0
      %3145 = vmatpush1.msra.mxu0 0.0
      %3146 = vmatprep.subr.mxu0 0.0
      %3147 = vmatpush1.msra.mxu0 0.0
      %3148 = vmatprep.subr.mxu0 0.0
      %3149 = vmatpush1.msra.mxu0 0.0
      %3150 = vmatprep.subr.mxu0 0.0
      %3151 = vmatpush1.msra.mxu0 0.0
      %3152 = vmatprep.subr.mxu0 0.0
      %3153 = vmatpush1.msra.mxu0 0.0
      %3154 = vmatprep.subr.mxu0 0.0
      %3155 = vmatpush1.msra.mxu0 0.0
      %3156 = vmatprep.mubr.f32.mxu0 0.0
      %3157 = vmatmul.mubr.f32.gmra.mrb[0].mxu0 %v3069
      %v3158 = vpop.f32.mrb[0].mxu0
      %v3159 = vadd.f32 0.0, %v3158
      %v3160 = vpop.f32.mrb[0].mxu0
      %3161 = vmatprep.mubr.f32.mxu0 0.0
      %3162 = vmatmul.mubr.f32.gmra.mrb[0].mxu0 %v3072
      %v3163 = vpop.f32.mrb[0].mxu0
      %v3164 = vadd.f32 0.0, %v3163
      %v3165 = vpop.f32.mrb[0].mxu0
      %3166 = vmatprep.mubr.f32.mxu0 0.0
      %3167 = vmatmul.mubr.f32.gmra.mrb[0].mxu0 %v3075
      %v3168 = vpop.f32.mrb[0].mxu0
      %v3169 = vadd.f32 0.0, %v3168
      %v3170 = vpop.f32.mrb[0].mxu0
      %3171 = vmatprep.mubr.f32.mxu0 0.0
      %3172 = vmatmul.mubr.f32.gmra.mrb[0].mxu0 %v3078
      %v3173 = vpop.f32.mrb[0].mxu0
      %v3174 = vadd.f32 0.0, %v3173
      %v3175 = vpop.f32.mrb[0].mxu0
      %3176 = vmatprep.mubr.f32.mxu0 0.0
      %3177 = vmatmul.mubr.f32.gmra.mrb[0].mxu0 %v3081
      %v3178 = vpop.f32.mrb[0].mxu0
      %v3179 = vadd.f32 0.0, %v3178
      %v3180 = vpop.f32.mrb[0].mxu0
      %3181 = vmatprep.mubr.f32.mxu0 0.0
      %3182 = vmatmul.mubr.f32.gmra.mrb[0].mxu0 %v3084
      %v3183 = vpop.f32.mrb[0].mxu0
      %v3184 = vadd.f32 0.0, %v3183
      %v3185 = vpop.f32.mrb[0].mxu0
      %3186 = vmatprep.mubr.f32.mxu0 0.0
      %3187 = vmatmul.mubr.f32.gmra.mrb[0].mxu0 %v3087
      %v3188 = vpop.f32.mrb[0].mxu0
      %v3189 = vadd.f32 0.0, %v3188
      %v3190 = vpop.f32.mrb[0].mxu0
      %3191 = vmatprep.mubr.f32.mxu0 0.0
      %3192 = vmatmul.mubr.f32.gmra.mrb[0].mxu0 %v3090
      %v3193 = vpop.f32.mrb[0].mxu0
      %v3194 = vadd.f32 0.0, %v3193
      %v3195 = vpop.f32.mrb[0].mxu0
      %3196 = vdwg.mxu0
      %v3197 = vsub.f32 %v3159, %v476
      %v3198 = vsub.f32 %v3164, %v477
      %v3199 = vsub.f32 %v3169, %v478
      %v3200 = vsub.f32 %v3174, %v479
      %v3201 = vsub.f32 %v3179, %v480
      %v3202 = vsub.f32 %v3184, %v481
      %v3203 = vsub.f32 %v3189, %v482
      %v3204 = vsub.f32 %v3194, %v483
      %v3205 = vpack.c.bf16 %v3198, %v3197
      %v3206 = vpack.c.bf16 %v3200, %v3199
      %v3207 = vpack.c.bf16 %v3202, %v3201
      %v3208 = vpack.c.bf16 %v3204, %v3203
      %v3210 = vsel %vm514, %v3205, 0
      %v3213 = vsel %vm514, %v3206, 0
      %v3216 = vsel %vm514, %v3207, 0
      %v3219 = vsel %vm514, %v3208, 0
      %3221 = vmatprep.subr.bf16.mxu0 0
      %3222 = vmatpush1.bf16.msra.mxu0 %v1107
      %3223 = vmatprep.subr.bf16.mxu0 0
      %3224 = vmatpush1.bf16.msra.mxu0 0
      %3225 = vmatprep.subr.bf16.mxu0 0
      %3226 = vmatpush1.bf16.msra.mxu0 0
      %3227 = vmatprep.subr.bf16.mxu0 0
      %3228 = vmatpush1.bf16.msra.mxu0 0
      %3229 = vmatprep.subr.bf16.mxu0 0
      %3230 = vmatpush1.bf16.msra.mxu0 0
      %3231 = vmatprep.subr.bf16.mxu0 0
      %3232 = vmatpush1.bf16.msra.mxu0 0
      %3233 = vmatprep.subr.bf16.mxu0 0
      %3234 = vmatpush1.bf16.msra.mxu0 0
      %3235 = vmatprep.subr.bf16.mxu0 0
      %3236 = vmatpush1.bf16.msra.mxu0 0
      %3237 = vmatprep.subr.bf16.mxu0 0
      %3238 = vmatpush1.bf16.msra.mxu0 0
      %3239 = vmatprep.subr.bf16.mxu0 0
      %3240 = vmatpush1.bf16.msra.mxu0 0
      %3241 = vmatprep.subr.bf16.mxu0 0
      %3242 = vmatpush1.bf16.msra.mxu0 0
      %3243 = vmatprep.subr.bf16.mxu0 0
      %3244 = vmatpush1.bf16.msra.mxu0 0
      %3245 = vmatprep.subr.bf16.mxu0 0
      %3246 = vmatpush1.bf16.msra.mxu0 0
      %3247 = vmatprep.subr.bf16.mxu0 0
      %3248 = vmatpush1.bf16.msra.mxu0 0
      %3249 = vmatprep.subr.bf16.mxu0 0
      %3250 = vmatpush1.bf16.msra.mxu0 0
      %3251 = vmatprep.subr.bf16.mxu0 0
      %3252 = vmatpush1.bf16.msra.mxu0 0
      %3253 = vmatprep.mubr.bf16.mxu0 0
      %3254 = vmatmul.mubr.bf16.gmra.mrb[0].mxu0 %v3210
      %v3255 = vpop.f32.mrb[0].mxu0
      %v3256 = vadd.f32 0.0, %v3255
      %v3257 = vpop.f32.mrb[0].mxu0
      %v3258 = vpop.f32.mrb[0].mxu0
      %v3259 = vadd.f32 0.0, %v3258
      %v3260 = vpop.f32.mrb[0].mxu0
      %3261 = vmatprep.mubr.bf16.mxu0 0
      %3262 = vmatmul.mubr.bf16.gmra.mrb[0].mxu0 %v3213
      %v3263 = vpop.f32.mrb[0].mxu0
      %v3264 = vadd.f32 0.0, %v3263
      %v3265 = vpop.f32.mrb[0].mxu0
      %v3266 = vpop.f32.mrb[0].mxu0
      %v3267 = vadd.f32 0.0, %v3266
      %v3268 = vpop.f32.mrb[0].mxu0
      %3269 = vmatprep.mubr.bf16.mxu0 0
      %3270 = vmatmul.mubr.bf16.gmra.mrb[0].mxu0 %v3216
      %v3271 = vpop.f32.mrb[0].mxu0
      %v3272 = vadd.f32 0.0, %v3271
      %v3273 = vpop.f32.mrb[0].mxu0
      %v3274 = vpop.f32.mrb[0].mxu0
      %v3275 = vadd.f32 0.0, %v3274
      %v3276 = vpop.f32.mrb[0].mxu0
      %3277 = vmatprep.mubr.bf16.mxu0 0
      %3278 = vmatmul.mubr.bf16.gmra.mrb[0].mxu0 %v3219
      %v3279 = vpop.f32.mrb[0].mxu0
      %v3280 = vadd.f32 0.0, %v3279
      %v3281 = vpop.f32.mrb[0].mxu0
      %v3282 = vpop.f32.mrb[0].mxu0
      %v3283 = vadd.f32 0.0, %v3282
      %v3284 = vpop.f32.mrb[0].mxu0
      %3285 = vdwg.mxu0
      %v3286 = vadd.f32 %v815, %v3256
      %v3287 = vadd.f32 %v818, %v3259
      %v3288 = vadd.f32 %v823, %v3264
      %v3289 = vadd.f32 %v826, %v3267
      %v3290 = vadd.f32 %v831, %v3272
      %v3291 = vadd.f32 %v834, %v3275
      %v3292 = vadd.f32 %v839, %v3280
      %v3293 = vadd.f32 %v842, %v3283
      %v3294 = vmax.f32 %v3286, 0.0
      %v3295 = vmax.f32 %v3287, 0.0
      %v3296 = vmax.f32 %v3288, 0.0
      %v3297 = vmax.f32 %v3289, 0.0
      %v3298 = vmax.f32 %v3290, 0.0
      %v3299 = vmax.f32 %v3291, 0.0
      %v3300 = vmax.f32 %v3292, 0.0
      %v3301 = vmax.f32 %v3293, 0.0
      %v3302 = vpack.c.bf16 %v3295, %v3294
      %v3303 = vpack.c.bf16 %v3297, %v3296
      %v3304 = vpack.c.bf16 %v3299, %v3298
      %v3305 = vpack.c.bf16 %v3301, %v3300
      %v3307 = vsel %vm671, %v3302, 0
      %v3310 = vsel %vm671, %v3303, 0
      %v3313 = vsel %vm671, %v3304, 0
      %v3316 = vsel %vm671, %v3305, 0
      %3318 = vmatprep.subr.bf16.mxu0 0
      %3319 = vmatpush1.bf16.msra.mxu0 %v1210
      %3320 = vmatprep.subr.bf16.mxu0 0
      %3321 = vmatpush1.bf16.msra.mxu0 %v1211
      %3322 = vmatprep.subr.bf16.mxu0 0
      %3323 = vmatpush1.bf16.msra.mxu0 %v1212
      %3324 = vmatprep.subr.bf16.mxu0 0
      %3325 = vmatpush1.bf16.msra.mxu0 %v1213
      %3326 = vmatprep.subr.bf16.mxu0 0
      %3327 = vmatpush1.bf16.msra.mxu0 0
      %3328 = vmatprep.subr.bf16.mxu0 0
      %3329 = vmatpush1.bf16.msra.mxu0 0
      %3330 = vmatprep.subr.bf16.mxu0 0
      %3331 = vmatpush1.bf16.msra.mxu0 0
      %3332 = vmatprep.subr.bf16.mxu0 0
      %3333 = vmatpush1.bf16.msra.mxu0 0
      %3334 = vmatprep.subr.bf16.mxu0 0
      %3335 = vmatpush1.bf16.msra.mxu0 0
      %3336 = vmatprep.subr.bf16.mxu0 0
      %3337 = vmatpush1.bf16.msra.mxu0 0
      %3338 = vmatprep.subr.bf16.mxu0 0
      %3339 = vmatpush1.bf16.msra.mxu0 0
      %3340 = vmatprep.subr.bf16.mxu0 0
      %3341 = vmatpush1.bf16.msra.mxu0 0
      %3342 = vmatprep.subr.bf16.mxu0 0
      %3343 = vmatpush1.bf16.msra.mxu0 0
      %3344 = vmatprep.subr.bf16.mxu0 0
      %3345 = vmatpush1.bf16.msra.mxu0 0
      %3346 = vmatprep.subr.bf16.mxu0 0
      %3347 = vmatpush1.bf16.msra.mxu0 0
      %3348 = vmatprep.subr.bf16.mxu0 0
      %3349 = vmatpush1.bf16.msra.mxu0 0
      %3350 = vmatprep.mubr.bf16.mxu0 0
      %3351 = vmatmul.mubr.bf16.gmra.mrb[0].mxu0 %v3307
      %v3352 = vpop.f32.mrb[0].mxu0
      %v3353 = vadd.f32 %v849, %v3352
      %v3354 = vpop.f32.mrb[0].mxu0
      %v3355 = vpop.f32.mrb[0].mxu0
      %v3356 = vadd.f32 %v849, %v3355
      %v3357 = vpop.f32.mrb[0].mxu0
      %3358 = vmatprep.mubr.bf16.mxu0 0
      %3359 = vmatmul.mubr.bf16.gmra.mrb[0].mxu0 %v3310
      %v3360 = vpop.f32.mrb[0].mxu0
      %v3361 = vadd.f32 %v849, %v3360
      %v3362 = vpop.f32.mrb[0].mxu0
      %v3363 = vpop.f32.mrb[0].mxu0
      %v3364 = vadd.f32 %v849, %v3363
      %v3365 = vpop.f32.mrb[0].mxu0
      %3366 = vmatprep.mubr.bf16.mxu0 0
      %3367 = vmatmul.mubr.bf16.gmra.mrb[0].mxu0 %v3313
      %v3368 = vpop.f32.mrb[0].mxu0
      %v3369 = vadd.f32 %v849, %v3368
      %v3370 = vpop.f32.mrb[0].mxu0
      %v3371 = vpop.f32.mrb[0].mxu0
      %v3372 = vadd.f32 %v849, %v3371
      %v3373 = vpop.f32.mrb[0].mxu0
      %3374 = vmatprep.mubr.bf16.mxu0 0
      %3375 = vmatmul.mubr.bf16.gmra.mrb[0].mxu0 %v3316
      %v3376 = vpop.f32.mrb[0].mxu0
      %v3377 = vadd.f32 %v849, %v3376
      %v3378 = vpop.f32.mrb[0].mxu0
      %v3379 = vpop.f32.mrb[0].mxu0
      %v3380 = vadd.f32 %v849, %v3379
      %v3381 = vpop.f32.mrb[0].mxu0
      %3382 = vdwg.mxu0
      %v3383 = vmax.f32 %v3353, 0.0
      %v3384 = vmax.f32 %v3356, 0.0
      %v3385 = vmax.f32 %v3361, 0.0
      %v3386 = vmax.f32 %v3364, 0.0
      %v3387 = vmax.f32 %v3369, 0.0
      %v3388 = vmax.f32 %v3372, 0.0
      %v3389 = vmax.f32 %v3377, 0.0
      %v3390 = vmax.f32 %v3380, 0.0
      %v3391 = vpack.c.bf16 %v3384, %v3383
      %v3392 = vpack.c.bf16 %v3386, %v3385
      %v3393 = vpack.c.bf16 %v3388, %v3387
      %v3394 = vpack.c.bf16 %v3390, %v3389
      %v3396 = vsel %vm671, %v3391, 0
      %v3399 = vsel %vm671, %v3392, 0
      %v3402 = vsel %vm671, %v3393, 0
      %v3405 = vsel %vm671, %v3394, 0
      %3407 = vmatprep.subr.bf16.mxu0 0
      %3408 = vmatpush1.bf16.msra.mxu0 %v1323
      %3409 = vmatprep.subr.bf16.mxu0 0
      %3410 = vmatpush1.bf16.msra.mxu0 %v1324
      %3411 = vmatprep.subr.bf16.mxu0 0
      %3412 = vmatpush1.bf16.msra.mxu0 %v1325
      %3413 = vmatprep.subr.bf16.mxu0 0
      %3414 = vmatpush1.bf16.msra.mxu0 %v1326
      %3415 = vmatprep.subr.bf16.mxu0 0
      %3416 = vmatpush1.bf16.msra.mxu0 0
      %3417 = vmatprep.subr.bf16.mxu0 0
      %3418 = vmatpush1.bf16.msra.mxu0 0
      %3419 = vmatprep.subr.bf16.mxu0 0
      %3420 = vmatpush1.bf16.msra.mxu0 0
      %3421 = vmatprep.subr.bf16.mxu0 0
      %3422 = vmatpush1.bf16.msra.mxu0 0
      %3423 = vmatprep.subr.bf16.mxu0 0
      %3424 = vmatpush1.bf16.msra.mxu0 0
      %3425 = vmatprep.subr.bf16.mxu0 0
      %3426 = vmatpush1.bf16.msra.mxu0 0
      %3427 = vmatprep.subr.bf16.mxu0 0
      %3428 = vmatpush1.bf16.msra.mxu0 0
      %3429 = vmatprep.subr.bf16.mxu0 0
      %3430 = vmatpush1.bf16.msra.mxu0 0
      %3431 = vmatprep.subr.bf16.mxu0 0
      %3432 = vmatpush1.bf16.msra.mxu0 0
      %3433 = vmatprep.subr.bf16.mxu0 0
      %3434 = vmatpush1.bf16.msra.mxu0 0
      %3435 = vmatprep.subr.bf16.mxu0 0
      %3436 = vmatpush1.bf16.msra.mxu0 0
      %3437 = vmatprep.subr.bf16.mxu0 0
      %3438 = vmatpush1.bf16.msra.mxu0 0
      %3439 = vmatprep.mubr.bf16.mxu0 0
      %3440 = vmatmul.mubr.bf16.gmra.mrb[0].mxu0 %v3396
      %v3441 = vpop.f32.mrb[0].mxu0
      %v3442 = vadd.f32 %v855, %v3441
      %v3443 = vpop.f32.mrb[0].mxu0
      %v3444 = vpop.f32.mrb[0].mxu0
      %v3445 = vadd.f32 %v855, %v3444
      %v3446 = vpop.f32.mrb[0].mxu0
      %3447 = vmatprep.mubr.bf16.mxu0 0
      %3448 = vmatmul.mubr.bf16.gmra.mrb[0].mxu0 %v3399
      %v3449 = vpop.f32.mrb[0].mxu0
      %v3450 = vadd.f32 %v855, %v3449
      %v3451 = vpop.f32.mrb[0].mxu0
      %v3452 = vpop.f32.mrb[0].mxu0
      %v3453 = vadd.f32 %v855, %v3452
      %v3454 = vpop.f32.mrb[0].mxu0
      %3455 = vmatprep.mubr.bf16.mxu0 0
      %3456 = vmatmul.mubr.bf16.gmra.mrb[0].mxu0 %v3402
      %v3457 = vpop.f32.mrb[0].mxu0
      %v3458 = vadd.f32 %v855, %v3457
      %v3459 = vpop.f32.mrb[0].mxu0
      %v3460 = vpop.f32.mrb[0].mxu0
      %v3461 = vadd.f32 %v855, %v3460
      %v3462 = vpop.f32.mrb[0].mxu0
      %3463 = vmatprep.mubr.bf16.mxu0 0
      %3464 = vmatmul.mubr.bf16.gmra.mrb[0].mxu0 %v3405
      %v3465 = vpop.f32.mrb[0].mxu0
      %v3466 = vadd.f32 %v855, %v3465
      %v3467 = vpop.f32.mrb[0].mxu0
      %v3468 = vpop.f32.mrb[0].mxu0
      %v3469 = vadd.f32 %v855, %v3468
      %v3470 = vpop.f32.mrb[0].mxu0
      %3471 = vdwg.mxu0
      %v3472 = vmax.f32 %v3442, 0.0
      %v3473 = vmax.f32 %v3445, 0.0
      %v3474 = vmax.f32 %v3450, 0.0
      %v3475 = vmax.f32 %v3453, 0.0
      %v3476 = vmax.f32 %v3458, 0.0
      %v3477 = vmax.f32 %v3461, 0.0
      %v3478 = vmax.f32 %v3466, 0.0
      %v3479 = vmax.f32 %v3469, 0.0
      %v3480 = vmax.f32 %v2964, %v3472
      %v3481 = vmax.f32 %v2965, %v3473
      %v3482 = vmax.f32 %v2966, %v3474
      %v3483 = vmax.f32 %v2967, %v3475
      %v3484 = vmax.f32 %v2968, %v3476
      %v3485 = vmax.f32 %v2969, %v3477
      %v3486 = vmax.f32 %v2970, %v3478
      %v3487 = vmax.f32 %v2971, %v3479
      %v3488 = vsel %vm671, %v3044, inf
      %3489 = vmin.xlane.f32.xlu0 %v3488
      %v3490 = vpop.xlane.xlu0 %3489
      %v3491 = vsel %vm671, %v3045, inf
      %3492 = vmin.xlane.f32.xlu0 %v3491
      %v3493 = vpop.xlane.xlu0 %3492
      %v3494 = vsel %vm671, %v3046, inf
      %3495 = vmin.xlane.f32.xlu0 %v3494
      %v3496 = vpop.xlane.xlu0 %3495
      %v3497 = vsel %vm671, %v3047, inf
      %3498 = vmin.xlane.f32.xlu0 %v3497
      %v3499 = vpop.xlane.xlu0 %3498
      %v3500 = vsel %vm671, %v3048, inf
      %3501 = vmin.xlane.f32.xlu0 %v3500
      %v3502 = vpop.xlane.xlu0 %3501
      %v3503 = vsel %vm671, %v3049, inf
      %3504 = vmin.xlane.f32.xlu0 %v3503
      %v3505 = vpop.xlane.xlu0 %3504
      %v3506 = vsel %vm671, %v3050, inf
      %3507 = vmin.xlane.f32.xlu0 %v3506
      %v3508 = vpop.xlane.xlu0 %3507
      %v3509 = vsel %vm671, %v3051, inf
      %3510 = vmin.xlane.f32.xlu0 %v3509
      %v3511 = vpop.xlane.xlu0 %3510
      %vm3512 = vcmp.le.f32.partialorder %v3044, %v3490
      %vm3513 = vcmp.le.f32.partialorder %v3045, %v3493
      %vm3514 = vcmp.le.f32.partialorder %v3046, %v3496
      %vm3515 = vcmp.le.f32.partialorder %v3047, %v3499
      %vm3516 = vcmp.le.f32.partialorder %v3048, %v3502
      %vm3517 = vcmp.le.f32.partialorder %v3049, %v3505
      %vm3518 = vcmp.le.f32.partialorder %v3050, %v3508
      %vm3519 = vcmp.le.f32.partialorder %v3051, %v3511
      %v3520 = vsel %vm3512, %v753, 64.0
      %v3521 = vsel %vm3513, %v753, 64.0
      %v3522 = vsel %vm3514, %v753, 64.0
      %v3523 = vsel %vm3515, %v753, 64.0
      %v3524 = vsel %vm3516, %v753, 64.0
      %v3525 = vsel %vm3517, %v753, 64.0
      %v3526 = vsel %vm3518, %v753, 64.0
      %v3527 = vsel %vm3519, %v753, 64.0
      %v3528 = vsel %vm671, %v3520, inf
      %3529 = vmin.xlane.f32.xlu0 %v3528
      %v3530 = vpop.xlane.xlu0 %3529
      %v3531 = vsel %vm671, %v3521, inf
      %3532 = vmin.xlane.f32.xlu0 %v3531
      %v3533 = vpop.xlane.xlu0 %3532
      %v3534 = vsel %vm671, %v3522, inf
      %3535 = vmin.xlane.f32.xlu0 %v3534
      %v3536 = vpop.xlane.xlu0 %3535
      %v3537 = vsel %vm671, %v3523, inf
      %3538 = vmin.xlane.f32.xlu0 %v3537
      %v3539 = vpop.xlane.xlu0 %3538
      %v3540 = vsel %vm671, %v3524, inf
      %3541 = vmin.xlane.f32.xlu0 %v3540
      %v3542 = vpop.xlane.xlu0 %3541
      %v3543 = vsel %vm671, %v3525, inf
      %3544 = vmin.xlane.f32.xlu0 %v3543
      %v3545 = vpop.xlane.xlu0 %3544
      %v3546 = vsel %vm671, %v3526, inf
      %3547 = vmin.xlane.f32.xlu0 %v3546
      %v3548 = vpop.xlane.xlu0 %3547
      %v3549 = vsel %vm671, %v3527, inf
      %3550 = vmin.xlane.f32.xlu0 %v3549
      %v3551 = vpop.xlane.xlu0 %3550
      %vm3552 = vcmp.eq.f32.partialorder %v753, %v3530
      %vm3553 = vcmp.eq.f32.partialorder %v753, %v3533
      %vm3554 = vcmp.eq.f32.partialorder %v753, %v3536
      %vm3555 = vcmp.eq.f32.partialorder %v753, %v3539
      %vm3556 = vcmp.eq.f32.partialorder %v753, %v3542
      %vm3557 = vcmp.eq.f32.partialorder %v753, %v3545
      %vm3558 = vcmp.eq.f32.partialorder %v753, %v3548
      %vm3559 = vcmp.eq.f32.partialorder %v753, %v3551
      %v3560 = vsel %vm3552, 1e+30, %v3044
      %v3561 = vsel %vm3553, 1e+30, %v3045
      %v3562 = vsel %vm3554, 1e+30, %v3046
      %v3563 = vsel %vm3555, 1e+30, %v3047
      %v3564 = vsel %vm3556, 1e+30, %v3048
      %v3565 = vsel %vm3557, 1e+30, %v3049
      %v3566 = vsel %vm3558, 1e+30, %v3050
      %v3567 = vsel %vm3559, 1e+30, %v3051
      %v3568 = vsel %vm3552, 1, 0
      %v3569 = vsel %vm3553, 1, 0
      %v3570 = vsel %vm3554, 1, 0
      %v3571 = vsel %vm3555, 1, 0
      %v3572 = vsel %vm3556, 1, 0
      %v3573 = vsel %vm3557, 1, 0
      %v3574 = vsel %vm3558, 1, 0
      %v3575 = vsel %vm3559, 1, 0
      %v3576 = vcvt.s32.f32 %v3568
      %v3577 = vcvt.s32.f32 %v3569
      %v3578 = vcvt.s32.f32 %v3570
      %v3579 = vcvt.s32.f32 %v3571
      %v3580 = vcvt.s32.f32 %v3572
      %v3581 = vcvt.s32.f32 %v3573
      %v3582 = vcvt.s32.f32 %v3574
      %v3583 = vcvt.s32.f32 %v3575
      %v3585 = vsel %vm671, %v3576, 0
      %v3588 = vsel %vm671, %v3577, 0
      %v3591 = vsel %vm671, %v3578, 0
      %v3594 = vsel %vm671, %v3579, 0
      %v3597 = vsel %vm671, %v3580, 0
      %v3600 = vsel %vm671, %v3581, 0
      %v3603 = vsel %vm671, %v3582, 0
      %v3606 = vsel %vm671, %v3583, 0
      %3608 = vmatprep.subr.mxu0 0.0
      %3609 = vmatpush1.msra.mxu0 %v476
      %3610 = vmatprep.subr.mxu0 0.0
      %3611 = vmatpush1.msra.mxu0 %v477
      %3612 = vmatprep.subr.mxu0 0.0
      %3613 = vmatpush1.msra.mxu0 %v478
      %3614 = vmatprep.subr.mxu0 0.0
      %3615 = vmatpush1.msra.mxu0 %v479
      %3616 = vmatprep.subr.mxu0 0.0
      %3617 = vmatpush1.msra.mxu0 %v480
      %3618 = vmatprep.subr.mxu0 0.0
      %3619 = vmatpush1.msra.mxu0 %v481
      %3620 = vmatprep.subr.mxu0 0.0
      %3621 = vmatpush1.msra.mxu0 %v482
      %3622 = vmatprep.subr.mxu0 0.0
      %3623 = vmatpush1.msra.mxu0 %v483
      %3624 = vmatprep.subr.mxu0 0.0
      %3625 = vmatpush1.msra.mxu0 0.0
      %3626 = vmatprep.subr.mxu0 0.0
      %3627 = vmatpush1.msra.mxu0 0.0
      %3628 = vmatprep.subr.mxu0 0.0
      %3629 = vmatpush1.msra.mxu0 0.0
      %3630 = vmatprep.subr.mxu0 0.0
      %3631 = vmatpush1.msra.mxu0 0.0
      %3632 = vmatprep.subr.mxu0 0.0
      %3633 = vmatpush1.msra.mxu0 0.0
      %3634 = vmatprep.subr.mxu0 0.0
      %3635 = vmatpush1.msra.mxu0 0.0
      %3636 = vmatprep.subr.mxu0 0.0
      %3637 = vmatpush1.msra.mxu0 0.0
      %3638 = vmatprep.subr.mxu0 0.0
      %3639 = vmatpush1.msra.mxu0 0.0
      %3640 = vmatprep.subr.mxu0 0.0
      %3641 = vmatpush1.msra.mxu0 0.0
      %3642 = vmatprep.subr.mxu0 0.0
      %3643 = vmatpush1.msra.mxu0 0.0
      %3644 = vmatprep.subr.mxu0 0.0
      %3645 = vmatpush1.msra.mxu0 0.0
      %3646 = vmatprep.subr.mxu0 0.0
      %3647 = vmatpush1.msra.mxu0 0.0
      %3648 = vmatprep.subr.mxu0 0.0
      %3649 = vmatpush1.msra.mxu0 0.0
      %3650 = vmatprep.subr.mxu0 0.0
      %3651 = vmatpush1.msra.mxu0 0.0
      %3652 = vmatprep.subr.mxu0 0.0
      %3653 = vmatpush1.msra.mxu0 0.0
      %3654 = vmatprep.subr.mxu0 0.0
      %3655 = vmatpush1.msra.mxu0 0.0
      %3656 = vmatprep.subr.mxu0 0.0
      %3657 = vmatpush1.msra.mxu0 0.0
      %3658 = vmatprep.subr.mxu0 0.0
      %3659 = vmatpush1.msra.mxu0 0.0
      %3660 = vmatprep.subr.mxu0 0.0
      %3661 = vmatpush1.msra.mxu0 0.0
      %3662 = vmatprep.subr.mxu0 0.0
      %3663 = vmatpush1.msra.mxu0 0.0
      %3664 = vmatprep.subr.mxu0 0.0
      %3665 = vmatpush1.msra.mxu0 0.0
      %3666 = vmatprep.subr.mxu0 0.0
      %3667 = vmatpush1.msra.mxu0 0.0
      %3668 = vmatprep.subr.mxu0 0.0
      %3669 = vmatpush1.msra.mxu0 0.0
      %3670 = vmatprep.subr.mxu0 0.0
      %3671 = vmatpush1.msra.mxu0 0.0
      %3672 = vmatprep.mubr.f32.mxu0 0.0
      %3673 = vmatmul.mubr.f32.gmra.mrb[0].mxu0 %v3585
      %v3674 = vpop.f32.mrb[0].mxu0
      %v3675 = vadd.f32 0.0, %v3674
      %v3676 = vpop.f32.mrb[0].mxu0
      %3677 = vmatprep.mubr.f32.mxu0 0.0
      %3678 = vmatmul.mubr.f32.gmra.mrb[0].mxu0 %v3588
      %v3679 = vpop.f32.mrb[0].mxu0
      %v3680 = vadd.f32 0.0, %v3679
      %v3681 = vpop.f32.mrb[0].mxu0
      %3682 = vmatprep.mubr.f32.mxu0 0.0
      %3683 = vmatmul.mubr.f32.gmra.mrb[0].mxu0 %v3591
      %v3684 = vpop.f32.mrb[0].mxu0
      %v3685 = vadd.f32 0.0, %v3684
      %v3686 = vpop.f32.mrb[0].mxu0
      %3687 = vmatprep.mubr.f32.mxu0 0.0
      %3688 = vmatmul.mubr.f32.gmra.mrb[0].mxu0 %v3594
      %v3689 = vpop.f32.mrb[0].mxu0
      %v3690 = vadd.f32 0.0, %v3689
      %v3691 = vpop.f32.mrb[0].mxu0
      %3692 = vmatprep.mubr.f32.mxu0 0.0
      %3693 = vmatmul.mubr.f32.gmra.mrb[0].mxu0 %v3597
      %v3694 = vpop.f32.mrb[0].mxu0
      %v3695 = vadd.f32 0.0, %v3694
      %v3696 = vpop.f32.mrb[0].mxu0
      %3697 = vmatprep.mubr.f32.mxu0 0.0
      %3698 = vmatmul.mubr.f32.gmra.mrb[0].mxu0 %v3600
      %v3699 = vpop.f32.mrb[0].mxu0
      %v3700 = vadd.f32 0.0, %v3699
      %v3701 = vpop.f32.mrb[0].mxu0
      %3702 = vmatprep.mubr.f32.mxu0 0.0
      %3703 = vmatmul.mubr.f32.gmra.mrb[0].mxu0 %v3603
      %v3704 = vpop.f32.mrb[0].mxu0
      %v3705 = vadd.f32 0.0, %v3704
      %v3706 = vpop.f32.mrb[0].mxu0
      %3707 = vmatprep.mubr.f32.mxu0 0.0
      %3708 = vmatmul.mubr.f32.gmra.mrb[0].mxu0 %v3606
      %v3709 = vpop.f32.mrb[0].mxu0
      %v3710 = vadd.f32 0.0, %v3709
      %v3711 = vpop.f32.mrb[0].mxu0
      %3712 = vdwg.mxu0
      %v3713 = vsub.f32 %v3675, %v476
      %v3714 = vsub.f32 %v3680, %v477
      %v3715 = vsub.f32 %v3685, %v478
      %v3716 = vsub.f32 %v3690, %v479
      %v3717 = vsub.f32 %v3695, %v480
      %v3718 = vsub.f32 %v3700, %v481
      %v3719 = vsub.f32 %v3705, %v482
      %v3720 = vsub.f32 %v3710, %v483
      %v3721 = vpack.c.bf16 %v3714, %v3713
      %v3722 = vpack.c.bf16 %v3716, %v3715
      %v3723 = vpack.c.bf16 %v3718, %v3717
      %v3724 = vpack.c.bf16 %v3720, %v3719
      %v3726 = vsel %vm514, %v3721, 0
      %v3729 = vsel %vm514, %v3722, 0
      %v3732 = vsel %vm514, %v3723, 0
      %v3735 = vsel %vm514, %v3724, 0
      %3737 = vmatprep.subr.bf16.mxu0 0
      %3738 = vmatpush1.bf16.msra.mxu0 %v1107
      %3739 = vmatprep.subr.bf16.mxu0 0
      %3740 = vmatpush1.bf16.msra.mxu0 0
      %3741 = vmatprep.subr.bf16.mxu0 0
      %3742 = vmatpush1.bf16.msra.mxu0 0
      %3743 = vmatprep.subr.bf16.mxu0 0
      %3744 = vmatpush1.bf16.msra.mxu0 0
      %3745 = vmatprep.subr.bf16.mxu0 0
      %3746 = vmatpush1.bf16.msra.mxu0 0
      %3747 = vmatprep.subr.bf16.mxu0 0
      %3748 = vmatpush1.bf16.msra.mxu0 0
      %3749 = vmatprep.subr.bf16.mxu0 0
      %3750 = vmatpush1.bf16.msra.mxu0 0
      %3751 = vmatprep.subr.bf16.mxu0 0
      %3752 = vmatpush1.bf16.msra.mxu0 0
      %3753 = vmatprep.subr.bf16.mxu0 0
      %3754 = vmatpush1.bf16.msra.mxu0 0
      %3755 = vmatprep.subr.bf16.mxu0 0
      %3756 = vmatpush1.bf16.msra.mxu0 0
      %3757 = vmatprep.subr.bf16.mxu0 0
      %3758 = vmatpush1.bf16.msra.mxu0 0
      %3759 = vmatprep.subr.bf16.mxu0 0
      %3760 = vmatpush1.bf16.msra.mxu0 0
      %3761 = vmatprep.subr.bf16.mxu0 0
      %3762 = vmatpush1.bf16.msra.mxu0 0
      %3763 = vmatprep.subr.bf16.mxu0 0
      %3764 = vmatpush1.bf16.msra.mxu0 0
      %3765 = vmatprep.subr.bf16.mxu0 0
      %3766 = vmatpush1.bf16.msra.mxu0 0
      %3767 = vmatprep.subr.bf16.mxu0 0
      %3768 = vmatpush1.bf16.msra.mxu0 0
      %3769 = vmatprep.mubr.bf16.mxu0 0
      %3770 = vmatmul.mubr.bf16.gmra.mrb[0].mxu0 %v3726
      %v3771 = vpop.f32.mrb[0].mxu0
      %v3772 = vadd.f32 0.0, %v3771
      %v3773 = vpop.f32.mrb[0].mxu0
      %v3774 = vpop.f32.mrb[0].mxu0
      %v3775 = vadd.f32 0.0, %v3774
      %v3776 = vpop.f32.mrb[0].mxu0
      %3777 = vmatprep.mubr.bf16.mxu0 0
      %3778 = vmatmul.mubr.bf16.gmra.mrb[0].mxu0 %v3729
      %v3779 = vpop.f32.mrb[0].mxu0
      %v3780 = vadd.f32 0.0, %v3779
      %v3781 = vpop.f32.mrb[0].mxu0
      %v3782 = vpop.f32.mrb[0].mxu0
      %v3783 = vadd.f32 0.0, %v3782
      %v3784 = vpop.f32.mrb[0].mxu0
      %3785 = vmatprep.mubr.bf16.mxu0 0
      %3786 = vmatmul.mubr.bf16.gmra.mrb[0].mxu0 %v3732
      %v3787 = vpop.f32.mrb[0].mxu0
      %v3788 = vadd.f32 0.0, %v3787
      %v3789 = vpop.f32.mrb[0].mxu0
      %v3790 = vpop.f32.mrb[0].mxu0
      %v3791 = vadd.f32 0.0, %v3790
      %v3792 = vpop.f32.mrb[0].mxu0
      %3793 = vmatprep.mubr.bf16.mxu0 0
      %3794 = vmatmul.mubr.bf16.gmra.mrb[0].mxu0 %v3735
      %v3795 = vpop.f32.mrb[0].mxu0
      %v3796 = vadd.f32 0.0, %v3795
      %v3797 = vpop.f32.mrb[0].mxu0
      %v3798 = vpop.f32.mrb[0].mxu0
      %v3799 = vadd.f32 0.0, %v3798
      %v3800 = vpop.f32.mrb[0].mxu0
      %3801 = vdwg.mxu0
      %v3802 = vadd.f32 %v815, %v3772
      %v3803 = vadd.f32 %v818, %v3775
      %v3804 = vadd.f32 %v823, %v3780
      %v3805 = vadd.f32 %v826, %v3783
      %v3806 = vadd.f32 %v831, %v3788
      %v3807 = vadd.f32 %v834, %v3791
      %v3808 = vadd.f32 %v839, %v3796
      %v3809 = vadd.f32 %v842, %v3799
      %v3810 = vmax.f32 %v3802, 0.0
      %v3811 = vmax.f32 %v3803, 0.0
      %v3812 = vmax.f32 %v3804, 0.0
      %v3813 = vmax.f32 %v3805, 0.0
      %v3814 = vmax.f32 %v3806, 0.0
      %v3815 = vmax.f32 %v3807, 0.0
      %v3816 = vmax.f32 %v3808, 0.0
      %v3817 = vmax.f32 %v3809, 0.0
      %v3818 = vpack.c.bf16 %v3811, %v3810
      %v3819 = vpack.c.bf16 %v3813, %v3812
      %v3820 = vpack.c.bf16 %v3815, %v3814
      %v3821 = vpack.c.bf16 %v3817, %v3816
      %v3823 = vsel %vm671, %v3818, 0
      %v3826 = vsel %vm671, %v3819, 0
      %v3829 = vsel %vm671, %v3820, 0
      %v3832 = vsel %vm671, %v3821, 0
      %3834 = vmatprep.subr.bf16.mxu0 0
      %3835 = vmatpush1.bf16.msra.mxu0 %v1210
      %3836 = vmatprep.subr.bf16.mxu0 0
      %3837 = vmatpush1.bf16.msra.mxu0 %v1211
      %3838 = vmatprep.subr.bf16.mxu0 0
      %3839 = vmatpush1.bf16.msra.mxu0 %v1212
      %3840 = vmatprep.subr.bf16.mxu0 0
      %3841 = vmatpush1.bf16.msra.mxu0 %v1213
      %3842 = vmatprep.subr.bf16.mxu0 0
      %3843 = vmatpush1.bf16.msra.mxu0 0
      %3844 = vmatprep.subr.bf16.mxu0 0
      %3845 = vmatpush1.bf16.msra.mxu0 0
      %3846 = vmatprep.subr.bf16.mxu0 0
      %3847 = vmatpush1.bf16.msra.mxu0 0
      %3848 = vmatprep.subr.bf16.mxu0 0
      %3849 = vmatpush1.bf16.msra.mxu0 0
      %3850 = vmatprep.subr.bf16.mxu0 0
      %3851 = vmatpush1.bf16.msra.mxu0 0
      %3852 = vmatprep.subr.bf16.mxu0 0
      %3853 = vmatpush1.bf16.msra.mxu0 0
      %3854 = vmatprep.subr.bf16.mxu0 0
      %3855 = vmatpush1.bf16.msra.mxu0 0
      %3856 = vmatprep.subr.bf16.mxu0 0
      %3857 = vmatpush1.bf16.msra.mxu0 0
      %3858 = vmatprep.subr.bf16.mxu0 0
      %3859 = vmatpush1.bf16.msra.mxu0 0
      %3860 = vmatprep.subr.bf16.mxu0 0
      %3861 = vmatpush1.bf16.msra.mxu0 0
      %3862 = vmatprep.subr.bf16.mxu0 0
      %3863 = vmatpush1.bf16.msra.mxu0 0
      %3864 = vmatprep.subr.bf16.mxu0 0
      %3865 = vmatpush1.bf16.msra.mxu0 0
      %3866 = vmatprep.mubr.bf16.mxu0 0
      %3867 = vmatmul.mubr.bf16.gmra.mrb[0].mxu0 %v3823
      %v3868 = vpop.f32.mrb[0].mxu0
      %v3869 = vadd.f32 %v849, %v3868
      %v3870 = vpop.f32.mrb[0].mxu0
      %v3871 = vpop.f32.mrb[0].mxu0
      %v3872 = vadd.f32 %v849, %v3871
      %v3873 = vpop.f32.mrb[0].mxu0
      %3874 = vmatprep.mubr.bf16.mxu0 0
      %3875 = vmatmul.mubr.bf16.gmra.mrb[0].mxu0 %v3826
      %v3876 = vpop.f32.mrb[0].mxu0
      %v3877 = vadd.f32 %v849, %v3876
      %v3878 = vpop.f32.mrb[0].mxu0
      %v3879 = vpop.f32.mrb[0].mxu0
      %v3880 = vadd.f32 %v849, %v3879
      %v3881 = vpop.f32.mrb[0].mxu0
      %3882 = vmatprep.mubr.bf16.mxu0 0
      %3883 = vmatmul.mubr.bf16.gmra.mrb[0].mxu0 %v3829
      %v3884 = vpop.f32.mrb[0].mxu0
      %v3885 = vadd.f32 %v849, %v3884
      %v3886 = vpop.f32.mrb[0].mxu0
      %v3887 = vpop.f32.mrb[0].mxu0
      %v3888 = vadd.f32 %v849, %v3887
      %v3889 = vpop.f32.mrb[0].mxu0
      %3890 = vmatprep.mubr.bf16.mxu0 0
      %3891 = vmatmul.mubr.bf16.gmra.mrb[0].mxu0 %v3832
      %v3892 = vpop.f32.mrb[0].mxu0
      %v3893 = vadd.f32 %v849, %v3892
      %v3894 = vpop.f32.mrb[0].mxu0
      %v3895 = vpop.f32.mrb[0].mxu0
      %v3896 = vadd.f32 %v849, %v3895
      %v3897 = vpop.f32.mrb[0].mxu0
      %3898 = vdwg.mxu0
      %v3899 = vmax.f32 %v3869, 0.0
      %v3900 = vmax.f32 %v3872, 0.0
      %v3901 = vmax.f32 %v3877, 0.0
      %v3902 = vmax.f32 %v3880, 0.0
      %v3903 = vmax.f32 %v3885, 0.0
      %v3904 = vmax.f32 %v3888, 0.0
      %v3905 = vmax.f32 %v3893, 0.0
      %v3906 = vmax.f32 %v3896, 0.0
      %v3907 = vpack.c.bf16 %v3900, %v3899
      %v3908 = vpack.c.bf16 %v3902, %v3901
      %v3909 = vpack.c.bf16 %v3904, %v3903
      %v3910 = vpack.c.bf16 %v3906, %v3905
      %v3912 = vsel %vm671, %v3907, 0
      %v3915 = vsel %vm671, %v3908, 0
      %v3918 = vsel %vm671, %v3909, 0
      %v3921 = vsel %vm671, %v3910, 0
      %3923 = vmatprep.subr.bf16.mxu0 0
      %3924 = vmatpush1.bf16.msra.mxu0 %v1323
      %3925 = vmatprep.subr.bf16.mxu0 0
      %3926 = vmatpush1.bf16.msra.mxu0 %v1324
      %3927 = vmatprep.subr.bf16.mxu0 0
      %3928 = vmatpush1.bf16.msra.mxu0 %v1325
      %3929 = vmatprep.subr.bf16.mxu0 0
      %3930 = vmatpush1.bf16.msra.mxu0 %v1326
      %3931 = vmatprep.subr.bf16.mxu0 0
      %3932 = vmatpush1.bf16.msra.mxu0 0
      %3933 = vmatprep.subr.bf16.mxu0 0
      %3934 = vmatpush1.bf16.msra.mxu0 0
      %3935 = vmatprep.subr.bf16.mxu0 0
      %3936 = vmatpush1.bf16.msra.mxu0 0
      %3937 = vmatprep.subr.bf16.mxu0 0
      %3938 = vmatpush1.bf16.msra.mxu0 0
      %3939 = vmatprep.subr.bf16.mxu0 0
      %3940 = vmatpush1.bf16.msra.mxu0 0
      %3941 = vmatprep.subr.bf16.mxu0 0
      %3942 = vmatpush1.bf16.msra.mxu0 0
      %3943 = vmatprep.subr.bf16.mxu0 0
      %3944 = vmatpush1.bf16.msra.mxu0 0
      %3945 = vmatprep.subr.bf16.mxu0 0
      %3946 = vmatpush1.bf16.msra.mxu0 0
      %3947 = vmatprep.subr.bf16.mxu0 0
      %3948 = vmatpush1.bf16.msra.mxu0 0
      %3949 = vmatprep.subr.bf16.mxu0 0
      %3950 = vmatpush1.bf16.msra.mxu0 0
      %3951 = vmatprep.subr.bf16.mxu0 0
      %3952 = vmatpush1.bf16.msra.mxu0 0
      %3953 = vmatprep.subr.bf16.mxu0 0
      %3954 = vmatpush1.bf16.msra.mxu0 0
      %3955 = vmatprep.mubr.bf16.mxu0 0
      %3956 = vmatmul.mubr.bf16.gmra.mrb[0].mxu0 %v3912
      %v3957 = vpop.f32.mrb[0].mxu0
      %v3958 = vadd.f32 %v855, %v3957
      %v3959 = vpop.f32.mrb[0].mxu0
      %v3960 = vpop.f32.mrb[0].mxu0
      %v3961 = vadd.f32 %v855, %v3960
      %v3962 = vpop.f32.mrb[0].mxu0
      %3963 = vmatprep.mubr.bf16.mxu0 0
      %3964 = vmatmul.mubr.bf16.gmra.mrb[0].mxu0 %v3915
      %v3965 = vpop.f32.mrb[0].mxu0
      %v3966 = vadd.f32 %v855, %v3965
      %v3967 = vpop.f32.mrb[0].mxu0
      %v3968 = vpop.f32.mrb[0].mxu0
      %v3969 = vadd.f32 %v855, %v3968
      %v3970 = vpop.f32.mrb[0].mxu0
      %3971 = vmatprep.mubr.bf16.mxu0 0
      %3972 = vmatmul.mubr.bf16.gmra.mrb[0].mxu0 %v3918
      %v3973 = vpop.f32.mrb[0].mxu0
      %v3974 = vadd.f32 %v855, %v3973
      %v3975 = vpop.f32.mrb[0].mxu0
      %v3976 = vpop.f32.mrb[0].mxu0
      %v3977 = vadd.f32 %v855, %v3976
      %v3978 = vpop.f32.mrb[0].mxu0
      %3979 = vmatprep.mubr.bf16.mxu0 0
      %3980 = vmatmul.mubr.bf16.gmra.mrb[0].mxu0 %v3921
      %v3981 = vpop.f32.mrb[0].mxu0
      %v3982 = vadd.f32 %v855, %v3981
      %v3983 = vpop.f32.mrb[0].mxu0
      %v3984 = vpop.f32.mrb[0].mxu0
      %v3985 = vadd.f32 %v855, %v3984
      %v3986 = vpop.f32.mrb[0].mxu0
      %3987 = vdwg.mxu0
      %v3988 = vmax.f32 %v3958, 0.0
      %v3989 = vmax.f32 %v3961, 0.0
      %v3990 = vmax.f32 %v3966, 0.0
      %v3991 = vmax.f32 %v3969, 0.0
      %v3992 = vmax.f32 %v3974, 0.0
      %v3993 = vmax.f32 %v3977, 0.0
      %v3994 = vmax.f32 %v3982, 0.0
      %v3995 = vmax.f32 %v3985, 0.0
      %v3996 = vmax.f32 %v3480, %v3988
      %v3997 = vmax.f32 %v3481, %v3989
      %v3998 = vmax.f32 %v3482, %v3990
      %v3999 = vmax.f32 %v3483, %v3991
      %v4000 = vmax.f32 %v3484, %v3992
      %v4001 = vmax.f32 %v3485, %v3993
      %v4002 = vmax.f32 %v3486, %v3994
      %v4003 = vmax.f32 %v3487, %v3995
      %v4004 = vsel %vm671, %v3560, inf
      %4005 = vmin.xlane.f32.xlu0 %v4004
      %v4006 = vpop.xlane.xlu0 %4005
      %v4007 = vsel %vm671, %v3561, inf
      %4008 = vmin.xlane.f32.xlu0 %v4007
      %v4009 = vpop.xlane.xlu0 %4008
      %v4010 = vsel %vm671, %v3562, inf
      %4011 = vmin.xlane.f32.xlu0 %v4010
      %v4012 = vpop.xlane.xlu0 %4011
      %v4013 = vsel %vm671, %v3563, inf
      %4014 = vmin.xlane.f32.xlu0 %v4013
      %v4015 = vpop.xlane.xlu0 %4014
      %v4016 = vsel %vm671, %v3564, inf
      %4017 = vmin.xlane.f32.xlu0 %v4016
      %v4018 = vpop.xlane.xlu0 %4017
      %v4019 = vsel %vm671, %v3565, inf
      %4020 = vmin.xlane.f32.xlu0 %v4019
      %v4021 = vpop.xlane.xlu0 %4020
      %v4022 = vsel %vm671, %v3566, inf
      %4023 = vmin.xlane.f32.xlu0 %v4022
      %v4024 = vpop.xlane.xlu0 %4023
      %v4025 = vsel %vm671, %v3567, inf
      %4026 = vmin.xlane.f32.xlu0 %v4025
      %v4027 = vpop.xlane.xlu0 %4026
      %vm4028 = vcmp.le.f32.partialorder %v3560, %v4006
      %vm4029 = vcmp.le.f32.partialorder %v3561, %v4009
      %vm4030 = vcmp.le.f32.partialorder %v3562, %v4012
      %vm4031 = vcmp.le.f32.partialorder %v3563, %v4015
      %vm4032 = vcmp.le.f32.partialorder %v3564, %v4018
      %vm4033 = vcmp.le.f32.partialorder %v3565, %v4021
      %vm4034 = vcmp.le.f32.partialorder %v3566, %v4024
      %vm4035 = vcmp.le.f32.partialorder %v3567, %v4027
      %v4036 = vsel %vm4028, %v753, 64.0
      %v4037 = vsel %vm4029, %v753, 64.0
      %v4038 = vsel %vm4030, %v753, 64.0
      %v4039 = vsel %vm4031, %v753, 64.0
      %v4040 = vsel %vm4032, %v753, 64.0
      %v4041 = vsel %vm4033, %v753, 64.0
      %v4042 = vsel %vm4034, %v753, 64.0
      %v4043 = vsel %vm4035, %v753, 64.0
      %v4044 = vsel %vm671, %v4036, inf
      %4045 = vmin.xlane.f32.xlu0 %v4044
      %v4046 = vpop.xlane.xlu0 %4045
      %v4047 = vsel %vm671, %v4037, inf
      %4048 = vmin.xlane.f32.xlu0 %v4047
      %v4049 = vpop.xlane.xlu0 %4048
      %v4050 = vsel %vm671, %v4038, inf
      %4051 = vmin.xlane.f32.xlu0 %v4050
      %v4052 = vpop.xlane.xlu0 %4051
      %v4053 = vsel %vm671, %v4039, inf
      %4054 = vmin.xlane.f32.xlu0 %v4053
      %v4055 = vpop.xlane.xlu0 %4054
      %v4056 = vsel %vm671, %v4040, inf
      %4057 = vmin.xlane.f32.xlu0 %v4056
      %v4058 = vpop.xlane.xlu0 %4057
      %v4059 = vsel %vm671, %v4041, inf
      %4060 = vmin.xlane.f32.xlu0 %v4059
      %v4061 = vpop.xlane.xlu0 %4060
      %v4062 = vsel %vm671, %v4042, inf
      %4063 = vmin.xlane.f32.xlu0 %v4062
      %v4064 = vpop.xlane.xlu0 %4063
      %v4065 = vsel %vm671, %v4043, inf
      %4066 = vmin.xlane.f32.xlu0 %v4065
      %v4067 = vpop.xlane.xlu0 %4066
      %vm4068 = vcmp.eq.f32.partialorder %v753, %v4046
      %vm4069 = vcmp.eq.f32.partialorder %v753, %v4049
      %vm4070 = vcmp.eq.f32.partialorder %v753, %v4052
      %vm4071 = vcmp.eq.f32.partialorder %v753, %v4055
      %vm4072 = vcmp.eq.f32.partialorder %v753, %v4058
      %vm4073 = vcmp.eq.f32.partialorder %v753, %v4061
      %vm4074 = vcmp.eq.f32.partialorder %v753, %v4064
      %vm4075 = vcmp.eq.f32.partialorder %v753, %v4067
      %v4076 = vsel %vm4068, 1e+30, %v3560
      %v4077 = vsel %vm4069, 1e+30, %v3561
      %v4078 = vsel %vm4070, 1e+30, %v3562
      %v4079 = vsel %vm4071, 1e+30, %v3563
      %v4080 = vsel %vm4072, 1e+30, %v3564
      %v4081 = vsel %vm4073, 1e+30, %v3565
      %v4082 = vsel %vm4074, 1e+30, %v3566
      %v4083 = vsel %vm4075, 1e+30, %v3567
      %v4084 = vsel %vm4068, 1, 0
      %v4085 = vsel %vm4069, 1, 0
      %v4086 = vsel %vm4070, 1, 0
      %v4087 = vsel %vm4071, 1, 0
      %v4088 = vsel %vm4072, 1, 0
      %v4089 = vsel %vm4073, 1, 0
      %v4090 = vsel %vm4074, 1, 0
      %v4091 = vsel %vm4075, 1, 0
      %v4092 = vcvt.s32.f32 %v4084
      %v4093 = vcvt.s32.f32 %v4085
      %v4094 = vcvt.s32.f32 %v4086
      %v4095 = vcvt.s32.f32 %v4087
      %v4096 = vcvt.s32.f32 %v4088
      %v4097 = vcvt.s32.f32 %v4089
      %v4098 = vcvt.s32.f32 %v4090
      %v4099 = vcvt.s32.f32 %v4091
      %v4101 = vsel %vm671, %v4092, 0
      %v4104 = vsel %vm671, %v4093, 0
      %v4107 = vsel %vm671, %v4094, 0
      %v4110 = vsel %vm671, %v4095, 0
      %v4113 = vsel %vm671, %v4096, 0
      %v4116 = vsel %vm671, %v4097, 0
      %v4119 = vsel %vm671, %v4098, 0
      %v4122 = vsel %vm671, %v4099, 0
      %4124 = vmatprep.subr.mxu0 0.0
      %4125 = vmatpush1.msra.mxu0 %v476
      %4126 = vmatprep.subr.mxu0 0.0
      %4127 = vmatpush1.msra.mxu0 %v477
      %4128 = vmatprep.subr.mxu0 0.0
      %4129 = vmatpush1.msra.mxu0 %v478
      %4130 = vmatprep.subr.mxu0 0.0
      %4131 = vmatpush1.msra.mxu0 %v479
      %4132 = vmatprep.subr.mxu0 0.0
      %4133 = vmatpush1.msra.mxu0 %v480
      %4134 = vmatprep.subr.mxu0 0.0
      %4135 = vmatpush1.msra.mxu0 %v481
      %4136 = vmatprep.subr.mxu0 0.0
      %4137 = vmatpush1.msra.mxu0 %v482
      %4138 = vmatprep.subr.mxu0 0.0
      %4139 = vmatpush1.msra.mxu0 %v483
      %4140 = vmatprep.subr.mxu0 0.0
      %4141 = vmatpush1.msra.mxu0 0.0
      %4142 = vmatprep.subr.mxu0 0.0
      %4143 = vmatpush1.msra.mxu0 0.0
      %4144 = vmatprep.subr.mxu0 0.0
      %4145 = vmatpush1.msra.mxu0 0.0
      %4146 = vmatprep.subr.mxu0 0.0
      %4147 = vmatpush1.msra.mxu0 0.0
      %4148 = vmatprep.subr.mxu0 0.0
      %4149 = vmatpush1.msra.mxu0 0.0
      %4150 = vmatprep.subr.mxu0 0.0
      %4151 = vmatpush1.msra.mxu0 0.0
      %4152 = vmatprep.subr.mxu0 0.0
      %4153 = vmatpush1.msra.mxu0 0.0
      %4154 = vmatprep.subr.mxu0 0.0
      %4155 = vmatpush1.msra.mxu0 0.0
      %4156 = vmatprep.subr.mxu0 0.0
      %4157 = vmatpush1.msra.mxu0 0.0
      %4158 = vmatprep.subr.mxu0 0.0
      %4159 = vmatpush1.msra.mxu0 0.0
      %4160 = vmatprep.subr.mxu0 0.0
      %4161 = vmatpush1.msra.mxu0 0.0
      %4162 = vmatprep.subr.mxu0 0.0
      %4163 = vmatpush1.msra.mxu0 0.0
      %4164 = vmatprep.subr.mxu0 0.0
      %4165 = vmatpush1.msra.mxu0 0.0
      %4166 = vmatprep.subr.mxu0 0.0
      %4167 = vmatpush1.msra.mxu0 0.0
      %4168 = vmatprep.subr.mxu0 0.0
      %4169 = vmatpush1.msra.mxu0 0.0
      %4170 = vmatprep.subr.mxu0 0.0
      %4171 = vmatpush1.msra.mxu0 0.0
      %4172 = vmatprep.subr.mxu0 0.0
      %4173 = vmatpush1.msra.mxu0 0.0
      %4174 = vmatprep.subr.mxu0 0.0
      %4175 = vmatpush1.msra.mxu0 0.0
      %4176 = vmatprep.subr.mxu0 0.0
      %4177 = vmatpush1.msra.mxu0 0.0
      %4178 = vmatprep.subr.mxu0 0.0
      %4179 = vmatpush1.msra.mxu0 0.0
      %4180 = vmatprep.subr.mxu0 0.0
      %4181 = vmatpush1.msra.mxu0 0.0
      %4182 = vmatprep.subr.mxu0 0.0
      %4183 = vmatpush1.msra.mxu0 0.0
      %4184 = vmatprep.subr.mxu0 0.0
      %4185 = vmatpush1.msra.mxu0 0.0
      %4186 = vmatprep.subr.mxu0 0.0
      %4187 = vmatpush1.msra.mxu0 0.0
      %4188 = vmatprep.mubr.f32.mxu0 0.0
      %4189 = vmatmul.mubr.f32.gmra.mrb[0].mxu0 %v4101
      %v4190 = vpop.f32.mrb[0].mxu0
      %v4191 = vadd.f32 0.0, %v4190
      %v4192 = vpop.f32.mrb[0].mxu0
      %4193 = vmatprep.mubr.f32.mxu0 0.0
      %4194 = vmatmul.mubr.f32.gmra.mrb[0].mxu0 %v4104
      %v4195 = vpop.f32.mrb[0].mxu0
      %v4196 = vadd.f32 0.0, %v4195
      %v4197 = vpop.f32.mrb[0].mxu0
      %4198 = vmatprep.mubr.f32.mxu0 0.0
      %4199 = vmatmul.mubr.f32.gmra.mrb[0].mxu0 %v4107
      %v4200 = vpop.f32.mrb[0].mxu0
      %v4201 = vadd.f32 0.0, %v4200
      %v4202 = vpop.f32.mrb[0].mxu0
      %4203 = vmatprep.mubr.f32.mxu0 0.0
      %4204 = vmatmul.mubr.f32.gmra.mrb[0].mxu0 %v4110
      %v4205 = vpop.f32.mrb[0].mxu0
      %v4206 = vadd.f32 0.0, %v4205
      %v4207 = vpop.f32.mrb[0].mxu0
      %4208 = vmatprep.mubr.f32.mxu0 0.0
      %4209 = vmatmul.mubr.f32.gmra.mrb[0].mxu0 %v4113
      %v4210 = vpop.f32.mrb[0].mxu0
      %v4211 = vadd.f32 0.0, %v4210
      %v4212 = vpop.f32.mrb[0].mxu0
      %4213 = vmatprep.mubr.f32.mxu0 0.0
      %4214 = vmatmul.mubr.f32.gmra.mrb[0].mxu0 %v4116
      %v4215 = vpop.f32.mrb[0].mxu0
      %v4216 = vadd.f32 0.0, %v4215
      %v4217 = vpop.f32.mrb[0].mxu0
      %4218 = vmatprep.mubr.f32.mxu0 0.0
      %4219 = vmatmul.mubr.f32.gmra.mrb[0].mxu0 %v4119
      %v4220 = vpop.f32.mrb[0].mxu0
      %v4221 = vadd.f32 0.0, %v4220
      %v4222 = vpop.f32.mrb[0].mxu0
      %4223 = vmatprep.mubr.f32.mxu0 0.0
      %4224 = vmatmul.mubr.f32.gmra.mrb[0].mxu0 %v4122
      %v4225 = vpop.f32.mrb[0].mxu0
      %v4226 = vadd.f32 0.0, %v4225
      %v4227 = vpop.f32.mrb[0].mxu0
      %4228 = vdwg.mxu0
      %v4229 = vsub.f32 %v4191, %v476
      %v4230 = vsub.f32 %v4196, %v477
      %v4231 = vsub.f32 %v4201, %v478
      %v4232 = vsub.f32 %v4206, %v479
      %v4233 = vsub.f32 %v4211, %v480
      %v4234 = vsub.f32 %v4216, %v481
      %v4235 = vsub.f32 %v4221, %v482
      %v4236 = vsub.f32 %v4226, %v483
      %v4237 = vpack.c.bf16 %v4230, %v4229
      %v4238 = vpack.c.bf16 %v4232, %v4231
      %v4239 = vpack.c.bf16 %v4234, %v4233
      %v4240 = vpack.c.bf16 %v4236, %v4235
      %v4242 = vsel %vm514, %v4237, 0
      %v4245 = vsel %vm514, %v4238, 0
      %v4248 = vsel %vm514, %v4239, 0
      %v4251 = vsel %vm514, %v4240, 0
      %4253 = vmatprep.subr.bf16.mxu0 0
      %4254 = vmatpush1.bf16.msra.mxu0 %v1107
      %4255 = vmatprep.subr.bf16.mxu0 0
      %4256 = vmatpush1.bf16.msra.mxu0 0
      %4257 = vmatprep.subr.bf16.mxu0 0
      %4258 = vmatpush1.bf16.msra.mxu0 0
      %4259 = vmatprep.subr.bf16.mxu0 0
      %4260 = vmatpush1.bf16.msra.mxu0 0
      %4261 = vmatprep.subr.bf16.mxu0 0
      %4262 = vmatpush1.bf16.msra.mxu0 0
      %4263 = vmatprep.subr.bf16.mxu0 0
      %4264 = vmatpush1.bf16.msra.mxu0 0
      %4265 = vmatprep.subr.bf16.mxu0 0
      %4266 = vmatpush1.bf16.msra.mxu0 0
      %4267 = vmatprep.subr.bf16.mxu0 0
      %4268 = vmatpush1.bf16.msra.mxu0 0
      %4269 = vmatprep.subr.bf16.mxu0 0
      %4270 = vmatpush1.bf16.msra.mxu0 0
      %4271 = vmatprep.subr.bf16.mxu0 0
      %4272 = vmatpush1.bf16.msra.mxu0 0
      %4273 = vmatprep.subr.bf16.mxu0 0
      %4274 = vmatpush1.bf16.msra.mxu0 0
      %4275 = vmatprep.subr.bf16.mxu0 0
      %4276 = vmatpush1.bf16.msra.mxu0 0
      %4277 = vmatprep.subr.bf16.mxu0 0
      %4278 = vmatpush1.bf16.msra.mxu0 0
      %4279 = vmatprep.subr.bf16.mxu0 0
      %4280 = vmatpush1.bf16.msra.mxu0 0
      %4281 = vmatprep.subr.bf16.mxu0 0
      %4282 = vmatpush1.bf16.msra.mxu0 0
      %4283 = vmatprep.subr.bf16.mxu0 0
      %4284 = vmatpush1.bf16.msra.mxu0 0
      %4285 = vmatprep.mubr.bf16.mxu0 0
      %4286 = vmatmul.mubr.bf16.gmra.mrb[0].mxu0 %v4242
      %v4287 = vpop.f32.mrb[0].mxu0
      %v4288 = vadd.f32 0.0, %v4287
      %v4289 = vpop.f32.mrb[0].mxu0
      %v4290 = vpop.f32.mrb[0].mxu0
      %v4291 = vadd.f32 0.0, %v4290
      %v4292 = vpop.f32.mrb[0].mxu0
      %4293 = vmatprep.mubr.bf16.mxu0 0
      %4294 = vmatmul.mubr.bf16.gmra.mrb[0].mxu0 %v4245
      %v4295 = vpop.f32.mrb[0].mxu0
      %v4296 = vadd.f32 0.0, %v4295
      %v4297 = vpop.f32.mrb[0].mxu0
      %v4298 = vpop.f32.mrb[0].mxu0
      %v4299 = vadd.f32 0.0, %v4298
      %v4300 = vpop.f32.mrb[0].mxu0
      %4301 = vmatprep.mubr.bf16.mxu0 0
      %4302 = vmatmul.mubr.bf16.gmra.mrb[0].mxu0 %v4248
      %v4303 = vpop.f32.mrb[0].mxu0
      %v4304 = vadd.f32 0.0, %v4303
      %v4305 = vpop.f32.mrb[0].mxu0
      %v4306 = vpop.f32.mrb[0].mxu0
      %v4307 = vadd.f32 0.0, %v4306
      %v4308 = vpop.f32.mrb[0].mxu0
      %4309 = vmatprep.mubr.bf16.mxu0 0
      %4310 = vmatmul.mubr.bf16.gmra.mrb[0].mxu0 %v4251
      %v4311 = vpop.f32.mrb[0].mxu0
      %v4312 = vadd.f32 0.0, %v4311
      %v4313 = vpop.f32.mrb[0].mxu0
      %v4314 = vpop.f32.mrb[0].mxu0
      %v4315 = vadd.f32 0.0, %v4314
      %v4316 = vpop.f32.mrb[0].mxu0
      %4317 = vdwg.mxu0
      %v4318 = vadd.f32 %v815, %v4288
      %v4319 = vadd.f32 %v818, %v4291
      %v4320 = vadd.f32 %v823, %v4296
      %v4321 = vadd.f32 %v826, %v4299
      %v4322 = vadd.f32 %v831, %v4304
      %v4323 = vadd.f32 %v834, %v4307
      %v4324 = vadd.f32 %v839, %v4312
      %v4325 = vadd.f32 %v842, %v4315
      %v4326 = vmax.f32 %v4318, 0.0
      %v4327 = vmax.f32 %v4319, 0.0
      %v4328 = vmax.f32 %v4320, 0.0
      %v4329 = vmax.f32 %v4321, 0.0
      %v4330 = vmax.f32 %v4322, 0.0
      %v4331 = vmax.f32 %v4323, 0.0
      %v4332 = vmax.f32 %v4324, 0.0
      %v4333 = vmax.f32 %v4325, 0.0
      %v4334 = vpack.c.bf16 %v4327, %v4326
      %v4335 = vpack.c.bf16 %v4329, %v4328
      %v4336 = vpack.c.bf16 %v4331, %v4330
      %v4337 = vpack.c.bf16 %v4333, %v4332
      %v4339 = vsel %vm671, %v4334, 0
      %v4342 = vsel %vm671, %v4335, 0
      %v4345 = vsel %vm671, %v4336, 0
      %v4348 = vsel %vm671, %v4337, 0
      %4350 = vmatprep.subr.bf16.mxu0 0
      %4351 = vmatpush1.bf16.msra.mxu0 %v1210
      %4352 = vmatprep.subr.bf16.mxu0 0
      %4353 = vmatpush1.bf16.msra.mxu0 %v1211
      %4354 = vmatprep.subr.bf16.mxu0 0
      %4355 = vmatpush1.bf16.msra.mxu0 %v1212
      %4356 = vmatprep.subr.bf16.mxu0 0
      %4357 = vmatpush1.bf16.msra.mxu0 %v1213
      %4358 = vmatprep.subr.bf16.mxu0 0
      %4359 = vmatpush1.bf16.msra.mxu0 0
      %4360 = vmatprep.subr.bf16.mxu0 0
      %4361 = vmatpush1.bf16.msra.mxu0 0
      %4362 = vmatprep.subr.bf16.mxu0 0
      %4363 = vmatpush1.bf16.msra.mxu0 0
      %4364 = vmatprep.subr.bf16.mxu0 0
      %4365 = vmatpush1.bf16.msra.mxu0 0
      %4366 = vmatprep.subr.bf16.mxu0 0
      %4367 = vmatpush1.bf16.msra.mxu0 0
      %4368 = vmatprep.subr.bf16.mxu0 0
      %4369 = vmatpush1.bf16.msra.mxu0 0
      %4370 = vmatprep.subr.bf16.mxu0 0
      %4371 = vmatpush1.bf16.msra.mxu0 0
      %4372 = vmatprep.subr.bf16.mxu0 0
      %4373 = vmatpush1.bf16.msra.mxu0 0
      %4374 = vmatprep.subr.bf16.mxu0 0
      %4375 = vmatpush1.bf16.msra.mxu0 0
      %4376 = vmatprep.subr.bf16.mxu0 0
      %4377 = vmatpush1.bf16.msra.mxu0 0
      %4378 = vmatprep.subr.bf16.mxu0 0
      %4379 = vmatpush1.bf16.msra.mxu0 0
      %4380 = vmatprep.subr.bf16.mxu0 0
      %4381 = vmatpush1.bf16.msra.mxu0 0
      %4382 = vmatprep.mubr.bf16.mxu0 0
      %4383 = vmatmul.mubr.bf16.gmra.mrb[0].mxu0 %v4339
      %v4384 = vpop.f32.mrb[0].mxu0
      %v4385 = vadd.f32 %v849, %v4384
      %v4386 = vpop.f32.mrb[0].mxu0
      %v4387 = vpop.f32.mrb[0].mxu0
      %v4388 = vadd.f32 %v849, %v4387
      %v4389 = vpop.f32.mrb[0].mxu0
      %4390 = vmatprep.mubr.bf16.mxu0 0
      %4391 = vmatmul.mubr.bf16.gmra.mrb[0].mxu0 %v4342
      %v4392 = vpop.f32.mrb[0].mxu0
      %v4393 = vadd.f32 %v849, %v4392
      %v4394 = vpop.f32.mrb[0].mxu0
      %v4395 = vpop.f32.mrb[0].mxu0
      %v4396 = vadd.f32 %v849, %v4395
      %v4397 = vpop.f32.mrb[0].mxu0
      %4398 = vmatprep.mubr.bf16.mxu0 0
      %4399 = vmatmul.mubr.bf16.gmra.mrb[0].mxu0 %v4345
      %v4400 = vpop.f32.mrb[0].mxu0
      %v4401 = vadd.f32 %v849, %v4400
      %v4402 = vpop.f32.mrb[0].mxu0
      %v4403 = vpop.f32.mrb[0].mxu0
      %v4404 = vadd.f32 %v849, %v4403
      %v4405 = vpop.f32.mrb[0].mxu0
      %4406 = vmatprep.mubr.bf16.mxu0 0
      %4407 = vmatmul.mubr.bf16.gmra.mrb[0].mxu0 %v4348
      %v4408 = vpop.f32.mrb[0].mxu0
      %v4409 = vadd.f32 %v849, %v4408
      %v4410 = vpop.f32.mrb[0].mxu0
      %v4411 = vpop.f32.mrb[0].mxu0
      %v4412 = vadd.f32 %v849, %v4411
      %v4413 = vpop.f32.mrb[0].mxu0
      %4414 = vdwg.mxu0
      %v4415 = vmax.f32 %v4385, 0.0
      %v4416 = vmax.f32 %v4388, 0.0
      %v4417 = vmax.f32 %v4393, 0.0
      %v4418 = vmax.f32 %v4396, 0.0
      %v4419 = vmax.f32 %v4401, 0.0
      %v4420 = vmax.f32 %v4404, 0.0
      %v4421 = vmax.f32 %v4409, 0.0
      %v4422 = vmax.f32 %v4412, 0.0
      %v4423 = vpack.c.bf16 %v4416, %v4415
      %v4424 = vpack.c.bf16 %v4418, %v4417
      %v4425 = vpack.c.bf16 %v4420, %v4419
      %v4426 = vpack.c.bf16 %v4422, %v4421
      %v4428 = vsel %vm671, %v4423, 0
      %v4431 = vsel %vm671, %v4424, 0
      %v4434 = vsel %vm671, %v4425, 0
      %v4437 = vsel %vm671, %v4426, 0
      %4439 = vmatprep.subr.bf16.mxu0 0
      %4440 = vmatpush1.bf16.msra.mxu0 %v1323
      %4441 = vmatprep.subr.bf16.mxu0 0
      %4442 = vmatpush1.bf16.msra.mxu0 %v1324
      %4443 = vmatprep.subr.bf16.mxu0 0
      %4444 = vmatpush1.bf16.msra.mxu0 %v1325
      %4445 = vmatprep.subr.bf16.mxu0 0
      %4446 = vmatpush1.bf16.msra.mxu0 %v1326
      %4447 = vmatprep.subr.bf16.mxu0 0
      %4448 = vmatpush1.bf16.msra.mxu0 0
      %4449 = vmatprep.subr.bf16.mxu0 0
      %4450 = vmatpush1.bf16.msra.mxu0 0
      %4451 = vmatprep.subr.bf16.mxu0 0
      %4452 = vmatpush1.bf16.msra.mxu0 0
      %4453 = vmatprep.subr.bf16.mxu0 0
      %4454 = vmatpush1.bf16.msra.mxu0 0
      %4455 = vmatprep.subr.bf16.mxu0 0
      %4456 = vmatpush1.bf16.msra.mxu0 0
      %4457 = vmatprep.subr.bf16.mxu0 0
      %4458 = vmatpush1.bf16.msra.mxu0 0
      %4459 = vmatprep.subr.bf16.mxu0 0
      %4460 = vmatpush1.bf16.msra.mxu0 0
      %4461 = vmatprep.subr.bf16.mxu0 0
      %4462 = vmatpush1.bf16.msra.mxu0 0
      %4463 = vmatprep.subr.bf16.mxu0 0
      %4464 = vmatpush1.bf16.msra.mxu0 0
      %4465 = vmatprep.subr.bf16.mxu0 0
      %4466 = vmatpush1.bf16.msra.mxu0 0
      %4467 = vmatprep.subr.bf16.mxu0 0
      %4468 = vmatpush1.bf16.msra.mxu0 0
      %4469 = vmatprep.subr.bf16.mxu0 0
      %4470 = vmatpush1.bf16.msra.mxu0 0
      %4471 = vmatprep.mubr.bf16.mxu0 0
      %4472 = vmatmul.mubr.bf16.gmra.mrb[0].mxu0 %v4428
      %v4473 = vpop.f32.mrb[0].mxu0
      %v4474 = vadd.f32 %v855, %v4473
      %v4475 = vpop.f32.mrb[0].mxu0
      %v4476 = vpop.f32.mrb[0].mxu0
      %v4477 = vadd.f32 %v855, %v4476
      %v4478 = vpop.f32.mrb[0].mxu0
      %4479 = vmatprep.mubr.bf16.mxu0 0
      %4480 = vmatmul.mubr.bf16.gmra.mrb[0].mxu0 %v4431
      %v4481 = vpop.f32.mrb[0].mxu0
      %v4482 = vadd.f32 %v855, %v4481
      %v4483 = vpop.f32.mrb[0].mxu0
      %v4484 = vpop.f32.mrb[0].mxu0
      %v4485 = vadd.f32 %v855, %v4484
      %v4486 = vpop.f32.mrb[0].mxu0
      %4487 = vmatprep.mubr.bf16.mxu0 0
      %4488 = vmatmul.mubr.bf16.gmra.mrb[0].mxu0 %v4434
      %v4489 = vpop.f32.mrb[0].mxu0
      %v4490 = vadd.f32 %v855, %v4489
      %v4491 = vpop.f32.mrb[0].mxu0
      %v4492 = vpop.f32.mrb[0].mxu0
      %v4493 = vadd.f32 %v855, %v4492
      %v4494 = vpop.f32.mrb[0].mxu0
      %4495 = vmatprep.mubr.bf16.mxu0 0
      %4496 = vmatmul.mubr.bf16.gmra.mrb[0].mxu0 %v4437
      %v4497 = vpop.f32.mrb[0].mxu0
      %v4498 = vadd.f32 %v855, %v4497
      %v4499 = vpop.f32.mrb[0].mxu0
      %v4500 = vpop.f32.mrb[0].mxu0
      %v4501 = vadd.f32 %v855, %v4500
      %v4502 = vpop.f32.mrb[0].mxu0
      %4503 = vdwg.mxu0
      %v4504 = vmax.f32 %v4474, 0.0
      %v4505 = vmax.f32 %v4477, 0.0
      %v4506 = vmax.f32 %v4482, 0.0
      %v4507 = vmax.f32 %v4485, 0.0
      %v4508 = vmax.f32 %v4490, 0.0
      %v4509 = vmax.f32 %v4493, 0.0
      %v4510 = vmax.f32 %v4498, 0.0
      %v4511 = vmax.f32 %v4501, 0.0
      %v4512 = vmax.f32 %v3996, %v4504
      %v4513 = vmax.f32 %v3997, %v4505
      %v4514 = vmax.f32 %v3998, %v4506
      %v4515 = vmax.f32 %v3999, %v4507
      %v4516 = vmax.f32 %v4000, %v4508
      %v4517 = vmax.f32 %v4001, %v4509
      %v4518 = vmax.f32 %v4002, %v4510
      %v4519 = vmax.f32 %v4003, %v4511
      %v4520 = vsel %vm671, %v4076, inf
      %4521 = vmin.xlane.f32.xlu0 %v4520
      %v4522 = vpop.xlane.xlu0 %4521
      %v4523 = vsel %vm671, %v4077, inf
      %4524 = vmin.xlane.f32.xlu0 %v4523
      %v4525 = vpop.xlane.xlu0 %4524
      %v4526 = vsel %vm671, %v4078, inf
      %4527 = vmin.xlane.f32.xlu0 %v4526
      %v4528 = vpop.xlane.xlu0 %4527
      %v4529 = vsel %vm671, %v4079, inf
      %4530 = vmin.xlane.f32.xlu0 %v4529
      %v4531 = vpop.xlane.xlu0 %4530
      %v4532 = vsel %vm671, %v4080, inf
      %4533 = vmin.xlane.f32.xlu0 %v4532
      %v4534 = vpop.xlane.xlu0 %4533
      %v4535 = vsel %vm671, %v4081, inf
      %4536 = vmin.xlane.f32.xlu0 %v4535
      %v4537 = vpop.xlane.xlu0 %4536
      %v4538 = vsel %vm671, %v4082, inf
      %4539 = vmin.xlane.f32.xlu0 %v4538
      %v4540 = vpop.xlane.xlu0 %4539
      %v4541 = vsel %vm671, %v4083, inf
      %4542 = vmin.xlane.f32.xlu0 %v4541
      %v4543 = vpop.xlane.xlu0 %4542
      %vm4544 = vcmp.le.f32.partialorder %v4076, %v4522
      %vm4545 = vcmp.le.f32.partialorder %v4077, %v4525
      %vm4546 = vcmp.le.f32.partialorder %v4078, %v4528
      %vm4547 = vcmp.le.f32.partialorder %v4079, %v4531
      %vm4548 = vcmp.le.f32.partialorder %v4080, %v4534
      %vm4549 = vcmp.le.f32.partialorder %v4081, %v4537
      %vm4550 = vcmp.le.f32.partialorder %v4082, %v4540
      %vm4551 = vcmp.le.f32.partialorder %v4083, %v4543
      %v4552 = vsel %vm4544, %v753, 64.0
      %v4553 = vsel %vm4545, %v753, 64.0
      %v4554 = vsel %vm4546, %v753, 64.0
      %v4555 = vsel %vm4547, %v753, 64.0
      %v4556 = vsel %vm4548, %v753, 64.0
      %v4557 = vsel %vm4549, %v753, 64.0
      %v4558 = vsel %vm4550, %v753, 64.0
      %v4559 = vsel %vm4551, %v753, 64.0
      %v4560 = vsel %vm671, %v4552, inf
      %4561 = vmin.xlane.f32.xlu0 %v4560
      %v4562 = vpop.xlane.xlu0 %4561
      %v4563 = vsel %vm671, %v4553, inf
      %4564 = vmin.xlane.f32.xlu0 %v4563
      %v4565 = vpop.xlane.xlu0 %4564
      %v4566 = vsel %vm671, %v4554, inf
      %4567 = vmin.xlane.f32.xlu0 %v4566
      %v4568 = vpop.xlane.xlu0 %4567
      %v4569 = vsel %vm671, %v4555, inf
      %4570 = vmin.xlane.f32.xlu0 %v4569
      %v4571 = vpop.xlane.xlu0 %4570
      %v4572 = vsel %vm671, %v4556, inf
      %4573 = vmin.xlane.f32.xlu0 %v4572
      %v4574 = vpop.xlane.xlu0 %4573
      %v4575 = vsel %vm671, %v4557, inf
      %4576 = vmin.xlane.f32.xlu0 %v4575
      %v4577 = vpop.xlane.xlu0 %4576
      %v4578 = vsel %vm671, %v4558, inf
      %4579 = vmin.xlane.f32.xlu0 %v4578
      %v4580 = vpop.xlane.xlu0 %4579
      %v4581 = vsel %vm671, %v4559, inf
      %4582 = vmin.xlane.f32.xlu0 %v4581
      %v4583 = vpop.xlane.xlu0 %4582
      %vm4584 = vcmp.eq.f32.partialorder %v753, %v4562
      %vm4585 = vcmp.eq.f32.partialorder %v753, %v4565
      %vm4586 = vcmp.eq.f32.partialorder %v753, %v4568
      %vm4587 = vcmp.eq.f32.partialorder %v753, %v4571
      %vm4588 = vcmp.eq.f32.partialorder %v753, %v4574
      %vm4589 = vcmp.eq.f32.partialorder %v753, %v4577
      %vm4590 = vcmp.eq.f32.partialorder %v753, %v4580
      %vm4591 = vcmp.eq.f32.partialorder %v753, %v4583
      %v4592 = vsel %vm4584, 1, 0
      %v4593 = vsel %vm4585, 1, 0
      %v4594 = vsel %vm4586, 1, 0
      %v4595 = vsel %vm4587, 1, 0
      %v4596 = vsel %vm4588, 1, 0
      %v4597 = vsel %vm4589, 1, 0
      %v4598 = vsel %vm4590, 1, 0
      %v4599 = vsel %vm4591, 1, 0
      %v4600 = vcvt.s32.f32 %v4592
      %v4601 = vcvt.s32.f32 %v4593
      %v4602 = vcvt.s32.f32 %v4594
      %v4603 = vcvt.s32.f32 %v4595
      %v4604 = vcvt.s32.f32 %v4596
      %v4605 = vcvt.s32.f32 %v4597
      %v4606 = vcvt.s32.f32 %v4598
      %v4607 = vcvt.s32.f32 %v4599
      %v4609 = vsel %vm671, %v4600, 0
      %v4612 = vsel %vm671, %v4601, 0
      %v4615 = vsel %vm671, %v4602, 0
      %v4618 = vsel %vm671, %v4603, 0
      %v4621 = vsel %vm671, %v4604, 0
      %v4624 = vsel %vm671, %v4605, 0
      %v4627 = vsel %vm671, %v4606, 0
      %v4630 = vsel %vm671, %v4607, 0
      %4632 = vmatprep.subr.mxu0 0.0
      %4633 = vmatpush1.msra.mxu0 %v476
      %4634 = vmatprep.subr.mxu0 0.0
      %4635 = vmatpush1.msra.mxu0 %v477
      %4636 = vmatprep.subr.mxu0 0.0
      %4637 = vmatpush1.msra.mxu0 %v478
      %4638 = vmatprep.subr.mxu0 0.0
      %4639 = vmatpush1.msra.mxu0 %v479
      %4640 = vmatprep.subr.mxu0 0.0
      %4641 = vmatpush1.msra.mxu0 %v480
      %4642 = vmatprep.subr.mxu0 0.0
      %4643 = vmatpush1.msra.mxu0 %v481
      %4644 = vmatprep.subr.mxu0 0.0
      %4645 = vmatpush1.msra.mxu0 %v482
      %4646 = vmatprep.subr.mxu0 0.0
      %4647 = vmatpush1.msra.mxu0 %v483
      %4648 = vmatprep.subr.mxu0 0.0
      %4649 = vmatpush1.msra.mxu0 0.0
      %4650 = vmatprep.subr.mxu0 0.0
      %4651 = vmatpush1.msra.mxu0 0.0
      %4652 = vmatprep.subr.mxu0 0.0
      %4653 = vmatpush1.msra.mxu0 0.0
      %4654 = vmatprep.subr.mxu0 0.0
      %4655 = vmatpush1.msra.mxu0 0.0
      %4656 = vmatprep.subr.mxu0 0.0
      %4657 = vmatpush1.msra.mxu0 0.0
      %4658 = vmatprep.subr.mxu0 0.0
      %4659 = vmatpush1.msra.mxu0 0.0
      %4660 = vmatprep.subr.mxu0 0.0
      %4661 = vmatpush1.msra.mxu0 0.0
      %4662 = vmatprep.subr.mxu0 0.0
      %4663 = vmatpush1.msra.mxu0 0.0
      %4664 = vmatprep.subr.mxu0 0.0
      %4665 = vmatpush1.msra.mxu0 0.0
      %4666 = vmatprep.subr.mxu0 0.0
      %4667 = vmatpush1.msra.mxu0 0.0
      %4668 = vmatprep.subr.mxu0 0.0
      %4669 = vmatpush1.msra.mxu0 0.0
      %4670 = vmatprep.subr.mxu0 0.0
      %4671 = vmatpush1.msra.mxu0 0.0
      %4672 = vmatprep.subr.mxu0 0.0
      %4673 = vmatpush1.msra.mxu0 0.0
      %4674 = vmatprep.subr.mxu0 0.0
      %4675 = vmatpush1.msra.mxu0 0.0
      %4676 = vmatprep.subr.mxu0 0.0
      %4677 = vmatpush1.msra.mxu0 0.0
      %4678 = vmatprep.subr.mxu0 0.0
      %4679 = vmatpush1.msra.mxu0 0.0
      %4680 = vmatprep.subr.mxu0 0.0
      %4681 = vmatpush1.msra.mxu0 0.0
      %4682 = vmatprep.subr.mxu0 0.0
      %4683 = vmatpush1.msra.mxu0 0.0
      %4684 = vmatprep.subr.mxu0 0.0
      %4685 = vmatpush1.msra.mxu0 0.0
      %4686 = vmatprep.subr.mxu0 0.0
      %4687 = vmatpush1.msra.mxu0 0.0
      %4688 = vmatprep.subr.mxu0 0.0
      %4689 = vmatpush1.msra.mxu0 0.0
      %4690 = vmatprep.subr.mxu0 0.0
      %4691 = vmatpush1.msra.mxu0 0.0
      %4692 = vmatprep.subr.mxu0 0.0
      %4693 = vmatpush1.msra.mxu0 0.0
      %4694 = vmatprep.subr.mxu0 0.0
      %4695 = vmatpush1.msra.mxu0 0.0
      %4696 = vmatprep.mubr.f32.mxu0 0.0
      %4697 = vmatmul.mubr.f32.gmra.mrb[0].mxu0 %v4609
      %v4698 = vpop.f32.mrb[0].mxu0
      %v4699 = vadd.f32 0.0, %v4698
      %v4700 = vpop.f32.mrb[0].mxu0
      %4701 = vmatprep.mubr.f32.mxu0 0.0
      %4702 = vmatmul.mubr.f32.gmra.mrb[0].mxu0 %v4612
      %v4703 = vpop.f32.mrb[0].mxu0
      %v4704 = vadd.f32 0.0, %v4703
      %v4705 = vpop.f32.mrb[0].mxu0
      %4706 = vmatprep.mubr.f32.mxu0 0.0
      %4707 = vmatmul.mubr.f32.gmra.mrb[0].mxu0 %v4615
      %v4708 = vpop.f32.mrb[0].mxu0
      %v4709 = vadd.f32 0.0, %v4708
      %v4710 = vpop.f32.mrb[0].mxu0
      %4711 = vmatprep.mubr.f32.mxu0 0.0
      %4712 = vmatmul.mubr.f32.gmra.mrb[0].mxu0 %v4618
      %v4713 = vpop.f32.mrb[0].mxu0
      %v4714 = vadd.f32 0.0, %v4713
      %v4715 = vpop.f32.mrb[0].mxu0
      %4716 = vmatprep.mubr.f32.mxu0 0.0
      %4717 = vmatmul.mubr.f32.gmra.mrb[0].mxu0 %v4621
      %v4718 = vpop.f32.mrb[0].mxu0
      %v4719 = vadd.f32 0.0, %v4718
      %v4720 = vpop.f32.mrb[0].mxu0
      %4721 = vmatprep.mubr.f32.mxu0 0.0
      %4722 = vmatmul.mubr.f32.gmra.mrb[0].mxu0 %v4624
      %v4723 = vpop.f32.mrb[0].mxu0
      %v4724 = vadd.f32 0.0, %v4723
      %v4725 = vpop.f32.mrb[0].mxu0
      %4726 = vmatprep.mubr.f32.mxu0 0.0
      %4727 = vmatmul.mubr.f32.gmra.mrb[0].mxu0 %v4627
      %v4728 = vpop.f32.mrb[0].mxu0
      %v4729 = vadd.f32 0.0, %v4728
      %v4730 = vpop.f32.mrb[0].mxu0
      %4731 = vmatprep.mubr.f32.mxu0 0.0
      %4732 = vmatmul.mubr.f32.gmra.mrb[0].mxu0 %v4630
      %v4733 = vpop.f32.mrb[0].mxu0
      %v4734 = vadd.f32 0.0, %v4733
      %v4735 = vpop.f32.mrb[0].mxu0
      %4736 = vdwg.mxu0
      %v4737 = vsub.f32 %v4699, %v476
      %v4738 = vsub.f32 %v4704, %v477
      %v4739 = vsub.f32 %v4709, %v478
      %v4740 = vsub.f32 %v4714, %v479
      %v4741 = vsub.f32 %v4719, %v480
      %v4742 = vsub.f32 %v4724, %v481
      %v4743 = vsub.f32 %v4729, %v482
      %v4744 = vsub.f32 %v4734, %v483
      %v4745 = vpack.c.bf16 %v4738, %v4737
      %v4746 = vpack.c.bf16 %v4740, %v4739
      %v4747 = vpack.c.bf16 %v4742, %v4741
      %v4748 = vpack.c.bf16 %v4744, %v4743
      %v4750 = vsel %vm514, %v4745, 0
      %v4753 = vsel %vm514, %v4746, 0
      %v4756 = vsel %vm514, %v4747, 0
      %v4759 = vsel %vm514, %v4748, 0
      %4761 = vmatprep.subr.bf16.mxu0 0
      %4762 = vmatpush1.bf16.msra.mxu0 %v1107
      %4763 = vmatprep.subr.bf16.mxu0 0
      %4764 = vmatpush1.bf16.msra.mxu0 0
      %4765 = vmatprep.subr.bf16.mxu0 0
      %4766 = vmatpush1.bf16.msra.mxu0 0
      %4767 = vmatprep.subr.bf16.mxu0 0
      %4768 = vmatpush1.bf16.msra.mxu0 0
      %4769 = vmatprep.subr.bf16.mxu0 0
      %4770 = vmatpush1.bf16.msra.mxu0 0
      %4771 = vmatprep.subr.bf16.mxu0 0
      %4772 = vmatpush1.bf16.msra.mxu0 0
      %4773 = vmatprep.subr.bf16.mxu0 0
      %4774 = vmatpush1.bf16.msra.mxu0 0
      %4775 = vmatprep.subr.bf16.mxu0 0
      %4776 = vmatpush1.bf16.msra.mxu0 0
      %4777 = vmatprep.subr.bf16.mxu0 0
      %4778 = vmatpush1.bf16.msra.mxu0 0
      %4779 = vmatprep.subr.bf16.mxu0 0
      %4780 = vmatpush1.bf16.msra.mxu0 0
      %4781 = vmatprep.subr.bf16.mxu0 0
      %4782 = vmatpush1.bf16.msra.mxu0 0
      %4783 = vmatprep.subr.bf16.mxu0 0
      %4784 = vmatpush1.bf16.msra.mxu0 0
      %4785 = vmatprep.subr.bf16.mxu0 0
      %4786 = vmatpush1.bf16.msra.mxu0 0
      %4787 = vmatprep.subr.bf16.mxu0 0
      %4788 = vmatpush1.bf16.msra.mxu0 0
      %4789 = vmatprep.subr.bf16.mxu0 0
      %4790 = vmatpush1.bf16.msra.mxu0 0
      %4791 = vmatprep.subr.bf16.mxu0 0
      %4792 = vmatpush1.bf16.msra.mxu0 0
      %4793 = vmatprep.mubr.bf16.mxu0 0
      %4794 = vmatmul.mubr.bf16.gmra.mrb[0].mxu0 %v4750
      %v4795 = vpop.f32.mrb[0].mxu0
      %v4796 = vadd.f32 0.0, %v4795
      %v4797 = vpop.f32.mrb[0].mxu0
      %v4798 = vpop.f32.mrb[0].mxu0
      %v4799 = vadd.f32 0.0, %v4798
      %v4800 = vpop.f32.mrb[0].mxu0
      %4801 = vmatprep.mubr.bf16.mxu0 0
      %4802 = vmatmul.mubr.bf16.gmra.mrb[0].mxu0 %v4753
      %v4803 = vpop.f32.mrb[0].mxu0
      %v4804 = vadd.f32 0.0, %v4803
      %v4805 = vpop.f32.mrb[0].mxu0
      %v4806 = vpop.f32.mrb[0].mxu0
      %v4807 = vadd.f32 0.0, %v4806
      %v4808 = vpop.f32.mrb[0].mxu0
      %4809 = vmatprep.mubr.bf16.mxu0 0
      %4810 = vmatmul.mubr.bf16.gmra.mrb[0].mxu0 %v4756
      %v4811 = vpop.f32.mrb[0].mxu0
      %v4812 = vadd.f32 0.0, %v4811
      %v4813 = vpop.f32.mrb[0].mxu0
      %v4814 = vpop.f32.mrb[0].mxu0
      %v4815 = vadd.f32 0.0, %v4814
      %v4816 = vpop.f32.mrb[0].mxu0
      %4817 = vmatprep.mubr.bf16.mxu0 0
      %4818 = vmatmul.mubr.bf16.gmra.mrb[0].mxu0 %v4759
      %v4819 = vpop.f32.mrb[0].mxu0
      %v4820 = vadd.f32 0.0, %v4819
      %v4821 = vpop.f32.mrb[0].mxu0
      %v4822 = vpop.f32.mrb[0].mxu0
      %v4823 = vadd.f32 0.0, %v4822
      %v4824 = vpop.f32.mrb[0].mxu0
      %4825 = vdwg.mxu0
      %v4826 = vadd.f32 %v815, %v4796
      %v4827 = vadd.f32 %v818, %v4799
      %v4828 = vadd.f32 %v823, %v4804
      %v4829 = vadd.f32 %v826, %v4807
      %v4830 = vadd.f32 %v831, %v4812
      %v4831 = vadd.f32 %v834, %v4815
      %v4832 = vadd.f32 %v839, %v4820
      %v4833 = vadd.f32 %v842, %v4823
      %v4834 = vmax.f32 %v4826, 0.0
      %v4835 = vmax.f32 %v4827, 0.0
      %v4836 = vmax.f32 %v4828, 0.0
      %v4837 = vmax.f32 %v4829, 0.0
      %v4838 = vmax.f32 %v4830, 0.0
      %v4839 = vmax.f32 %v4831, 0.0
      %v4840 = vmax.f32 %v4832, 0.0
      %v4841 = vmax.f32 %v4833, 0.0
      %v4842 = vpack.c.bf16 %v4835, %v4834
      %v4843 = vpack.c.bf16 %v4837, %v4836
      %v4844 = vpack.c.bf16 %v4839, %v4838
      %v4845 = vpack.c.bf16 %v4841, %v4840
      %v4847 = vsel %vm671, %v4842, 0
      %v4850 = vsel %vm671, %v4843, 0
      %v4853 = vsel %vm671, %v4844, 0
      %v4856 = vsel %vm671, %v4845, 0
      %4858 = vmatprep.subr.bf16.mxu0 0
      %4859 = vmatpush1.bf16.msra.mxu0 %v1210
      %4860 = vmatprep.subr.bf16.mxu0 0
      %4861 = vmatpush1.bf16.msra.mxu0 %v1211
      %4862 = vmatprep.subr.bf16.mxu0 0
      %4863 = vmatpush1.bf16.msra.mxu0 %v1212
      %4864 = vmatprep.subr.bf16.mxu0 0
      %4865 = vmatpush1.bf16.msra.mxu0 %v1213
      %4866 = vmatprep.subr.bf16.mxu0 0
      %4867 = vmatpush1.bf16.msra.mxu0 0
      %4868 = vmatprep.subr.bf16.mxu0 0
      %4869 = vmatpush1.bf16.msra.mxu0 0
      %4870 = vmatprep.subr.bf16.mxu0 0
      %4871 = vmatpush1.bf16.msra.mxu0 0
      %4872 = vmatprep.subr.bf16.mxu0 0
      %4873 = vmatpush1.bf16.msra.mxu0 0
      %4874 = vmatprep.subr.bf16.mxu0 0
      %4875 = vmatpush1.bf16.msra.mxu0 0
      %4876 = vmatprep.subr.bf16.mxu0 0
      %4877 = vmatpush1.bf16.msra.mxu0 0
      %4878 = vmatprep.subr.bf16.mxu0 0
      %4879 = vmatpush1.bf16.msra.mxu0 0
      %4880 = vmatprep.subr.bf16.mxu0 0
      %4881 = vmatpush1.bf16.msra.mxu0 0
      %4882 = vmatprep.subr.bf16.mxu0 0
      %4883 = vmatpush1.bf16.msra.mxu0 0
      %4884 = vmatprep.subr.bf16.mxu0 0
      %4885 = vmatpush1.bf16.msra.mxu0 0
      %4886 = vmatprep.subr.bf16.mxu0 0
      %4887 = vmatpush1.bf16.msra.mxu0 0
      %4888 = vmatprep.subr.bf16.mxu0 0
      %4889 = vmatpush1.bf16.msra.mxu0 0
      %4890 = vmatprep.mubr.bf16.mxu0 0
      %4891 = vmatmul.mubr.bf16.gmra.mrb[0].mxu0 %v4847
      %v4892 = vpop.f32.mrb[0].mxu0
      %v4893 = vadd.f32 %v849, %v4892
      %v4894 = vpop.f32.mrb[0].mxu0
      %v4895 = vpop.f32.mrb[0].mxu0
      %v4896 = vadd.f32 %v849, %v4895
      %v4897 = vpop.f32.mrb[0].mxu0
      %4898 = vmatprep.mubr.bf16.mxu0 0
      %4899 = vmatmul.mubr.bf16.gmra.mrb[0].mxu0 %v4850
      %v4900 = vpop.f32.mrb[0].mxu0
      %v4901 = vadd.f32 %v849, %v4900
      %v4902 = vpop.f32.mrb[0].mxu0
      %v4903 = vpop.f32.mrb[0].mxu0
      %v4904 = vadd.f32 %v849, %v4903
      %v4905 = vpop.f32.mrb[0].mxu0
      %4906 = vmatprep.mubr.bf16.mxu0 0
      %4907 = vmatmul.mubr.bf16.gmra.mrb[0].mxu0 %v4853
      %v4908 = vpop.f32.mrb[0].mxu0
      %v4909 = vadd.f32 %v849, %v4908
      %v4910 = vpop.f32.mrb[0].mxu0
      %v4911 = vpop.f32.mrb[0].mxu0
      %v4912 = vadd.f32 %v849, %v4911
      %v4913 = vpop.f32.mrb[0].mxu0
      %4914 = vmatprep.mubr.bf16.mxu0 0
      %4915 = vmatmul.mubr.bf16.gmra.mrb[0].mxu0 %v4856
      %v4916 = vpop.f32.mrb[0].mxu0
      %v4917 = vadd.f32 %v849, %v4916
      %v4918 = vpop.f32.mrb[0].mxu0
      %v4919 = vpop.f32.mrb[0].mxu0
      %v4920 = vadd.f32 %v849, %v4919
      %v4921 = vpop.f32.mrb[0].mxu0
      %4922 = vdwg.mxu0
      %v4923 = vmax.f32 %v4893, 0.0
      %v4924 = vmax.f32 %v4896, 0.0
      %v4925 = vmax.f32 %v4901, 0.0
      %v4926 = vmax.f32 %v4904, 0.0
      %v4927 = vmax.f32 %v4909, 0.0
      %v4928 = vmax.f32 %v4912, 0.0
      %v4929 = vmax.f32 %v4917, 0.0
      %v4930 = vmax.f32 %v4920, 0.0
      %v4931 = vpack.c.bf16 %v4924, %v4923
      %v4932 = vpack.c.bf16 %v4926, %v4925
      %v4933 = vpack.c.bf16 %v4928, %v4927
      %v4934 = vpack.c.bf16 %v4930, %v4929
      %v4936 = vsel %vm671, %v4931, 0
      %v4939 = vsel %vm671, %v4932, 0
      %v4942 = vsel %vm671, %v4933, 0
      %v4945 = vsel %vm671, %v4934, 0
      %4947 = vmatprep.subr.bf16.mxu0 0
      %4948 = vmatpush1.bf16.msra.mxu0 %v1323
      %4949 = vmatprep.subr.bf16.mxu0 0
      %4950 = vmatpush1.bf16.msra.mxu0 %v1324
      %4951 = vmatprep.subr.bf16.mxu0 0
      %4952 = vmatpush1.bf16.msra.mxu0 %v1325
      %4953 = vmatprep.subr.bf16.mxu0 0
      %4954 = vmatpush1.bf16.msra.mxu0 %v1326
      %4955 = vmatprep.subr.bf16.mxu0 0
      %4956 = vmatpush1.bf16.msra.mxu0 0
      %4957 = vmatprep.subr.bf16.mxu0 0
      %4958 = vmatpush1.bf16.msra.mxu0 0
      %4959 = vmatprep.subr.bf16.mxu0 0
      %4960 = vmatpush1.bf16.msra.mxu0 0
      %4961 = vmatprep.subr.bf16.mxu0 0
      %4962 = vmatpush1.bf16.msra.mxu0 0
      %4963 = vmatprep.subr.bf16.mxu0 0
      %4964 = vmatpush1.bf16.msra.mxu0 0
      %4965 = vmatprep.subr.bf16.mxu0 0
      %4966 = vmatpush1.bf16.msra.mxu0 0
      %4967 = vmatprep.subr.bf16.mxu0 0
      %4968 = vmatpush1.bf16.msra.mxu0 0
      %4969 = vmatprep.subr.bf16.mxu0 0
      %4970 = vmatpush1.bf16.msra.mxu0 0
      %4971 = vmatprep.subr.bf16.mxu0 0
      %4972 = vmatpush1.bf16.msra.mxu0 0
      %4973 = vmatprep.subr.bf16.mxu0 0
      %4974 = vmatpush1.bf16.msra.mxu0 0
      %4975 = vmatprep.subr.bf16.mxu0 0
      %4976 = vmatpush1.bf16.msra.mxu0 0
      %4977 = vmatprep.subr.bf16.mxu0 0
      %4978 = vmatpush1.bf16.msra.mxu0 0
      %4979 = vmatprep.mubr.bf16.mxu0 0
      %4980 = vmatmul.mubr.bf16.gmra.mrb[0].mxu0 %v4936
      %v4981 = vpop.f32.mrb[0].mxu0
      %v4982 = vadd.f32 %v855, %v4981
      %v4983 = vpop.f32.mrb[0].mxu0
      %v4984 = vpop.f32.mrb[0].mxu0
      %v4985 = vadd.f32 %v855, %v4984
      %v4986 = vpop.f32.mrb[0].mxu0
      %4987 = vmatprep.mubr.bf16.mxu0 0
      %4988 = vmatmul.mubr.bf16.gmra.mrb[0].mxu0 %v4939
      %v4989 = vpop.f32.mrb[0].mxu0
      %v4990 = vadd.f32 %v855, %v4989
      %v4991 = vpop.f32.mrb[0].mxu0
      %v4992 = vpop.f32.mrb[0].mxu0
      %v4993 = vadd.f32 %v855, %v4992
      %v4994 = vpop.f32.mrb[0].mxu0
      %4995 = vmatprep.mubr.bf16.mxu0 0
      %4996 = vmatmul.mubr.bf16.gmra.mrb[0].mxu0 %v4942
      %v4997 = vpop.f32.mrb[0].mxu0
      %v4998 = vadd.f32 %v855, %v4997
      %v4999 = vpop.f32.mrb[0].mxu0
      %v5000 = vpop.f32.mrb[0].mxu0
      %v5001 = vadd.f32 %v855, %v5000
      %v5002 = vpop.f32.mrb[0].mxu0
      %5003 = vmatprep.mubr.bf16.mxu0 0
      %5004 = vmatmul.mubr.bf16.gmra.mrb[0].mxu0 %v4945
      %v5005 = vpop.f32.mrb[0].mxu0
      %v5006 = vadd.f32 %v855, %v5005
      %v5007 = vpop.f32.mrb[0].mxu0
      %v5008 = vpop.f32.mrb[0].mxu0
      %v5009 = vadd.f32 %v855, %v5008
      %v5010 = vpop.f32.mrb[0].mxu0
      %5011 = vdwg.mxu0
      %v5012 = vmax.f32 %v4982, 0.0
      %v5013 = vmax.f32 %v4985, 0.0
      %v5014 = vmax.f32 %v4990, 0.0
      %v5015 = vmax.f32 %v4993, 0.0
      %v5016 = vmax.f32 %v4998, 0.0
      %v5017 = vmax.f32 %v5001, 0.0
      %v5018 = vmax.f32 %v5006, 0.0
      %v5019 = vmax.f32 %v5009, 0.0
      %v5020 = vmax.f32 %v4512, %v5012
      %v5021 = vmax.f32 %v4513, %v5013
      %v5022 = vmax.f32 %v4514, %v5014
      %v5023 = vmax.f32 %v4515, %v5015
      %v5024 = vmax.f32 %v4516, %v5016
      %v5025 = vmax.f32 %v4517, %v5017
      %v5026 = vmax.f32 %v4518, %v5018
      %v5027 = vmax.f32 %v4519, %v5019
      %v5028 = vld [vmem:[%s10] sm:$0xff]
      %v5029 = vld [vmem:[%s10 + $0x8] sm:$0xff]
      %v5030 = vld [vmem:[%s10 + $0x10] sm:$0xff]
      %v5031 = vld [vmem:[%s10 + $0x18] sm:$0xff]
      %v5032 = vld [vmem:[%s10 + $0x20] sm:$0xff]
      %v5033 = vld [vmem:[%s10 + $0x28] sm:$0xff]
      %v5034 = vld [vmem:[%s10 + $0x30] sm:$0xff]
      %v5035 = vld [vmem:[%s10 + $0x38] sm:$0xff]
      %v5036 = vld [vmem:[%s11] sm:$0xff]
      %v5037 = vld [vmem:[%s11 + $0x8] sm:$0xff]
      %v5038 = vld [vmem:[%s11 + $0x10] sm:$0xff]
      %v5039 = vld [vmem:[%s11 + $0x18] sm:$0xff]
      %v5040 = vld [vmem:[%s11 + $0x20] sm:$0xff]
      %v5041 = vld [vmem:[%s11 + $0x28] sm:$0xff]
      %v5042 = vld [vmem:[%s11 + $0x30] sm:$0xff]
      %v5043 = vld [vmem:[%s11 + $0x38] sm:$0xff]
      %v5044 = vld [vmem:[%s12] sm:$0x3]
      %v5046 = vsel %vm671, %v5020, 0
      %v5049 = vsel %vm671, %v5021, 0
      %v5052 = vsel %vm671, %v5022, 0
      %v5055 = vsel %vm671, %v5023, 0
      %v5058 = vsel %vm671, %v5024, 0
      %v5061 = vsel %vm671, %v5025, 0
      %v5064 = vsel %vm671, %v5026, 0
      %v5067 = vsel %vm671, %v5027, 0
      %5069 = vmatprep.subr.mxu0 0.0
      %5070 = vmatpush1.xpose.msra.mxu0 %v5046
      %5071 = vmatprep.subr.mxu0 0.0
      %5072 = vmatpush1.xpose.msra.mxu0 %v5049
      %5073 = vmatprep.subr.mxu0 0.0
      %5074 = vmatpush1.xpose.msra.mxu0 %v5052
      %5075 = vmatprep.subr.mxu0 0.0
      %5076 = vmatpush1.xpose.msra.mxu0 %v5055
      %5077 = vmatprep.subr.mxu0 0.0
      %5078 = vmatpush1.xpose.msra.mxu0 %v5058
      %5079 = vmatprep.subr.mxu0 0.0
      %5080 = vmatpush1.xpose.msra.mxu0 %v5061
      %5081 = vmatprep.subr.mxu0 0.0
      %5082 = vmatpush1.xpose.msra.mxu0 %v5064
      %5083 = vmatprep.subr.mxu0 0.0
      %5084 = vmatpush1.xpose.msra.mxu0 %v5067
      %5085 = vmatprep.subr.mxu0 0.0
      %5086 = vmatpush1.xpose.msra.mxu0 0.0
      %5087 = vmatprep.subr.mxu0 0.0
      %5088 = vmatpush1.xpose.msra.mxu0 0.0
      %5089 = vmatprep.subr.mxu0 0.0
      %5090 = vmatpush1.xpose.msra.mxu0 0.0
      %5091 = vmatprep.subr.mxu0 0.0
      %5092 = vmatpush1.xpose.msra.mxu0 0.0
      %5093 = vmatprep.subr.mxu0 0.0
      %5094 = vmatpush1.xpose.msra.mxu0 0.0
      %5095 = vmatprep.subr.mxu0 0.0
      %5096 = vmatpush1.xpose.msra.mxu0 0.0
      %5097 = vmatprep.subr.mxu0 0.0
      %5098 = vmatpush1.xpose.msra.mxu0 0.0
      %5099 = vmatprep.subr.mxu0 0.0
      %5100 = vmatpush1.xpose.msra.mxu0 0.0
      %5101 = vmatprep.subr.mxu0 0.0
      %5102 = vmatpush1.xpose.msra.mxu0 0.0
      %5103 = vmatprep.subr.mxu0 0.0
      %5104 = vmatpush1.xpose.msra.mxu0 0.0
      %5105 = vmatprep.subr.mxu0 0.0
      %5106 = vmatpush1.xpose.msra.mxu0 0.0
      %5107 = vmatprep.subr.mxu0 0.0
      %5108 = vmatpush1.xpose.msra.mxu0 0.0
      %5109 = vmatprep.subr.mxu0 0.0
      %5110 = vmatpush1.xpose.msra.mxu0 0.0
      %5111 = vmatprep.subr.mxu0 0.0
      %5112 = vmatpush1.xpose.msra.mxu0 0.0
      %5113 = vmatprep.subr.mxu0 0.0
      %5114 = vmatpush1.xpose.msra.mxu0 0.0
      %5115 = vmatprep.subr.mxu0 0.0
      %5116 = vmatpush1.xpose.msra.mxu0 0.0
      %5117 = vmatprep.subr.mxu0 0.0
      %5118 = vmatpush1.xpose.msra.mxu0 0.0
      %5119 = vmatprep.subr.mxu0 0.0
      %5120 = vmatpush1.xpose.msra.mxu0 0.0
      %5121 = vmatprep.subr.mxu0 0.0
      %5122 = vmatpush1.xpose.msra.mxu0 0.0
      %5123 = vmatprep.subr.mxu0 0.0
      %5124 = vmatpush1.xpose.msra.mxu0 0.0
      %5125 = vmatprep.subr.mxu0 0.0
      %5126 = vmatpush1.xpose.msra.mxu0 0.0
      %5127 = vmatprep.subr.mxu0 0.0
      %5128 = vmatpush1.xpose.msra.mxu0 0.0
      %5129 = vmatprep.subr.mxu0 0.0
      %5130 = vmatpush1.xpose.msra.mxu0 0.0
      %5131 = vmatprep.subr.mxu0 0.0
      %5132 = vmatpush1.xpose.msra.mxu0 0.0
      %5133 = vmatprep.mubr.f32.mxu0 0.0
      %5134 = vmatmul.mubr.f32.gmra.mrb[0].mxu0 %v5046
      %v5135 = vpop.f32.mrb[0].mxu0
      %v5136 = vadd.f32 0.0, %v5135
      %v5137 = vpop.f32.mrb[0].mxu0
      %5138 = vmatprep.mubr.f32.mxu0 0.0
      %5139 = vmatmul.mubr.f32.gmra.mrb[0].mxu0 %v5049
      %v5140 = vpop.f32.mrb[0].mxu0
      %v5141 = vadd.f32 0.0, %v5140
      %v5142 = vpop.f32.mrb[0].mxu0
      %5143 = vmatprep.mubr.f32.mxu0 0.0
      %5144 = vmatmul.mubr.f32.gmra.mrb[0].mxu0 %v5052
      %v5145 = vpop.f32.mrb[0].mxu0
      %v5146 = vadd.f32 0.0, %v5145
      %v5147 = vpop.f32.mrb[0].mxu0
      %5148 = vmatprep.mubr.f32.mxu0 0.0
      %5149 = vmatmul.mubr.f32.gmra.mrb[0].mxu0 %v5055
      %v5150 = vpop.f32.mrb[0].mxu0
      %v5151 = vadd.f32 0.0, %v5150
      %v5152 = vpop.f32.mrb[0].mxu0
      %5153 = vmatprep.mubr.f32.mxu0 0.0
      %5154 = vmatmul.mubr.f32.gmra.mrb[0].mxu0 %v5058
      %v5155 = vpop.f32.mrb[0].mxu0
      %v5156 = vadd.f32 0.0, %v5155
      %v5157 = vpop.f32.mrb[0].mxu0
      %5158 = vmatprep.mubr.f32.mxu0 0.0
      %5159 = vmatmul.mubr.f32.gmra.mrb[0].mxu0 %v5061
      %v5160 = vpop.f32.mrb[0].mxu0
      %v5161 = vadd.f32 0.0, %v5160
      %v5162 = vpop.f32.mrb[0].mxu0
      %5163 = vmatprep.mubr.f32.mxu0 0.0
      %5164 = vmatmul.mubr.f32.gmra.mrb[0].mxu0 %v5064
      %v5165 = vpop.f32.mrb[0].mxu0
      %v5166 = vadd.f32 0.0, %v5165
      %v5167 = vpop.f32.mrb[0].mxu0
      %5168 = vmatprep.mubr.f32.mxu0 0.0
      %5169 = vmatmul.mubr.f32.gmra.mrb[0].mxu0 %v5067
      %v5170 = vpop.f32.mrb[0].mxu0
      %v5171 = vadd.f32 0.0, %v5170
      %v5172 = vpop.f32.mrb[0].mxu0
      %5173 = vdwg.mxu0
      %v5174 = vsel %vm655, %v5136, 0.0
      %v5175 = vsel %vm656, %v5141, 0.0
      %v5176 = vsel %vm657, %v5146, 0.0
      %v5177 = vsel %vm658, %v5151, 0.0
      %v5178 = vsel %vm659, %v5156, 0.0
      %v5179 = vsel %vm660, %v5161, 0.0
      %v5180 = vsel %vm661, %v5166, 0.0
      %v5181 = vsel %vm662, %v5171, 0.0
      %v5182 = vsel %vm671, %v5174, 0.0
      %v5183 = vsel %vm671, %v5175, 0.0
      %v5184 = vadd.f32 %v5182, %v5183
      %v5185 = vsel %vm671, %v5176, 0.0
      %v5186 = vadd.f32 %v5184, %v5185
      %v5187 = vsel %vm671, %v5177, 0.0
      %v5188 = vadd.f32 %v5186, %v5187
      %v5189 = vsel %vm671, %v5178, 0.0
      %v5190 = vadd.f32 %v5188, %v5189
      %v5191 = vsel %vm671, %v5179, 0.0
      %v5192 = vadd.f32 %v5190, %v5191
      %v5193 = vsel %vm671, %v5180, 0.0
      %v5194 = vadd.f32 %v5192, %v5193
      %v5195 = vsel %vm671, %v5181, 0.0
      %v5196 = vadd.f32 %v5194, %v5195
      %v5197 = vrot.slane %v5196, 4
      %v5198 = vadd.f32 %v5196, %v5197
      %v5199 = vrot.slane %v5198, 2
      %v5200 = vadd.f32 %v5198, %v5199
      %v5201 = vrot.slane %v5200, 1
      %v5202 = vadd.f32 %v5200, %v5201
      %v5203 = vmul.f32 %v5136, 2.0
      %v5204 = vmul.f32 %v5141, 2.0
      %v5205 = vmul.f32 %v5146, 2.0
      %v5206 = vmul.f32 %v5151, 2.0
      %v5207 = vmul.f32 %v5156, 2.0
      %v5208 = vmul.f32 %v5161, 2.0
      %v5209 = vmul.f32 %v5166, 2.0
      %v5210 = vmul.f32 %v5171, 2.0
      %v5211 = vsub.f32 %v5202, %v5203
      %v5212 = vsub.f32 %v5202, %v5204
      %v5213 = vsub.f32 %v5202, %v5205
      %v5214 = vsub.f32 %v5202, %v5206
      %v5215 = vsub.f32 %v5202, %v5207
      %v5216 = vsub.f32 %v5202, %v5208
      %v5217 = vsub.f32 %v5202, %v5209
      %v5218 = vsub.f32 %v5202, %v5210
      %v5219 = vsel %vm737, %v5211, 1e+30
      %v5220 = vsel %vm738, %v5212, 1e+30
      %v5221 = vsel %vm739, %v5213, 1e+30
      %v5222 = vsel %vm740, %v5214, 1e+30
      %v5223 = vsel %vm741, %v5215, 1e+30
      %v5224 = vsel %vm742, %v5216, 1e+30
      %v5225 = vsel %vm743, %v5217, 1e+30
      %v5226 = vsel %vm744, %v5218, 1e+30
      %v5227 = vpack.c.bf16 %v5021, %v5020
      %v5228 = vpack.c.bf16 %v5023, %v5022
      %v5229 = vpack.c.bf16 %v5025, %v5024
      %v5230 = vpack.c.bf16 %v5027, %v5026
      %v5232 = vlaneseq
      %v5233 = vshrl.u32 %v5232, 7
      %v5234 = vsub.s32 0, %v5233
      %v5235 = vrot.slane %v5044, %v5234
      %v5236 = vlaneseq
      %v5237 = vshrl.u32 %v5236, 7
      %v5238 = vsub.s32 1, %v5237
      %v5239 = vrot.slane %v5044, %v5238
      %v5250 = vunpack.c.l.b16 %v5028
      %v5251 = vunpack.c.h.b16 %v5028
      %v5252 = vunpack.c.l.b16 %v5029
      %v5253 = vunpack.c.h.b16 %v5029
      %v5254 = vunpack.c.l.b16 %v5030
      %v5255 = vunpack.c.h.b16 %v5030
      %v5256 = vunpack.c.l.b16 %v5031
      %v5257 = vunpack.c.h.b16 %v5031
      %v5258 = vunpack.c.l.b16 %v5032
      %v5259 = vunpack.c.h.b16 %v5032
      %v5260 = vunpack.c.l.b16 %v5033
      %v5261 = vunpack.c.h.b16 %v5033
      %v5262 = vunpack.c.l.b16 %v5034
      %v5263 = vunpack.c.h.b16 %v5034
      %v5264 = vunpack.c.l.b16 %v5035
      %v5265 = vunpack.c.h.b16 %v5035
      %v5266 = vpack.c.b16 %v5252, %v5250
      %v5267 = vpack.c.b16 %v5253, %v5251
      %v5268 = vpack.c.b16 %v5256, %v5254
      %v5269 = vpack.c.b16 %v5257, %v5255
      %v5270 = vpack.c.b16 %v5260, %v5258
      %v5271 = vpack.c.b16 %v5261, %v5259
      %v5272 = vpack.c.b16 %v5264, %v5262
      %v5273 = vpack.c.b16 %v5265, %v5263
      %v5283 = vsel %vm671, %v5227, 0
      %v5286 = vsel %vm671, %v5228, 0
      %v5289 = vsel %vm671, %v5229, 0
      %v5292 = vsel %vm671, %v5230, 0
      %5294 = vmatprep.subr.bf16.mxu0 %v5267
      %5295 = vmatpush1.bf16.msra.mxu0 %v5266
      %5296 = vmatprep.subr.bf16.mxu0 %v5269
      %5297 = vmatpush1.bf16.msra.mxu0 %v5268
      %5298 = vmatprep.subr.bf16.mxu0 %v5271
      %5299 = vmatpush1.bf16.msra.mxu0 %v5270
      %5300 = vmatprep.subr.bf16.mxu0 %v5273
      %5301 = vmatpush1.bf16.msra.mxu0 %v5272
      %5302 = vmatprep.subr.bf16.mxu0 0
      %5303 = vmatpush1.bf16.msra.mxu0 0
      %5304 = vmatprep.subr.bf16.mxu0 0
      %5305 = vmatpush1.bf16.msra.mxu0 0
      %5306 = vmatprep.subr.bf16.mxu0 0
      %5307 = vmatpush1.bf16.msra.mxu0 0
      %5308 = vmatprep.subr.bf16.mxu0 0
      %5309 = vmatpush1.bf16.msra.mxu0 0
      %5310 = vmatprep.subr.bf16.mxu0 0
      %5311 = vmatpush1.bf16.msra.mxu0 0
      %5312 = vmatprep.subr.bf16.mxu0 0
      %5313 = vmatpush1.bf16.msra.mxu0 0
      %5314 = vmatprep.subr.bf16.mxu0 0
      %5315 = vmatpush1.bf16.msra.mxu0 0
      %5316 = vmatprep.subr.bf16.mxu0 0
      %5317 = vmatpush1.bf16.msra.mxu0 0
      %5318 = vmatprep.subr.bf16.mxu0 0
      %5319 = vmatpush1.bf16.msra.mxu0 0
      %5320 = vmatprep.subr.bf16.mxu0 0
      %5321 = vmatpush1.bf16.msra.mxu0 0
      %5322 = vmatprep.subr.bf16.mxu0 0
      %5323 = vmatpush1.bf16.msra.mxu0 0
      %5324 = vmatprep.subr.bf16.mxu0 0
      %5325 = vmatpush1.bf16.msra.mxu0 0
      %5326 = vmatprep.mubr.bf16.mxu0 0
      %5327 = vmatmul.mubr.bf16.gmra.mrb[0].mxu0 %v5283
      %v5328 = vpop.f32.mrb[0].mxu0
      %v5329 = vadd.f32 %v5235, %v5328
      %v5330 = vpop.f32.mrb[0].mxu0
      %v5331 = vadd.f32 %v5239, %v5330
      %v5332 = vpop.f32.mrb[0].mxu0
      %v5333 = vadd.f32 %v5235, %v5332
      %v5334 = vpop.f32.mrb[0].mxu0
      %v5335 = vadd.f32 %v5239, %v5334
      %5336 = vmatprep.mubr.bf16.mxu0 0
      %5337 = vmatmul.mubr.bf16.gmra.mrb[0].mxu0 %v5286
      %v5338 = vpop.f32.mrb[0].mxu0
      %v5339 = vadd.f32 %v5235, %v5338
      %v5340 = vpop.f32.mrb[0].mxu0
      %v5341 = vadd.f32 %v5239, %v5340
      %v5342 = vpop.f32.mrb[0].mxu0
      %v5343 = vadd.f32 %v5235, %v5342
      %v5344 = vpop.f32.mrb[0].mxu0
      %v5345 = vadd.f32 %v5239, %v5344
      %5346 = vmatprep.mubr.bf16.mxu0 0
      %5347 = vmatmul.mubr.bf16.gmra.mrb[0].mxu0 %v5289
      %v5348 = vpop.f32.mrb[0].mxu0
      %v5349 = vadd.f32 %v5235, %v5348
      %v5350 = vpop.f32.mrb[0].mxu0
      %v5351 = vadd.f32 %v5239, %v5350
      %v5352 = vpop.f32.mrb[0].mxu0
      %v5353 = vadd.f32 %v5235, %v5352
      %v5354 = vpop.f32.mrb[0].mxu0
      %v5355 = vadd.f32 %v5239, %v5354
      %5356 = vmatprep.mubr.bf16.mxu0 0
      %5357 = vmatmul.mubr.bf16.gmra.mrb[0].mxu0 %v5292
      %v5358 = vpop.f32.mrb[0].mxu0
      %v5359 = vadd.f32 %v5235, %v5358
      %v5360 = vpop.f32.mrb[0].mxu0
      %v5361 = vadd.f32 %v5239, %v5360
      %v5362 = vpop.f32.mrb[0].mxu0
      %v5363 = vadd.f32 %v5235, %v5362
      %v5364 = vpop.f32.mrb[0].mxu0
      %v5365 = vadd.f32 %v5239, %v5364
      %5366 = vdwg.mxu0
      %v5367 = vsel %vm671, %v5219, inf
      %5368 = vmin.xlane.f32.xlu0 %v5367
      %v5369 = vpop.xlane.xlu0 %5368
      %v5370 = vsel %vm671, %v5220, inf
      %5371 = vmin.xlane.f32.xlu0 %v5370
      %v5372 = vpop.xlane.xlu0 %5371
      %v5373 = vsel %vm671, %v5221, inf
      %5374 = vmin.xlane.f32.xlu0 %v5373
      %v5375 = vpop.xlane.xlu0 %5374
      %v5376 = vsel %vm671, %v5222, inf
      %5377 = vmin.xlane.f32.xlu0 %v5376
      %v5378 = vpop.xlane.xlu0 %5377
      %v5379 = vsel %vm671, %v5223, inf
      %5380 = vmin.xlane.f32.xlu0 %v5379
      %v5381 = vpop.xlane.xlu0 %5380
      %v5382 = vsel %vm671, %v5224, inf
      %5383 = vmin.xlane.f32.xlu0 %v5382
      %v5384 = vpop.xlane.xlu0 %5383
      %v5385 = vsel %vm671, %v5225, inf
      %5386 = vmin.xlane.f32.xlu0 %v5385
      %v5387 = vpop.xlane.xlu0 %5386
      %v5388 = vsel %vm671, %v5226, inf
      %5389 = vmin.xlane.f32.xlu0 %v5388
      %v5390 = vpop.xlane.xlu0 %5389
      %vm5391 = vcmp.le.f32.partialorder %v5219, %v5369
      %vm5392 = vcmp.le.f32.partialorder %v5220, %v5372
      %vm5393 = vcmp.le.f32.partialorder %v5221, %v5375
      %vm5394 = vcmp.le.f32.partialorder %v5222, %v5378
      %vm5395 = vcmp.le.f32.partialorder %v5223, %v5381
      %vm5396 = vcmp.le.f32.partialorder %v5224, %v5384
      %vm5397 = vcmp.le.f32.partialorder %v5225, %v5387
      %vm5398 = vcmp.le.f32.partialorder %v5226, %v5390
      %v5399 = vsel %vm5391, %v753, 64.0
      %v5400 = vsel %vm5392, %v753, 64.0
      %v5401 = vsel %vm5393, %v753, 64.0
      %v5402 = vsel %vm5394, %v753, 64.0
      %v5403 = vsel %vm5395, %v753, 64.0
      %v5404 = vsel %vm5396, %v753, 64.0
      %v5405 = vsel %vm5397, %v753, 64.0
      %v5406 = vsel %vm5398, %v753, 64.0
      %v5407 = vsel %vm671, %v5399, inf
      %5408 = vmin.xlane.f32.xlu0 %v5407
      %v5409 = vpop.xlane.xlu0 %5408
      %v5410 = vsel %vm671, %v5400, inf
      %5411 = vmin.xlane.f32.xlu0 %v5410
      %v5412 = vpop.xlane.xlu0 %5411
      %v5413 = vsel %vm671, %v5401, inf
      %5414 = vmin.xlane.f32.xlu0 %v5413
      %v5415 = vpop.xlane.xlu0 %5414
      %v5416 = vsel %vm671, %v5402, inf
      %5417 = vmin.xlane.f32.xlu0 %v5416
      %v5418 = vpop.xlane.xlu0 %5417
      %v5419 = vsel %vm671, %v5403, inf
      %5420 = vmin.xlane.f32.xlu0 %v5419
      %v5421 = vpop.xlane.xlu0 %5420
      %v5422 = vsel %vm671, %v5404, inf
      %5423 = vmin.xlane.f32.xlu0 %v5422
      %v5424 = vpop.xlane.xlu0 %5423
      %v5425 = vsel %vm671, %v5405, inf
      %5426 = vmin.xlane.f32.xlu0 %v5425
      %v5427 = vpop.xlane.xlu0 %5426
      %v5428 = vsel %vm671, %v5406, inf
      %5429 = vmin.xlane.f32.xlu0 %v5428
      %v5430 = vpop.xlane.xlu0 %5429
      %vm5431 = vcmp.eq.f32.partialorder %v753, %v5409
      %vm5432 = vcmp.eq.f32.partialorder %v753, %v5412
      %vm5433 = vcmp.eq.f32.partialorder %v753, %v5415
      %vm5434 = vcmp.eq.f32.partialorder %v753, %v5418
      %vm5435 = vcmp.eq.f32.partialorder %v753, %v5421
      %vm5436 = vcmp.eq.f32.partialorder %v753, %v5424
      %vm5437 = vcmp.eq.f32.partialorder %v753, %v5427
      %vm5438 = vcmp.eq.f32.partialorder %v753, %v5430
      %v5439 = vsel %vm5431, 1e+30, %v5219
      %v5440 = vsel %vm5432, 1e+30, %v5220
      %v5441 = vsel %vm5433, 1e+30, %v5221
      %v5442 = vsel %vm5434, 1e+30, %v5222
      %v5443 = vsel %vm5435, 1e+30, %v5223
      %v5444 = vsel %vm5436, 1e+30, %v5224
      %v5445 = vsel %vm5437, 1e+30, %v5225
      %v5446 = vsel %vm5438, 1e+30, %v5226
      %v5447 = vsel %vm5431, 1, 0
      %v5448 = vsel %vm5432, 1, 0
      %v5449 = vsel %vm5433, 1, 0
      %v5450 = vsel %vm5434, 1, 0
      %v5451 = vsel %vm5435, 1, 0
      %v5452 = vsel %vm5436, 1, 0
      %v5453 = vsel %vm5437, 1, 0
      %v5454 = vsel %vm5438, 1, 0
      %v5455 = vcvt.s32.f32 %v5447
      %v5456 = vcvt.s32.f32 %v5448
      %v5457 = vcvt.s32.f32 %v5449
      %v5458 = vcvt.s32.f32 %v5450
      %v5459 = vcvt.s32.f32 %v5451
      %v5460 = vcvt.s32.f32 %v5452
      %v5461 = vcvt.s32.f32 %v5453
      %v5462 = vcvt.s32.f32 %v5454
      %v5464 = vsel %vm671, %v5455, 0
      %v5467 = vsel %vm671, %v5456, 0
      %v5470 = vsel %vm671, %v5457, 0
      %v5473 = vsel %vm671, %v5458, 0
      %v5476 = vsel %vm671, %v5459, 0
      %v5479 = vsel %vm671, %v5460, 0
      %v5482 = vsel %vm671, %v5461, 0
      %v5485 = vsel %vm671, %v5462, 0
      %5487 = vmatprep.subr.mxu0 0.0
      %5488 = vmatpush1.msra.mxu0 %v5020
      %5489 = vmatprep.subr.mxu0 0.0
      %5490 = vmatpush1.msra.mxu0 %v5021
      %5491 = vmatprep.subr.mxu0 0.0
      %5492 = vmatpush1.msra.mxu0 %v5022
      %5493 = vmatprep.subr.mxu0 0.0
      %5494 = vmatpush1.msra.mxu0 %v5023
      %5495 = vmatprep.subr.mxu0 0.0
      %5496 = vmatpush1.msra.mxu0 %v5024
      %5497 = vmatprep.subr.mxu0 0.0
      %5498 = vmatpush1.msra.mxu0 %v5025
      %5499 = vmatprep.subr.mxu0 0.0
      %5500 = vmatpush1.msra.mxu0 %v5026
      %5501 = vmatprep.subr.mxu0 0.0
      %5502 = vmatpush1.msra.mxu0 %v5027
      %5503 = vmatprep.subr.mxu0 0.0
      %5504 = vmatpush1.msra.mxu0 0.0
      %5505 = vmatprep.subr.mxu0 0.0
      %5506 = vmatpush1.msra.mxu0 0.0
      %5507 = vmatprep.subr.mxu0 0.0
      %5508 = vmatpush1.msra.mxu0 0.0
      %5509 = vmatprep.subr.mxu0 0.0
      %5510 = vmatpush1.msra.mxu0 0.0
      %5511 = vmatprep.subr.mxu0 0.0
      %5512 = vmatpush1.msra.mxu0 0.0
      %5513 = vmatprep.subr.mxu0 0.0
      %5514 = vmatpush1.msra.mxu0 0.0
      %5515 = vmatprep.subr.mxu0 0.0
      %5516 = vmatpush1.msra.mxu0 0.0
      %5517 = vmatprep.subr.mxu0 0.0
      %5518 = vmatpush1.msra.mxu0 0.0
      %5519 = vmatprep.subr.mxu0 0.0
      %5520 = vmatpush1.msra.mxu0 0.0
      %5521 = vmatprep.subr.mxu0 0.0
      %5522 = vmatpush1.msra.mxu0 0.0
      %5523 = vmatprep.subr.mxu0 0.0
      %5524 = vmatpush1.msra.mxu0 0.0
      %5525 = vmatprep.subr.mxu0 0.0
      %5526 = vmatpush1.msra.mxu0 0.0
      %5527 = vmatprep.subr.mxu0 0.0
      %5528 = vmatpush1.msra.mxu0 0.0
      %5529 = vmatprep.subr.mxu0 0.0
      %5530 = vmatpush1.msra.mxu0 0.0
      %5531 = vmatprep.subr.mxu0 0.0
      %5532 = vmatpush1.msra.mxu0 0.0
      %5533 = vmatprep.subr.mxu0 0.0
      %5534 = vmatpush1.msra.mxu0 0.0
      %5535 = vmatprep.subr.mxu0 0.0
      %5536 = vmatpush1.msra.mxu0 0.0
      %5537 = vmatprep.subr.mxu0 0.0
      %5538 = vmatpush1.msra.mxu0 0.0
      %5539 = vmatprep.subr.mxu0 0.0
      %5540 = vmatpush1.msra.mxu0 0.0
      %5541 = vmatprep.subr.mxu0 0.0
      %5542 = vmatpush1.msra.mxu0 0.0
      %5543 = vmatprep.subr.mxu0 0.0
      %5544 = vmatpush1.msra.mxu0 0.0
      %5545 = vmatprep.subr.mxu0 0.0
      %5546 = vmatpush1.msra.mxu0 0.0
      %5547 = vmatprep.subr.mxu0 0.0
      %5548 = vmatpush1.msra.mxu0 0.0
      %5549 = vmatprep.subr.mxu0 0.0
      %5550 = vmatpush1.msra.mxu0 0.0
      %5551 = vmatprep.mubr.f32.mxu0 0.0
      %5552 = vmatmul.mubr.f32.gmra.mrb[0].mxu0 %v5464
      %v5553 = vpop.f32.mrb[0].mxu0
      %v5554 = vadd.f32 0.0, %v5553
      %v5555 = vpop.f32.mrb[0].mxu0
      %5556 = vmatprep.mubr.f32.mxu0 0.0
      %5557 = vmatmul.mubr.f32.gmra.mrb[0].mxu0 %v5467
      %v5558 = vpop.f32.mrb[0].mxu0
      %v5559 = vadd.f32 0.0, %v5558
      %v5560 = vpop.f32.mrb[0].mxu0
      %5561 = vmatprep.mubr.f32.mxu0 0.0
      %5562 = vmatmul.mubr.f32.gmra.mrb[0].mxu0 %v5470
      %v5563 = vpop.f32.mrb[0].mxu0
      %v5564 = vadd.f32 0.0, %v5563
      %v5565 = vpop.f32.mrb[0].mxu0
      %5566 = vmatprep.mubr.f32.mxu0 0.0
      %5567 = vmatmul.mubr.f32.gmra.mrb[0].mxu0 %v5473
      %v5568 = vpop.f32.mrb[0].mxu0
      %v5569 = vadd.f32 0.0, %v5568
      %v5570 = vpop.f32.mrb[0].mxu0
      %5571 = vmatprep.mubr.f32.mxu0 0.0
      %5572 = vmatmul.mubr.f32.gmra.mrb[0].mxu0 %v5476
      %v5573 = vpop.f32.mrb[0].mxu0
      %v5574 = vadd.f32 0.0, %v5573
      %v5575 = vpop.f32.mrb[0].mxu0
      %5576 = vmatprep.mubr.f32.mxu0 0.0
      %5577 = vmatmul.mubr.f32.gmra.mrb[0].mxu0 %v5479
      %v5578 = vpop.f32.mrb[0].mxu0
      %v5579 = vadd.f32 0.0, %v5578
      %v5580 = vpop.f32.mrb[0].mxu0
      %5581 = vmatprep.mubr.f32.mxu0 0.0
      %5582 = vmatmul.mubr.f32.gmra.mrb[0].mxu0 %v5482
      %v5583 = vpop.f32.mrb[0].mxu0
      %v5584 = vadd.f32 0.0, %v5583
      %v5585 = vpop.f32.mrb[0].mxu0
      %5586 = vmatprep.mubr.f32.mxu0 0.0
      %5587 = vmatmul.mubr.f32.gmra.mrb[0].mxu0 %v5485
      %v5588 = vpop.f32.mrb[0].mxu0
      %v5589 = vadd.f32 0.0, %v5588
      %v5590 = vpop.f32.mrb[0].mxu0
      %5591 = vdwg.mxu0
      %v5592 = vsub.f32 %v5554, %v5020
      %v5593 = vsub.f32 %v5559, %v5021
      %v5594 = vsub.f32 %v5564, %v5022
      %v5595 = vsub.f32 %v5569, %v5023
      %v5596 = vsub.f32 %v5574, %v5024
      %v5597 = vsub.f32 %v5579, %v5025
      %v5598 = vsub.f32 %v5584, %v5026
      %v5599 = vsub.f32 %v5589, %v5027
      %v5600 = vpack.c.bf16 %v5593, %v5592
      %v5601 = vpack.c.bf16 %v5595, %v5594
      %v5602 = vpack.c.bf16 %v5597, %v5596
      %v5603 = vpack.c.bf16 %v5599, %v5598
      %v5612 = vunpack.c.l.b16 %v5036
      %v5613 = vunpack.c.h.b16 %v5036
      %v5614 = vunpack.c.l.b16 %v5037
      %v5615 = vunpack.c.h.b16 %v5037
      %v5616 = vunpack.c.l.b16 %v5038
      %v5617 = vunpack.c.h.b16 %v5038
      %v5618 = vunpack.c.l.b16 %v5039
      %v5619 = vunpack.c.h.b16 %v5039
      %v5620 = vunpack.c.l.b16 %v5040
      %v5621 = vunpack.c.h.b16 %v5040
      %v5622 = vunpack.c.l.b16 %v5041
      %v5623 = vunpack.c.h.b16 %v5041
      %v5624 = vunpack.c.l.b16 %v5042
      %v5625 = vunpack.c.h.b16 %v5042
      %v5626 = vunpack.c.l.b16 %v5043
      %v5627 = vunpack.c.h.b16 %v5043
      %v5628 = vpack.c.b16 %v5614, %v5612
      %v5629 = vpack.c.b16 %v5615, %v5613
      %v5630 = vpack.c.b16 %v5618, %v5616
      %v5631 = vpack.c.b16 %v5619, %v5617
      %v5632 = vpack.c.b16 %v5622, %v5620
      %v5633 = vpack.c.b16 %v5623, %v5621
      %v5634 = vpack.c.b16 %v5626, %v5624
      %v5635 = vpack.c.b16 %v5627, %v5625
      %v5645 = vsel %vm671, %v5600, 0
      %v5648 = vsel %vm671, %v5601, 0
      %v5651 = vsel %vm671, %v5602, 0
      %v5654 = vsel %vm671, %v5603, 0
      %5656 = vmatprep.subr.bf16.mxu0 %v5629
      %5657 = vmatpush1.bf16.msra.mxu0 %v5628
      %5658 = vmatprep.subr.bf16.mxu0 %v5631
      %5659 = vmatpush1.bf16.msra.mxu0 %v5630
      %5660 = vmatprep.subr.bf16.mxu0 %v5633
      %5661 = vmatpush1.bf16.msra.mxu0 %v5632
      %5662 = vmatprep.subr.bf16.mxu0 %v5635
      %5663 = vmatpush1.bf16.msra.mxu0 %v5634
      %5664 = vmatprep.subr.bf16.mxu0 0
      %5665 = vmatpush1.bf16.msra.mxu0 0
      %5666 = vmatprep.subr.bf16.mxu0 0
      %5667 = vmatpush1.bf16.msra.mxu0 0
      %5668 = vmatprep.subr.bf16.mxu0 0
      %5669 = vmatpush1.bf16.msra.mxu0 0
      %5670 = vmatprep.subr.bf16.mxu0 0
      %5671 = vmatpush1.bf16.msra.mxu0 0
      %5672 = vmatprep.subr.bf16.mxu0 0
      %5673 = vmatpush1.bf16.msra.mxu0 0
      %5674 = vmatprep.subr.bf16.mxu0 0
      %5675 = vmatpush1.bf16.msra.mxu0 0
      %5676 = vmatprep.subr.bf16.mxu0 0
      %5677 = vmatpush1.bf16.msra.mxu0 0
      %5678 = vmatprep.subr.bf16.mxu0 0
      %5679 = vmatpush1.bf16.msra.mxu0 0
      %5680 = vmatprep.subr.bf16.mxu0 0
      %5681 = vmatpush1.bf16.msra.mxu0 0
      %5682 = vmatprep.subr.bf16.mxu0 0
      %5683 = vmatpush1.bf16.msra.mxu0 0
      %5684 = vmatprep.subr.bf16.mxu0 0
      %5685 = vmatpush1.bf16.msra.mxu0 0
      %5686 = vmatprep.subr.bf16.mxu0 0
      %5687 = vmatpush1.bf16.msra.mxu0 0
      %5688 = vmatprep.mubr.bf16.mxu0 0
      %5689 = vmatmul.mubr.bf16.gmra.mrb[0].mxu0 %v5645
      %v5690 = vpop.f32.mrb[0].mxu0
      %v5691 = vadd.f32 0.0, %v5690
      %v5692 = vpop.f32.mrb[0].mxu0
      %v5693 = vadd.f32 0.0, %v5692
      %v5694 = vpop.f32.mrb[0].mxu0
      %v5695 = vadd.f32 0.0, %v5694
      %v5696 = vpop.f32.mrb[0].mxu0
      %v5697 = vadd.f32 0.0, %v5696
      %5698 = vmatprep.mubr.bf16.mxu0 0
      %5699 = vmatmul.mubr.bf16.gmra.mrb[0].mxu0 %v5648
      %v5700 = vpop.f32.mrb[0].mxu0
      %v5701 = vadd.f32 0.0, %v5700
      %v5702 = vpop.f32.mrb[0].mxu0
      %v5703 = vadd.f32 0.0, %v5702
      %v5704 = vpop.f32.mrb[0].mxu0
      %v5705 = vadd.f32 0.0, %v5704
      %v5706 = vpop.f32.mrb[0].mxu0
      %v5707 = vadd.f32 0.0, %v5706
      %5708 = vmatprep.mubr.bf16.mxu0 0
      %5709 = vmatmul.mubr.bf16.gmra.mrb[0].mxu0 %v5651
      %v5710 = vpop.f32.mrb[0].mxu0
      %v5711 = vadd.f32 0.0, %v5710
      %v5712 = vpop.f32.mrb[0].mxu0
      %v5713 = vadd.f32 0.0, %v5712
      %v5714 = vpop.f32.mrb[0].mxu0
      %v5715 = vadd.f32 0.0, %v5714
      %v5716 = vpop.f32.mrb[0].mxu0
      %v5717 = vadd.f32 0.0, %v5716
      %5718 = vmatprep.mubr.bf16.mxu0 0
      %5719 = vmatmul.mubr.bf16.gmra.mrb[0].mxu0 %v5654
      %v5720 = vpop.f32.mrb[0].mxu0
      %v5721 = vadd.f32 0.0, %v5720
      %v5722 = vpop.f32.mrb[0].mxu0
      %v5723 = vadd.f32 0.0, %v5722
      %v5724 = vpop.f32.mrb[0].mxu0
      %v5725 = vadd.f32 0.0, %v5724
      %v5726 = vpop.f32.mrb[0].mxu0
      %v5727 = vadd.f32 0.0, %v5726
      %5728 = vdwg.mxu0
      %v5729 = vadd.f32 %v5329, %v5691
      %v5730 = vadd.f32 %v5331, %v5693
      %v5731 = vadd.f32 %v5333, %v5695
      %v5732 = vadd.f32 %v5335, %v5697
      %v5733 = vadd.f32 %v5339, %v5701
      %v5734 = vadd.f32 %v5341, %v5703
      %v5735 = vadd.f32 %v5343, %v5705
      %v5736 = vadd.f32 %v5345, %v5707
      %v5737 = vadd.f32 %v5349, %v5711
      %v5738 = vadd.f32 %v5351, %v5713
      %v5739 = vadd.f32 %v5353, %v5715
      %v5740 = vadd.f32 %v5355, %v5717
      %v5741 = vadd.f32 %v5359, %v5721
      %v5742 = vadd.f32 %v5361, %v5723
      %v5743 = vadd.f32 %v5363, %v5725
      %v5744 = vadd.f32 %v5365, %v5727
      %v5745 = vmax.f32 %v5729, 0.0
      %v5746 = vmax.f32 %v5730, 0.0
      %v5747 = vmax.f32 %v5731, 0.0
      %v5748 = vmax.f32 %v5732, 0.0
      %v5749 = vmax.f32 %v5733, 0.0
      %v5750 = vmax.f32 %v5734, 0.0
      %v5751 = vmax.f32 %v5735, 0.0
      %v5752 = vmax.f32 %v5736, 0.0
      %v5753 = vmax.f32 %v5737, 0.0
      %v5754 = vmax.f32 %v5738, 0.0
      %v5755 = vmax.f32 %v5739, 0.0
      %v5756 = vmax.f32 %v5740, 0.0
      %v5757 = vmax.f32 %v5741, 0.0
      %v5758 = vmax.f32 %v5742, 0.0
      %v5759 = vmax.f32 %v5743, 0.0
      %v5760 = vmax.f32 %v5744, 0.0
      %v5761 = vmax.f32 %v5745, -1e+30
      %v5762 = vmax.f32 %v5746, -1e+30
      %v5763 = vmax.f32 %v5747, -1e+30
      %v5764 = vmax.f32 %v5748, -1e+30
      %v5765 = vmax.f32 %v5749, -1e+30
      %v5766 = vmax.f32 %v5750, -1e+30
      %v5767 = vmax.f32 %v5751, -1e+30
      %v5768 = vmax.f32 %v5752, -1e+30
      %v5769 = vmax.f32 %v5753, -1e+30
      %v5770 = vmax.f32 %v5754, -1e+30
      %v5771 = vmax.f32 %v5755, -1e+30
      %v5772 = vmax.f32 %v5756, -1e+30
      %v5773 = vmax.f32 %v5757, -1e+30
      %v5774 = vmax.f32 %v5758, -1e+30
      %v5775 = vmax.f32 %v5759, -1e+30
      %v5776 = vmax.f32 %v5760, -1e+30
      %v5777 = vsel %vm671, %v5439, inf
      %5778 = vmin.xlane.f32.xlu0 %v5777
      %v5779 = vpop.xlane.xlu0 %5778
      %v5780 = vsel %vm671, %v5440, inf
      %5781 = vmin.xlane.f32.xlu0 %v5780
      %v5782 = vpop.xlane.xlu0 %5781
      %v5783 = vsel %vm671, %v5441, inf
      %5784 = vmin.xlane.f32.xlu0 %v5783
      %v5785 = vpop.xlane.xlu0 %5784
      %v5786 = vsel %vm671, %v5442, inf
      %5787 = vmin.xlane.f32.xlu0 %v5786
      %v5788 = vpop.xlane.xlu0 %5787
      %v5789 = vsel %vm671, %v5443, inf
      %5790 = vmin.xlane.f32.xlu0 %v5789
      %v5791 = vpop.xlane.xlu0 %5790
      %v5792 = vsel %vm671, %v5444, inf
      %5793 = vmin.xlane.f32.xlu0 %v5792
      %v5794 = vpop.xlane.xlu0 %5793
      %v5795 = vsel %vm671, %v5445, inf
      %5796 = vmin.xlane.f32.xlu0 %v5795
      %v5797 = vpop.xlane.xlu0 %5796
      %v5798 = vsel %vm671, %v5446, inf
      %5799 = vmin.xlane.f32.xlu0 %v5798
      %v5800 = vpop.xlane.xlu0 %5799
      %vm5801 = vcmp.le.f32.partialorder %v5439, %v5779
      %vm5802 = vcmp.le.f32.partialorder %v5440, %v5782
      %vm5803 = vcmp.le.f32.partialorder %v5441, %v5785
      %vm5804 = vcmp.le.f32.partialorder %v5442, %v5788
      %vm5805 = vcmp.le.f32.partialorder %v5443, %v5791
      %vm5806 = vcmp.le.f32.partialorder %v5444, %v5794
      %vm5807 = vcmp.le.f32.partialorder %v5445, %v5797
      %vm5808 = vcmp.le.f32.partialorder %v5446, %v5800
      %v5809 = vsel %vm5801, %v753, 64.0
      %v5810 = vsel %vm5802, %v753, 64.0
      %v5811 = vsel %vm5803, %v753, 64.0
      %v5812 = vsel %vm5804, %v753, 64.0
      %v5813 = vsel %vm5805, %v753, 64.0
      %v5814 = vsel %vm5806, %v753, 64.0
      %v5815 = vsel %vm5807, %v753, 64.0
      %v5816 = vsel %vm5808, %v753, 64.0
      %v5817 = vsel %vm671, %v5809, inf
      %5818 = vmin.xlane.f32.xlu0 %v5817
      %v5819 = vpop.xlane.xlu0 %5818
      %v5820 = vsel %vm671, %v5810, inf
      %5821 = vmin.xlane.f32.xlu0 %v5820
      %v5822 = vpop.xlane.xlu0 %5821
      %v5823 = vsel %vm671, %v5811, inf
      %5824 = vmin.xlane.f32.xlu0 %v5823
      %v5825 = vpop.xlane.xlu0 %5824
      %v5826 = vsel %vm671, %v5812, inf
      %5827 = vmin.xlane.f32.xlu0 %v5826
      %v5828 = vpop.xlane.xlu0 %5827
      %v5829 = vsel %vm671, %v5813, inf
      %5830 = vmin.xlane.f32.xlu0 %v5829
      %v5831 = vpop.xlane.xlu0 %5830
      %v5832 = vsel %vm671, %v5814, inf
      %5833 = vmin.xlane.f32.xlu0 %v5832
      %v5834 = vpop.xlane.xlu0 %5833
      %v5835 = vsel %vm671, %v5815, inf
      %5836 = vmin.xlane.f32.xlu0 %v5835
      %v5837 = vpop.xlane.xlu0 %5836
      %v5838 = vsel %vm671, %v5816, inf
      %5839 = vmin.xlane.f32.xlu0 %v5838
      %v5840 = vpop.xlane.xlu0 %5839
      %vm5841 = vcmp.eq.f32.partialorder %v753, %v5819
      %vm5842 = vcmp.eq.f32.partialorder %v753, %v5822
      %vm5843 = vcmp.eq.f32.partialorder %v753, %v5825
      %vm5844 = vcmp.eq.f32.partialorder %v753, %v5828
      %vm5845 = vcmp.eq.f32.partialorder %v753, %v5831
      %vm5846 = vcmp.eq.f32.partialorder %v753, %v5834
      %vm5847 = vcmp.eq.f32.partialorder %v753, %v5837
      %vm5848 = vcmp.eq.f32.partialorder %v753, %v5840
      %v5849 = vsel %vm5841, 1e+30, %v5439
      %v5850 = vsel %vm5842, 1e+30, %v5440
      %v5851 = vsel %vm5843, 1e+30, %v5441
      %v5852 = vsel %vm5844, 1e+30, %v5442
      %v5853 = vsel %vm5845, 1e+30, %v5443
      %v5854 = vsel %vm5846, 1e+30, %v5444
      %v5855 = vsel %vm5847, 1e+30, %v5445
      %v5856 = vsel %vm5848, 1e+30, %v5446
      %v5857 = vsel %vm5841, 1, 0
      %v5858 = vsel %vm5842, 1, 0
      %v5859 = vsel %vm5843, 1, 0
      %v5860 = vsel %vm5844, 1, 0
      %v5861 = vsel %vm5845, 1, 0
      %v5862 = vsel %vm5846, 1, 0
      %v5863 = vsel %vm5847, 1, 0
      %v5864 = vsel %vm5848, 1, 0
      %v5865 = vcvt.s32.f32 %v5857
      %v5866 = vcvt.s32.f32 %v5858
      %v5867 = vcvt.s32.f32 %v5859
      %v5868 = vcvt.s32.f32 %v5860
      %v5869 = vcvt.s32.f32 %v5861
      %v5870 = vcvt.s32.f32 %v5862
      %v5871 = vcvt.s32.f32 %v5863
      %v5872 = vcvt.s32.f32 %v5864
      %v5874 = vsel %vm671, %v5865, 0
      %v5877 = vsel %vm671, %v5866, 0
      %v5880 = vsel %vm671, %v5867, 0
      %v5883 = vsel %vm671, %v5868, 0
      %v5886 = vsel %vm671, %v5869, 0
      %v5889 = vsel %vm671, %v5870, 0
      %v5892 = vsel %vm671, %v5871, 0
      %v5895 = vsel %vm671, %v5872, 0
      %5897 = vmatprep.subr.mxu0 0.0
      %5898 = vmatpush1.msra.mxu0 %v5020
      %5899 = vmatprep.subr.mxu0 0.0
      %5900 = vmatpush1.msra.mxu0 %v5021
      %5901 = vmatprep.subr.mxu0 0.0
      %5902 = vmatpush1.msra.mxu0 %v5022
      %5903 = vmatprep.subr.mxu0 0.0
      %5904 = vmatpush1.msra.mxu0 %v5023
      %5905 = vmatprep.subr.mxu0 0.0
      %5906 = vmatpush1.msra.mxu0 %v5024
      %5907 = vmatprep.subr.mxu0 0.0
      %5908 = vmatpush1.msra.mxu0 %v5025
      %5909 = vmatprep.subr.mxu0 0.0
      %5910 = vmatpush1.msra.mxu0 %v5026
      %5911 = vmatprep.subr.mxu0 0.0
      %5912 = vmatpush1.msra.mxu0 %v5027
      %5913 = vmatprep.subr.mxu0 0.0
      %5914 = vmatpush1.msra.mxu0 0.0
      %5915 = vmatprep.subr.mxu0 0.0
      %5916 = vmatpush1.msra.mxu0 0.0
      %5917 = vmatprep.subr.mxu0 0.0
      %5918 = vmatpush1.msra.mxu0 0.0
      %5919 = vmatprep.subr.mxu0 0.0
      %5920 = vmatpush1.msra.mxu0 0.0
      %5921 = vmatprep.subr.mxu0 0.0
      %5922 = vmatpush1.msra.mxu0 0.0
      %5923 = vmatprep.subr.mxu0 0.0
      %5924 = vmatpush1.msra.mxu0 0.0
      %5925 = vmatprep.subr.mxu0 0.0
      %5926 = vmatpush1.msra.mxu0 0.0
      %5927 = vmatprep.subr.mxu0 0.0
      %5928 = vmatpush1.msra.mxu0 0.0
      %5929 = vmatprep.subr.mxu0 0.0
      %5930 = vmatpush1.msra.mxu0 0.0
      %5931 = vmatprep.subr.mxu0 0.0
      %5932 = vmatpush1.msra.mxu0 0.0
      %5933 = vmatprep.subr.mxu0 0.0
      %5934 = vmatpush1.msra.mxu0 0.0
      %5935 = vmatprep.subr.mxu0 0.0
      %5936 = vmatpush1.msra.mxu0 0.0
      %5937 = vmatprep.subr.mxu0 0.0
      %5938 = vmatpush1.msra.mxu0 0.0
      %5939 = vmatprep.subr.mxu0 0.0
      %5940 = vmatpush1.msra.mxu0 0.0
      %5941 = vmatprep.subr.mxu0 0.0
      %5942 = vmatpush1.msra.mxu0 0.0
      %5943 = vmatprep.subr.mxu0 0.0
      %5944 = vmatpush1.msra.mxu0 0.0
      %5945 = vmatprep.subr.mxu0 0.0
      %5946 = vmatpush1.msra.mxu0 0.0
      %5947 = vmatprep.subr.mxu0 0.0
      %5948 = vmatpush1.msra.mxu0 0.0
      %5949 = vmatprep.subr.mxu0 0.0
      %5950 = vmatpush1.msra.mxu0 0.0
      %5951 = vmatprep.subr.mxu0 0.0
      %5952 = vmatpush1.msra.mxu0 0.0
      %5953 = vmatprep.subr.mxu0 0.0
      %5954 = vmatpush1.msra.mxu0 0.0
      %5955 = vmatprep.subr.mxu0 0.0
      %5956 = vmatpush1.msra.mxu0 0.0
      %5957 = vmatprep.subr.mxu0 0.0
      %5958 = vmatpush1.msra.mxu0 0.0
      %5959 = vmatprep.subr.mxu0 0.0
      %5960 = vmatpush1.msra.mxu0 0.0
      %5961 = vmatprep.mubr.f32.mxu0 0.0
      %5962 = vmatmul.mubr.f32.gmra.mrb[0].mxu0 %v5874
      %v5963 = vpop.f32.mrb[0].mxu0
      %v5964 = vadd.f32 0.0, %v5963
      %v5965 = vpop.f32.mrb[0].mxu0
      %5966 = vmatprep.mubr.f32.mxu0 0.0
      %5967 = vmatmul.mubr.f32.gmra.mrb[0].mxu0 %v5877
      %v5968 = vpop.f32.mrb[0].mxu0
      %v5969 = vadd.f32 0.0, %v5968
      %v5970 = vpop.f32.mrb[0].mxu0
      %5971 = vmatprep.mubr.f32.mxu0 0.0
      %5972 = vmatmul.mubr.f32.gmra.mrb[0].mxu0 %v5880
      %v5973 = vpop.f32.mrb[0].mxu0
      %v5974 = vadd.f32 0.0, %v5973
      %v5975 = vpop.f32.mrb[0].mxu0
      %5976 = vmatprep.mubr.f32.mxu0 0.0
      %5977 = vmatmul.mubr.f32.gmra.mrb[0].mxu0 %v5883
      %v5978 = vpop.f32.mrb[0].mxu0
      %v5979 = vadd.f32 0.0, %v5978
      %v5980 = vpop.f32.mrb[0].mxu0
      %5981 = vmatprep.mubr.f32.mxu0 0.0
      %5982 = vmatmul.mubr.f32.gmra.mrb[0].mxu0 %v5886
      %v5983 = vpop.f32.mrb[0].mxu0
      %v5984 = vadd.f32 0.0, %v5983
      %v5985 = vpop.f32.mrb[0].mxu0
      %5986 = vmatprep.mubr.f32.mxu0 0.0
      %5987 = vmatmul.mubr.f32.gmra.mrb[0].mxu0 %v5889
      %v5988 = vpop.f32.mrb[0].mxu0
      %v5989 = vadd.f32 0.0, %v5988
      %v5990 = vpop.f32.mrb[0].mxu0
      %5991 = vmatprep.mubr.f32.mxu0 0.0
      %5992 = vmatmul.mubr.f32.gmra.mrb[0].mxu0 %v5892
      %v5993 = vpop.f32.mrb[0].mxu0
      %v5994 = vadd.f32 0.0, %v5993
      %v5995 = vpop.f32.mrb[0].mxu0
      %5996 = vmatprep.mubr.f32.mxu0 0.0
      %5997 = vmatmul.mubr.f32.gmra.mrb[0].mxu0 %v5895
      %v5998 = vpop.f32.mrb[0].mxu0
      %v5999 = vadd.f32 0.0, %v5998
      %v6000 = vpop.f32.mrb[0].mxu0
      %6001 = vdwg.mxu0
      %v6002 = vsub.f32 %v5964, %v5020
      %v6003 = vsub.f32 %v5969, %v5021
      %v6004 = vsub.f32 %v5974, %v5022
      %v6005 = vsub.f32 %v5979, %v5023
      %v6006 = vsub.f32 %v5984, %v5024
      %v6007 = vsub.f32 %v5989, %v5025
      %v6008 = vsub.f32 %v5994, %v5026
      %v6009 = vsub.f32 %v5999, %v5027
      %v6010 = vpack.c.bf16 %v6003, %v6002
      %v6011 = vpack.c.bf16 %v6005, %v6004
      %v6012 = vpack.c.bf16 %v6007, %v6006
      %v6013 = vpack.c.bf16 %v6009, %v6008
      %v6015 = vsel %vm671, %v6010, 0
      %v6018 = vsel %vm671, %v6011, 0
      %v6021 = vsel %vm671, %v6012, 0
      %v6024 = vsel %vm671, %v6013, 0
      %6026 = vmatprep.subr.bf16.mxu0 %v5629
      %6027 = vmatpush1.bf16.msra.mxu0 %v5628
      %6028 = vmatprep.subr.bf16.mxu0 %v5631
      %6029 = vmatpush1.bf16.msra.mxu0 %v5630
      %6030 = vmatprep.subr.bf16.mxu0 %v5633
      %6031 = vmatpush1.bf16.msra.mxu0 %v5632
      %6032 = vmatprep.subr.bf16.mxu0 %v5635
      %6033 = vmatpush1.bf16.msra.mxu0 %v5634
      %6034 = vmatprep.subr.bf16.mxu0 0
      %6035 = vmatpush1.bf16.msra.mxu0 0
      %6036 = vmatprep.subr.bf16.mxu0 0
      %6037 = vmatpush1.bf16.msra.mxu0 0
      %6038 = vmatprep.subr.bf16.mxu0 0
      %6039 = vmatpush1.bf16.msra.mxu0 0
      %6040 = vmatprep.subr.bf16.mxu0 0
      %6041 = vmatpush1.bf16.msra.mxu0 0
      %6042 = vmatprep.subr.bf16.mxu0 0
      %6043 = vmatpush1.bf16.msra.mxu0 0
      %6044 = vmatprep.subr.bf16.mxu0 0
      %6045 = vmatpush1.bf16.msra.mxu0 0
      %6046 = vmatprep.subr.bf16.mxu0 0
      %6047 = vmatpush1.bf16.msra.mxu0 0
      %6048 = vmatprep.subr.bf16.mxu0 0
      %6049 = vmatpush1.bf16.msra.mxu0 0
      %6050 = vmatprep.subr.bf16.mxu0 0
      %6051 = vmatpush1.bf16.msra.mxu0 0
      %6052 = vmatprep.subr.bf16.mxu0 0
      %6053 = vmatpush1.bf16.msra.mxu0 0
      %6054 = vmatprep.subr.bf16.mxu0 0
      %6055 = vmatpush1.bf16.msra.mxu0 0
      %6056 = vmatprep.subr.bf16.mxu0 0
      %6057 = vmatpush1.bf16.msra.mxu0 0
      %6058 = vmatprep.mubr.bf16.mxu0 0
      %6059 = vmatmul.mubr.bf16.gmra.mrb[0].mxu0 %v6015
      %v6060 = vpop.f32.mrb[0].mxu0
      %v6061 = vadd.f32 0.0, %v6060
      %v6062 = vpop.f32.mrb[0].mxu0
      %v6063 = vadd.f32 0.0, %v6062
      %v6064 = vpop.f32.mrb[0].mxu0
      %v6065 = vadd.f32 0.0, %v6064
      %v6066 = vpop.f32.mrb[0].mxu0
      %v6067 = vadd.f32 0.0, %v6066
      %6068 = vmatprep.mubr.bf16.mxu0 0
      %6069 = vmatmul.mubr.bf16.gmra.mrb[0].mxu0 %v6018
      %v6070 = vpop.f32.mrb[0].mxu0
      %v6071 = vadd.f32 0.0, %v6070
      %v6072 = vpop.f32.mrb[0].mxu0
      %v6073 = vadd.f32 0.0, %v6072
      %v6074 = vpop.f32.mrb[0].mxu0
      %v6075 = vadd.f32 0.0, %v6074
      %v6076 = vpop.f32.mrb[0].mxu0
      %v6077 = vadd.f32 0.0, %v6076
      %6078 = vmatprep.mubr.bf16.mxu0 0
      %6079 = vmatmul.mubr.bf16.gmra.mrb[0].mxu0 %v6021
      %v6080 = vpop.f32.mrb[0].mxu0
      %v6081 = vadd.f32 0.0, %v6080
      %v6082 = vpop.f32.mrb[0].mxu0
      %v6083 = vadd.f32 0.0, %v6082
      %v6084 = vpop.f32.mrb[0].mxu0
      %v6085 = vadd.f32 0.0, %v6084
      %v6086 = vpop.f32.mrb[0].mxu0
      %v6087 = vadd.f32 0.0, %v6086
      %6088 = vmatprep.mubr.bf16.mxu0 0
      %6089 = vmatmul.mubr.bf16.gmra.mrb[0].mxu0 %v6024
      %v6090 = vpop.f32.mrb[0].mxu0
      %v6091 = vadd.f32 0.0, %v6090
      %v6092 = vpop.f32.mrb[0].mxu0
      %v6093 = vadd.f32 0.0, %v6092
      %v6094 = vpop.f32.mrb[0].mxu0
      %v6095 = vadd.f32 0.0, %v6094
      %v6096 = vpop.f32.mrb[0].mxu0
      %v6097 = vadd.f32 0.0, %v6096
      %6098 = vdwg.mxu0
      %v6099 = vadd.f32 %v5329, %v6061
      %v6100 = vadd.f32 %v5331, %v6063
      %v6101 = vadd.f32 %v5333, %v6065
      %v6102 = vadd.f32 %v5335, %v6067
      %v6103 = vadd.f32 %v5339, %v6071
      %v6104 = vadd.f32 %v5341, %v6073
      %v6105 = vadd.f32 %v5343, %v6075
      %v6106 = vadd.f32 %v5345, %v6077
      %v6107 = vadd.f32 %v5349, %v6081
      %v6108 = vadd.f32 %v5351, %v6083
      %v6109 = vadd.f32 %v5353, %v6085
      %v6110 = vadd.f32 %v5355, %v6087
      %v6111 = vadd.f32 %v5359, %v6091
      %v6112 = vadd.f32 %v5361, %v6093
      %v6113 = vadd.f32 %v5363, %v6095
      %v6114 = vadd.f32 %v5365, %v6097
      %v6115 = vmax.f32 %v6099, 0.0
      %v6116 = vmax.f32 %v6100, 0.0
      %v6117 = vmax.f32 %v6101, 0.0
      %v6118 = vmax.f32 %v6102, 0.0
      %v6119 = vmax.f32 %v6103, 0.0
      %v6120 = vmax.f32 %v6104, 0.0
      %v6121 = vmax.f32 %v6105, 0.0
      %v6122 = vmax.f32 %v6106, 0.0
      %v6123 = vmax.f32 %v6107, 0.0
      %v6124 = vmax.f32 %v6108, 0.0
      %v6125 = vmax.f32 %v6109, 0.0
      %v6126 = vmax.f32 %v6110, 0.0
      %v6127 = vmax.f32 %v6111, 0.0
      %v6128 = vmax.f32 %v6112, 0.0
      %v6129 = vmax.f32 %v6113, 0.0
      %v6130 = vmax.f32 %v6114, 0.0
      %v6131 = vmax.f32 %v5761, %v6115
      %v6132 = vmax.f32 %v5762, %v6116
      %v6133 = vmax.f32 %v5763, %v6117
      %v6134 = vmax.f32 %v5764, %v6118
      %v6135 = vmax.f32 %v5765, %v6119
      %v6136 = vmax.f32 %v5766, %v6120
      %v6137 = vmax.f32 %v5767, %v6121
      %v6138 = vmax.f32 %v5768, %v6122
      %v6139 = vmax.f32 %v5769, %v6123
      %v6140 = vmax.f32 %v5770, %v6124
      %v6141 = vmax.f32 %v5771, %v6125
      %v6142 = vmax.f32 %v5772, %v6126
      %v6143 = vmax.f32 %v5773, %v6127
      %v6144 = vmax.f32 %v5774, %v6128
      %v6145 = vmax.f32 %v5775, %v6129
      %v6146 = vmax.f32 %v5776, %v6130
      %v6147 = vsel %vm671, %v5849, inf
      %6148 = vmin.xlane.f32.xlu0 %v6147
      %v6149 = vpop.xlane.xlu0 %6148
      %v6150 = vsel %vm671, %v5850, inf
      %6151 = vmin.xlane.f32.xlu0 %v6150
      %v6152 = vpop.xlane.xlu0 %6151
      %v6153 = vsel %vm671, %v5851, inf
      %6154 = vmin.xlane.f32.xlu0 %v6153
      %v6155 = vpop.xlane.xlu0 %6154
      %v6156 = vsel %vm671, %v5852, inf
      %6157 = vmin.xlane.f32.xlu0 %v6156
      %v6158 = vpop.xlane.xlu0 %6157
      %v6159 = vsel %vm671, %v5853, inf
      %6160 = vmin.xlane.f32.xlu0 %v6159
      %v6161 = vpop.xlane.xlu0 %6160
      %v6162 = vsel %vm671, %v5854, inf
      %6163 = vmin.xlane.f32.xlu0 %v6162
      %v6164 = vpop.xlane.xlu0 %6163
      %v6165 = vsel %vm671, %v5855, inf
      %6166 = vmin.xlane.f32.xlu0 %v6165
      %v6167 = vpop.xlane.xlu0 %6166
      %v6168 = vsel %vm671, %v5856, inf
      %6169 = vmin.xlane.f32.xlu0 %v6168
      %v6170 = vpop.xlane.xlu0 %6169
      %vm6171 = vcmp.le.f32.partialorder %v5849, %v6149
      %vm6172 = vcmp.le.f32.partialorder %v5850, %v6152
      %vm6173 = vcmp.le.f32.partialorder %v5851, %v6155
      %vm6174 = vcmp.le.f32.partialorder %v5852, %v6158
      %vm6175 = vcmp.le.f32.partialorder %v5853, %v6161
      %vm6176 = vcmp.le.f32.partialorder %v5854, %v6164
      %vm6177 = vcmp.le.f32.partialorder %v5855, %v6167
      %vm6178 = vcmp.le.f32.partialorder %v5856, %v6170
      %v6179 = vsel %vm6171, %v753, 64.0
      %v6180 = vsel %vm6172, %v753, 64.0
      %v6181 = vsel %vm6173, %v753, 64.0
      %v6182 = vsel %vm6174, %v753, 64.0
      %v6183 = vsel %vm6175, %v753, 64.0
      %v6184 = vsel %vm6176, %v753, 64.0
      %v6185 = vsel %vm6177, %v753, 64.0
      %v6186 = vsel %vm6178, %v753, 64.0
      %v6187 = vsel %vm671, %v6179, inf
      %6188 = vmin.xlane.f32.xlu0 %v6187
      %v6189 = vpop.xlane.xlu0 %6188
      %v6190 = vsel %vm671, %v6180, inf
      %6191 = vmin.xlane.f32.xlu0 %v6190
      %v6192 = vpop.xlane.xlu0 %6191
      %v6193 = vsel %vm671, %v6181, inf
      %6194 = vmin.xlane.f32.xlu0 %v6193
      %v6195 = vpop.xlane.xlu0 %6194
      %v6196 = vsel %vm671, %v6182, inf
      %6197 = vmin.xlane.f32.xlu0 %v6196
      %v6198 = vpop.xlane.xlu0 %6197
      %v6199 = vsel %vm671, %v6183, inf
      %6200 = vmin.xlane.f32.xlu0 %v6199
      %v6201 = vpop.xlane.xlu0 %6200
      %v6202 = vsel %vm671, %v6184, inf
      %6203 = vmin.xlane.f32.xlu0 %v6202
      %v6204 = vpop.xlane.xlu0 %6203
      %v6205 = vsel %vm671, %v6185, inf
      %6206 = vmin.xlane.f32.xlu0 %v6205
      %v6207 = vpop.xlane.xlu0 %6206
      %v6208 = vsel %vm671, %v6186, inf
      %6209 = vmin.xlane.f32.xlu0 %v6208
      %v6210 = vpop.xlane.xlu0 %6209
      %vm6211 = vcmp.eq.f32.partialorder %v753, %v6189
      %vm6212 = vcmp.eq.f32.partialorder %v753, %v6192
      %vm6213 = vcmp.eq.f32.partialorder %v753, %v6195
      %vm6214 = vcmp.eq.f32.partialorder %v753, %v6198
      %vm6215 = vcmp.eq.f32.partialorder %v753, %v6201
      %vm6216 = vcmp.eq.f32.partialorder %v753, %v6204
      %vm6217 = vcmp.eq.f32.partialorder %v753, %v6207
      %vm6218 = vcmp.eq.f32.partialorder %v753, %v6210
      %v6219 = vsel %vm6211, 1e+30, %v5849
      %v6220 = vsel %vm6212, 1e+30, %v5850
      %v6221 = vsel %vm6213, 1e+30, %v5851
      %v6222 = vsel %vm6214, 1e+30, %v5852
      %v6223 = vsel %vm6215, 1e+30, %v5853
      %v6224 = vsel %vm6216, 1e+30, %v5854
      %v6225 = vsel %vm6217, 1e+30, %v5855
      %v6226 = vsel %vm6218, 1e+30, %v5856
      %v6227 = vsel %vm6211, 1, 0
      %v6228 = vsel %vm6212, 1, 0
      %v6229 = vsel %vm6213, 1, 0
      %v6230 = vsel %vm6214, 1, 0
      %v6231 = vsel %vm6215, 1, 0
      %v6232 = vsel %vm6216, 1, 0
      %v6233 = vsel %vm6217, 1, 0
      %v6234 = vsel %vm6218, 1, 0
      %v6235 = vcvt.s32.f32 %v6227
      %v6236 = vcvt.s32.f32 %v6228
      %v6237 = vcvt.s32.f32 %v6229
      %v6238 = vcvt.s32.f32 %v6230
      %v6239 = vcvt.s32.f32 %v6231
      %v6240 = vcvt.s32.f32 %v6232
      %v6241 = vcvt.s32.f32 %v6233
      %v6242 = vcvt.s32.f32 %v6234
      %v6244 = vsel %vm671, %v6235, 0
      %v6247 = vsel %vm671, %v6236, 0
      %v6250 = vsel %vm671, %v6237, 0
      %v6253 = vsel %vm671, %v6238, 0
      %v6256 = vsel %vm671, %v6239, 0
      %v6259 = vsel %vm671, %v6240, 0
      %v6262 = vsel %vm671, %v6241, 0
      %v6265 = vsel %vm671, %v6242, 0
      %6267 = vmatprep.subr.mxu0 0.0
      %6268 = vmatpush1.msra.mxu0 %v5020
      %6269 = vmatprep.subr.mxu0 0.0
      %6270 = vmatpush1.msra.mxu0 %v5021
      %6271 = vmatprep.subr.mxu0 0.0
      %6272 = vmatpush1.msra.mxu0 %v5022
      %6273 = vmatprep.subr.mxu0 0.0
      %6274 = vmatpush1.msra.mxu0 %v5023
      %6275 = vmatprep.subr.mxu0 0.0
      %6276 = vmatpush1.msra.mxu0 %v5024
      %6277 = vmatprep.subr.mxu0 0.0
      %6278 = vmatpush1.msra.mxu0 %v5025
      %6279 = vmatprep.subr.mxu0 0.0
      %6280 = vmatpush1.msra.mxu0 %v5026
      %6281 = vmatprep.subr.mxu0 0.0
      %6282 = vmatpush1.msra.mxu0 %v5027
      %6283 = vmatprep.subr.mxu0 0.0
      %6284 = vmatpush1.msra.mxu0 0.0
      %6285 = vmatprep.subr.mxu0 0.0
      %6286 = vmatpush1.msra.mxu0 0.0
      %6287 = vmatprep.subr.mxu0 0.0
      %6288 = vmatpush1.msra.mxu0 0.0
      %6289 = vmatprep.subr.mxu0 0.0
      %6290 = vmatpush1.msra.mxu0 0.0
      %6291 = vmatprep.subr.mxu0 0.0
      %6292 = vmatpush1.msra.mxu0 0.0
      %6293 = vmatprep.subr.mxu0 0.0
      %6294 = vmatpush1.msra.mxu0 0.0
      %6295 = vmatprep.subr.mxu0 0.0
      %6296 = vmatpush1.msra.mxu0 0.0
      %6297 = vmatprep.subr.mxu0 0.0
      %6298 = vmatpush1.msra.mxu0 0.0
      %6299 = vmatprep.subr.mxu0 0.0
      %6300 = vmatpush1.msra.mxu0 0.0
      %6301 = vmatprep.subr.mxu0 0.0
      %6302 = vmatpush1.msra.mxu0 0.0
      %6303 = vmatprep.subr.mxu0 0.0
      %6304 = vmatpush1.msra.mxu0 0.0
      %6305 = vmatprep.subr.mxu0 0.0
      %6306 = vmatpush1.msra.mxu0 0.0
      %6307 = vmatprep.subr.mxu0 0.0
      %6308 = vmatpush1.msra.mxu0 0.0
      %6309 = vmatprep.subr.mxu0 0.0
      %6310 = vmatpush1.msra.mxu0 0.0
      %6311 = vmatprep.subr.mxu0 0.0
      %6312 = vmatpush1.msra.mxu0 0.0
      %6313 = vmatprep.subr.mxu0 0.0
      %6314 = vmatpush1.msra.mxu0 0.0
      %6315 = vmatprep.subr.mxu0 0.0
      %6316 = vmatpush1.msra.mxu0 0.0
      %6317 = vmatprep.subr.mxu0 0.0
      %6318 = vmatpush1.msra.mxu0 0.0
      %6319 = vmatprep.subr.mxu0 0.0
      %6320 = vmatpush1.msra.mxu0 0.0
      %6321 = vmatprep.subr.mxu0 0.0
      %6322 = vmatpush1.msra.mxu0 0.0
      %6323 = vmatprep.subr.mxu0 0.0
      %6324 = vmatpush1.msra.mxu0 0.0
      %6325 = vmatprep.subr.mxu0 0.0
      %6326 = vmatpush1.msra.mxu0 0.0
      %6327 = vmatprep.subr.mxu0 0.0
      %6328 = vmatpush1.msra.mxu0 0.0
      %6329 = vmatprep.subr.mxu0 0.0
      %6330 = vmatpush1.msra.mxu0 0.0
      %6331 = vmatprep.mubr.f32.mxu0 0.0
      %6332 = vmatmul.mubr.f32.gmra.mrb[0].mxu0 %v6244
      %v6333 = vpop.f32.mrb[0].mxu0
      %v6334 = vadd.f32 0.0, %v6333
      %v6335 = vpop.f32.mrb[0].mxu0
      %6336 = vmatprep.mubr.f32.mxu0 0.0
      %6337 = vmatmul.mubr.f32.gmra.mrb[0].mxu0 %v6247
      %v6338 = vpop.f32.mrb[0].mxu0
      %v6339 = vadd.f32 0.0, %v6338
      %v6340 = vpop.f32.mrb[0].mxu0
      %6341 = vmatprep.mubr.f32.mxu0 0.0
      %6342 = vmatmul.mubr.f32.gmra.mrb[0].mxu0 %v6250
      %v6343 = vpop.f32.mrb[0].mxu0
      %v6344 = vadd.f32 0.0, %v6343
      %v6345 = vpop.f32.mrb[0].mxu0
      %6346 = vmatprep.mubr.f32.mxu0 0.0
      %6347 = vmatmul.mubr.f32.gmra.mrb[0].mxu0 %v6253
      %v6348 = vpop.f32.mrb[0].mxu0
      %v6349 = vadd.f32 0.0, %v6348
      %v6350 = vpop.f32.mrb[0].mxu0
      %6351 = vmatprep.mubr.f32.mxu0 0.0
      %6352 = vmatmul.mubr.f32.gmra.mrb[0].mxu0 %v6256
      %v6353 = vpop.f32.mrb[0].mxu0
      %v6354 = vadd.f32 0.0, %v6353
      %v6355 = vpop.f32.mrb[0].mxu0
      %6356 = vmatprep.mubr.f32.mxu0 0.0
      %6357 = vmatmul.mubr.f32.gmra.mrb[0].mxu0 %v6259
      %v6358 = vpop.f32.mrb[0].mxu0
      %v6359 = vadd.f32 0.0, %v6358
      %v6360 = vpop.f32.mrb[0].mxu0
      %6361 = vmatprep.mubr.f32.mxu0 0.0
      %6362 = vmatmul.mubr.f32.gmra.mrb[0].mxu0 %v6262
      %v6363 = vpop.f32.mrb[0].mxu0
      %v6364 = vadd.f32 0.0, %v6363
      %v6365 = vpop.f32.mrb[0].mxu0
      %6366 = vmatprep.mubr.f32.mxu0 0.0
      %6367 = vmatmul.mubr.f32.gmra.mrb[0].mxu0 %v6265
      %v6368 = vpop.f32.mrb[0].mxu0
      %v6369 = vadd.f32 0.0, %v6368
      %v6370 = vpop.f32.mrb[0].mxu0
      %6371 = vdwg.mxu0
      %v6372 = vsub.f32 %v6334, %v5020
      %v6373 = vsub.f32 %v6339, %v5021
      %v6374 = vsub.f32 %v6344, %v5022
      %v6375 = vsub.f32 %v6349, %v5023
      %v6376 = vsub.f32 %v6354, %v5024
      %v6377 = vsub.f32 %v6359, %v5025
      %v6378 = vsub.f32 %v6364, %v5026
      %v6379 = vsub.f32 %v6369, %v5027
      %v6380 = vpack.c.bf16 %v6373, %v6372
      %v6381 = vpack.c.bf16 %v6375, %v6374
      %v6382 = vpack.c.bf16 %v6377, %v6376
      %v6383 = vpack.c.bf16 %v6379, %v6378
      %v6385 = vsel %vm671, %v6380, 0
      %v6388 = vsel %vm671, %v6381, 0
      %v6391 = vsel %vm671, %v6382, 0
      %v6394 = vsel %vm671, %v6383, 0
      %6396 = vmatprep.subr.bf16.mxu0 %v5629
      %6397 = vmatpush1.bf16.msra.mxu0 %v5628
      %6398 = vmatprep.subr.bf16.mxu0 %v5631
      %6399 = vmatpush1.bf16.msra.mxu0 %v5630
      %6400 = vmatprep.subr.bf16.mxu0 %v5633
      %6401 = vmatpush1.bf16.msra.mxu0 %v5632
      %6402 = vmatprep.subr.bf16.mxu0 %v5635
      %6403 = vmatpush1.bf16.msra.mxu0 %v5634
      %6404 = vmatprep.subr.bf16.mxu0 0
      %6405 = vmatpush1.bf16.msra.mxu0 0
      %6406 = vmatprep.subr.bf16.mxu0 0
      %6407 = vmatpush1.bf16.msra.mxu0 0
      %6408 = vmatprep.subr.bf16.mxu0 0
      %6409 = vmatpush1.bf16.msra.mxu0 0
      %6410 = vmatprep.subr.bf16.mxu0 0
      %6411 = vmatpush1.bf16.msra.mxu0 0
      %6412 = vmatprep.subr.bf16.mxu0 0
      %6413 = vmatpush1.bf16.msra.mxu0 0
      %6414 = vmatprep.subr.bf16.mxu0 0
      %6415 = vmatpush1.bf16.msra.mxu0 0
      %6416 = vmatprep.subr.bf16.mxu0 0
      %6417 = vmatpush1.bf16.msra.mxu0 0
      %6418 = vmatprep.subr.bf16.mxu0 0
      %6419 = vmatpush1.bf16.msra.mxu0 0
      %6420 = vmatprep.subr.bf16.mxu0 0
      %6421 = vmatpush1.bf16.msra.mxu0 0
      %6422 = vmatprep.subr.bf16.mxu0 0
      %6423 = vmatpush1.bf16.msra.mxu0 0
      %6424 = vmatprep.subr.bf16.mxu0 0
      %6425 = vmatpush1.bf16.msra.mxu0 0
      %6426 = vmatprep.subr.bf16.mxu0 0
      %6427 = vmatpush1.bf16.msra.mxu0 0
      %6428 = vmatprep.mubr.bf16.mxu0 0
      %6429 = vmatmul.mubr.bf16.gmra.mrb[0].mxu0 %v6385
      %v6430 = vpop.f32.mrb[0].mxu0
      %v6431 = vadd.f32 0.0, %v6430
      %v6432 = vpop.f32.mrb[0].mxu0
      %v6433 = vadd.f32 0.0, %v6432
      %v6434 = vpop.f32.mrb[0].mxu0
      %v6435 = vadd.f32 0.0, %v6434
      %v6436 = vpop.f32.mrb[0].mxu0
      %v6437 = vadd.f32 0.0, %v6436
      %6438 = vmatprep.mubr.bf16.mxu0 0
      %6439 = vmatmul.mubr.bf16.gmra.mrb[0].mxu0 %v6388
      %v6440 = vpop.f32.mrb[0].mxu0
      %v6441 = vadd.f32 0.0, %v6440
      %v6442 = vpop.f32.mrb[0].mxu0
      %v6443 = vadd.f32 0.0, %v6442
      %v6444 = vpop.f32.mrb[0].mxu0
      %v6445 = vadd.f32 0.0, %v6444
      %v6446 = vpop.f32.mrb[0].mxu0
      %v6447 = vadd.f32 0.0, %v6446
      %6448 = vmatprep.mubr.bf16.mxu0 0
      %6449 = vmatmul.mubr.bf16.gmra.mrb[0].mxu0 %v6391
      %v6450 = vpop.f32.mrb[0].mxu0
      %v6451 = vadd.f32 0.0, %v6450
      %v6452 = vpop.f32.mrb[0].mxu0
      %v6453 = vadd.f32 0.0, %v6452
      %v6454 = vpop.f32.mrb[0].mxu0
      %v6455 = vadd.f32 0.0, %v6454
      %v6456 = vpop.f32.mrb[0].mxu0
      %v6457 = vadd.f32 0.0, %v6456
      %6458 = vmatprep.mubr.bf16.mxu0 0
      %6459 = vmatmul.mubr.bf16.gmra.mrb[0].mxu0 %v6394
      %v6460 = vpop.f32.mrb[0].mxu0
      %v6461 = vadd.f32 0.0, %v6460
      %v6462 = vpop.f32.mrb[0].mxu0
      %v6463 = vadd.f32 0.0, %v6462
      %v6464 = vpop.f32.mrb[0].mxu0
      %v6465 = vadd.f32 0.0, %v6464
      %v6466 = vpop.f32.mrb[0].mxu0
      %v6467 = vadd.f32 0.0, %v6466
      %6468 = vdwg.mxu0
      %v6469 = vadd.f32 %v5329, %v6431
      %v6470 = vadd.f32 %v5331, %v6433
      %v6471 = vadd.f32 %v5333, %v6435
      %v6472 = vadd.f32 %v5335, %v6437
      %v6473 = vadd.f32 %v5339, %v6441
      %v6474 = vadd.f32 %v5341, %v6443
      %v6475 = vadd.f32 %v5343, %v6445
      %v6476 = vadd.f32 %v5345, %v6447
      %v6477 = vadd.f32 %v5349, %v6451
      %v6478 = vadd.f32 %v5351, %v6453
      %v6479 = vadd.f32 %v5353, %v6455
      %v6480 = vadd.f32 %v5355, %v6457
      %v6481 = vadd.f32 %v5359, %v6461
      %v6482 = vadd.f32 %v5361, %v6463
      %v6483 = vadd.f32 %v5363, %v6465
      %v6484 = vadd.f32 %v5365, %v6467
      %v6485 = vmax.f32 %v6469, 0.0
      %v6486 = vmax.f32 %v6470, 0.0
      %v6487 = vmax.f32 %v6471, 0.0
      %v6488 = vmax.f32 %v6472, 0.0
      %v6489 = vmax.f32 %v6473, 0.0
      %v6490 = vmax.f32 %v6474, 0.0
      %v6491 = vmax.f32 %v6475, 0.0
      %v6492 = vmax.f32 %v6476, 0.0
      %v6493 = vmax.f32 %v6477, 0.0
      %v6494 = vmax.f32 %v6478, 0.0
      %v6495 = vmax.f32 %v6479, 0.0
      %v6496 = vmax.f32 %v6480, 0.0
      %v6497 = vmax.f32 %v6481, 0.0
      %v6498 = vmax.f32 %v6482, 0.0
      %v6499 = vmax.f32 %v6483, 0.0
      %v6500 = vmax.f32 %v6484, 0.0
      %v6501 = vmax.f32 %v6131, %v6485
      %v6502 = vmax.f32 %v6132, %v6486
      %v6503 = vmax.f32 %v6133, %v6487
      %v6504 = vmax.f32 %v6134, %v6488
      %v6505 = vmax.f32 %v6135, %v6489
      %v6506 = vmax.f32 %v6136, %v6490
      %v6507 = vmax.f32 %v6137, %v6491
      %v6508 = vmax.f32 %v6138, %v6492
      %v6509 = vmax.f32 %v6139, %v6493
      %v6510 = vmax.f32 %v6140, %v6494
      %v6511 = vmax.f32 %v6141, %v6495
      %v6512 = vmax.f32 %v6142, %v6496
      %v6513 = vmax.f32 %v6143, %v6497
      %v6514 = vmax.f32 %v6144, %v6498
      %v6515 = vmax.f32 %v6145, %v6499
      %v6516 = vmax.f32 %v6146, %v6500
      %v6517 = vsel %vm671, %v6219, inf
      %6518 = vmin.xlane.f32.xlu0 %v6517
      %v6519 = vpop.xlane.xlu0 %6518
      %v6520 = vsel %vm671, %v6220, inf
      %6521 = vmin.xlane.f32.xlu0 %v6520
      %v6522 = vpop.xlane.xlu0 %6521
      %v6523 = vsel %vm671, %v6221, inf
      %6524 = vmin.xlane.f32.xlu0 %v6523
      %v6525 = vpop.xlane.xlu0 %6524
      %v6526 = vsel %vm671, %v6222, inf
      %6527 = vmin.xlane.f32.xlu0 %v6526
      %v6528 = vpop.xlane.xlu0 %6527
      %v6529 = vsel %vm671, %v6223, inf
      %6530 = vmin.xlane.f32.xlu0 %v6529
      %v6531 = vpop.xlane.xlu0 %6530
      %v6532 = vsel %vm671, %v6224, inf
      %6533 = vmin.xlane.f32.xlu0 %v6532
      %v6534 = vpop.xlane.xlu0 %6533
      %v6535 = vsel %vm671, %v6225, inf
      %6536 = vmin.xlane.f32.xlu0 %v6535
      %v6537 = vpop.xlane.xlu0 %6536
      %v6538 = vsel %vm671, %v6226, inf
      %6539 = vmin.xlane.f32.xlu0 %v6538
      %v6540 = vpop.xlane.xlu0 %6539
      %vm6541 = vcmp.le.f32.partialorder %v6219, %v6519
      %vm6542 = vcmp.le.f32.partialorder %v6220, %v6522
      %vm6543 = vcmp.le.f32.partialorder %v6221, %v6525
      %vm6544 = vcmp.le.f32.partialorder %v6222, %v6528
      %vm6545 = vcmp.le.f32.partialorder %v6223, %v6531
      %vm6546 = vcmp.le.f32.partialorder %v6224, %v6534
      %vm6547 = vcmp.le.f32.partialorder %v6225, %v6537
      %vm6548 = vcmp.le.f32.partialorder %v6226, %v6540
      %v6549 = vsel %vm6541, %v753, 64.0
      %v6550 = vsel %vm6542, %v753, 64.0
      %v6551 = vsel %vm6543, %v753, 64.0
      %v6552 = vsel %vm6544, %v753, 64.0
      %v6553 = vsel %vm6545, %v753, 64.0
      %v6554 = vsel %vm6546, %v753, 64.0
      %v6555 = vsel %vm6547, %v753, 64.0
      %v6556 = vsel %vm6548, %v753, 64.0
      %v6557 = vsel %vm671, %v6549, inf
      %6558 = vmin.xlane.f32.xlu0 %v6557
      %v6559 = vpop.xlane.xlu0 %6558
      %v6560 = vsel %vm671, %v6550, inf
      %6561 = vmin.xlane.f32.xlu0 %v6560
      %v6562 = vpop.xlane.xlu0 %6561
      %v6563 = vsel %vm671, %v6551, inf
      %6564 = vmin.xlane.f32.xlu0 %v6563
      %v6565 = vpop.xlane.xlu0 %6564
      %v6566 = vsel %vm671, %v6552, inf
      %6567 = vmin.xlane.f32.xlu0 %v6566
      %v6568 = vpop.xlane.xlu0 %6567
      %v6569 = vsel %vm671, %v6553, inf
      %6570 = vmin.xlane.f32.xlu0 %v6569
      %v6571 = vpop.xlane.xlu0 %6570
      %v6572 = vsel %vm671, %v6554, inf
      %6573 = vmin.xlane.f32.xlu0 %v6572
      %v6574 = vpop.xlane.xlu0 %6573
      %v6575 = vsel %vm671, %v6555, inf
      %6576 = vmin.xlane.f32.xlu0 %v6575
      %v6577 = vpop.xlane.xlu0 %6576
      %v6578 = vsel %vm671, %v6556, inf
      %6579 = vmin.xlane.f32.xlu0 %v6578
      %v6580 = vpop.xlane.xlu0 %6579
      %vm6581 = vcmp.eq.f32.partialorder %v753, %v6559
      %vm6582 = vcmp.eq.f32.partialorder %v753, %v6562
      %vm6583 = vcmp.eq.f32.partialorder %v753, %v6565
      %vm6584 = vcmp.eq.f32.partialorder %v753, %v6568
      %vm6585 = vcmp.eq.f32.partialorder %v753, %v6571
      %vm6586 = vcmp.eq.f32.partialorder %v753, %v6574
      %vm6587 = vcmp.eq.f32.partialorder %v753, %v6577
      %vm6588 = vcmp.eq.f32.partialorder %v753, %v6580
      %v6589 = vsel %vm6581, 1e+30, %v6219
      %v6590 = vsel %vm6582, 1e+30, %v6220
      %v6591 = vsel %vm6583, 1e+30, %v6221
      %v6592 = vsel %vm6584, 1e+30, %v6222
      %v6593 = vsel %vm6585, 1e+30, %v6223
      %v6594 = vsel %vm6586, 1e+30, %v6224
      %v6595 = vsel %vm6587, 1e+30, %v6225
      %v6596 = vsel %vm6588, 1e+30, %v6226
      %v6597 = vsel %vm6581, 1, 0
      %v6598 = vsel %vm6582, 1, 0
      %v6599 = vsel %vm6583, 1, 0
      %v6600 = vsel %vm6584, 1, 0
      %v6601 = vsel %vm6585, 1, 0
      %v6602 = vsel %vm6586, 1, 0
      %v6603 = vsel %vm6587, 1, 0
      %v6604 = vsel %vm6588, 1, 0
      %v6605 = vcvt.s32.f32 %v6597
      %v6606 = vcvt.s32.f32 %v6598
      %v6607 = vcvt.s32.f32 %v6599
      %v6608 = vcvt.s32.f32 %v6600
      %v6609 = vcvt.s32.f32 %v6601
      %v6610 = vcvt.s32.f32 %v6602
      %v6611 = vcvt.s32.f32 %v6603
      %v6612 = vcvt.s32.f32 %v6604
      %v6614 = vsel %vm671, %v6605, 0
      %v6617 = vsel %vm671, %v6606, 0
      %v6620 = vsel %vm671, %v6607, 0
      %v6623 = vsel %vm671, %v6608, 0
      %v6626 = vsel %vm671, %v6609, 0
      %v6629 = vsel %vm671, %v6610, 0
      %v6632 = vsel %vm671, %v6611, 0
      %v6635 = vsel %vm671, %v6612, 0
      %6637 = vmatprep.subr.mxu0 0.0
      %6638 = vmatpush1.msra.mxu0 %v5020
      %6639 = vmatprep.subr.mxu0 0.0
      %6640 = vmatpush1.msra.mxu0 %v5021
      %6641 = vmatprep.subr.mxu0 0.0
      %6642 = vmatpush1.msra.mxu0 %v5022
      %6643 = vmatprep.subr.mxu0 0.0
      %6644 = vmatpush1.msra.mxu0 %v5023
      %6645 = vmatprep.subr.mxu0 0.0
      %6646 = vmatpush1.msra.mxu0 %v5024
      %6647 = vmatprep.subr.mxu0 0.0
      %6648 = vmatpush1.msra.mxu0 %v5025
      %6649 = vmatprep.subr.mxu0 0.0
      %6650 = vmatpush1.msra.mxu0 %v5026
      %6651 = vmatprep.subr.mxu0 0.0
      %6652 = vmatpush1.msra.mxu0 %v5027
      %6653 = vmatprep.subr.mxu0 0.0
      %6654 = vmatpush1.msra.mxu0 0.0
      %6655 = vmatprep.subr.mxu0 0.0
      %6656 = vmatpush1.msra.mxu0 0.0
      %6657 = vmatprep.subr.mxu0 0.0
      %6658 = vmatpush1.msra.mxu0 0.0
      %6659 = vmatprep.subr.mxu0 0.0
      %6660 = vmatpush1.msra.mxu0 0.0
      %6661 = vmatprep.subr.mxu0 0.0
      %6662 = vmatpush1.msra.mxu0 0.0
      %6663 = vmatprep.subr.mxu0 0.0
      %6664 = vmatpush1.msra.mxu0 0.0
      %6665 = vmatprep.subr.mxu0 0.0
      %6666 = vmatpush1.msra.mxu0 0.0
      %6667 = vmatprep.subr.mxu0 0.0
      %6668 = vmatpush1.msra.mxu0 0.0
      %6669 = vmatprep.subr.mxu0 0.0
      %6670 = vmatpush1.msra.mxu0 0.0
      %6671 = vmatprep.subr.mxu0 0.0
      %6672 = vmatpush1.msra.mxu0 0.0
      %6673 = vmatprep.subr.mxu0 0.0
      %6674 = vmatpush1.msra.mxu0 0.0
      %6675 = vmatprep.subr.mxu0 0.0
      %6676 = vmatpush1.msra.mxu0 0.0
      %6677 = vmatprep.subr.mxu0 0.0
      %6678 = vmatpush1.msra.mxu0 0.0
      %6679 = vmatprep.subr.mxu0 0.0
      %6680 = vmatpush1.msra.mxu0 0.0
      %6681 = vmatprep.subr.mxu0 0.0
      %6682 = vmatpush1.msra.mxu0 0.0
      %6683 = vmatprep.subr.mxu0 0.0
      %6684 = vmatpush1.msra.mxu0 0.0
      %6685 = vmatprep.subr.mxu0 0.0
      %6686 = vmatpush1.msra.mxu0 0.0
      %6687 = vmatprep.subr.mxu0 0.0
      %6688 = vmatpush1.msra.mxu0 0.0
      %6689 = vmatprep.subr.mxu0 0.0
      %6690 = vmatpush1.msra.mxu0 0.0
      %6691 = vmatprep.subr.mxu0 0.0
      %6692 = vmatpush1.msra.mxu0 0.0
      %6693 = vmatprep.subr.mxu0 0.0
      %6694 = vmatpush1.msra.mxu0 0.0
      %6695 = vmatprep.subr.mxu0 0.0
      %6696 = vmatpush1.msra.mxu0 0.0
      %6697 = vmatprep.subr.mxu0 0.0
      %6698 = vmatpush1.msra.mxu0 0.0
      %6699 = vmatprep.subr.mxu0 0.0
      %6700 = vmatpush1.msra.mxu0 0.0
      %6701 = vmatprep.mubr.f32.mxu0 0.0
      %6702 = vmatmul.mubr.f32.gmra.mrb[0].mxu0 %v6614
      %v6703 = vpop.f32.mrb[0].mxu0
      %v6704 = vadd.f32 0.0, %v6703
      %v6705 = vpop.f32.mrb[0].mxu0
      %6706 = vmatprep.mubr.f32.mxu0 0.0
      %6707 = vmatmul.mubr.f32.gmra.mrb[0].mxu0 %v6617
      %v6708 = vpop.f32.mrb[0].mxu0
      %v6709 = vadd.f32 0.0, %v6708
      %v6710 = vpop.f32.mrb[0].mxu0
      %6711 = vmatprep.mubr.f32.mxu0 0.0
      %6712 = vmatmul.mubr.f32.gmra.mrb[0].mxu0 %v6620
      %v6713 = vpop.f32.mrb[0].mxu0
      %v6714 = vadd.f32 0.0, %v6713
      %v6715 = vpop.f32.mrb[0].mxu0
      %6716 = vmatprep.mubr.f32.mxu0 0.0
      %6717 = vmatmul.mubr.f32.gmra.mrb[0].mxu0 %v6623
      %v6718 = vpop.f32.mrb[0].mxu0
      %v6719 = vadd.f32 0.0, %v6718
      %v6720 = vpop.f32.mrb[0].mxu0
      %6721 = vmatprep.mubr.f32.mxu0 0.0
      %6722 = vmatmul.mubr.f32.gmra.mrb[0].mxu0 %v6626
      %v6723 = vpop.f32.mrb[0].mxu0
      %v6724 = vadd.f32 0.0, %v6723
      %v6725 = vpop.f32.mrb[0].mxu0
      %6726 = vmatprep.mubr.f32.mxu0 0.0
      %6727 = vmatmul.mubr.f32.gmra.mrb[0].mxu0 %v6629
      %v6728 = vpop.f32.mrb[0].mxu0
      %v6729 = vadd.f32 0.0, %v6728
      %v6730 = vpop.f32.mrb[0].mxu0
      %6731 = vmatprep.mubr.f32.mxu0 0.0
      %6732 = vmatmul.mubr.f32.gmra.mrb[0].mxu0 %v6632
      %v6733 = vpop.f32.mrb[0].mxu0
      %v6734 = vadd.f32 0.0, %v6733
      %v6735 = vpop.f32.mrb[0].mxu0
      %6736 = vmatprep.mubr.f32.mxu0 0.0
      %6737 = vmatmul.mubr.f32.gmra.mrb[0].mxu0 %v6635
      %v6738 = vpop.f32.mrb[0].mxu0
      %v6739 = vadd.f32 0.0, %v6738
      %v6740 = vpop.f32.mrb[0].mxu0
      %6741 = vdwg.mxu0
      %v6742 = vsub.f32 %v6704, %v5020
      %v6743 = vsub.f32 %v6709, %v5021
      %v6744 = vsub.f32 %v6714, %v5022
      %v6745 = vsub.f32 %v6719, %v5023
      %v6746 = vsub.f32 %v6724, %v5024
      %v6747 = vsub.f32 %v6729, %v5025
      %v6748 = vsub.f32 %v6734, %v5026
      %v6749 = vsub.f32 %v6739, %v5027
      %v6750 = vpack.c.bf16 %v6743, %v6742
      %v6751 = vpack.c.bf16 %v6745, %v6744
      %v6752 = vpack.c.bf16 %v6747, %v6746
      %v6753 = vpack.c.bf16 %v6749, %v6748
      %v6755 = vsel %vm671, %v6750, 0
      %v6758 = vsel %vm671, %v6751, 0
      %v6761 = vsel %vm671, %v6752, 0
      %v6764 = vsel %vm671, %v6753, 0
      %6766 = vmatprep.subr.bf16.mxu0 %v5629
      %6767 = vmatpush1.bf16.msra.mxu0 %v5628
      %6768 = vmatprep.subr.bf16.mxu0 %v5631
      %6769 = vmatpush1.bf16.msra.mxu0 %v5630
      %6770 = vmatprep.subr.bf16.mxu0 %v5633
      %6771 = vmatpush1.bf16.msra.mxu0 %v5632
      %6772 = vmatprep.subr.bf16.mxu0 %v5635
      %6773 = vmatpush1.bf16.msra.mxu0 %v5634
      %6774 = vmatprep.subr.bf16.mxu0 0
      %6775 = vmatpush1.bf16.msra.mxu0 0
      %6776 = vmatprep.subr.bf16.mxu0 0
      %6777 = vmatpush1.bf16.msra.mxu0 0
      %6778 = vmatprep.subr.bf16.mxu0 0
      %6779 = vmatpush1.bf16.msra.mxu0 0
      %6780 = vmatprep.subr.bf16.mxu0 0
      %6781 = vmatpush1.bf16.msra.mxu0 0
      %6782 = vmatprep.subr.bf16.mxu0 0
      %6783 = vmatpush1.bf16.msra.mxu0 0
      %6784 = vmatprep.subr.bf16.mxu0 0
      %6785 = vmatpush1.bf16.msra.mxu0 0
      %6786 = vmatprep.subr.bf16.mxu0 0
      %6787 = vmatpush1.bf16.msra.mxu0 0
      %6788 = vmatprep.subr.bf16.mxu0 0
      %6789 = vmatpush1.bf16.msra.mxu0 0
      %6790 = vmatprep.subr.bf16.mxu0 0
      %6791 = vmatpush1.bf16.msra.mxu0 0
      %6792 = vmatprep.subr.bf16.mxu0 0
      %6793 = vmatpush1.bf16.msra.mxu0 0
      %6794 = vmatprep.subr.bf16.mxu0 0
      %6795 = vmatpush1.bf16.msra.mxu0 0
      %6796 = vmatprep.subr.bf16.mxu0 0
      %6797 = vmatpush1.bf16.msra.mxu0 0
      %6798 = vmatprep.mubr.bf16.mxu0 0
      %6799 = vmatmul.mubr.bf16.gmra.mrb[0].mxu0 %v6755
      %v6800 = vpop.f32.mrb[0].mxu0
      %v6801 = vadd.f32 0.0, %v6800
      %v6802 = vpop.f32.mrb[0].mxu0
      %v6803 = vadd.f32 0.0, %v6802
      %v6804 = vpop.f32.mrb[0].mxu0
      %v6805 = vadd.f32 0.0, %v6804
      %v6806 = vpop.f32.mrb[0].mxu0
      %v6807 = vadd.f32 0.0, %v6806
      %6808 = vmatprep.mubr.bf16.mxu0 0
      %6809 = vmatmul.mubr.bf16.gmra.mrb[0].mxu0 %v6758
      %v6810 = vpop.f32.mrb[0].mxu0
      %v6811 = vadd.f32 0.0, %v6810
      %v6812 = vpop.f32.mrb[0].mxu0
      %v6813 = vadd.f32 0.0, %v6812
      %v6814 = vpop.f32.mrb[0].mxu0
      %v6815 = vadd.f32 0.0, %v6814
      %v6816 = vpop.f32.mrb[0].mxu0
      %v6817 = vadd.f32 0.0, %v6816
      %6818 = vmatprep.mubr.bf16.mxu0 0
      %6819 = vmatmul.mubr.bf16.gmra.mrb[0].mxu0 %v6761
      %v6820 = vpop.f32.mrb[0].mxu0
      %v6821 = vadd.f32 0.0, %v6820
      %v6822 = vpop.f32.mrb[0].mxu0
      %v6823 = vadd.f32 0.0, %v6822
      %v6824 = vpop.f32.mrb[0].mxu0
      %v6825 = vadd.f32 0.0, %v6824
      %v6826 = vpop.f32.mrb[0].mxu0
      %v6827 = vadd.f32 0.0, %v6826
      %6828 = vmatprep.mubr.bf16.mxu0 0
      %6829 = vmatmul.mubr.bf16.gmra.mrb[0].mxu0 %v6764
      %v6830 = vpop.f32.mrb[0].mxu0
      %v6831 = vadd.f32 0.0, %v6830
      %v6832 = vpop.f32.mrb[0].mxu0
      %v6833 = vadd.f32 0.0, %v6832
      %v6834 = vpop.f32.mrb[0].mxu0
      %v6835 = vadd.f32 0.0, %v6834
      %v6836 = vpop.f32.mrb[0].mxu0
      %v6837 = vadd.f32 0.0, %v6836
      %6838 = vdwg.mxu0
      %v6839 = vadd.f32 %v5329, %v6801
      %v6840 = vadd.f32 %v5331, %v6803
      %v6841 = vadd.f32 %v5333, %v6805
      %v6842 = vadd.f32 %v5335, %v6807
      %v6843 = vadd.f32 %v5339, %v6811
      %v6844 = vadd.f32 %v5341, %v6813
      %v6845 = vadd.f32 %v5343, %v6815
      %v6846 = vadd.f32 %v5345, %v6817
      %v6847 = vadd.f32 %v5349, %v6821
      %v6848 = vadd.f32 %v5351, %v6823
      %v6849 = vadd.f32 %v5353, %v6825
      %v6850 = vadd.f32 %v5355, %v6827
      %v6851 = vadd.f32 %v5359, %v6831
      %v6852 = vadd.f32 %v5361, %v6833
      %v6853 = vadd.f32 %v5363, %v6835
      %v6854 = vadd.f32 %v5365, %v6837
      %v6855 = vmax.f32 %v6839, 0.0
      %v6856 = vmax.f32 %v6840, 0.0
      %v6857 = vmax.f32 %v6841, 0.0
      %v6858 = vmax.f32 %v6842, 0.0
      %v6859 = vmax.f32 %v6843, 0.0
      %v6860 = vmax.f32 %v6844, 0.0
      %v6861 = vmax.f32 %v6845, 0.0
      %v6862 = vmax.f32 %v6846, 0.0
      %v6863 = vmax.f32 %v6847, 0.0
      %v6864 = vmax.f32 %v6848, 0.0
      %v6865 = vmax.f32 %v6849, 0.0
      %v6866 = vmax.f32 %v6850, 0.0
      %v6867 = vmax.f32 %v6851, 0.0
      %v6868 = vmax.f32 %v6852, 0.0
      %v6869 = vmax.f32 %v6853, 0.0
      %v6870 = vmax.f32 %v6854, 0.0
      %v6871 = vmax.f32 %v6501, %v6855
      %v6872 = vmax.f32 %v6502, %v6856
      %v6873 = vmax.f32 %v6503, %v6857
      %v6874 = vmax.f32 %v6504, %v6858
      %v6875 = vmax.f32 %v6505, %v6859
      %v6876 = vmax.f32 %v6506, %v6860
      %v6877 = vmax.f32 %v6507, %v6861
      %v6878 = vmax.f32 %v6508, %v6862
      %v6879 = vmax.f32 %v6509, %v6863
      %v6880 = vmax.f32 %v6510, %v6864
      %v6881 = vmax.f32 %v6511, %v6865
      %v6882 = vmax.f32 %v6512, %v6866
      %v6883 = vmax.f32 %v6513, %v6867
      %v6884 = vmax.f32 %v6514, %v6868
      %v6885 = vmax.f32 %v6515, %v6869
      %v6886 = vmax.f32 %v6516, %v6870
      %v6887 = vsel %vm671, %v6589, inf
      %6888 = vmin.xlane.f32.xlu0 %v6887
      %v6889 = vpop.xlane.xlu0 %6888
      %v6890 = vsel %vm671, %v6590, inf
      %6891 = vmin.xlane.f32.xlu0 %v6890
      %v6892 = vpop.xlane.xlu0 %6891
      %v6893 = vsel %vm671, %v6591, inf
      %6894 = vmin.xlane.f32.xlu0 %v6893
      %v6895 = vpop.xlane.xlu0 %6894
      %v6896 = vsel %vm671, %v6592, inf
      %6897 = vmin.xlane.f32.xlu0 %v6896
      %v6898 = vpop.xlane.xlu0 %6897
      %v6899 = vsel %vm671, %v6593, inf
      %6900 = vmin.xlane.f32.xlu0 %v6899
      %v6901 = vpop.xlane.xlu0 %6900
      %v6902 = vsel %vm671, %v6594, inf
      %6903 = vmin.xlane.f32.xlu0 %v6902
      %v6904 = vpop.xlane.xlu0 %6903
      %v6905 = vsel %vm671, %v6595, inf
      %6906 = vmin.xlane.f32.xlu0 %v6905
      %v6907 = vpop.xlane.xlu0 %6906
      %v6908 = vsel %vm671, %v6596, inf
      %6909 = vmin.xlane.f32.xlu0 %v6908
      %v6910 = vpop.xlane.xlu0 %6909
      %vm6911 = vcmp.le.f32.partialorder %v6589, %v6889
      %vm6912 = vcmp.le.f32.partialorder %v6590, %v6892
      %vm6913 = vcmp.le.f32.partialorder %v6591, %v6895
      %vm6914 = vcmp.le.f32.partialorder %v6592, %v6898
      %vm6915 = vcmp.le.f32.partialorder %v6593, %v6901
      %vm6916 = vcmp.le.f32.partialorder %v6594, %v6904
      %vm6917 = vcmp.le.f32.partialorder %v6595, %v6907
      %vm6918 = vcmp.le.f32.partialorder %v6596, %v6910
      %v6919 = vsel %vm6911, %v753, 64.0
      %v6920 = vsel %vm6912, %v753, 64.0
      %v6921 = vsel %vm6913, %v753, 64.0
      %v6922 = vsel %vm6914, %v753, 64.0
      %v6923 = vsel %vm6915, %v753, 64.0
      %v6924 = vsel %vm6916, %v753, 64.0
      %v6925 = vsel %vm6917, %v753, 64.0
      %v6926 = vsel %vm6918, %v753, 64.0
      %v6927 = vsel %vm671, %v6919, inf
      %6928 = vmin.xlane.f32.xlu0 %v6927
      %v6929 = vpop.xlane.xlu0 %6928
      %v6930 = vsel %vm671, %v6920, inf
      %6931 = vmin.xlane.f32.xlu0 %v6930
      %v6932 = vpop.xlane.xlu0 %6931
      %v6933 = vsel %vm671, %v6921, inf
      %6934 = vmin.xlane.f32.xlu0 %v6933
      %v6935 = vpop.xlane.xlu0 %6934
      %v6936 = vsel %vm671, %v6922, inf
      %6937 = vmin.xlane.f32.xlu0 %v6936
      %v6938 = vpop.xlane.xlu0 %6937
      %v6939 = vsel %vm671, %v6923, inf
      %6940 = vmin.xlane.f32.xlu0 %v6939
      %v6941 = vpop.xlane.xlu0 %6940
      %v6942 = vsel %vm671, %v6924, inf
      %6943 = vmin.xlane.f32.xlu0 %v6942
      %v6944 = vpop.xlane.xlu0 %6943
      %v6945 = vsel %vm671, %v6925, inf
      %6946 = vmin.xlane.f32.xlu0 %v6945
      %v6947 = vpop.xlane.xlu0 %6946
      %v6948 = vsel %vm671, %v6926, inf
      %6949 = vmin.xlane.f32.xlu0 %v6948
      %v6950 = vpop.xlane.xlu0 %6949
      %vm6951 = vcmp.eq.f32.partialorder %v753, %v6929
      %vm6952 = vcmp.eq.f32.partialorder %v753, %v6932
      %vm6953 = vcmp.eq.f32.partialorder %v753, %v6935
      %vm6954 = vcmp.eq.f32.partialorder %v753, %v6938
      %vm6955 = vcmp.eq.f32.partialorder %v753, %v6941
      %vm6956 = vcmp.eq.f32.partialorder %v753, %v6944
      %vm6957 = vcmp.eq.f32.partialorder %v753, %v6947
      %vm6958 = vcmp.eq.f32.partialorder %v753, %v6950
      %v6959 = vsel %vm6951, 1e+30, %v6589
      %v6960 = vsel %vm6952, 1e+30, %v6590
      %v6961 = vsel %vm6953, 1e+30, %v6591
      %v6962 = vsel %vm6954, 1e+30, %v6592
      %v6963 = vsel %vm6955, 1e+30, %v6593
      %v6964 = vsel %vm6956, 1e+30, %v6594
      %v6965 = vsel %vm6957, 1e+30, %v6595
      %v6966 = vsel %vm6958, 1e+30, %v6596
      %v6967 = vsel %vm6951, 1, 0
      %v6968 = vsel %vm6952, 1, 0
      %v6969 = vsel %vm6953, 1, 0
      %v6970 = vsel %vm6954, 1, 0
      %v6971 = vsel %vm6955, 1, 0
      %v6972 = vsel %vm6956, 1, 0
      %v6973 = vsel %vm6957, 1, 0
      %v6974 = vsel %vm6958, 1, 0
      %v6975 = vcvt.s32.f32 %v6967
      %v6976 = vcvt.s32.f32 %v6968
      %v6977 = vcvt.s32.f32 %v6969
      %v6978 = vcvt.s32.f32 %v6970
      %v6979 = vcvt.s32.f32 %v6971
      %v6980 = vcvt.s32.f32 %v6972
      %v6981 = vcvt.s32.f32 %v6973
      %v6982 = vcvt.s32.f32 %v6974
      %v6984 = vsel %vm671, %v6975, 0
      %v6987 = vsel %vm671, %v6976, 0
      %v6990 = vsel %vm671, %v6977, 0
      %v6993 = vsel %vm671, %v6978, 0
      %v6996 = vsel %vm671, %v6979, 0
      %v6999 = vsel %vm671, %v6980, 0
      %v7002 = vsel %vm671, %v6981, 0
      %v7005 = vsel %vm671, %v6982, 0
      %7007 = vmatprep.subr.mxu0 0.0
      %7008 = vmatpush1.msra.mxu0 %v5020
      %7009 = vmatprep.subr.mxu0 0.0
      %7010 = vmatpush1.msra.mxu0 %v5021
      %7011 = vmatprep.subr.mxu0 0.0
      %7012 = vmatpush1.msra.mxu0 %v5022
      %7013 = vmatprep.subr.mxu0 0.0
      %7014 = vmatpush1.msra.mxu0 %v5023
      %7015 = vmatprep.subr.mxu0 0.0
      %7016 = vmatpush1.msra.mxu0 %v5024
      %7017 = vmatprep.subr.mxu0 0.0
      %7018 = vmatpush1.msra.mxu0 %v5025
      %7019 = vmatprep.subr.mxu0 0.0
      %7020 = vmatpush1.msra.mxu0 %v5026
      %7021 = vmatprep.subr.mxu0 0.0
      %7022 = vmatpush1.msra.mxu0 %v5027
      %7023 = vmatprep.subr.mxu0 0.0
      %7024 = vmatpush1.msra.mxu0 0.0
      %7025 = vmatprep.subr.mxu0 0.0
      %7026 = vmatpush1.msra.mxu0 0.0
      %7027 = vmatprep.subr.mxu0 0.0
      %7028 = vmatpush1.msra.mxu0 0.0
      %7029 = vmatprep.subr.mxu0 0.0
      %7030 = vmatpush1.msra.mxu0 0.0
      %7031 = vmatprep.subr.mxu0 0.0
      %7032 = vmatpush1.msra.mxu0 0.0
      %7033 = vmatprep.subr.mxu0 0.0
      %7034 = vmatpush1.msra.mxu0 0.0
      %7035 = vmatprep.subr.mxu0 0.0
      %7036 = vmatpush1.msra.mxu0 0.0
      %7037 = vmatprep.subr.mxu0 0.0
      %7038 = vmatpush1.msra.mxu0 0.0
      %7039 = vmatprep.subr.mxu0 0.0
      %7040 = vmatpush1.msra.mxu0 0.0
      %7041 = vmatprep.subr.mxu0 0.0
      %7042 = vmatpush1.msra.mxu0 0.0
      %7043 = vmatprep.subr.mxu0 0.0
      %7044 = vmatpush1.msra.mxu0 0.0
      %7045 = vmatprep.subr.mxu0 0.0
      %7046 = vmatpush1.msra.mxu0 0.0
      %7047 = vmatprep.subr.mxu0 0.0
      %7048 = vmatpush1.msra.mxu0 0.0
      %7049 = vmatprep.subr.mxu0 0.0
      %7050 = vmatpush1.msra.mxu0 0.0
      %7051 = vmatprep.subr.mxu0 0.0
      %7052 = vmatpush1.msra.mxu0 0.0
      %7053 = vmatprep.subr.mxu0 0.0
      %7054 = vmatpush1.msra.mxu0 0.0
      %7055 = vmatprep.subr.mxu0 0.0
      %7056 = vmatpush1.msra.mxu0 0.0
      %7057 = vmatprep.subr.mxu0 0.0
      %7058 = vmatpush1.msra.mxu0 0.0
      %7059 = vmatprep.subr.mxu0 0.0
      %7060 = vmatpush1.msra.mxu0 0.0
      %7061 = vmatprep.subr.mxu0 0.0
      %7062 = vmatpush1.msra.mxu0 0.0
      %7063 = vmatprep.subr.mxu0 0.0
      %7064 = vmatpush1.msra.mxu0 0.0
      %7065 = vmatprep.subr.mxu0 0.0
      %7066 = vmatpush1.msra.mxu0 0.0
      %7067 = vmatprep.subr.mxu0 0.0
      %7068 = vmatpush1.msra.mxu0 0.0
      %7069 = vmatprep.subr.mxu0 0.0
      %7070 = vmatpush1.msra.mxu0 0.0
      %7071 = vmatprep.mubr.f32.mxu0 0.0
      %7072 = vmatmul.mubr.f32.gmra.mrb[0].mxu0 %v6984
      %v7073 = vpop.f32.mrb[0].mxu0
      %v7074 = vadd.f32 0.0, %v7073
      %v7075 = vpop.f32.mrb[0].mxu0
      %7076 = vmatprep.mubr.f32.mxu0 0.0
      %7077 = vmatmul.mubr.f32.gmra.mrb[0].mxu0 %v6987
      %v7078 = vpop.f32.mrb[0].mxu0
      %v7079 = vadd.f32 0.0, %v7078
      %v7080 = vpop.f32.mrb[0].mxu0
      %7081 = vmatprep.mubr.f32.mxu0 0.0
      %7082 = vmatmul.mubr.f32.gmra.mrb[0].mxu0 %v6990
      %v7083 = vpop.f32.mrb[0].mxu0
      %v7084 = vadd.f32 0.0, %v7083
      %v7085 = vpop.f32.mrb[0].mxu0
      %7086 = vmatprep.mubr.f32.mxu0 0.0
      %7087 = vmatmul.mubr.f32.gmra.mrb[0].mxu0 %v6993
      %v7088 = vpop.f32.mrb[0].mxu0
      %v7089 = vadd.f32 0.0, %v7088
      %v7090 = vpop.f32.mrb[0].mxu0
      %7091 = vmatprep.mubr.f32.mxu0 0.0
      %7092 = vmatmul.mubr.f32.gmra.mrb[0].mxu0 %v6996
      %v7093 = vpop.f32.mrb[0].mxu0
      %v7094 = vadd.f32 0.0, %v7093
      %v7095 = vpop.f32.mrb[0].mxu0
      %7096 = vmatprep.mubr.f32.mxu0 0.0
      %7097 = vmatmul.mubr.f32.gmra.mrb[0].mxu0 %v6999
      %v7098 = vpop.f32.mrb[0].mxu0
      %v7099 = vadd.f32 0.0, %v7098
      %v7100 = vpop.f32.mrb[0].mxu0
      %7101 = vmatprep.mubr.f32.mxu0 0.0
      %7102 = vmatmul.mubr.f32.gmra.mrb[0].mxu0 %v7002
      %v7103 = vpop.f32.mrb[0].mxu0
      %v7104 = vadd.f32 0.0, %v7103
      %v7105 = vpop.f32.mrb[0].mxu0
      %7106 = vmatprep.mubr.f32.mxu0 0.0
      %7107 = vmatmul.mubr.f32.gmra.mrb[0].mxu0 %v7005
      %v7108 = vpop.f32.mrb[0].mxu0
      %v7109 = vadd.f32 0.0, %v7108
      %v7110 = vpop.f32.mrb[0].mxu0
      %7111 = vdwg.mxu0
      %v7112 = vsub.f32 %v7074, %v5020
      %v7113 = vsub.f32 %v7079, %v5021
      %v7114 = vsub.f32 %v7084, %v5022
      %v7115 = vsub.f32 %v7089, %v5023
      %v7116 = vsub.f32 %v7094, %v5024
      %v7117 = vsub.f32 %v7099, %v5025
      %v7118 = vsub.f32 %v7104, %v5026
      %v7119 = vsub.f32 %v7109, %v5027
      %v7120 = vpack.c.bf16 %v7113, %v7112
      %v7121 = vpack.c.bf16 %v7115, %v7114
      %v7122 = vpack.c.bf16 %v7117, %v7116
      %v7123 = vpack.c.bf16 %v7119, %v7118
      %v7125 = vsel %vm671, %v7120, 0
      %v7128 = vsel %vm671, %v7121, 0
      %v7131 = vsel %vm671, %v7122, 0
      %v7134 = vsel %vm671, %v7123, 0
      %7136 = vmatprep.subr.bf16.mxu0 %v5629
      %7137 = vmatpush1.bf16.msra.mxu0 %v5628
      %7138 = vmatprep.subr.bf16.mxu0 %v5631
      %7139 = vmatpush1.bf16.msra.mxu0 %v5630
      %7140 = vmatprep.subr.bf16.mxu0 %v5633
      %7141 = vmatpush1.bf16.msra.mxu0 %v5632
      %7142 = vmatprep.subr.bf16.mxu0 %v5635
      %7143 = vmatpush1.bf16.msra.mxu0 %v5634
      %7144 = vmatprep.subr.bf16.mxu0 0
      %7145 = vmatpush1.bf16.msra.mxu0 0
      %7146 = vmatprep.subr.bf16.mxu0 0
      %7147 = vmatpush1.bf16.msra.mxu0 0
      %7148 = vmatprep.subr.bf16.mxu0 0
      %7149 = vmatpush1.bf16.msra.mxu0 0
      %7150 = vmatprep.subr.bf16.mxu0 0
      %7151 = vmatpush1.bf16.msra.mxu0 0
      %7152 = vmatprep.subr.bf16.mxu0 0
      %7153 = vmatpush1.bf16.msra.mxu0 0
      %7154 = vmatprep.subr.bf16.mxu0 0
      %7155 = vmatpush1.bf16.msra.mxu0 0
      %7156 = vmatprep.subr.bf16.mxu0 0
      %7157 = vmatpush1.bf16.msra.mxu0 0
      %7158 = vmatprep.subr.bf16.mxu0 0
      %7159 = vmatpush1.bf16.msra.mxu0 0
      %7160 = vmatprep.subr.bf16.mxu0 0
      %7161 = vmatpush1.bf16.msra.mxu0 0
      %7162 = vmatprep.subr.bf16.mxu0 0
      %7163 = vmatpush1.bf16.msra.mxu0 0
      %7164 = vmatprep.subr.bf16.mxu0 0
      %7165 = vmatpush1.bf16.msra.mxu0 0
      %7166 = vmatprep.subr.bf16.mxu0 0
      %7167 = vmatpush1.bf16.msra.mxu0 0
      %7168 = vmatprep.mubr.bf16.mxu0 0
      %7169 = vmatmul.mubr.bf16.gmra.mrb[0].mxu0 %v7125
      %v7170 = vpop.f32.mrb[0].mxu0
      %v7171 = vadd.f32 0.0, %v7170
      %v7172 = vpop.f32.mrb[0].mxu0
      %v7173 = vadd.f32 0.0, %v7172
      %v7174 = vpop.f32.mrb[0].mxu0
      %v7175 = vadd.f32 0.0, %v7174
      %v7176 = vpop.f32.mrb[0].mxu0
      %v7177 = vadd.f32 0.0, %v7176
      %7178 = vmatprep.mubr.bf16.mxu0 0
      %7179 = vmatmul.mubr.bf16.gmra.mrb[0].mxu0 %v7128
      %v7180 = vpop.f32.mrb[0].mxu0
      %v7181 = vadd.f32 0.0, %v7180
      %v7182 = vpop.f32.mrb[0].mxu0
      %v7183 = vadd.f32 0.0, %v7182
      %v7184 = vpop.f32.mrb[0].mxu0
      %v7185 = vadd.f32 0.0, %v7184
      %v7186 = vpop.f32.mrb[0].mxu0
      %v7187 = vadd.f32 0.0, %v7186
      %7188 = vmatprep.mubr.bf16.mxu0 0
      %7189 = vmatmul.mubr.bf16.gmra.mrb[0].mxu0 %v7131
      %v7190 = vpop.f32.mrb[0].mxu0
      %v7191 = vadd.f32 0.0, %v7190
      %v7192 = vpop.f32.mrb[0].mxu0
      %v7193 = vadd.f32 0.0, %v7192
      %v7194 = vpop.f32.mrb[0].mxu0
      %v7195 = vadd.f32 0.0, %v7194
      %v7196 = vpop.f32.mrb[0].mxu0
      %v7197 = vadd.f32 0.0, %v7196
      %7198 = vmatprep.mubr.bf16.mxu0 0
      %7199 = vmatmul.mubr.bf16.gmra.mrb[0].mxu0 %v7134
      %v7200 = vpop.f32.mrb[0].mxu0
      %v7201 = vadd.f32 0.0, %v7200
      %v7202 = vpop.f32.mrb[0].mxu0
      %v7203 = vadd.f32 0.0, %v7202
      %v7204 = vpop.f32.mrb[0].mxu0
      %v7205 = vadd.f32 0.0, %v7204
      %v7206 = vpop.f32.mrb[0].mxu0
      %v7207 = vadd.f32 0.0, %v7206
      %7208 = vdwg.mxu0
      %v7209 = vadd.f32 %v5329, %v7171
      %v7210 = vadd.f32 %v5331, %v7173
      %v7211 = vadd.f32 %v5333, %v7175
      %v7212 = vadd.f32 %v5335, %v7177
      %v7213 = vadd.f32 %v5339, %v7181
      %v7214 = vadd.f32 %v5341, %v7183
      %v7215 = vadd.f32 %v5343, %v7185
      %v7216 = vadd.f32 %v5345, %v7187
      %v7217 = vadd.f32 %v5349, %v7191
      %v7218 = vadd.f32 %v5351, %v7193
      %v7219 = vadd.f32 %v5353, %v7195
      %v7220 = vadd.f32 %v5355, %v7197
      %v7221 = vadd.f32 %v5359, %v7201
      %v7222 = vadd.f32 %v5361, %v7203
      %v7223 = vadd.f32 %v5363, %v7205
      %v7224 = vadd.f32 %v5365, %v7207
      %v7225 = vmax.f32 %v7209, 0.0
      %v7226 = vmax.f32 %v7210, 0.0
      %v7227 = vmax.f32 %v7211, 0.0
      %v7228 = vmax.f32 %v7212, 0.0
      %v7229 = vmax.f32 %v7213, 0.0
      %v7230 = vmax.f32 %v7214, 0.0
      %v7231 = vmax.f32 %v7215, 0.0
      %v7232 = vmax.f32 %v7216, 0.0
      %v7233 = vmax.f32 %v7217, 0.0
      %v7234 = vmax.f32 %v7218, 0.0
      %v7235 = vmax.f32 %v7219, 0.0
      %v7236 = vmax.f32 %v7220, 0.0
      %v7237 = vmax.f32 %v7221, 0.0
      %v7238 = vmax.f32 %v7222, 0.0
      %v7239 = vmax.f32 %v7223, 0.0
      %v7240 = vmax.f32 %v7224, 0.0
      %v7241 = vmax.f32 %v6871, %v7225
      %v7242 = vmax.f32 %v6872, %v7226
      %v7243 = vmax.f32 %v6873, %v7227
      %v7244 = vmax.f32 %v6874, %v7228
      %v7245 = vmax.f32 %v6875, %v7229
      %v7246 = vmax.f32 %v6876, %v7230
      %v7247 = vmax.f32 %v6877, %v7231
      %v7248 = vmax.f32 %v6878, %v7232
      %v7249 = vmax.f32 %v6879, %v7233
      %v7250 = vmax.f32 %v6880, %v7234
      %v7251 = vmax.f32 %v6881, %v7235
      %v7252 = vmax.f32 %v6882, %v7236
      %v7253 = vmax.f32 %v6883, %v7237
      %v7254 = vmax.f32 %v6884, %v7238
      %v7255 = vmax.f32 %v6885, %v7239
      %v7256 = vmax.f32 %v6886, %v7240
      %v7257 = vsel %vm671, %v6959, inf
      %7258 = vmin.xlane.f32.xlu0 %v7257
      %v7259 = vpop.xlane.xlu0 %7258
      %v7260 = vsel %vm671, %v6960, inf
      %7261 = vmin.xlane.f32.xlu0 %v7260
      %v7262 = vpop.xlane.xlu0 %7261
      %v7263 = vsel %vm671, %v6961, inf
      %7264 = vmin.xlane.f32.xlu0 %v7263
      %v7265 = vpop.xlane.xlu0 %7264
      %v7266 = vsel %vm671, %v6962, inf
      %7267 = vmin.xlane.f32.xlu0 %v7266
      %v7268 = vpop.xlane.xlu0 %7267
      %v7269 = vsel %vm671, %v6963, inf
      %7270 = vmin.xlane.f32.xlu0 %v7269
      %v7271 = vpop.xlane.xlu0 %7270
      %v7272 = vsel %vm671, %v6964, inf
      %7273 = vmin.xlane.f32.xlu0 %v7272
      %v7274 = vpop.xlane.xlu0 %7273
      %v7275 = vsel %vm671, %v6965, inf
      %7276 = vmin.xlane.f32.xlu0 %v7275
      %v7277 = vpop.xlane.xlu0 %7276
      %v7278 = vsel %vm671, %v6966, inf
      %7279 = vmin.xlane.f32.xlu0 %v7278
      %v7280 = vpop.xlane.xlu0 %7279
      %vm7281 = vcmp.le.f32.partialorder %v6959, %v7259
      %vm7282 = vcmp.le.f32.partialorder %v6960, %v7262
      %vm7283 = vcmp.le.f32.partialorder %v6961, %v7265
      %vm7284 = vcmp.le.f32.partialorder %v6962, %v7268
      %vm7285 = vcmp.le.f32.partialorder %v6963, %v7271
      %vm7286 = vcmp.le.f32.partialorder %v6964, %v7274
      %vm7287 = vcmp.le.f32.partialorder %v6965, %v7277
      %vm7288 = vcmp.le.f32.partialorder %v6966, %v7280
      %v7289 = vsel %vm7281, %v753, 64.0
      %v7290 = vsel %vm7282, %v753, 64.0
      %v7291 = vsel %vm7283, %v753, 64.0
      %v7292 = vsel %vm7284, %v753, 64.0
      %v7293 = vsel %vm7285, %v753, 64.0
      %v7294 = vsel %vm7286, %v753, 64.0
      %v7295 = vsel %vm7287, %v753, 64.0
      %v7296 = vsel %vm7288, %v753, 64.0
      %v7297 = vsel %vm671, %v7289, inf
      %7298 = vmin.xlane.f32.xlu0 %v7297
      %v7299 = vpop.xlane.xlu0 %7298
      %v7300 = vsel %vm671, %v7290, inf
      %7301 = vmin.xlane.f32.xlu0 %v7300
      %v7302 = vpop.xlane.xlu0 %7301
      %v7303 = vsel %vm671, %v7291, inf
      %7304 = vmin.xlane.f32.xlu0 %v7303
      %v7305 = vpop.xlane.xlu0 %7304
      %v7306 = vsel %vm671, %v7292, inf
      %7307 = vmin.xlane.f32.xlu0 %v7306
      %v7308 = vpop.xlane.xlu0 %7307
      %v7309 = vsel %vm671, %v7293, inf
      %7310 = vmin.xlane.f32.xlu0 %v7309
      %v7311 = vpop.xlane.xlu0 %7310
      %v7312 = vsel %vm671, %v7294, inf
      %7313 = vmin.xlane.f32.xlu0 %v7312
      %v7314 = vpop.xlane.xlu0 %7313
      %v7315 = vsel %vm671, %v7295, inf
      %7316 = vmin.xlane.f32.xlu0 %v7315
      %v7317 = vpop.xlane.xlu0 %7316
      %v7318 = vsel %vm671, %v7296, inf
      %7319 = vmin.xlane.f32.xlu0 %v7318
      %v7320 = vpop.xlane.xlu0 %7319
      %vm7321 = vcmp.eq.f32.partialorder %v753, %v7299
      %vm7322 = vcmp.eq.f32.partialorder %v753, %v7302
      %vm7323 = vcmp.eq.f32.partialorder %v753, %v7305
      %vm7324 = vcmp.eq.f32.partialorder %v753, %v7308
      %vm7325 = vcmp.eq.f32.partialorder %v753, %v7311
      %vm7326 = vcmp.eq.f32.partialorder %v753, %v7314
      %vm7327 = vcmp.eq.f32.partialorder %v753, %v7317
      %vm7328 = vcmp.eq.f32.partialorder %v753, %v7320
      %v7329 = vsel %vm7321, 1e+30, %v6959
      %v7330 = vsel %vm7322, 1e+30, %v6960
      %v7331 = vsel %vm7323, 1e+30, %v6961
      %v7332 = vsel %vm7324, 1e+30, %v6962
      %v7333 = vsel %vm7325, 1e+30, %v6963
      %v7334 = vsel %vm7326, 1e+30, %v6964
      %v7335 = vsel %vm7327, 1e+30, %v6965
      %v7336 = vsel %vm7328, 1e+30, %v6966
      %v7337 = vsel %vm7321, 1, 0
      %v7338 = vsel %vm7322, 1, 0
      %v7339 = vsel %vm7323, 1, 0
      %v7340 = vsel %vm7324, 1, 0
      %v7341 = vsel %vm7325, 1, 0
      %v7342 = vsel %vm7326, 1, 0
      %v7343 = vsel %vm7327, 1, 0
      %v7344 = vsel %vm7328, 1, 0
      %v7345 = vcvt.s32.f32 %v7337
      %v7346 = vcvt.s32.f32 %v7338
      %v7347 = vcvt.s32.f32 %v7339
      %v7348 = vcvt.s32.f32 %v7340
      %v7349 = vcvt.s32.f32 %v7341
      %v7350 = vcvt.s32.f32 %v7342
      %v7351 = vcvt.s32.f32 %v7343
      %v7352 = vcvt.s32.f32 %v7344
      %v7354 = vsel %vm671, %v7345, 0
      %v7357 = vsel %vm671, %v7346, 0
      %v7360 = vsel %vm671, %v7347, 0
      %v7363 = vsel %vm671, %v7348, 0
      %v7366 = vsel %vm671, %v7349, 0
      %v7369 = vsel %vm671, %v7350, 0
      %v7372 = vsel %vm671, %v7351, 0
      %v7375 = vsel %vm671, %v7352, 0
      %7377 = vmatprep.subr.mxu0 0.0
      %7378 = vmatpush1.msra.mxu0 %v5020
      %7379 = vmatprep.subr.mxu0 0.0
      %7380 = vmatpush1.msra.mxu0 %v5021
      %7381 = vmatprep.subr.mxu0 0.0
      %7382 = vmatpush1.msra.mxu0 %v5022
      %7383 = vmatprep.subr.mxu0 0.0
      %7384 = vmatpush1.msra.mxu0 %v5023
      %7385 = vmatprep.subr.mxu0 0.0
      %7386 = vmatpush1.msra.mxu0 %v5024
      %7387 = vmatprep.subr.mxu0 0.0
      %7388 = vmatpush1.msra.mxu0 %v5025
      %7389 = vmatprep.subr.mxu0 0.0
      %7390 = vmatpush1.msra.mxu0 %v5026
      %7391 = vmatprep.subr.mxu0 0.0
      %7392 = vmatpush1.msra.mxu0 %v5027
      %7393 = vmatprep.subr.mxu0 0.0
      %7394 = vmatpush1.msra.mxu0 0.0
      %7395 = vmatprep.subr.mxu0 0.0
      %7396 = vmatpush1.msra.mxu0 0.0
      %7397 = vmatprep.subr.mxu0 0.0
      %7398 = vmatpush1.msra.mxu0 0.0
      %7399 = vmatprep.subr.mxu0 0.0
      %7400 = vmatpush1.msra.mxu0 0.0
      %7401 = vmatprep.subr.mxu0 0.0
      %7402 = vmatpush1.msra.mxu0 0.0
      %7403 = vmatprep.subr.mxu0 0.0
      %7404 = vmatpush1.msra.mxu0 0.0
      %7405 = vmatprep.subr.mxu0 0.0
      %7406 = vmatpush1.msra.mxu0 0.0
      %7407 = vmatprep.subr.mxu0 0.0
      %7408 = vmatpush1.msra.mxu0 0.0
      %7409 = vmatprep.subr.mxu0 0.0
      %7410 = vmatpush1.msra.mxu0 0.0
      %7411 = vmatprep.subr.mxu0 0.0
      %7412 = vmatpush1.msra.mxu0 0.0
      %7413 = vmatprep.subr.mxu0 0.0
      %7414 = vmatpush1.msra.mxu0 0.0
      %7415 = vmatprep.subr.mxu0 0.0
      %7416 = vmatpush1.msra.mxu0 0.0
      %7417 = vmatprep.subr.mxu0 0.0
      %7418 = vmatpush1.msra.mxu0 0.0
      %7419 = vmatprep.subr.mxu0 0.0
      %7420 = vmatpush1.msra.mxu0 0.0
      %7421 = vmatprep.subr.mxu0 0.0
      %7422 = vmatpush1.msra.mxu0 0.0
      %7423 = vmatprep.subr.mxu0 0.0
      %7424 = vmatpush1.msra.mxu0 0.0
      %7425 = vmatprep.subr.mxu0 0.0
      %7426 = vmatpush1.msra.mxu0 0.0
      %7427 = vmatprep.subr.mxu0 0.0
      %7428 = vmatpush1.msra.mxu0 0.0
      %7429 = vmatprep.subr.mxu0 0.0
      %7430 = vmatpush1.msra.mxu0 0.0
      %7431 = vmatprep.subr.mxu0 0.0
      %7432 = vmatpush1.msra.mxu0 0.0
      %7433 = vmatprep.subr.mxu0 0.0
      %7434 = vmatpush1.msra.mxu0 0.0
      %7435 = vmatprep.subr.mxu0 0.0
      %7436 = vmatpush1.msra.mxu0 0.0
      %7437 = vmatprep.subr.mxu0 0.0
      %7438 = vmatpush1.msra.mxu0 0.0
      %7439 = vmatprep.subr.mxu0 0.0
      %7440 = vmatpush1.msra.mxu0 0.0
      %7441 = vmatprep.mubr.f32.mxu0 0.0
      %7442 = vmatmul.mubr.f32.gmra.mrb[0].mxu0 %v7354
      %v7443 = vpop.f32.mrb[0].mxu0
      %v7444 = vadd.f32 0.0, %v7443
      %v7445 = vpop.f32.mrb[0].mxu0
      %7446 = vmatprep.mubr.f32.mxu0 0.0
      %7447 = vmatmul.mubr.f32.gmra.mrb[0].mxu0 %v7357
      %v7448 = vpop.f32.mrb[0].mxu0
      %v7449 = vadd.f32 0.0, %v7448
      %v7450 = vpop.f32.mrb[0].mxu0
      %7451 = vmatprep.mubr.f32.mxu0 0.0
      %7452 = vmatmul.mubr.f32.gmra.mrb[0].mxu0 %v7360
      %v7453 = vpop.f32.mrb[0].mxu0
      %v7454 = vadd.f32 0.0, %v7453
      %v7455 = vpop.f32.mrb[0].mxu0
      %7456 = vmatprep.mubr.f32.mxu0 0.0
      %7457 = vmatmul.mubr.f32.gmra.mrb[0].mxu0 %v7363
      %v7458 = vpop.f32.mrb[0].mxu0
      %v7459 = vadd.f32 0.0, %v7458
      %v7460 = vpop.f32.mrb[0].mxu0
      %7461 = vmatprep.mubr.f32.mxu0 0.0
      %7462 = vmatmul.mubr.f32.gmra.mrb[0].mxu0 %v7366
      %v7463 = vpop.f32.mrb[0].mxu0
      %v7464 = vadd.f32 0.0, %v7463
      %v7465 = vpop.f32.mrb[0].mxu0
      %7466 = vmatprep.mubr.f32.mxu0 0.0
      %7467 = vmatmul.mubr.f32.gmra.mrb[0].mxu0 %v7369
      %v7468 = vpop.f32.mrb[0].mxu0
      %v7469 = vadd.f32 0.0, %v7468
      %v7470 = vpop.f32.mrb[0].mxu0
      %7471 = vmatprep.mubr.f32.mxu0 0.0
      %7472 = vmatmul.mubr.f32.gmra.mrb[0].mxu0 %v7372
      %v7473 = vpop.f32.mrb[0].mxu0
      %v7474 = vadd.f32 0.0, %v7473
      %v7475 = vpop.f32.mrb[0].mxu0
      %7476 = vmatprep.mubr.f32.mxu0 0.0
      %7477 = vmatmul.mubr.f32.gmra.mrb[0].mxu0 %v7375
      %v7478 = vpop.f32.mrb[0].mxu0
      %v7479 = vadd.f32 0.0, %v7478
      %v7480 = vpop.f32.mrb[0].mxu0
      %7481 = vdwg.mxu0
      %v7482 = vsub.f32 %v7444, %v5020
      %v7483 = vsub.f32 %v7449, %v5021
      %v7484 = vsub.f32 %v7454, %v5022
      %v7485 = vsub.f32 %v7459, %v5023
      %v7486 = vsub.f32 %v7464, %v5024
      %v7487 = vsub.f32 %v7469, %v5025
      %v7488 = vsub.f32 %v7474, %v5026
      %v7489 = vsub.f32 %v7479, %v5027
      %v7490 = vpack.c.bf16 %v7483, %v7482
      %v7491 = vpack.c.bf16 %v7485, %v7484
      %v7492 = vpack.c.bf16 %v7487, %v7486
      %v7493 = vpack.c.bf16 %v7489, %v7488
      %v7495 = vsel %vm671, %v7490, 0
      %v7498 = vsel %vm671, %v7491, 0
      %v7501 = vsel %vm671, %v7492, 0
      %v7504 = vsel %vm671, %v7493, 0
      %7506 = vmatprep.subr.bf16.mxu0 %v5629
      %7507 = vmatpush1.bf16.msra.mxu0 %v5628
      %7508 = vmatprep.subr.bf16.mxu0 %v5631
      %7509 = vmatpush1.bf16.msra.mxu0 %v5630
      %7510 = vmatprep.subr.bf16.mxu0 %v5633
      %7511 = vmatpush1.bf16.msra.mxu0 %v5632
      %7512 = vmatprep.subr.bf16.mxu0 %v5635
      %7513 = vmatpush1.bf16.msra.mxu0 %v5634
      %7514 = vmatprep.subr.bf16.mxu0 0
      %7515 = vmatpush1.bf16.msra.mxu0 0
      %7516 = vmatprep.subr.bf16.mxu0 0
      %7517 = vmatpush1.bf16.msra.mxu0 0
      %7518 = vmatprep.subr.bf16.mxu0 0
      %7519 = vmatpush1.bf16.msra.mxu0 0
      %7520 = vmatprep.subr.bf16.mxu0 0
      %7521 = vmatpush1.bf16.msra.mxu0 0
      %7522 = vmatprep.subr.bf16.mxu0 0
      %7523 = vmatpush1.bf16.msra.mxu0 0
      %7524 = vmatprep.subr.bf16.mxu0 0
      %7525 = vmatpush1.bf16.msra.mxu0 0
      %7526 = vmatprep.subr.bf16.mxu0 0
      %7527 = vmatpush1.bf16.msra.mxu0 0
      %7528 = vmatprep.subr.bf16.mxu0 0
      %7529 = vmatpush1.bf16.msra.mxu0 0
      %7530 = vmatprep.subr.bf16.mxu0 0
      %7531 = vmatpush1.bf16.msra.mxu0 0
      %7532 = vmatprep.subr.bf16.mxu0 0
      %7533 = vmatpush1.bf16.msra.mxu0 0
      %7534 = vmatprep.subr.bf16.mxu0 0
      %7535 = vmatpush1.bf16.msra.mxu0 0
      %7536 = vmatprep.subr.bf16.mxu0 0
      %7537 = vmatpush1.bf16.msra.mxu0 0
      %7538 = vmatprep.mubr.bf16.mxu0 0
      %7539 = vmatmul.mubr.bf16.gmra.mrb[0].mxu0 %v7495
      %v7540 = vpop.f32.mrb[0].mxu0
      %v7541 = vadd.f32 0.0, %v7540
      %v7542 = vpop.f32.mrb[0].mxu0
      %v7543 = vadd.f32 0.0, %v7542
      %v7544 = vpop.f32.mrb[0].mxu0
      %v7545 = vadd.f32 0.0, %v7544
      %v7546 = vpop.f32.mrb[0].mxu0
      %v7547 = vadd.f32 0.0, %v7546
      %7548 = vmatprep.mubr.bf16.mxu0 0
      %7549 = vmatmul.mubr.bf16.gmra.mrb[0].mxu0 %v7498
      %v7550 = vpop.f32.mrb[0].mxu0
      %v7551 = vadd.f32 0.0, %v7550
      %v7552 = vpop.f32.mrb[0].mxu0
      %v7553 = vadd.f32 0.0, %v7552
      %v7554 = vpop.f32.mrb[0].mxu0
      %v7555 = vadd.f32 0.0, %v7554
      %v7556 = vpop.f32.mrb[0].mxu0
      %v7557 = vadd.f32 0.0, %v7556
      %7558 = vmatprep.mubr.bf16.mxu0 0
      %7559 = vmatmul.mubr.bf16.gmra.mrb[0].mxu0 %v7501
      %v7560 = vpop.f32.mrb[0].mxu0
      %v7561 = vadd.f32 0.0, %v7560
      %v7562 = vpop.f32.mrb[0].mxu0
      %v7563 = vadd.f32 0.0, %v7562
      %v7564 = vpop.f32.mrb[0].mxu0
      %v7565 = vadd.f32 0.0, %v7564
      %v7566 = vpop.f32.mrb[0].mxu0
      %v7567 = vadd.f32 0.0, %v7566
      %7568 = vmatprep.mubr.bf16.mxu0 0
      %7569 = vmatmul.mubr.bf16.gmra.mrb[0].mxu0 %v7504
      %v7570 = vpop.f32.mrb[0].mxu0
      %v7571 = vadd.f32 0.0, %v7570
      %v7572 = vpop.f32.mrb[0].mxu0
      %v7573 = vadd.f32 0.0, %v7572
      %v7574 = vpop.f32.mrb[0].mxu0
      %v7575 = vadd.f32 0.0, %v7574
      %v7576 = vpop.f32.mrb[0].mxu0
      %v7577 = vadd.f32 0.0, %v7576
      %7578 = vdwg.mxu0
      %v7579 = vadd.f32 %v5329, %v7541
      %v7580 = vadd.f32 %v5331, %v7543
      %v7581 = vadd.f32 %v5333, %v7545
      %v7582 = vadd.f32 %v5335, %v7547
      %v7583 = vadd.f32 %v5339, %v7551
      %v7584 = vadd.f32 %v5341, %v7553
      %v7585 = vadd.f32 %v5343, %v7555
      %v7586 = vadd.f32 %v5345, %v7557
      %v7587 = vadd.f32 %v5349, %v7561
      %v7588 = vadd.f32 %v5351, %v7563
      %v7589 = vadd.f32 %v5353, %v7565
      %v7590 = vadd.f32 %v5355, %v7567
      %v7591 = vadd.f32 %v5359, %v7571
      %v7592 = vadd.f32 %v5361, %v7573
      %v7593 = vadd.f32 %v5363, %v7575
      %v7594 = vadd.f32 %v5365, %v7577
      %v7595 = vmax.f32 %v7579, 0.0
      %v7596 = vmax.f32 %v7580, 0.0
      %v7597 = vmax.f32 %v7581, 0.0
      %v7598 = vmax.f32 %v7582, 0.0
      %v7599 = vmax.f32 %v7583, 0.0
      %v7600 = vmax.f32 %v7584, 0.0
      %v7601 = vmax.f32 %v7585, 0.0
      %v7602 = vmax.f32 %v7586, 0.0
      %v7603 = vmax.f32 %v7587, 0.0
      %v7604 = vmax.f32 %v7588, 0.0
      %v7605 = vmax.f32 %v7589, 0.0
      %v7606 = vmax.f32 %v7590, 0.0
      %v7607 = vmax.f32 %v7591, 0.0
      %v7608 = vmax.f32 %v7592, 0.0
      %v7609 = vmax.f32 %v7593, 0.0
      %v7610 = vmax.f32 %v7594, 0.0
      %v7611 = vmax.f32 %v7241, %v7595
      %v7612 = vmax.f32 %v7242, %v7596
      %v7613 = vmax.f32 %v7243, %v7597
      %v7614 = vmax.f32 %v7244, %v7598
      %v7615 = vmax.f32 %v7245, %v7599
      %v7616 = vmax.f32 %v7246, %v7600
      %v7617 = vmax.f32 %v7247, %v7601
      %v7618 = vmax.f32 %v7248, %v7602
      %v7619 = vmax.f32 %v7249, %v7603
      %v7620 = vmax.f32 %v7250, %v7604
      %v7621 = vmax.f32 %v7251, %v7605
      %v7622 = vmax.f32 %v7252, %v7606
      %v7623 = vmax.f32 %v7253, %v7607
      %v7624 = vmax.f32 %v7254, %v7608
      %v7625 = vmax.f32 %v7255, %v7609
      %v7626 = vmax.f32 %v7256, %v7610
      %v7627 = vsel %vm671, %v7329, inf
      %7628 = vmin.xlane.f32.xlu0 %v7627
      %v7629 = vpop.xlane.xlu0 %7628
      %v7630 = vsel %vm671, %v7330, inf
      %7631 = vmin.xlane.f32.xlu0 %v7630
      %v7632 = vpop.xlane.xlu0 %7631
      %v7633 = vsel %vm671, %v7331, inf
      %7634 = vmin.xlane.f32.xlu0 %v7633
      %v7635 = vpop.xlane.xlu0 %7634
      %v7636 = vsel %vm671, %v7332, inf
      %7637 = vmin.xlane.f32.xlu0 %v7636
      %v7638 = vpop.xlane.xlu0 %7637
      %v7639 = vsel %vm671, %v7333, inf
      %7640 = vmin.xlane.f32.xlu0 %v7639
      %v7641 = vpop.xlane.xlu0 %7640
      %v7642 = vsel %vm671, %v7334, inf
      %7643 = vmin.xlane.f32.xlu0 %v7642
      %v7644 = vpop.xlane.xlu0 %7643
      %v7645 = vsel %vm671, %v7335, inf
      %7646 = vmin.xlane.f32.xlu0 %v7645
      %v7647 = vpop.xlane.xlu0 %7646
      %v7648 = vsel %vm671, %v7336, inf
      %7649 = vmin.xlane.f32.xlu0 %v7648
      %v7650 = vpop.xlane.xlu0 %7649
      %vm7651 = vcmp.le.f32.partialorder %v7329, %v7629
      %vm7652 = vcmp.le.f32.partialorder %v7330, %v7632
      %vm7653 = vcmp.le.f32.partialorder %v7331, %v7635
      %vm7654 = vcmp.le.f32.partialorder %v7332, %v7638
      %vm7655 = vcmp.le.f32.partialorder %v7333, %v7641
      %vm7656 = vcmp.le.f32.partialorder %v7334, %v7644
      %vm7657 = vcmp.le.f32.partialorder %v7335, %v7647
      %vm7658 = vcmp.le.f32.partialorder %v7336, %v7650
      %v7659 = vsel %vm7651, %v753, 64.0
      %v7660 = vsel %vm7652, %v753, 64.0
      %v7661 = vsel %vm7653, %v753, 64.0
      %v7662 = vsel %vm7654, %v753, 64.0
      %v7663 = vsel %vm7655, %v753, 64.0
      %v7664 = vsel %vm7656, %v753, 64.0
      %v7665 = vsel %vm7657, %v753, 64.0
      %v7666 = vsel %vm7658, %v753, 64.0
      %v7667 = vsel %vm671, %v7659, inf
      %7668 = vmin.xlane.f32.xlu0 %v7667
      %v7669 = vpop.xlane.xlu0 %7668
      %v7670 = vsel %vm671, %v7660, inf
      %7671 = vmin.xlane.f32.xlu0 %v7670
      %v7672 = vpop.xlane.xlu0 %7671
      %v7673 = vsel %vm671, %v7661, inf
      %7674 = vmin.xlane.f32.xlu0 %v7673
      %v7675 = vpop.xlane.xlu0 %7674
      %v7676 = vsel %vm671, %v7662, inf
      %7677 = vmin.xlane.f32.xlu0 %v7676
      %v7678 = vpop.xlane.xlu0 %7677
      %v7679 = vsel %vm671, %v7663, inf
      %7680 = vmin.xlane.f32.xlu0 %v7679
      %v7681 = vpop.xlane.xlu0 %7680
      %v7682 = vsel %vm671, %v7664, inf
      %7683 = vmin.xlane.f32.xlu0 %v7682
      %v7684 = vpop.xlane.xlu0 %7683
      %v7685 = vsel %vm671, %v7665, inf
      %7686 = vmin.xlane.f32.xlu0 %v7685
      %v7687 = vpop.xlane.xlu0 %7686
      %v7688 = vsel %vm671, %v7666, inf
      %7689 = vmin.xlane.f32.xlu0 %v7688
      %v7690 = vpop.xlane.xlu0 %7689
      %vm7691 = vcmp.eq.f32.partialorder %v753, %v7669
      %vm7692 = vcmp.eq.f32.partialorder %v753, %v7672
      %vm7693 = vcmp.eq.f32.partialorder %v753, %v7675
      %vm7694 = vcmp.eq.f32.partialorder %v753, %v7678
      %vm7695 = vcmp.eq.f32.partialorder %v753, %v7681
      %vm7696 = vcmp.eq.f32.partialorder %v753, %v7684
      %vm7697 = vcmp.eq.f32.partialorder %v753, %v7687
      %vm7698 = vcmp.eq.f32.partialorder %v753, %v7690
      %v7699 = vsel %vm7691, 1e+30, %v7329
      %v7700 = vsel %vm7692, 1e+30, %v7330
      %v7701 = vsel %vm7693, 1e+30, %v7331
      %v7702 = vsel %vm7694, 1e+30, %v7332
      %v7703 = vsel %vm7695, 1e+30, %v7333
      %v7704 = vsel %vm7696, 1e+30, %v7334
      %v7705 = vsel %vm7697, 1e+30, %v7335
      %v7706 = vsel %vm7698, 1e+30, %v7336
      %v7707 = vsel %vm7691, 1, 0
      %v7708 = vsel %vm7692, 1, 0
      %v7709 = vsel %vm7693, 1, 0
      %v7710 = vsel %vm7694, 1, 0
      %v7711 = vsel %vm7695, 1, 0
      %v7712 = vsel %vm7696, 1, 0
      %v7713 = vsel %vm7697, 1, 0
      %v7714 = vsel %vm7698, 1, 0
      %v7715 = vcvt.s32.f32 %v7707
      %v7716 = vcvt.s32.f32 %v7708
      %v7717 = vcvt.s32.f32 %v7709
      %v7718 = vcvt.s32.f32 %v7710
      %v7719 = vcvt.s32.f32 %v7711
      %v7720 = vcvt.s32.f32 %v7712
      %v7721 = vcvt.s32.f32 %v7713
      %v7722 = vcvt.s32.f32 %v7714
      %v7724 = vsel %vm671, %v7715, 0
      %v7727 = vsel %vm671, %v7716, 0
      %v7730 = vsel %vm671, %v7717, 0
      %v7733 = vsel %vm671, %v7718, 0
      %v7736 = vsel %vm671, %v7719, 0
      %v7739 = vsel %vm671, %v7720, 0
      %v7742 = vsel %vm671, %v7721, 0
      %v7745 = vsel %vm671, %v7722, 0
      %7747 = vmatprep.subr.mxu0 0.0
      %7748 = vmatpush1.msra.mxu0 %v5020
      %7749 = vmatprep.subr.mxu0 0.0
      %7750 = vmatpush1.msra.mxu0 %v5021
      %7751 = vmatprep.subr.mxu0 0.0
      %7752 = vmatpush1.msra.mxu0 %v5022
      %7753 = vmatprep.subr.mxu0 0.0
      %7754 = vmatpush1.msra.mxu0 %v5023
      %7755 = vmatprep.subr.mxu0 0.0
      %7756 = vmatpush1.msra.mxu0 %v5024
      %7757 = vmatprep.subr.mxu0 0.0
      %7758 = vmatpush1.msra.mxu0 %v5025
      %7759 = vmatprep.subr.mxu0 0.0
      %7760 = vmatpush1.msra.mxu0 %v5026
      %7761 = vmatprep.subr.mxu0 0.0
      %7762 = vmatpush1.msra.mxu0 %v5027
      %7763 = vmatprep.subr.mxu0 0.0
      %7764 = vmatpush1.msra.mxu0 0.0
      %7765 = vmatprep.subr.mxu0 0.0
      %7766 = vmatpush1.msra.mxu0 0.0
      %7767 = vmatprep.subr.mxu0 0.0
      %7768 = vmatpush1.msra.mxu0 0.0
      %7769 = vmatprep.subr.mxu0 0.0
      %7770 = vmatpush1.msra.mxu0 0.0
      %7771 = vmatprep.subr.mxu0 0.0
      %7772 = vmatpush1.msra.mxu0 0.0
      %7773 = vmatprep.subr.mxu0 0.0
      %7774 = vmatpush1.msra.mxu0 0.0
      %7775 = vmatprep.subr.mxu0 0.0
      %7776 = vmatpush1.msra.mxu0 0.0
      %7777 = vmatprep.subr.mxu0 0.0
      %7778 = vmatpush1.msra.mxu0 0.0
      %7779 = vmatprep.subr.mxu0 0.0
      %7780 = vmatpush1.msra.mxu0 0.0
      %7781 = vmatprep.subr.mxu0 0.0
      %7782 = vmatpush1.msra.mxu0 0.0
      %7783 = vmatprep.subr.mxu0 0.0
      %7784 = vmatpush1.msra.mxu0 0.0
      %7785 = vmatprep.subr.mxu0 0.0
      %7786 = vmatpush1.msra.mxu0 0.0
      %7787 = vmatprep.subr.mxu0 0.0
      %7788 = vmatpush1.msra.mxu0 0.0
      %7789 = vmatprep.subr.mxu0 0.0
      %7790 = vmatpush1.msra.mxu0 0.0
      %7791 = vmatprep.subr.mxu0 0.0
      %7792 = vmatpush1.msra.mxu0 0.0
      %7793 = vmatprep.subr.mxu0 0.0
      %7794 = vmatpush1.msra.mxu0 0.0
      %7795 = vmatprep.subr.mxu0 0.0
      %7796 = vmatpush1.msra.mxu0 0.0
      %7797 = vmatprep.subr.mxu0 0.0
      %7798 = vmatpush1.msra.mxu0 0.0
      %7799 = vmatprep.subr.mxu0 0.0
      %7800 = vmatpush1.msra.mxu0 0.0
      %7801 = vmatprep.subr.mxu0 0.0
      %7802 = vmatpush1.msra.mxu0 0.0
      %7803 = vmatprep.subr.mxu0 0.0
      %7804 = vmatpush1.msra.mxu0 0.0
      %7805 = vmatprep.subr.mxu0 0.0
      %7806 = vmatpush1.msra.mxu0 0.0
      %7807 = vmatprep.subr.mxu0 0.0
      %7808 = vmatpush1.msra.mxu0 0.0
      %7809 = vmatprep.subr.mxu0 0.0
      %7810 = vmatpush1.msra.mxu0 0.0
      %7811 = vmatprep.mubr.f32.mxu0 0.0
      %7812 = vmatmul.mubr.f32.gmra.mrb[0].mxu0 %v7724
      %v7813 = vpop.f32.mrb[0].mxu0
      %v7814 = vadd.f32 0.0, %v7813
      %v7815 = vpop.f32.mrb[0].mxu0
      %7816 = vmatprep.mubr.f32.mxu0 0.0
      %7817 = vmatmul.mubr.f32.gmra.mrb[0].mxu0 %v7727
      %v7818 = vpop.f32.mrb[0].mxu0
      %v7819 = vadd.f32 0.0, %v7818
      %v7820 = vpop.f32.mrb[0].mxu0
      %7821 = vmatprep.mubr.f32.mxu0 0.0
      %7822 = vmatmul.mubr.f32.gmra.mrb[0].mxu0 %v7730
      %v7823 = vpop.f32.mrb[0].mxu0
      %v7824 = vadd.f32 0.0, %v7823
      %v7825 = vpop.f32.mrb[0].mxu0
      %7826 = vmatprep.mubr.f32.mxu0 0.0
      %7827 = vmatmul.mubr.f32.gmra.mrb[0].mxu0 %v7733
      %v7828 = vpop.f32.mrb[0].mxu0
      %v7829 = vadd.f32 0.0, %v7828
      %v7830 = vpop.f32.mrb[0].mxu0
      %7831 = vmatprep.mubr.f32.mxu0 0.0
      %7832 = vmatmul.mubr.f32.gmra.mrb[0].mxu0 %v7736
      %v7833 = vpop.f32.mrb[0].mxu0
      %v7834 = vadd.f32 0.0, %v7833
      %v7835 = vpop.f32.mrb[0].mxu0
      %7836 = vmatprep.mubr.f32.mxu0 0.0
      %7837 = vmatmul.mubr.f32.gmra.mrb[0].mxu0 %v7739
      %v7838 = vpop.f32.mrb[0].mxu0
      %v7839 = vadd.f32 0.0, %v7838
      %v7840 = vpop.f32.mrb[0].mxu0
      %7841 = vmatprep.mubr.f32.mxu0 0.0
      %7842 = vmatmul.mubr.f32.gmra.mrb[0].mxu0 %v7742
      %v7843 = vpop.f32.mrb[0].mxu0
      %v7844 = vadd.f32 0.0, %v7843
      %v7845 = vpop.f32.mrb[0].mxu0
      %7846 = vmatprep.mubr.f32.mxu0 0.0
      %7847 = vmatmul.mubr.f32.gmra.mrb[0].mxu0 %v7745
      %v7848 = vpop.f32.mrb[0].mxu0
      %v7849 = vadd.f32 0.0, %v7848
      %v7850 = vpop.f32.mrb[0].mxu0
      %7851 = vdwg.mxu0
      %v7852 = vsub.f32 %v7814, %v5020
      %v7853 = vsub.f32 %v7819, %v5021
      %v7854 = vsub.f32 %v7824, %v5022
      %v7855 = vsub.f32 %v7829, %v5023
      %v7856 = vsub.f32 %v7834, %v5024
      %v7857 = vsub.f32 %v7839, %v5025
      %v7858 = vsub.f32 %v7844, %v5026
      %v7859 = vsub.f32 %v7849, %v5027
      %v7860 = vpack.c.bf16 %v7853, %v7852
      %v7861 = vpack.c.bf16 %v7855, %v7854
      %v7862 = vpack.c.bf16 %v7857, %v7856
      %v7863 = vpack.c.bf16 %v7859, %v7858
      %v7865 = vsel %vm671, %v7860, 0
      %v7868 = vsel %vm671, %v7861, 0
      %v7871 = vsel %vm671, %v7862, 0
      %v7874 = vsel %vm671, %v7863, 0
      %7876 = vmatprep.subr.bf16.mxu0 %v5629
      %7877 = vmatpush1.bf16.msra.mxu0 %v5628
      %7878 = vmatprep.subr.bf16.mxu0 %v5631
      %7879 = vmatpush1.bf16.msra.mxu0 %v5630
      %7880 = vmatprep.subr.bf16.mxu0 %v5633
      %7881 = vmatpush1.bf16.msra.mxu0 %v5632
      %7882 = vmatprep.subr.bf16.mxu0 %v5635
      %7883 = vmatpush1.bf16.msra.mxu0 %v5634
      %7884 = vmatprep.subr.bf16.mxu0 0
      %7885 = vmatpush1.bf16.msra.mxu0 0
      %7886 = vmatprep.subr.bf16.mxu0 0
      %7887 = vmatpush1.bf16.msra.mxu0 0
      %7888 = vmatprep.subr.bf16.mxu0 0
      %7889 = vmatpush1.bf16.msra.mxu0 0
      %7890 = vmatprep.subr.bf16.mxu0 0
      %7891 = vmatpush1.bf16.msra.mxu0 0
      %7892 = vmatprep.subr.bf16.mxu0 0
      %7893 = vmatpush1.bf16.msra.mxu0 0
      %7894 = vmatprep.subr.bf16.mxu0 0
      %7895 = vmatpush1.bf16.msra.mxu0 0
      %7896 = vmatprep.subr.bf16.mxu0 0
      %7897 = vmatpush1.bf16.msra.mxu0 0
      %7898 = vmatprep.subr.bf16.mxu0 0
      %7899 = vmatpush1.bf16.msra.mxu0 0
      %7900 = vmatprep.subr.bf16.mxu0 0
      %7901 = vmatpush1.bf16.msra.mxu0 0
      %7902 = vmatprep.subr.bf16.mxu0 0
      %7903 = vmatpush1.bf16.msra.mxu0 0
      %7904 = vmatprep.subr.bf16.mxu0 0
      %7905 = vmatpush1.bf16.msra.mxu0 0
      %7906 = vmatprep.subr.bf16.mxu0 0
      %7907 = vmatpush1.bf16.msra.mxu0 0
      %7908 = vmatprep.mubr.bf16.mxu0 0
      %7909 = vmatmul.mubr.bf16.gmra.mrb[0].mxu0 %v7865
      %v7910 = vpop.f32.mrb[0].mxu0
      %v7911 = vadd.f32 0.0, %v7910
      %v7912 = vpop.f32.mrb[0].mxu0
      %v7913 = vadd.f32 0.0, %v7912
      %v7914 = vpop.f32.mrb[0].mxu0
      %v7915 = vadd.f32 0.0, %v7914
      %v7916 = vpop.f32.mrb[0].mxu0
      %v7917 = vadd.f32 0.0, %v7916
      %7918 = vmatprep.mubr.bf16.mxu0 0
      %7919 = vmatmul.mubr.bf16.gmra.mrb[0].mxu0 %v7868
      %v7920 = vpop.f32.mrb[0].mxu0
      %v7921 = vadd.f32 0.0, %v7920
      %v7922 = vpop.f32.mrb[0].mxu0
      %v7923 = vadd.f32 0.0, %v7922
      %v7924 = vpop.f32.mrb[0].mxu0
      %v7925 = vadd.f32 0.0, %v7924
      %v7926 = vpop.f32.mrb[0].mxu0
      %v7927 = vadd.f32 0.0, %v7926
      %7928 = vmatprep.mubr.bf16.mxu0 0
      %7929 = vmatmul.mubr.bf16.gmra.mrb[0].mxu0 %v7871
      %v7930 = vpop.f32.mrb[0].mxu0
      %v7931 = vadd.f32 0.0, %v7930
      %v7932 = vpop.f32.mrb[0].mxu0
      %v7933 = vadd.f32 0.0, %v7932
      %v7934 = vpop.f32.mrb[0].mxu0
      %v7935 = vadd.f32 0.0, %v7934
      %v7936 = vpop.f32.mrb[0].mxu0
      %v7937 = vadd.f32 0.0, %v7936
      %7938 = vmatprep.mubr.bf16.mxu0 0
      %7939 = vmatmul.mubr.bf16.gmra.mrb[0].mxu0 %v7874
      %v7940 = vpop.f32.mrb[0].mxu0
      %v7941 = vadd.f32 0.0, %v7940
      %v7942 = vpop.f32.mrb[0].mxu0
      %v7943 = vadd.f32 0.0, %v7942
      %v7944 = vpop.f32.mrb[0].mxu0
      %v7945 = vadd.f32 0.0, %v7944
      %v7946 = vpop.f32.mrb[0].mxu0
      %v7947 = vadd.f32 0.0, %v7946
      %7948 = vdwg.mxu0
      %v7949 = vadd.f32 %v5329, %v7911
      %v7950 = vadd.f32 %v5331, %v7913
      %v7951 = vadd.f32 %v5333, %v7915
      %v7952 = vadd.f32 %v5335, %v7917
      %v7953 = vadd.f32 %v5339, %v7921
      %v7954 = vadd.f32 %v5341, %v7923
      %v7955 = vadd.f32 %v5343, %v7925
      %v7956 = vadd.f32 %v5345, %v7927
      %v7957 = vadd.f32 %v5349, %v7931
      %v7958 = vadd.f32 %v5351, %v7933
      %v7959 = vadd.f32 %v5353, %v7935
      %v7960 = vadd.f32 %v5355, %v7937
      %v7961 = vadd.f32 %v5359, %v7941
      %v7962 = vadd.f32 %v5361, %v7943
      %v7963 = vadd.f32 %v5363, %v7945
      %v7964 = vadd.f32 %v5365, %v7947
      %v7965 = vmax.f32 %v7949, 0.0
      %v7966 = vmax.f32 %v7950, 0.0
      %v7967 = vmax.f32 %v7951, 0.0
      %v7968 = vmax.f32 %v7952, 0.0
      %v7969 = vmax.f32 %v7953, 0.0
      %v7970 = vmax.f32 %v7954, 0.0
      %v7971 = vmax.f32 %v7955, 0.0
      %v7972 = vmax.f32 %v7956, 0.0
      %v7973 = vmax.f32 %v7957, 0.0
      %v7974 = vmax.f32 %v7958, 0.0
      %v7975 = vmax.f32 %v7959, 0.0
      %v7976 = vmax.f32 %v7960, 0.0
      %v7977 = vmax.f32 %v7961, 0.0
      %v7978 = vmax.f32 %v7962, 0.0
      %v7979 = vmax.f32 %v7963, 0.0
      %v7980 = vmax.f32 %v7964, 0.0
      %v7981 = vmax.f32 %v7611, %v7965
      %v7982 = vmax.f32 %v7612, %v7966
      %v7983 = vmax.f32 %v7613, %v7967
      %v7984 = vmax.f32 %v7614, %v7968
      %v7985 = vmax.f32 %v7615, %v7969
      %v7986 = vmax.f32 %v7616, %v7970
      %v7987 = vmax.f32 %v7617, %v7971
      %v7988 = vmax.f32 %v7618, %v7972
      %v7989 = vmax.f32 %v7619, %v7973
      %v7990 = vmax.f32 %v7620, %v7974
      %v7991 = vmax.f32 %v7621, %v7975
      %v7992 = vmax.f32 %v7622, %v7976
      %v7993 = vmax.f32 %v7623, %v7977
      %v7994 = vmax.f32 %v7624, %v7978
      %v7995 = vmax.f32 %v7625, %v7979
      %v7996 = vmax.f32 %v7626, %v7980
      %v7997 = vsel %vm671, %v7699, inf
      %7998 = vmin.xlane.f32.xlu0 %v7997
      %v7999 = vpop.xlane.xlu0 %7998
      %v8000 = vsel %vm671, %v7700, inf
      %8001 = vmin.xlane.f32.xlu0 %v8000
      %v8002 = vpop.xlane.xlu0 %8001
      %v8003 = vsel %vm671, %v7701, inf
      %8004 = vmin.xlane.f32.xlu0 %v8003
      %v8005 = vpop.xlane.xlu0 %8004
      %v8006 = vsel %vm671, %v7702, inf
      %8007 = vmin.xlane.f32.xlu0 %v8006
      %v8008 = vpop.xlane.xlu0 %8007
      %v8009 = vsel %vm671, %v7703, inf
      %8010 = vmin.xlane.f32.xlu0 %v8009
      %v8011 = vpop.xlane.xlu0 %8010
      %v8012 = vsel %vm671, %v7704, inf
      %8013 = vmin.xlane.f32.xlu0 %v8012
      %v8014 = vpop.xlane.xlu0 %8013
      %v8015 = vsel %vm671, %v7705, inf
      %8016 = vmin.xlane.f32.xlu0 %v8015
      %v8017 = vpop.xlane.xlu0 %8016
      %v8018 = vsel %vm671, %v7706, inf
      %8019 = vmin.xlane.f32.xlu0 %v8018
      %v8020 = vpop.xlane.xlu0 %8019
      %vm8021 = vcmp.le.f32.partialorder %v7699, %v7999
      %vm8022 = vcmp.le.f32.partialorder %v7700, %v8002
      %vm8023 = vcmp.le.f32.partialorder %v7701, %v8005
      %vm8024 = vcmp.le.f32.partialorder %v7702, %v8008
      %vm8025 = vcmp.le.f32.partialorder %v7703, %v8011
      %vm8026 = vcmp.le.f32.partialorder %v7704, %v8014
      %vm8027 = vcmp.le.f32.partialorder %v7705, %v8017
      %vm8028 = vcmp.le.f32.partialorder %v7706, %v8020
      %v8029 = vsel %vm8021, %v753, 64.0
      %v8030 = vsel %vm8022, %v753, 64.0
      %v8031 = vsel %vm8023, %v753, 64.0
      %v8032 = vsel %vm8024, %v753, 64.0
      %v8033 = vsel %vm8025, %v753, 64.0
      %v8034 = vsel %vm8026, %v753, 64.0
      %v8035 = vsel %vm8027, %v753, 64.0
      %v8036 = vsel %vm8028, %v753, 64.0
      %v8037 = vsel %vm671, %v8029, inf
      %8038 = vmin.xlane.f32.xlu0 %v8037
      %v8039 = vpop.xlane.xlu0 %8038
      %v8040 = vsel %vm671, %v8030, inf
      %8041 = vmin.xlane.f32.xlu0 %v8040
      %v8042 = vpop.xlane.xlu0 %8041
      %v8043 = vsel %vm671, %v8031, inf
      %8044 = vmin.xlane.f32.xlu0 %v8043
      %v8045 = vpop.xlane.xlu0 %8044
      %v8046 = vsel %vm671, %v8032, inf
      %8047 = vmin.xlane.f32.xlu0 %v8046
      %v8048 = vpop.xlane.xlu0 %8047
      %v8049 = vsel %vm671, %v8033, inf
      %8050 = vmin.xlane.f32.xlu0 %v8049
      %v8051 = vpop.xlane.xlu0 %8050
      %v8052 = vsel %vm671, %v8034, inf
      %8053 = vmin.xlane.f32.xlu0 %v8052
      %v8054 = vpop.xlane.xlu0 %8053
      %v8055 = vsel %vm671, %v8035, inf
      %8056 = vmin.xlane.f32.xlu0 %v8055
      %v8057 = vpop.xlane.xlu0 %8056
      %v8058 = vsel %vm671, %v8036, inf
      %8059 = vmin.xlane.f32.xlu0 %v8058
      %v8060 = vpop.xlane.xlu0 %8059
      %vm8061 = vcmp.eq.f32.partialorder %v753, %v8039
      %vm8062 = vcmp.eq.f32.partialorder %v753, %v8042
      %vm8063 = vcmp.eq.f32.partialorder %v753, %v8045
      %vm8064 = vcmp.eq.f32.partialorder %v753, %v8048
      %vm8065 = vcmp.eq.f32.partialorder %v753, %v8051
      %vm8066 = vcmp.eq.f32.partialorder %v753, %v8054
      %vm8067 = vcmp.eq.f32.partialorder %v753, %v8057
      %vm8068 = vcmp.eq.f32.partialorder %v753, %v8060
      %v8069 = vsel %vm8061, 1, 0
      %v8070 = vsel %vm8062, 1, 0
      %v8071 = vsel %vm8063, 1, 0
      %v8072 = vsel %vm8064, 1, 0
      %v8073 = vsel %vm8065, 1, 0
      %v8074 = vsel %vm8066, 1, 0
      %v8075 = vsel %vm8067, 1, 0
      %v8076 = vsel %vm8068, 1, 0
      %v8077 = vcvt.s32.f32 %v8069
      %v8078 = vcvt.s32.f32 %v8070
      %v8079 = vcvt.s32.f32 %v8071
      %v8080 = vcvt.s32.f32 %v8072
      %v8081 = vcvt.s32.f32 %v8073
      %v8082 = vcvt.s32.f32 %v8074
      %v8083 = vcvt.s32.f32 %v8075
      %v8084 = vcvt.s32.f32 %v8076
      %v8086 = vsel %vm671, %v8077, 0
      %v8089 = vsel %vm671, %v8078, 0
      %v8092 = vsel %vm671, %v8079, 0
      %v8095 = vsel %vm671, %v8080, 0
      %v8098 = vsel %vm671, %v8081, 0
      %v8101 = vsel %vm671, %v8082, 0
      %v8104 = vsel %vm671, %v8083, 0
      %v8107 = vsel %vm671, %v8084, 0
      %8109 = vmatprep.subr.mxu0 0.0
      %8110 = vmatpush1.msra.mxu0 %v5020
      %8111 = vmatprep.subr.mxu0 0.0
      %8112 = vmatpush1.msra.mxu0 %v5021
      %8113 = vmatprep.subr.mxu0 0.0
      %8114 = vmatpush1.msra.mxu0 %v5022
      %8115 = vmatprep.subr.mxu0 0.0
      %8116 = vmatpush1.msra.mxu0 %v5023
      %8117 = vmatprep.subr.mxu0 0.0
      %8118 = vmatpush1.msra.mxu0 %v5024
      %8119 = vmatprep.subr.mxu0 0.0
      %8120 = vmatpush1.msra.mxu0 %v5025
      %8121 = vmatprep.subr.mxu0 0.0
      %8122 = vmatpush1.msra.mxu0 %v5026
      %8123 = vmatprep.subr.mxu0 0.0
      %8124 = vmatpush1.msra.mxu0 %v5027
      %8125 = vmatprep.subr.mxu0 0.0
      %8126 = vmatpush1.msra.mxu0 0.0
      %8127 = vmatprep.subr.mxu0 0.0
      %8128 = vmatpush1.msra.mxu0 0.0
      %8129 = vmatprep.subr.mxu0 0.0
      %8130 = vmatpush1.msra.mxu0 0.0
      %8131 = vmatprep.subr.mxu0 0.0
      %8132 = vmatpush1.msra.mxu0 0.0
      %8133 = vmatprep.subr.mxu0 0.0
      %8134 = vmatpush1.msra.mxu0 0.0
      %8135 = vmatprep.subr.mxu0 0.0
      %8136 = vmatpush1.msra.mxu0 0.0
      %8137 = vmatprep.subr.mxu0 0.0
      %8138 = vmatpush1.msra.mxu0 0.0
      %8139 = vmatprep.subr.mxu0 0.0
      %8140 = vmatpush1.msra.mxu0 0.0
      %8141 = vmatprep.subr.mxu0 0.0
      %8142 = vmatpush1.msra.mxu0 0.0
      %8143 = vmatprep.subr.mxu0 0.0
      %8144 = vmatpush1.msra.mxu0 0.0
      %8145 = vmatprep.subr.mxu0 0.0
      %8146 = vmatpush1.msra.mxu0 0.0
      %8147 = vmatprep.subr.mxu0 0.0
      %8148 = vmatpush1.msra.mxu0 0.0
      %8149 = vmatprep.subr.mxu0 0.0
      %8150 = vmatpush1.msra.mxu0 0.0
      %8151 = vmatprep.subr.mxu0 0.0
      %8152 = vmatpush1.msra.mxu0 0.0
      %8153 = vmatprep.subr.mxu0 0.0
      %8154 = vmatpush1.msra.mxu0 0.0
      %8155 = vmatprep.subr.mxu0 0.0
      %8156 = vmatpush1.msra.mxu0 0.0
      %8157 = vmatprep.subr.mxu0 0.0
      %8158 = vmatpush1.msra.mxu0 0.0
      %8159 = vmatprep.subr.mxu0 0.0
      %8160 = vmatpush1.msra.mxu0 0.0
      %8161 = vmatprep.subr.mxu0 0.0
      %8162 = vmatpush1.msra.mxu0 0.0
      %8163 = vmatprep.subr.mxu0 0.0
      %8164 = vmatpush1.msra.mxu0 0.0
      %8165 = vmatprep.subr.mxu0 0.0
      %8166 = vmatpush1.msra.mxu0 0.0
      %8167 = vmatprep.subr.mxu0 0.0
      %8168 = vmatpush1.msra.mxu0 0.0
      %8169 = vmatprep.subr.mxu0 0.0
      %8170 = vmatpush1.msra.mxu0 0.0
      %8171 = vmatprep.subr.mxu0 0.0
      %8172 = vmatpush1.msra.mxu0 0.0
      %8173 = vmatprep.mubr.f32.mxu0 0.0
      %8174 = vmatmul.mubr.f32.gmra.mrb[0].mxu0 %v8086
      %v8175 = vpop.f32.mrb[0].mxu0
      %v8176 = vadd.f32 0.0, %v8175
      %v8177 = vpop.f32.mrb[0].mxu0
      %8178 = vmatprep.mubr.f32.mxu0 0.0
      %8179 = vmatmul.mubr.f32.gmra.mrb[0].mxu0 %v8089
      %v8180 = vpop.f32.mrb[0].mxu0
      %v8181 = vadd.f32 0.0, %v8180
      %v8182 = vpop.f32.mrb[0].mxu0
      %8183 = vmatprep.mubr.f32.mxu0 0.0
      %8184 = vmatmul.mubr.f32.gmra.mrb[0].mxu0 %v8092
      %v8185 = vpop.f32.mrb[0].mxu0
      %v8186 = vadd.f32 0.0, %v8185
      %v8187 = vpop.f32.mrb[0].mxu0
      %8188 = vmatprep.mubr.f32.mxu0 0.0
      %8189 = vmatmul.mubr.f32.gmra.mrb[0].mxu0 %v8095
      %v8190 = vpop.f32.mrb[0].mxu0
      %v8191 = vadd.f32 0.0, %v8190
      %v8192 = vpop.f32.mrb[0].mxu0
      %8193 = vmatprep.mubr.f32.mxu0 0.0
      %8194 = vmatmul.mubr.f32.gmra.mrb[0].mxu0 %v8098
      %v8195 = vpop.f32.mrb[0].mxu0
      %v8196 = vadd.f32 0.0, %v8195
      %v8197 = vpop.f32.mrb[0].mxu0
      %8198 = vmatprep.mubr.f32.mxu0 0.0
      %8199 = vmatmul.mubr.f32.gmra.mrb[0].mxu0 %v8101
      %v8200 = vpop.f32.mrb[0].mxu0
      %v8201 = vadd.f32 0.0, %v8200
      %v8202 = vpop.f32.mrb[0].mxu0
      %8203 = vmatprep.mubr.f32.mxu0 0.0
      %8204 = vmatmul.mubr.f32.gmra.mrb[0].mxu0 %v8104
      %v8205 = vpop.f32.mrb[0].mxu0
      %v8206 = vadd.f32 0.0, %v8205
      %v8207 = vpop.f32.mrb[0].mxu0
      %8208 = vmatprep.mubr.f32.mxu0 0.0
      %8209 = vmatmul.mubr.f32.gmra.mrb[0].mxu0 %v8107
      %v8210 = vpop.f32.mrb[0].mxu0
      %v8211 = vadd.f32 0.0, %v8210
      %v8212 = vpop.f32.mrb[0].mxu0
      %8213 = vdwg.mxu0
      %v8214 = vsub.f32 %v8176, %v5020
      %v8215 = vsub.f32 %v8181, %v5021
      %v8216 = vsub.f32 %v8186, %v5022
      %v8217 = vsub.f32 %v8191, %v5023
      %v8218 = vsub.f32 %v8196, %v5024
      %v8219 = vsub.f32 %v8201, %v5025
      %v8220 = vsub.f32 %v8206, %v5026
      %v8221 = vsub.f32 %v8211, %v5027
      %v8222 = vpack.c.bf16 %v8215, %v8214
      %v8223 = vpack.c.bf16 %v8217, %v8216
      %v8224 = vpack.c.bf16 %v8219, %v8218
      %v8225 = vpack.c.bf16 %v8221, %v8220
      %v8227 = vsel %vm671, %v8222, 0
      %v8230 = vsel %vm671, %v8223, 0
      %v8233 = vsel %vm671, %v8224, 0
      %v8236 = vsel %vm671, %v8225, 0
      %8238 = vmatprep.subr.bf16.mxu0 %v5629
      %8239 = vmatpush1.bf16.msra.mxu0 %v5628
      %8240 = vmatprep.subr.bf16.mxu0 %v5631
      %8241 = vmatpush1.bf16.msra.mxu0 %v5630
      %8242 = vmatprep.subr.bf16.mxu0 %v5633
      %8243 = vmatpush1.bf16.msra.mxu0 %v5632
      %8244 = vmatprep.subr.bf16.mxu0 %v5635
      %8245 = vmatpush1.bf16.msra.mxu0 %v5634
      %8246 = vmatprep.subr.bf16.mxu0 0
      %8247 = vmatpush1.bf16.msra.mxu0 0
      %8248 = vmatprep.subr.bf16.mxu0 0
      %8249 = vmatpush1.bf16.msra.mxu0 0
      %8250 = vmatprep.subr.bf16.mxu0 0
      %8251 = vmatpush1.bf16.msra.mxu0 0
      %8252 = vmatprep.subr.bf16.mxu0 0
      %8253 = vmatpush1.bf16.msra.mxu0 0
      %8254 = vmatprep.subr.bf16.mxu0 0
      %8255 = vmatpush1.bf16.msra.mxu0 0
      %8256 = vmatprep.subr.bf16.mxu0 0
      %8257 = vmatpush1.bf16.msra.mxu0 0
      %8258 = vmatprep.subr.bf16.mxu0 0
      %8259 = vmatpush1.bf16.msra.mxu0 0
      %8260 = vmatprep.subr.bf16.mxu0 0
      %8261 = vmatpush1.bf16.msra.mxu0 0
      %8262 = vmatprep.subr.bf16.mxu0 0
      %8263 = vmatpush1.bf16.msra.mxu0 0
      %8264 = vmatprep.subr.bf16.mxu0 0
      %8265 = vmatpush1.bf16.msra.mxu0 0
      %8266 = vmatprep.subr.bf16.mxu0 0
      %8267 = vmatpush1.bf16.msra.mxu0 0
      %8268 = vmatprep.subr.bf16.mxu0 0
      %8269 = vmatpush1.bf16.msra.mxu0 0
      %8270 = vmatprep.mubr.bf16.mxu0 0
      %8271 = vmatmul.mubr.bf16.gmra.mrb[0].mxu0 %v8227
      %v8272 = vpop.f32.mrb[0].mxu0
      %v8273 = vadd.f32 0.0, %v8272
      %v8274 = vpop.f32.mrb[0].mxu0
      %v8275 = vadd.f32 0.0, %v8274
      %v8276 = vpop.f32.mrb[0].mxu0
      %v8277 = vadd.f32 0.0, %v8276
      %v8278 = vpop.f32.mrb[0].mxu0
      %v8279 = vadd.f32 0.0, %v8278
      %8280 = vmatprep.mubr.bf16.mxu0 0
      %8281 = vmatmul.mubr.bf16.gmra.mrb[0].mxu0 %v8230
      %v8282 = vpop.f32.mrb[0].mxu0
      %v8283 = vadd.f32 0.0, %v8282
      %v8284 = vpop.f32.mrb[0].mxu0
      %v8285 = vadd.f32 0.0, %v8284
      %v8286 = vpop.f32.mrb[0].mxu0
      %v8287 = vadd.f32 0.0, %v8286
      %v8288 = vpop.f32.mrb[0].mxu0
      %v8289 = vadd.f32 0.0, %v8288
      %8290 = vmatprep.mubr.bf16.mxu0 0
      %8291 = vmatmul.mubr.bf16.gmra.mrb[0].mxu0 %v8233
      %v8292 = vpop.f32.mrb[0].mxu0
      %v8293 = vadd.f32 0.0, %v8292
      %v8294 = vpop.f32.mrb[0].mxu0
      %v8295 = vadd.f32 0.0, %v8294
      %v8296 = vpop.f32.mrb[0].mxu0
      %v8297 = vadd.f32 0.0, %v8296
      %v8298 = vpop.f32.mrb[0].mxu0
      %v8299 = vadd.f32 0.0, %v8298
      %8300 = vmatprep.mubr.bf16.mxu0 0
      %8301 = vmatmul.mubr.bf16.gmra.mrb[0].mxu0 %v8236
      %v8302 = vpop.f32.mrb[0].mxu0
      %v8303 = vadd.f32 0.0, %v8302
      %v8304 = vpop.f32.mrb[0].mxu0
      %v8305 = vadd.f32 0.0, %v8304
      %v8306 = vpop.f32.mrb[0].mxu0
      %v8307 = vadd.f32 0.0, %v8306
      %v8308 = vpop.f32.mrb[0].mxu0
      %v8309 = vadd.f32 0.0, %v8308
      %8310 = vdwg.mxu0
      %v8311 = vadd.f32 %v5329, %v8273
      %v8312 = vadd.f32 %v5331, %v8275
      %v8313 = vadd.f32 %v5333, %v8277
      %v8314 = vadd.f32 %v5335, %v8279
      %v8315 = vadd.f32 %v5339, %v8283
      %v8316 = vadd.f32 %v5341, %v8285
      %v8317 = vadd.f32 %v5343, %v8287
      %v8318 = vadd.f32 %v5345, %v8289
      %v8319 = vadd.f32 %v5349, %v8293
      %v8320 = vadd.f32 %v5351, %v8295
      %v8321 = vadd.f32 %v5353, %v8297
      %v8322 = vadd.f32 %v5355, %v8299
      %v8323 = vadd.f32 %v5359, %v8303
      %v8324 = vadd.f32 %v5361, %v8305
      %v8325 = vadd.f32 %v5363, %v8307
      %v8326 = vadd.f32 %v5365, %v8309
      %v8327 = vmax.f32 %v8311, 0.0
      %v8328 = vmax.f32 %v8312, 0.0
      %v8329 = vmax.f32 %v8313, 0.0
      %v8330 = vmax.f32 %v8314, 0.0
      %v8331 = vmax.f32 %v8315, 0.0
      %v8332 = vmax.f32 %v8316, 0.0
      %v8333 = vmax.f32 %v8317, 0.0
      %v8334 = vmax.f32 %v8318, 0.0
      %v8335 = vmax.f32 %v8319, 0.0
      %v8336 = vmax.f32 %v8320, 0.0
      %v8337 = vmax.f32 %v8321, 0.0
      %v8338 = vmax.f32 %v8322, 0.0
      %v8339 = vmax.f32 %v8323, 0.0
      %v8340 = vmax.f32 %v8324, 0.0
      %v8341 = vmax.f32 %v8325, 0.0
      %v8342 = vmax.f32 %v8326, 0.0
      %v8343 = vmax.f32 %v7981, %v8327
      %v8344 = vmax.f32 %v7982, %v8328
      %v8345 = vmax.f32 %v7983, %v8329
      %v8346 = vmax.f32 %v7984, %v8330
      %v8347 = vmax.f32 %v7985, %v8331
      %v8348 = vmax.f32 %v7986, %v8332
      %v8349 = vmax.f32 %v7987, %v8333
      %v8350 = vmax.f32 %v7988, %v8334
      %v8351 = vmax.f32 %v7989, %v8335
      %v8352 = vmax.f32 %v7990, %v8336
      %v8353 = vmax.f32 %v7991, %v8337
      %v8354 = vmax.f32 %v7992, %v8338
      %v8355 = vmax.f32 %v7993, %v8339
      %v8356 = vmax.f32 %v7994, %v8340
      %v8357 = vmax.f32 %v7995, %v8341
      %v8358 = vmax.f32 %v7996, %v8342
      %vm8359 = vcmp.eq.s32.totalorder %v484, 0
      %vm8360 = vcmp.eq.s32.totalorder %v485, 0
      %vm8361 = vcmp.eq.s32.totalorder %v486, 0
      %vm8362 = vcmp.eq.s32.totalorder %v487, 0
      %vm8363 = vcmp.eq.s32.totalorder %v488, 0
      %vm8364 = vcmp.eq.s32.totalorder %v489, 0
      %vm8365 = vcmp.eq.s32.totalorder %v490, 0
      %vm8366 = vcmp.eq.s32.totalorder %v491, 0
      %v8367 = vsel %vm8359, 1, 0
      %v8368 = vsel %vm8360, 1, 0
      %v8369 = vsel %vm8361, 1, 0
      %v8370 = vsel %vm8362, 1, 0
      %v8371 = vsel %vm8363, 1, 0
      %v8372 = vsel %vm8364, 1, 0
      %v8373 = vsel %vm8365, 1, 0
      %v8374 = vsel %vm8366, 1, 0
      %8375 = vset.pattern.permute.xlu0 0
      %8376 = vperm.xlu0 %8375, %v8367
      %v8377 = vpop.permute.xlu0 %8376
      %8378 = vset.pattern.permute.xlu0 0
      %8379 = vperm.xlu0 %8378, %v8368
      %v8380 = vpop.permute.xlu0 %8379
      %8381 = vset.pattern.permute.xlu0 0
      %8382 = vperm.xlu0 %8381, %v8369
      %v8383 = vpop.permute.xlu0 %8382
      %8384 = vset.pattern.permute.xlu0 0
      %8385 = vperm.xlu0 %8384, %v8370
      %v8386 = vpop.permute.xlu0 %8385
      %8387 = vset.pattern.permute.xlu0 0
      %8388 = vperm.xlu0 %8387, %v8371
      %v8389 = vpop.permute.xlu0 %8388
      %8390 = vset.pattern.permute.xlu0 0
      %8391 = vperm.xlu0 %8390, %v8372
      %v8392 = vpop.permute.xlu0 %8391
      %8393 = vset.pattern.permute.xlu0 0
      %8394 = vperm.xlu0 %8393, %v8373
      %v8395 = vpop.permute.xlu0 %8394
      %8396 = vset.pattern.permute.xlu0 0
      %8397 = vperm.xlu0 %8396, %v8374
      %v8398 = vpop.permute.xlu0 %8397
      %vm8399 = vcmp.eq.s32.totalorder %v8377, 1
      %vm8400 = vcmp.eq.s32.totalorder %v8380, 1
      %vm8401 = vcmp.eq.s32.totalorder %v8383, 1
      %vm8402 = vcmp.eq.s32.totalorder %v8386, 1
      %vm8403 = vcmp.eq.s32.totalorder %v8389, 1
      %vm8404 = vcmp.eq.s32.totalorder %v8392, 1
      %vm8405 = vcmp.eq.s32.totalorder %v8395, 1
      %vm8406 = vcmp.eq.s32.totalorder %v8398, 1
      %v8407 = vsel %vm8399, %v8343, -1e+30
      %v8408 = vsel %vm8399, %v8344, -1e+30
      %v8409 = vsel %vm8400, %v8345, -1e+30
      %v8410 = vsel %vm8400, %v8346, -1e+30
      %v8411 = vsel %vm8401, %v8347, -1e+30
      %v8412 = vsel %vm8401, %v8348, -1e+30
      %v8413 = vsel %vm8402, %v8349, -1e+30
      %v8414 = vsel %vm8402, %v8350, -1e+30
      %v8415 = vsel %vm8403, %v8351, -1e+30
      %v8416 = vsel %vm8403, %v8352, -1e+30
      %v8417 = vsel %vm8404, %v8353, -1e+30
      %v8418 = vsel %vm8404, %v8354, -1e+30
      %v8419 = vsel %vm8405, %v8355, -1e+30
      %v8420 = vsel %vm8405, %v8356, -1e+30
      %v8421 = vsel %vm8406, %v8357, -1e+30
      %v8422 = vsel %vm8406, %v8358, -1e+30
      %v8423 = vmax.f32 %v8407, %v8411
      %v8424 = vmax.f32 %v8409, %v8413
      %v8425 = vmax.f32 %v8423, %v8415
      %v8426 = vmax.f32 %v8424, %v8417
      %v8427 = vmax.f32 %v8425, %v8419
      %v8428 = vmax.f32 %v8426, %v8421
      %v8429 = vmax.f32 %v8427, %v8428
      %v8430 = vrot.slane %v8429, 4
      %v8431 = vmax.f32 %v8429, %v8430
      %v8432 = vrot.slane %v8431, 2
      %v8433 = vmax.f32 %v8431, %v8432
      %v8434 = vrot.slane %v8433, 1
      %v8435 = vmax.f32 %v8433, %v8434
      %v8436 = vmax.f32 %v8408, %v8412
      %v8437 = vmax.f32 %v8410, %v8414
      %v8438 = vmax.f32 %v8436, %v8416
      %v8439 = vmax.f32 %v8437, %v8418
      %v8440 = vmax.f32 %v8438, %v8420
      %v8441 = vmax.f32 %v8439, %v8422
      %v8442 = vmax.f32 %v8440, %v8441
      %v8443 = vrot.slane %v8442, 4
      %v8444 = vmax.f32 %v8442, %v8443
      %v8445 = vrot.slane %v8444, 2
      %v8446 = vmax.f32 %v8444, %v8445
      %v8447 = vrot.slane %v8446, 1
      %v8448 = vmax.f32 %v8446, %v8447
      %vm8449 = vcmp.eq.s32.totalorder %v484, 1
      %vm8450 = vcmp.eq.s32.totalorder %v485, 1
      %vm8451 = vcmp.eq.s32.totalorder %v486, 1
      %vm8452 = vcmp.eq.s32.totalorder %v487, 1
      %vm8453 = vcmp.eq.s32.totalorder %v488, 1
      %vm8454 = vcmp.eq.s32.totalorder %v489, 1
      %vm8455 = vcmp.eq.s32.totalorder %v490, 1
      %vm8456 = vcmp.eq.s32.totalorder %v491, 1
      %v8457 = vsel %vm8449, 1, 0
      %v8458 = vsel %vm8450, 1, 0
      %v8459 = vsel %vm8451, 1, 0
      %v8460 = vsel %vm8452, 1, 0
      %v8461 = vsel %vm8453, 1, 0
      %v8462 = vsel %vm8454, 1, 0
      %v8463 = vsel %vm8455, 1, 0
      %v8464 = vsel %vm8456, 1, 0
      %8465 = vset.pattern.permute.xlu0 0
      %8466 = vperm.xlu0 %8465, %v8457
      %v8467 = vpop.permute.xlu0 %8466
      %8468 = vset.pattern.permute.xlu0 0
      %8469 = vperm.xlu0 %8468, %v8458
      %v8470 = vpop.permute.xlu0 %8469
      %8471 = vset.pattern.permute.xlu0 0
      %8472 = vperm.xlu0 %8471, %v8459
      %v8473 = vpop.permute.xlu0 %8472
      %8474 = vset.pattern.permute.xlu0 0
      %8475 = vperm.xlu0 %8474, %v8460
      %v8476 = vpop.permute.xlu0 %8475
      %8477 = vset.pattern.permute.xlu0 0
      %8478 = vperm.xlu0 %8477, %v8461
      %v8479 = vpop.permute.xlu0 %8478
      %8480 = vset.pattern.permute.xlu0 0
      %8481 = vperm.xlu0 %8480, %v8462
      %v8482 = vpop.permute.xlu0 %8481
      %8483 = vset.pattern.permute.xlu0 0
      %8484 = vperm.xlu0 %8483, %v8463
      %v8485 = vpop.permute.xlu0 %8484
      %8486 = vset.pattern.permute.xlu0 0
      %8487 = vperm.xlu0 %8486, %v8464
      %v8488 = vpop.permute.xlu0 %8487
      %vm8489 = vcmp.eq.s32.totalorder %v8467, 1
      %vm8490 = vcmp.eq.s32.totalorder %v8470, 1
      %vm8491 = vcmp.eq.s32.totalorder %v8473, 1
      %vm8492 = vcmp.eq.s32.totalorder %v8476, 1
      %vm8493 = vcmp.eq.s32.totalorder %v8479, 1
      %vm8494 = vcmp.eq.s32.totalorder %v8482, 1
      %vm8495 = vcmp.eq.s32.totalorder %v8485, 1
      %vm8496 = vcmp.eq.s32.totalorder %v8488, 1
      %v8497 = vsel %vm8489, %v8343, -1e+30
      %v8498 = vsel %vm8489, %v8344, -1e+30
      %v8499 = vsel %vm8490, %v8345, -1e+30
      %v8500 = vsel %vm8490, %v8346, -1e+30
      %v8501 = vsel %vm8491, %v8347, -1e+30
      %v8502 = vsel %vm8491, %v8348, -1e+30
      %v8503 = vsel %vm8492, %v8349, -1e+30
      %v8504 = vsel %vm8492, %v8350, -1e+30
      %v8505 = vsel %vm8493, %v8351, -1e+30
      %v8506 = vsel %vm8493, %v8352, -1e+30
      %v8507 = vsel %vm8494, %v8353, -1e+30
      %v8508 = vsel %vm8494, %v8354, -1e+30
      %v8509 = vsel %vm8495, %v8355, -1e+30
      %v8510 = vsel %vm8495, %v8356, -1e+30
      %v8511 = vsel %vm8496, %v8357, -1e+30
      %v8512 = vsel %vm8496, %v8358, -1e+30
      %v8513 = vmax.f32 %v8497, %v8501
      %v8514 = vmax.f32 %v8499, %v8503
      %v8515 = vmax.f32 %v8513, %v8505
      %v8516 = vmax.f32 %v8514, %v8507
      %v8517 = vmax.f32 %v8515, %v8509
      %v8518 = vmax.f32 %v8516, %v8511
      %v8519 = vmax.f32 %v8517, %v8518
      %v8520 = vrot.slane %v8519, 4
      %v8521 = vmax.f32 %v8519, %v8520
      %v8522 = vrot.slane %v8521, 2
      %v8523 = vmax.f32 %v8521, %v8522
      %v8524 = vrot.slane %v8523, 1
      %v8525 = vmax.f32 %v8523, %v8524
      %v8526 = vmax.f32 %v8498, %v8502
      %v8527 = vmax.f32 %v8500, %v8504
      %v8528 = vmax.f32 %v8526, %v8506
      %v8529 = vmax.f32 %v8527, %v8508
      %v8530 = vmax.f32 %v8528, %v8510
      %v8531 = vmax.f32 %v8529, %v8512
      %v8532 = vmax.f32 %v8530, %v8531
      %v8533 = vrot.slane %v8532, 4
      %v8534 = vmax.f32 %v8532, %v8533
      %v8535 = vrot.slane %v8534, 2
      %v8536 = vmax.f32 %v8534, %v8535
      %v8537 = vrot.slane %v8536, 1
      %v8538 = vmax.f32 %v8536, %v8537
      %vm8539 = vcmask 1040384
      %v8540 = vsel %vm8539, %v8435, %v8525
      %v8541 = vsel %vm8539, %v8448, %v8538
      %v8544 = vcombine.low %v8540, %v8541
      %v8546 = vunpack.c.l.s4 1983009808
      %v8547 = vunpack.c.0.s8 %v8546
      %v8548 = vlaneseq
      %v8549 = vshrl.u32 %v8548, 7
      %v8550 = vsub.s32 %v8547, %v8549
      %v8551 = vrot.slane %v8544, %v8550
      %8553 = vst [vmem:[%s474] sm:$0xf] %v8551
      %p8554 = scmp.lt.s32.totalorder %s24, 1
      %s8555 = scalar_select %p8554, %s24, 1
      %s8556 = smul.addr %s8555, 2
      %s8557 = smul.addr %s8556, 2
      %s8558 = scalar_lea.vmem %s13, %s8557
      // Predicated region
      $region73: #{net2_forward.2} parent=71 // pred_check
        %p8559 = pneg %p330
      $region74: #{net2_forward.2} parent=71 // pred_check_branch
        %8561 = sbr.rel (%p8559) target = $region76
      $region75: #{net2_forward.2} parent=71 // pred_region
        _
      $region76: #{net2_forward.2} parent=71 // pred_fallthru
        _
    $region72: #{net2_forward.2} parent=5 // pred_fallthru
      _
    %p8562 = scmp.le.s32.totalorder 2, %s19
    // Predicated region
    $region77: #{net2_forward.2} parent=5 // pred_check
      %p8563 = pneg %p8562
    $region78: #{net2_forward.2} parent=5 // pred_check_branch
      %8565 = sbr.rel (%p8563) target = $region80
    $region79: #{net2_forward.2} parent=5 // pred_region
      %s8566 = ssub.s32 %s19, 2
      // Predicated region
      $region81: #{net2_forward.2} parent=79 // pred_check
        %p8567 = pneg %p336
      $region82: #{net2_forward.2} parent=79 // pred_check_branch
        %8569 = sbr.rel (%p8567) target = $region84
      $region83: #{net2_forward.2} parent=79 // pred_region
        %p8570 = scmp.lt.s32.totalorder %s25, 1
        %s8571 = scalar_select %p8570, %s25, 1
        %s8572 = smul.addr %s8571, 2
        %s8573 = smul.addr %s8572, 2
        %s8574 = scalar_lea.vmem %s13, %s8573
      $region84: #{net2_forward.2} parent=79 // pred_fallthru
        _
    $region80: #{net2_forward.2} parent=5 // pred_fallthru
      _
  $region6: #{net2_forward.2} parent=0 // loop_footer
    %s23 = sadd.s32 1, %s19
  $region7: #{net2_forward.2} parent=0 // loop_footer_branch
    %18 = sbr.rel target = $region3
  $region8: #{net2_forward.2} parent=0 // loop_exit
    _

</llo_original>
